<compile_context>
chip_gen: v5e
topology: v5e:2x2
jax: 0.10.0
libtpu: 0.0.40
codegen_flags: <defaults>
</compile_context>

<pallas_src>
import jax
import jax.numpy as jnp
from jax.experimental import pallas as pl
from jax.experimental.pallas import tpu as pltpu


def _round_up(x, m):
    return (x + m - 1) // m * m


# ----------------------------------------------------------------------------
# Kernel 1: conv (im2col matmul, BN folded) + bias/shift + ReLU + 2x2 maxpool
# ----------------------------------------------------------------------------
def conv_bn_relu_pool(cols4, w, shift, *, tm_max=512):
    """out = relu( max_q(cols4[q] @ w) + shift )

    cols4: (4, M, K) bf16 -- leading axis = the 4 positions of each 2x2 pool window,
                             M = B*PH*PW pooled output pixels, K = 9*IC.
    w:     (K, OC) bf16    -- conv weight with BN scale folded in.
    shift: (OC,)   f32     -- conv_bias*bn_scale + bn_shift.
    returns (M, OC) bf16.

    The per-window affine epilogue is identical for all 4 taps and ReLU is monotone,
    so maxpool commutes with (+shift, relu) and can be fused as a 4-way max of matmuls.
    """
    _, M, K = cols4.shape
    OC = w.shape[1]

    TM = tm_max if M > tm_max else _round_up(M, 8)
    Mp = _round_up(M, TM)
    if Mp != M:
        cols4 = jnp.pad(cols4, ((0, 0), (0, Mp - M), (0, 0)))
    grid = (Mp // TM,)

    def kernel(c_ref, w_ref, t_ref, o_ref):
        wv = w_ref[...]
        a0 = jnp.dot(c_ref[0], wv, preferred_element_type=jnp.float32)
        a1 = jnp.dot(c_ref[1], wv, preferred_element_type=jnp.float32)
        a2 = jnp.dot(c_ref[2], wv, preferred_element_type=jnp.float32)
        a3 = jnp.dot(c_ref[3], wv, preferred_element_type=jnp.float32)
        m = jnp.maximum(jnp.maximum(a0, a1), jnp.maximum(a2, a3))
        o_ref[...] = jnp.maximum(m + t_ref[...], 0.0).astype(o_ref.dtype)

    bytes_accessed = (4 * Mp * K + K * OC + Mp * OC) * 2 + OC * 4
    out = pl.pallas_call(
        kernel,
        out_shape=jax.ShapeDtypeStruct((Mp, OC), jnp.bfloat16),
        grid=grid,
        in_specs=[
            pl.BlockSpec((4, TM, K), lambda i: (0, i, 0)),
            pl.BlockSpec((K, OC), lambda i: (0, 0)),
            pl.BlockSpec((1, OC), lambda i: (0, 0)),
        ],
        out_specs=pl.BlockSpec((TM, OC), lambda i: (i, 0)),
        compiler_params=pltpu.CompilerParams(
            dimension_semantics=("parallel",)),
        cost_estimate=pl.CostEstimate(
            flops=2 * 4 * Mp * K * OC,
            transcendentals=0,
            bytes_accessed=bytes_accessed),
    )(cols4, w, shift.reshape(1, OC).astype(jnp.float32))
    return out[:M]


# ----------------------------------------------------------------------------
# Kernel 2: fused FC head  fc1 -> (dropout = id) -> fc2 -> fc3 -> softmax
# ----------------------------------------------------------------------------
def fc_head_softmax(x, w1, b1, w2, b2, w3, b3):
    """x: (B, K1) bf16, weights (in, out) bf16, biases f32 -> (B, N3) f32 softmax probs."""
    B, K1 = x.shape
    N1 = w1.shape[1]
    N2 = w2.shape[1]
    N3 = w3.shape[1]

    TB = 256 if B > 256 else _round_up(B, 8)
    Bp = _round_up(B, TB)
    if Bp != B:
        x = jnp.pad(x, ((0, Bp - B), (0, 0)))
    grid = (Bp // TB,)

    def kernel(x_ref, w1_ref, b1_ref, w2_ref, b2_ref, w3_ref, b3_ref, o_ref):
        h = jnp.dot(x_ref[...], w1_ref[...],
                    preferred_element_type=jnp.float32) + b1_ref[...]
        # Dropout2d(0.25) is the identity at inference time.
        h = jnp.dot(h.astype(jnp.bfloat16), w2_ref[...],
                    preferred_element_type=jnp.float32) + b2_ref[...]
        h = jnp.dot(h.astype(jnp.bfloat16), w3_ref[...],
                    preferred_element_type=jnp.float32) + b3_ref[...]
        m = jnp.max(h, axis=-1, keepdims=True)
        e = jnp.exp(h - m)
        o_ref[...] = (e / jnp.sum(e, axis=-1, keepdims=True)).astype(o_ref.dtype)

    flops = 2 * Bp * (K1 * N1 + N1 * N2 + N2 * N3)
    bytes_accessed = ((Bp * K1 + K1 * N1 + N1 * N2 + N2 * N3) * 2
                      + (N1 + N2 + N3) * 4 + Bp * N3 * 4)
    out = pl.pallas_call(
        kernel,
        out_shape=jax.ShapeDtypeStruct((Bp, N3), jnp.float32),
        grid=grid,
        in_specs=[
            pl.BlockSpec((TB, K1), lambda i: (i, 0)),
            pl.BlockSpec((K1, N1), lambda i: (0, 0)),
            pl.BlockSpec((1, N1), lambda i: (0, 0)),
            pl.BlockSpec((N1, N2), lambda i: (0, 0)),
            pl.BlockSpec((1, N2), lambda i: (0, 0)),
            pl.BlockSpec((N2, N3), lambda i: (0, 0)),
            pl.BlockSpec((1, N3), lambda i: (0, 0)),
        ],
        out_specs=pl.BlockSpec((TB, N3), lambda i: (i, 0)),
        compiler_params=pltpu.CompilerParams(
            dimension_semantics=("parallel",)),
        cost_estimate=pl.CostEstimate(
            flops=flops, transcendentals=Bp * N3, bytes_accessed=bytes_accessed),
    )(x, w1, b1.reshape(1, N1), w2, b2.reshape(1, N2), w3, b3.reshape(1, N3))
    return out[:B]


# ----------------------------------------------------------------------------
# Glue: im2col grouped by 2x2 pool window, BN folding, parameters, forward
# ----------------------------------------------------------------------------
def im2col_pool_groups(x_nhwc, pad):
    """3x3-conv im2col with rows grouped by 2x2 maxpool window.

    (B,H,W,C) -> (4, B*PH*PW, 9*C). Patch column ordering is (kh, kw, c); the leading
    axis enumerates the (dy,dx) position of the conv-output pixel inside its pool window.
    """
    if pad:
        x_nhwc = jnp.pad(x_nhwc, ((0, 0), (pad, pad), (pad, pad), (0, 0)))
    B, H, W, C = x_nhwc.shape
    oh, ow = H - 2, W - 2
    ph, pw = oh // 2, ow // 2
    patches = [x_nhwc[:, i:i + oh, j:j + ow, :] for i in range(3) for j in range(3)]
    p = jnp.stack(patches, axis=3).reshape(B, oh, ow, 9 * C)
    p = p[:, :ph * 2, :pw * 2, :]                              # floor-pool (no-op here)
    p = p.reshape(B, ph, 2, pw, 2, 9 * C).transpose(2, 4, 0, 1, 3, 5)
    return p.reshape(4, B * ph * pw, 9 * C), (B, ph, pw)


def fold_bn(gamma, beta, mean, var, eps=1e-5):
    scale = gamma / jnp.sqrt(var + eps)
    shift = beta - mean * scale
    return scale, shift


def make_params(key):
    ks = jax.random.split(key, 16)
    f32, bf16 = jnp.float32, jnp.bfloat16

    def normal(k, shape, std):
        return (std * jax.random.normal(k, shape)).astype(f32)

    p = {}

    # ---- layer1: Conv2d(1, 32, 3, padding=1) + BatchNorm2d(32) ----
    w1 = normal(ks[0], (32, 1, 3, 3), 0.1)                 # PyTorch layout (OC, IC, KH, KW)
    b1 = normal(ks[1], (32,), 0.05)
    g1 = 1.0 + 0.1 * jax.random.normal(ks[2], (32,)).astype(f32)
    be1 = normal(ks[3], (32,), 0.05)
    mu1 = normal(ks[4], (32,), 0.05)
    v1 = 1.0 + 0.1 * jnp.abs(jax.random.normal(ks[5], (32,))).astype(f32)
    s1, t1 = fold_bn(g1, be1, mu1, v1)
    w1_mat = jnp.transpose(w1, (2, 3, 1, 0)).reshape(9 * 1, 32)   # rows in (kh, kw, ic)
    p["w1"] = (w1_mat * s1[None, :]).astype(bf16)          # BN scale folded into weights
    p["t1"] = (b1 * s1 + t1).astype(f32)                   # bias + BN shift folded together

    # ---- layer2: Conv2d(32, 64, 3) + BatchNorm2d(64) ----
    w2 = normal(ks[6], (64, 32, 3, 3), 0.05)
    b2 = normal(ks[7], (64,), 0.05)
    g2 = 1.0 + 0.1 * jax.random.normal(ks[8], (64,)).astype(f32)
    be2 = normal(ks[9], (64,), 0.05)
    mu2 = normal(ks[10], (64,), 0.05)
    v2 = 1.0 + 0.1 * jnp.abs(jax.random.normal(ks[11], (64,))).astype(f32)
    s2, t2 = fold_bn(g2, be2, mu2, v2)
    w2_mat = jnp.transpose(w2, (2, 3, 1, 0)).reshape(9 * 32, 64)
    p["w2"] = (w2_mat * s2[None, :]).astype(bf16)
    p["t2"] = (b2 * s2 + t2).astype(f32)

    # ---- fc1: permute rows from PyTorch's (c,h,w) flatten order to our NHWC (h,w,c) ----
    wf1_torch = normal(ks[12], (600, 64 * 6 * 6), 0.02)    # PyTorch (out, in), in = (c,h,w)
    wf1 = wf1_torch.reshape(600, 64, 6, 6).transpose(2, 3, 1, 0).reshape(64 * 6 * 6, 600)
    p["wf1"] = wf1.astype(bf16)
    p["bf1"] = jnp.zeros((600,), f32)
    p["wf2"] = normal(ks[13], (600, 120), 0.05).astype(bf16)
    p["bf2"] = jnp.zeros((120,), f32)
    p["wf3"] = normal(ks[14], (120, 10), 0.1).astype(bf16)
    p["bf3"] = jnp.zeros((10,), f32)
    return p


def fashion_cnn_forward(x_nchw, p):
    # NCHW -> NHWC, bf16 for native-MXU matmuls (accumulation stays f32 in-kernel).
    x = jnp.transpose(x_nchw, (0, 2, 3, 1)).astype(jnp.bfloat16)

    # ---- layer1: conv(1->32, k3, pad1) + BN + ReLU + maxpool2x2, one fused kernel ----
    cols, (b, ph, pw) = im2col_pool_groups(x, pad=1)       # (4, B*14*14, 9)
    y = conv_bn_relu_pool(cols, p["w1"], p["t1"])          # (B*14*14, 32) bf16
    y = y.reshape(b, ph, pw, 32)                           # (B, 14, 14, 32)

    # ---- layer2: conv(32->64, k3, pad0) + BN + ReLU + maxpool2x2, one fused kernel ----
    cols, (b, ph, pw) = im2col_pool_groups(y, pad=0)       # (4, B*6*6, 288)
    y = conv_bn_relu_pool(cols, p["w2"], p["t2"])          # (B*6*6, 64) bf16

    # Rows are already (b, h, w)-ordered with channels last and wf1's rows were permuted
    # to (h, w, c) order at build time -> plain reshape, no NCHW transpose on the hot path.
    y = y.reshape(b, ph * pw * 64)                         # (B, 2304)

    # ---- fc1 -> dropout(eval: identity) -> fc2 -> fc3 -> softmax, one fused kernel ----
    return fc_head_softmax(y, p["wf1"], p["bf1"], p["wf2"], p["bf2"],
                           p["wf3"], p["bf3"])


if __name__ == "__main__":
    key = jax.random.PRNGKey(0)
    k_x, k_p = jax.random.split(key)
    # FashionMNIST-sized input (the FC dimensions of the module require 1x28x28).
    x = jax.random.normal(k_x, (2, 1, 28, 28), dtype=jnp.float32)
    params = make_params(k_p)

    fwd = jax.jit(fashion_cnn_forward)
    out = jax.block_until_ready(fwd(x, params))

    assert out.shape == (2, 10)
    assert bool(jnp.all(jnp.isfinite(out)))
    # softmax rows sum to 1
    assert bool(jnp.allclose(jnp.sum(out, axis=-1), 1.0, atol=1e-5))
    print("KERNEL_OK")
</pallas_src>

<mosaic_0001>
module attributes {stable_mosaic.version = 11 : i64} {
  func.func @kernel(%arg0: i32, %arg1: memref<4x392x9xbf16, #tpu.memory_space<vmem>>, %arg2: memref<9x32xbf16, #tpu.memory_space<vmem>>, %arg3: memref<1x32xf32, #tpu.memory_space<vmem>>, %arg4: memref<392x32xbf16, #tpu.memory_space<vmem>>) attributes {dimension_semantics = [#tpu.dimension_semantics<parallel>], iteration_bounds = array<i64: 1>, scalar_prefetch = 0 : i64, scratch_operands = 0 : i64, tpu.core_type = #tpu.core_type<tc>, window_params = [{transform_indices = @transform_0, window_bounds = array<i64: 4, 392, 9>}, {pipeline_mode = #tpu.pipeline_mode<synchronous>, transform_indices = @transform_1, window_bounds = array<i64: 9, 32>}, {pipeline_mode = #tpu.pipeline_mode<synchronous>, transform_indices = @transform_2, window_bounds = array<i64: 1, 32>}, {transform_indices = @transform_3, window_bounds = array<i64: 392, 32>}]} {
    %c0 = arith.constant 0 : index
    %c0_0 = arith.constant 0 : index
    %0 = vector.load %arg2[%c0, %c0_0] : memref<9x32xbf16, #tpu.memory_space<vmem>>, vector<9x32xbf16>
    %c0_1 = arith.constant 0 : index
    %c0_2 = arith.constant 0 : index
    %c0_3 = arith.constant 0 : index
    %1 = vector.load %arg1[%c0_1, %c0_2, %c0_3] : memref<4x392x9xbf16, #tpu.memory_space<vmem>>, vector<1x392x9xbf16>
    %2 = vector.shape_cast %1 : vector<1x392x9xbf16> to vector<392x9xbf16>
    %cst = arith.constant dense<0.000000e+00> : vector<392x32xf32>
    %3 = tpu.matmul %2, %0, %cst {dimension_numbers = #tpu.dot_dimension_numbers<[1], [0], [0], [1], [0, 0, 1, 1], [], []>} : vector<392x9xbf16>, vector<9x32xbf16>, vector<392x32xf32> -> vector<392x32xf32>
    %c1 = arith.constant 1 : index
    %c0_4 = arith.constant 0 : index
    %c0_5 = arith.constant 0 : index
    %4 = vector.load %arg1[%c1, %c0_4, %c0_5] : memref<4x392x9xbf16, #tpu.memory_space<vmem>>, vector<1x392x9xbf16>
    %5 = vector.shape_cast %4 : vector<1x392x9xbf16> to vector<392x9xbf16>
    %cst_6 = arith.constant dense<0.000000e+00> : vector<392x32xf32>
    %6 = tpu.matmul %5, %0, %cst_6 {dimension_numbers = #tpu.dot_dimension_numbers<[1], [0], [0], [1], [0, 0, 1, 1], [], []>} : vector<392x9xbf16>, vector<9x32xbf16>, vector<392x32xf32> -> vector<392x32xf32>
    %c2 = arith.constant 2 : index
    %c0_7 = arith.constant 0 : index
    %c0_8 = arith.constant 0 : index
    %7 = vector.load %arg1[%c2, %c0_7, %c0_8] : memref<4x392x9xbf16, #tpu.memory_space<vmem>>, vector<1x392x9xbf16>
    %8 = vector.shape_cast %7 : vector<1x392x9xbf16> to vector<392x9xbf16>
    %cst_9 = arith.constant dense<0.000000e+00> : vector<392x32xf32>
    %9 = tpu.matmul %8, %0, %cst_9 {dimension_numbers = #tpu.dot_dimension_numbers<[1], [0], [0], [1], [0, 0, 1, 1], [], []>} : vector<392x9xbf16>, vector<9x32xbf16>, vector<392x32xf32> -> vector<392x32xf32>
    %c3 = arith.constant 3 : index
    %c0_10 = arith.constant 0 : index
    %c0_11 = arith.constant 0 : index
    %10 = vector.load %arg1[%c3, %c0_10, %c0_11] : memref<4x392x9xbf16, #tpu.memory_space<vmem>>, vector<1x392x9xbf16>
    %11 = vector.shape_cast %10 : vector<1x392x9xbf16> to vector<392x9xbf16>
    %cst_12 = arith.constant dense<0.000000e+00> : vector<392x32xf32>
    %12 = tpu.matmul %11, %0, %cst_12 {dimension_numbers = #tpu.dot_dimension_numbers<[1], [0], [0], [1], [0, 0, 1, 1], [], []>} : vector<392x9xbf16>, vector<9x32xbf16>, vector<392x32xf32> -> vector<392x32xf32>
    %13 = arith.maximumf %3, %6 : vector<392x32xf32>
    %14 = arith.maximumf %9, %12 : vector<392x32xf32>
    %15 = arith.maximumf %13, %14 : vector<392x32xf32>
    %c0_13 = arith.constant 0 : index
    %c0_14 = arith.constant 0 : index
    %16 = vector.load %arg3[%c0_13, %c0_14] : memref<1x32xf32, #tpu.memory_space<vmem>>, vector<1x32xf32>
    %17 = vector.broadcast %16 : vector<1x32xf32> to vector<392x32xf32>
    %18 = arith.addf %15, %17 : vector<392x32xf32>
    %cst_15 = arith.constant 0.000000e+00 : f32
    %19 = vector.broadcast %cst_15 : f32 to vector<392x32xf32>
    %20 = arith.maximumf %18, %19 : vector<392x32xf32>
    %21 = arith.truncf %20 : vector<392x32xf32> to vector<392x32xbf16>
    %c0_16 = arith.constant 0 : index
    %c0_17 = arith.constant 0 : index
    %22 = vector.load %arg4[%c0_16, %c0_17] : memref<392x32xbf16, #tpu.memory_space<vmem>>, vector<392x32xbf16>
    tpu.vector_store %arg4[%c0_16, %c0_17], %21 {strides = array<i32>} : memref<392x32xbf16, #tpu.memory_space<vmem>>, vector<392x32xbf16>,
    return
  }
  func.func @transform_0(%arg0: i32) -> (i32, i32, i32) {
    %c0_i32 = arith.constant 0 : i32
    %c0_i32_0 = arith.constant 0 : i32
    %c0_i32_1 = arith.constant 0 : i32
    return %c0_i32, %arg0, %c0_i32_0 : i32, i32, i32
  }
  func.func @transform_1(%arg0: i32) -> (i32, i32) {
    %c0_i32 = arith.constant 0 : i32
    %c0_i32_0 = arith.constant 0 : i32
    %c0_i32_1 = arith.constant 0 : i32
    return %c0_i32, %c0_i32_0 : i32, i32
  }
  func.func @transform_2(%arg0: i32) -> (i32, i32) {
    %c0_i32 = arith.constant 0 : i32
    %c0_i32_0 = arith.constant 0 : i32
    %c0_i32_1 = arith.constant 0 : i32
    return %c0_i32, %c0_i32_0 : i32, i32
  }
  func.func @transform_3(%arg0: i32) -> (i32, i32) {
    %c0_i32 = arith.constant 0 : i32
    %c0_i32_0 = arith.constant 0 : i32
    return %arg0, %c0_i32 : i32, i32
  }
}

module attributes {stable_mosaic.version = 11 : i64} {
  func.func @kernel(%arg0: i32, %arg1: memref<4x72x288xbf16, #tpu.memory_space<vmem>>, %arg2: memref<288x64xbf16, #tpu.memory_space<vmem>>, %arg3: memref<1x64xf32, #tpu.memory_space<vmem>>, %arg4: memref<72x64xbf16, #tpu.memory_space<vmem>>) attributes {dimension_semantics = [#tpu.dimension_semantics<parallel>], iteration_bounds = array<i64: 1>, scalar_prefetch = 0 : i64, scratch_operands = 0 : i64, tpu.core_type = #tpu.core_type<tc>, window_params = [{transform_indices = @transform_0, window_bounds = array<i64: 4, 72, 288>}, {pipeline_mode = #tpu.pipeline_mode<synchronous>, transform_indices = @transform_1, window_bounds = array<i64: 288, 64>}, {pipeline_mode = #tpu.pipeline_mode<synchronous>, transform_indices = @transform_2, window_bounds = array<i64: 1, 64>}, {transform_indices = @transform_3, window_bounds = array<i64: 72, 64>}]} {
    %c0 = arith.constant 0 : index
    %c0_0 = arith.constant 0 : index
    %0 = vector.load %arg2[%c0, %c0_0] : memref<288x64xbf16, #tpu.memory_space<vmem>>, vector<288x64xbf16>
    %c0_1 = arith.constant 0 : index
    %c0_2 = arith.constant 0 : index
    %c0_3 = arith.constant 0 : index
    %1 = vector.load %arg1[%c0_1, %c0_2, %c0_3] : memref<4x72x288xbf16, #tpu.memory_space<vmem>>, vector<1x72x288xbf16>
    %2 = vector.shape_cast %1 : vector<1x72x288xbf16> to vector<72x288xbf16>
    %cst = arith.constant dense<0.000000e+00> : vector<72x64xf32>
    %3 = tpu.matmul %2, %0, %cst {dimension_numbers = #tpu.dot_dimension_numbers<[1], [0], [0], [1], [0, 0, 1, 1], [], []>} : vector<72x288xbf16>, vector<288x64xbf16>, vector<72x64xf32> -> vector<72x64xf32>
    %c1 = arith.constant 1 : index
    %c0_4 = arith.constant 0 : index
    %c0_5 = arith.constant 0 : index
    %4 = vector.load %arg1[%c1, %c0_4, %c0_5] : memref<4x72x288xbf16, #tpu.memory_space<vmem>>, vector<1x72x288xbf16>
    %5 = vector.shape_cast %4 : vector<1x72x288xbf16> to vector<72x288xbf16>
    %cst_6 = arith.constant dense<0.000000e+00> : vector<72x64xf32>
    %6 = tpu.matmul %5, %0, %cst_6 {dimension_numbers = #tpu.dot_dimension_numbers<[1], [0], [0], [1], [0, 0, 1, 1], [], []>} : vector<72x288xbf16>, vector<288x64xbf16>, vector<72x64xf32> -> vector<72x64xf32>
    %c2 = arith.constant 2 : index
    %c0_7 = arith.constant 0 : index
    %c0_8 = arith.constant 0 : index
    %7 = vector.load %arg1[%c2, %c0_7, %c0_8] : memref<4x72x288xbf16, #tpu.memory_space<vmem>>, vector<1x72x288xbf16>
    %8 = vector.shape_cast %7 : vector<1x72x288xbf16> to vector<72x288xbf16>
    %cst_9 = arith.constant dense<0.000000e+00> : vector<72x64xf32>
    %9 = tpu.matmul %8, %0, %cst_9 {dimension_numbers = #tpu.dot_dimension_numbers<[1], [0], [0], [1], [0, 0, 1, 1], [], []>} : vector<72x288xbf16>, vector<288x64xbf16>, vector<72x64xf32> -> vector<72x64xf32>
    %c3 = arith.constant 3 : index
    %c0_10 = arith.constant 0 : index
    %c0_11 = arith.constant 0 : index
    %10 = vector.load %arg1[%c3, %c0_10, %c0_11] : memref<4x72x288xbf16, #tpu.memory_space<vmem>>, vector<1x72x288xbf16>
    %11 = vector.shape_cast %10 : vector<1x72x288xbf16> to vector<72x288xbf16>
    %cst_12 = arith.constant dense<0.000000e+00> : vector<72x64xf32>
    %12 = tpu.matmul %11, %0, %cst_12 {dimension_numbers = #tpu.dot_dimension_numbers<[1], [0], [0], [1], [0, 0, 1, 1], [], []>} : vector<72x288xbf16>, vector<288x64xbf16>, vector<72x64xf32> -> vector<72x64xf32>
    %13 = arith.maximumf %3, %6 : vector<72x64xf32>
    %14 = arith.maximumf %9, %12 : vector<72x64xf32>
    %15 = arith.maximumf %13, %14 : vector<72x64xf32>
    %c0_13 = arith.constant 0 : index
    %c0_14 = arith.constant 0 : index
    %16 = vector.load %arg3[%c0_13, %c0_14] : memref<1x64xf32, #tpu.memory_space<vmem>>, vector<1x64xf32>
    %17 = vector.broadcast %16 : vector<1x64xf32> to vector<72x64xf32>
    %18 = arith.addf %15, %17 : vector<72x64xf32>
    %cst_15 = arith.constant 0.000000e+00 : f32
    %19 = vector.broadcast %cst_15 : f32 to vector<72x64xf32>
    %20 = arith.maximumf %18, %19 : vector<72x64xf32>
    %21 = arith.truncf %20 : vector<72x64xf32> to vector<72x64xbf16>
    %c0_16 = arith.constant 0 : index
    %c0_17 = arith.constant 0 : index
    %22 = vector.load %arg4[%c0_16, %c0_17] : memref<72x64xbf16, #tpu.memory_space<vmem>>, vector<72x64xbf16>
    tpu.vector_store %arg4[%c0_16, %c0_17], %21 {strides = array<i32>} : memref<72x64xbf16, #tpu.memory_space<vmem>>, vector<72x64xbf16>,
    return
  }
  func.func @transform_0(%arg0: i32) -> (i32, i32, i32) {
    %c0_i32 = arith.constant 0 : i32
    %c0_i32_0 = arith.constant 0 : i32
    %c0_i32_1 = arith.constant 0 : i32
    return %c0_i32, %arg0, %c0_i32_0 : i32, i32, i32
  }
  func.func @transform_1(%arg0: i32) -> (i32, i32) {
    %c0_i32 = arith.constant 0 : i32
    %c0_i32_0 = arith.constant 0 : i32
    %c0_i32_1 = arith.constant 0 : i32
    return %c0_i32, %c0_i32_0 : i32, i32
  }
  func.func @transform_2(%arg0: i32) -> (i32, i32) {
    %c0_i32 = arith.constant 0 : i32
    %c0_i32_0 = arith.constant 0 : i32
    %c0_i32_1 = arith.constant 0 : i32
    return %c0_i32, %c0_i32_0 : i32, i32
  }
  func.func @transform_3(%arg0: i32) -> (i32, i32) {
    %c0_i32 = arith.constant 0 : i32
    %c0_i32_0 = arith.constant 0 : i32
    return %arg0, %c0_i32 : i32, i32
  }
}

module attributes {stable_mosaic.version = 11 : i64} {
  func.func @kernel(%arg0: i32, %arg1: memref<8x2304xbf16, #tpu.memory_space<vmem>>, %arg2: memref<2304x600xbf16, #tpu.memory_space<vmem>>, %arg3: memref<1x600xf32, #tpu.memory_space<vmem>>, %arg4: memref<600x120xbf16, #tpu.memory_space<vmem>>, %arg5: memref<1x120xf32, #tpu.memory_space<vmem>>, %arg6: memref<120x10xbf16, #tpu.memory_space<vmem>>, %arg7: memref<1x10xf32, #tpu.memory_space<vmem>>, %arg8: memref<8x10xf32, #tpu.memory_space<vmem>>) attributes {dimension_semantics = [#tpu.dimension_semantics<parallel>], iteration_bounds = array<i64: 1>, scalar_prefetch = 0 : i64, scratch_operands = 0 : i64, tpu.core_type = #tpu.core_type<tc>, window_params = [{transform_indices = @transform_0, window_bounds = array<i64: 8, 2304>}, {pipeline_mode = #tpu.pipeline_mode<synchronous>, transform_indices = @transform_1, window_bounds = array<i64: 2304, 600>}, {pipeline_mode = #tpu.pipeline_mode<synchronous>, transform_indices = @transform_2, window_bounds = array<i64: 1, 600>}, {pipeline_mode = #tpu.pipeline_mode<synchronous>, transform_indices = @transform_3, window_bounds = array<i64: 600, 120>}, {pipeline_mode = #tpu.pipeline_mode<synchronous>, transform_indices = @transform_4, window_bounds = array<i64: 1, 120>}, {pipeline_mode = #tpu.pipeline_mode<synchronous>, transform_indices = @transform_5, window_bounds = array<i64: 120, 10>}, {pipeline_mode = #tpu.pipeline_mode<synchronous>, transform_indices = @transform_6, window_bounds = array<i64: 1, 10>}, {transform_indices = @transform_7, window_bounds = array<i64: 8, 10>}]} {
    %c0 = arith.constant 0 : index
    %c0_0 = arith.constant 0 : index
    %0 = vector.load %arg1[%c0, %c0_0] : memref<8x2304xbf16, #tpu.memory_space<vmem>>, vector<8x2304xbf16>
    %c0_1 = arith.constant 0 : index
    %c0_2 = arith.constant 0 : index
    %1 = vector.load %arg2[%c0_1, %c0_2] : memref<2304x600xbf16, #tpu.memory_space<vmem>>, vector<2304x600xbf16>
    %cst = arith.constant dense<0.000000e+00> : vector<8x600xf32>
    %2 = tpu.matmul %0, %1, %cst {dimension_numbers = #tpu.dot_dimension_numbers<[1], [0], [0], [1], [0, 0, 1, 1], [], []>} : vector<8x2304xbf16>, vector<2304x600xbf16>, vector<8x600xf32> -> vector<8x600xf32>
    %c0_3 = arith.constant 0 : index
    %c0_4 = arith.constant 0 : index
    %3 = vector.load %arg3[%c0_3, %c0_4] : memref<1x600xf32, #tpu.memory_space<vmem>>, vector<1x600xf32>
    %4 = vector.broadcast %3 : vector<1x600xf32> to vector<8x600xf32>
    %5 = arith.addf %2, %4 : vector<8x600xf32>
    %6 = arith.truncf %5 : vector<8x600xf32> to vector<8x600xbf16>
    %c0_5 = arith.constant 0 : index
    %c0_6 = arith.constant 0 : index
    %7 = vector.load %arg4[%c0_5, %c0_6] : memref<600x120xbf16, #tpu.memory_space<vmem>>, vector<600x120xbf16>
    %cst_7 = arith.constant dense<0.000000e+00> : vector<8x120xf32>
    %8 = tpu.matmul %6, %7, %cst_7 {dimension_numbers = #tpu.dot_dimension_numbers<[1], [0], [0], [1], [0, 0, 1, 1], [], []>} : vector<8x600xbf16>, vector<600x120xbf16>, vector<8x120xf32> -> vector<8x120xf32>
    %c0_8 = arith.constant 0 : index
    %c0_9 = arith.constant 0 : index
    %9 = vector.load %arg5[%c0_8, %c0_9] : memref<1x120xf32, #tpu.memory_space<vmem>>, vector<1x120xf32>
    %10 = vector.broadcast %9 : vector<1x120xf32> to vector<8x120xf32>
    %11 = arith.addf %8, %10 : vector<8x120xf32>
    %12 = arith.truncf %11 : vector<8x120xf32> to vector<8x120xbf16>
    %c0_10 = arith.constant 0 : index
    %c0_11 = arith.constant 0 : index
    %13 = vector.load %arg6[%c0_10, %c0_11] : memref<120x10xbf16, #tpu.memory_space<vmem>>, vector<120x10xbf16>
    %cst_12 = arith.constant dense<0.000000e+00> : vector<8x10xf32>
    %14 = tpu.matmul %12, %13, %cst_12 {dimension_numbers = #tpu.dot_dimension_numbers<[1], [0], [0], [1], [0, 0, 1, 1], [], []>} : vector<8x120xbf16>, vector<120x10xbf16>, vector<8x10xf32> -> vector<8x10xf32>
    %c0_13 = arith.constant 0 : index
    %c0_14 = arith.constant 0 : index
    %15 = vector.load %arg7[%c0_13, %c0_14] : memref<1x10xf32, #tpu.memory_space<vmem>>, vector<1x10xf32>
    %16 = vector.broadcast %15 : vector<1x10xf32> to vector<8x10xf32>
    %17 = arith.addf %14, %16 : vector<8x10xf32>
    %cst_15 = arith.constant dense<0xFF800000> : vector<8xf32>
    %18 = vector.multi_reduction <maximumf>, %17, %cst_15 [1] : vector<8x10xf32> to vector<8xf32>
    %19 = vector.shape_cast %18 : vector<8xf32> to vector<8x1xf32>
    %20 = vector.broadcast %19 : vector<8x1xf32> to vector<8x10xf32>
    %21 = arith.subf %17, %20 : vector<8x10xf32>
    %22 = math.exp %21 : vector<8x10xf32>
    %cst_16 = arith.constant dense<0.000000e+00> : vector<8xf32>
    %23 = vector.multi_reduction <add>, %22, %cst_16 [1] : vector<8x10xf32> to vector<8xf32>
    %24 = vector.shape_cast %23 : vector<8xf32> to vector<8x1xf32>
    %25 = vector.broadcast %24 : vector<8x1xf32> to vector<8x10xf32>
    %26 = arith.divf %22, %25 : vector<8x10xf32>
    %c0_17 = arith.constant 0 : index
    %c0_18 = arith.constant 0 : index
    %27 = vector.load %arg8[%c0_17, %c0_18] : memref<8x10xf32, #tpu.memory_space<vmem>>, vector<8x10xf32>
    tpu.vector_store %arg8[%c0_17, %c0_18], %26 {strides = array<i32>} : memref<8x10xf32, #tpu.memory_space<vmem>>, vector<8x10xf32>,
    return
  }
  func.func @transform_0(%arg0: i32) -> (i32, i32) {
    %c0_i32 = arith.constant 0 : i32
    %c0_i32_0 = arith.constant 0 : i32
    return %arg0, %c0_i32 : i32, i32
  }
  func.func @transform_1(%arg0: i32) -> (i32, i32) {
    %c0_i32 = arith.constant 0 : i32
    %c0_i32_0 = arith.constant 0 : i32
    %c0_i32_1 = arith.constant 0 : i32
    return %c0_i32, %c0_i32_0 : i32, i32
  }
  func.func @transform_2(%arg0: i32) -> (i32, i32) {
    %c0_i32 = arith.constant 0 : i32
    %c0_i32_0 = arith.constant 0 : i32
    %c0_i32_1 = arith.constant 0 : i32
    return %c0_i32, %c0_i32_0 : i32, i32
  }
  func.func @transform_3(%arg0: i32) -> (i32, i32) {
    %c0_i32 = arith.constant 0 : i32
    %c0_i32_0 = arith.constant 0 : i32
    %c0_i32_1 = arith.constant 0 : i32
    return %c0_i32, %c0_i32_0 : i32, i32
  }
  func.func @transform_4(%arg0: i32) -> (i32, i32) {
    %c0_i32 = arith.constant 0 : i32
    %c0_i32_0 = arith.constant 0 : i32
    %c0_i32_1 = arith.constant 0 : i32
    return %c0_i32, %c0_i32_0 : i32, i32
  }
  func.func @transform_5(%arg0: i32) -> (i32, i32) {
    %c0_i32 = arith.constant 0 : i32
    %c0_i32_0 = arith.constant 0 : i32
    %c0_i32_1 = arith.constant 0 : i32
    return %c0_i32, %c0_i32_0 : i32, i32
  }
  func.func @transform_6(%arg0: i32) -> (i32, i32) {
    %c0_i32 = arith.constant 0 : i32
    %c0_i32_0 = arith.constant 0 : i32
    %c0_i32_1 = arith.constant 0 : i32
    return %c0_i32, %c0_i32_0 : i32, i32
  }
  func.func @transform_7(%arg0: i32) -> (i32, i32) {
    %c0_i32 = arith.constant 0 : i32
    %c0_i32_0 = arith.constant 0 : i32
    return %arg0, %c0_i32 : i32, i32
  }
}

</mosaic_0001>

<llo_original>
// kernel: fashion_cnn_forward.3
$region0: #{fashion_cnn_forward.3}
  #allocation0 [shape = 'u32[]', space=smem, size = 0x4, offset = 0x4, fixed_abs, tag = 'smem constant byte address 0x4 - core index']
  #allocation1 [shape = 'u32[72,128]{1,0:T(1,128)}', space=vmem, size = 0x9000, scoped, tag = 'internal scratch']
  %s0 = inlined_call_operand.vmem [shape: bf16[4,392,9], index: 0, kind: input, shape index: {}]
  %s1 = inlined_call_operand.vmem [shape: bf16[9,32], index: 1, kind: input, shape index: {}]
  %s2 = inlined_call_operand.vmem [shape: f32[1,32], index: 2, kind: input, shape index: {}]
  %s3 = inlined_call_operand.vmem [shape: bf16[392,32], index: 3, kind: output, shape index: {}]
  %s4 = sld [smem:[#allocation0]]
  $region22: #{fashion_cnn_forward.3} parent=0
    _
  %s6 = ssub.s32 1, %s4
  %s7 = scalar_select 0, %s6, %s4
  // Predicated region
  $region2: #{fashion_cnn_forward.3} parent=0 // pred_check
    _
  $region3: #{fashion_cnn_forward.3} parent=0 // pred_check_branch
    %9 = sbr.rel (0) target = $region5
  $region4: #{fashion_cnn_forward.3} parent=0 // pred_region
    _
  $region5: #{fashion_cnn_forward.3} parent=0 // pred_fallthru
    _
  // Predicated region
  $region6: #{fashion_cnn_forward.3} parent=0 // pred_check
    _
  $region7: #{fashion_cnn_forward.3} parent=0 // pred_check_branch
    %11 = sbr.rel (0) target = $region9
  $region8: #{fashion_cnn_forward.3} parent=0 // pred_region
    _
  $region9: #{fashion_cnn_forward.3} parent=0 // pred_fallthru
    _
  // Predicated region
  $region10: #{fashion_cnn_forward.3} parent=0 // pred_check
    _
  $region11: #{fashion_cnn_forward.3} parent=0 // pred_check_branch
    %13 = sbr.rel (0) target = $region13
  $region12: #{fashion_cnn_forward.3} parent=0 // pred_region
    _
  $region13: #{fashion_cnn_forward.3} parent=0 // pred_fallthru
    _
  %v15 = vld [vmem:[%s1] sm:$0xf]
  %v16 = vld [vmem:[%s1 + $0x4] sm:$0x1]
  %v17 = vld [vmem:[%s0] sm:$0xf]
  %v18 = vld [vmem:[%s0 + $0x4] sm:$0xf]
  %v19 = vld [vmem:[%s0 + $0x8] sm:$0xf]
  %v20 = vld [vmem:[%s0 + $0xc] sm:$0xf]
  %v21 = vld [vmem:[%s0 + $0x10] sm:$0xf]
  %v22 = vld [vmem:[%s0 + $0x14] sm:$0xf]
  %v23 = vld [vmem:[%s0 + $0x18] sm:$0xf]
  %v24 = vld [vmem:[%s0 + $0x1c] sm:$0xf]
  %v25 = vld [vmem:[%s0 + $0x20] sm:$0xf]
  %v26 = vld [vmem:[%s0 + $0x24] sm:$0xf]
  %v27 = vld [vmem:[%s0 + $0x28] sm:$0xf]
  %v28 = vld [vmem:[%s0 + $0x2c] sm:$0xf]
  %v29 = vld [vmem:[%s0 + $0x30] sm:$0xf]
  %v30 = vld [vmem:[%s0 + $0x34] sm:$0xf]
  %v31 = vld [vmem:[%s0 + $0x38] sm:$0xf]
  %v32 = vld [vmem:[%s0 + $0x3c] sm:$0xf]
  %v33 = vld [vmem:[%s0 + $0x40] sm:$0xf]
  %v34 = vld [vmem:[%s0 + $0x44] sm:$0xf]
  %v35 = vld [vmem:[%s0 + $0x48] sm:$0xf]
  %v36 = vld [vmem:[%s0 + $0x4c] sm:$0xf]
  %v37 = vld [vmem:[%s0 + $0x50] sm:$0xf]
  %v38 = vld [vmem:[%s0 + $0x54] sm:$0xf]
  %v39 = vld [vmem:[%s0 + $0x58] sm:$0xf]
  %v40 = vld [vmem:[%s0 + $0x5c] sm:$0xf]
  %v41 = vld [vmem:[%s0 + $0x60] sm:$0xf]
  %v42 = vld [vmem:[%s0 + $0x64] sm:$0xf]
  %v43 = vld [vmem:[%s0 + $0x68] sm:$0xf]
  %v44 = vld [vmem:[%s0 + $0x6c] sm:$0xf]
  %v45 = vld [vmem:[%s0 + $0x70] sm:$0xf]
  %v46 = vld [vmem:[%s0 + $0x74] sm:$0xf]
  %v47 = vld [vmem:[%s0 + $0x78] sm:$0xf]
  %v48 = vld [vmem:[%s0 + $0x7c] sm:$0xf]
  %v49 = vld [vmem:[%s0 + $0x80] sm:$0xf]
  %v50 = vld [vmem:[%s0 + $0x84] sm:$0xf]
  %v51 = vld [vmem:[%s0 + $0x88] sm:$0xf]
  %v52 = vld [vmem:[%s0 + $0x8c] sm:$0xf]
  %v53 = vld [vmem:[%s0 + $0x90] sm:$0xf]
  %v54 = vld [vmem:[%s0 + $0x94] sm:$0xf]
  %v55 = vld [vmem:[%s0 + $0x98] sm:$0xf]
  %v56 = vld [vmem:[%s0 + $0x9c] sm:$0xf]
  %v57 = vld [vmem:[%s0 + $0xa0] sm:$0xf]
  %v58 = vld [vmem:[%s0 + $0xa4] sm:$0xf]
  %v59 = vld [vmem:[%s0 + $0xa8] sm:$0xf]
  %v60 = vld [vmem:[%s0 + $0xac] sm:$0xf]
  %v61 = vld [vmem:[%s0 + $0xb0] sm:$0xf]
  %v62 = vld [vmem:[%s0 + $0xb4] sm:$0xf]
  %v63 = vld [vmem:[%s0 + $0xb8] sm:$0xf]
  %v64 = vld [vmem:[%s0 + $0xbc] sm:$0xf]
  %v65 = vld [vmem:[%s0 + $0xc0] sm:$0xf]
  %v115 = vunpack.c.l.b16 %v17
  %v116 = vunpack.c.l.b16 %v18
  %v117 = vunpack.c.l.b16 %v19
  %v118 = vunpack.c.l.b16 %v20
  %v119 = vunpack.c.l.b16 %v21
  %v120 = vunpack.c.l.b16 %v22
  %v121 = vunpack.c.l.b16 %v23
  %v122 = vunpack.c.l.b16 %v24
  %v123 = vunpack.c.l.b16 %v25
  %v124 = vunpack.c.l.b16 %v26
  %v125 = vunpack.c.l.b16 %v27
  %v126 = vunpack.c.l.b16 %v28
  %v127 = vunpack.c.l.b16 %v29
  %v128 = vunpack.c.l.b16 %v30
  %v129 = vunpack.c.l.b16 %v31
  %v130 = vunpack.c.l.b16 %v32
  %v131 = vunpack.c.l.b16 %v33
  %v132 = vunpack.c.l.b16 %v34
  %v133 = vunpack.c.l.b16 %v35
  %v134 = vunpack.c.l.b16 %v36
  %v135 = vunpack.c.l.b16 %v37
  %v136 = vunpack.c.l.b16 %v38
  %v137 = vunpack.c.l.b16 %v39
  %v138 = vunpack.c.l.b16 %v40
  %v139 = vunpack.c.l.b16 %v41
  %v140 = vunpack.c.l.b16 %v42
  %v141 = vunpack.c.l.b16 %v43
  %v142 = vunpack.c.l.b16 %v44
  %v143 = vunpack.c.l.b16 %v45
  %v144 = vunpack.c.l.b16 %v46
  %v145 = vunpack.c.l.b16 %v47
  %v146 = vunpack.c.l.b16 %v48
  %v147 = vunpack.c.l.b16 %v49
  %v148 = vunpack.c.l.b16 %v50
  %v149 = vunpack.c.l.b16 %v51
  %v150 = vunpack.c.l.b16 %v52
  %v151 = vunpack.c.l.b16 %v53
  %v152 = vunpack.c.l.b16 %v54
  %v153 = vunpack.c.l.b16 %v55
  %v154 = vunpack.c.l.b16 %v56
  %v155 = vunpack.c.l.b16 %v57
  %v156 = vunpack.c.l.b16 %v58
  %v157 = vunpack.c.l.b16 %v59
  %v158 = vunpack.c.l.b16 %v60
  %v159 = vunpack.c.l.b16 %v61
  %v160 = vunpack.c.l.b16 %v62
  %v161 = vunpack.c.l.b16 %v63
  %v162 = vunpack.c.l.b16 %v64
  %v163 = vunpack.c.l.b16 %v65
  %v164 = vpack.c.b16 %v116, %v115
  %v165 = vpack.c.b16 %v118, %v117
  %v166 = vpack.c.b16 %v120, %v119
  %v167 = vpack.c.b16 %v122, %v121
  %v168 = vpack.c.b16 %v124, %v123
  %v169 = vpack.c.b16 %v126, %v125
  %v170 = vpack.c.b16 %v128, %v127
  %v171 = vpack.c.b16 %v130, %v129
  %v172 = vpack.c.b16 %v132, %v131
  %v173 = vpack.c.b16 %v134, %v133
  %v174 = vpack.c.b16 %v136, %v135
  %v175 = vpack.c.b16 %v138, %v137
  %v176 = vpack.c.b16 %v140, %v139
  %v177 = vpack.c.b16 %v142, %v141
  %v178 = vpack.c.b16 %v144, %v143
  %v179 = vpack.c.b16 %v146, %v145
  %v180 = vpack.c.b16 %v148, %v147
  %v181 = vpack.c.b16 %v150, %v149
  %v182 = vpack.c.b16 %v152, %v151
  %v183 = vpack.c.b16 %v154, %v153
  %v184 = vpack.c.b16 %v156, %v155
  %v185 = vpack.c.b16 %v158, %v157
  %v186 = vpack.c.b16 %v160, %v159
  %v187 = vpack.c.b16 %v162, %v161
  %v188 = vpack.c.b16 %v163, %v163
  %v191 = vunpack.c.l.b16 %v15
  %v192 = vunpack.c.l.b16 %v16
  %v193 = vpack.c.b16 %v192, %v191
  %vm194 = vcmask 72704
  %v196 = vsel %vm194, %v164, 0
  %v199 = vsel %vm194, %v165, 0
  %v202 = vsel %vm194, %v166, 0
  %v205 = vsel %vm194, %v167, 0
  %v208 = vsel %vm194, %v168, 0
  %v211 = vsel %vm194, %v169, 0
  %v214 = vsel %vm194, %v170, 0
  %v217 = vsel %vm194, %v171, 0
  %v220 = vsel %vm194, %v172, 0
  %v223 = vsel %vm194, %v173, 0
  %v226 = vsel %vm194, %v174, 0
  %v229 = vsel %vm194, %v175, 0
  %v232 = vsel %vm194, %v176, 0
  %v235 = vsel %vm194, %v177, 0
  %v238 = vsel %vm194, %v178, 0
  %v241 = vsel %vm194, %v179, 0
  %v244 = vsel %vm194, %v180, 0
  %v247 = vsel %vm194, %v181, 0
  %v250 = vsel %vm194, %v182, 0
  %v253 = vsel %vm194, %v183, 0
  %v256 = vsel %vm194, %v184, 0
  %v259 = vsel %vm194, %v185, 0
  %v262 = vsel %vm194, %v186, 0
  %v265 = vsel %vm194, %v187, 0
  %v268 = vsel %vm194, %v188, 0
  %vm270 = vcmask 1043456
  %vm271 = vcmask 1044480
  %v272 = vsel %vm270, 4294967295, 65535
  %v273 = vsel %vm271, %v272, 0
  %v275 = vand.u32 %v193, %v273
  %277 = vmatpush.bf16.msra.mxu0 0
  %278 = vmatpush.bf16.msra.mxu0 0
  %279 = vmatpush.bf16.msra.mxu0 0
  %280 = vmatpush.bf16.msra.mxu0 0
  %281 = vmatpush.bf16.msra.mxu0 0
  %282 = vmatpush.bf16.msra.mxu0 0
  %283 = vmatpush.bf16.msra.mxu0 0
  %284 = vmatpush.bf16.msra.mxu0 %v275
  %285 = vmatmul.bf16.gmra.mxu0 %v196
  %v286 = vpop.f32.mrf.mxu0
  %v287 = vadd.f32 0.0, %v286
  %v288 = vpop.f32.mrf.mxu0
  %v289 = vadd.f32 0.0, %v288
  %290 = vmatmul.bf16.gmra.mxu0 %v199
  %v291 = vpop.f32.mrf.mxu0
  %v292 = vadd.f32 0.0, %v291
  %v293 = vpop.f32.mrf.mxu0
  %v294 = vadd.f32 0.0, %v293
  %295 = vmatmul.bf16.gmra.mxu0 %v202
  %v296 = vpop.f32.mrf.mxu0
  %v297 = vadd.f32 0.0, %v296
  %v298 = vpop.f32.mrf.mxu0
  %v299 = vadd.f32 0.0, %v298
  %300 = vmatmul.bf16.gmra.mxu0 %v205
  %v301 = vpop.f32.mrf.mxu0
  %v302 = vadd.f32 0.0, %v301
  %v303 = vpop.f32.mrf.mxu0
  %v304 = vadd.f32 0.0, %v303
  %305 = vmatmul.bf16.gmra.mxu0 %v208
  %v306 = vpop.f32.mrf.mxu0
  %v307 = vadd.f32 0.0, %v306
  %v308 = vpop.f32.mrf.mxu0
  %v309 = vadd.f32 0.0, %v308
  %310 = vmatmul.bf16.gmra.mxu0 %v211
  %v311 = vpop.f32.mrf.mxu0
  %v312 = vadd.f32 0.0, %v311
  %v313 = vpop.f32.mrf.mxu0
  %v314 = vadd.f32 0.0, %v313
  %315 = vmatmul.bf16.gmra.mxu0 %v214
  %v316 = vpop.f32.mrf.mxu0
  %v317 = vadd.f32 0.0, %v316
  %v318 = vpop.f32.mrf.mxu0
  %v319 = vadd.f32 0.0, %v318
  %320 = vmatmul.bf16.gmra.mxu0 %v217
  %v321 = vpop.f32.mrf.mxu0
  %v322 = vadd.f32 0.0, %v321
  %v323 = vpop.f32.mrf.mxu0
  %v324 = vadd.f32 0.0, %v323
  %325 = vmatmul.bf16.gmra.mxu0 %v220
  %v326 = vpop.f32.mrf.mxu0
  %v327 = vadd.f32 0.0, %v326
  %v328 = vpop.f32.mrf.mxu0
  %v329 = vadd.f32 0.0, %v328
  %330 = vmatmul.bf16.gmra.mxu0 %v223
  %v331 = vpop.f32.mrf.mxu0
  %v332 = vadd.f32 0.0, %v331
  %v333 = vpop.f32.mrf.mxu0
  %v334 = vadd.f32 0.0, %v333
  %335 = vmatmul.bf16.gmra.mxu0 %v226
  %v336 = vpop.f32.mrf.mxu0
  %v337 = vadd.f32 0.0, %v336
  %v338 = vpop.f32.mrf.mxu0
  %v339 = vadd.f32 0.0, %v338
  %340 = vmatmul.bf16.gmra.mxu0 %v229
  %v341 = vpop.f32.mrf.mxu0
  %v342 = vadd.f32 0.0, %v341
  %v343 = vpop.f32.mrf.mxu0
  %v344 = vadd.f32 0.0, %v343
  %345 = vmatmul.bf16.gmra.mxu0 %v232
  %v346 = vpop.f32.mrf.mxu0
  %v347 = vadd.f32 0.0, %v346
  %v348 = vpop.f32.mrf.mxu0
  %v349 = vadd.f32 0.0, %v348
  %350 = vmatmul.bf16.gmra.mxu0 %v235
  %v351 = vpop.f32.mrf.mxu0
  %v352 = vadd.f32 0.0, %v351
  %v353 = vpop.f32.mrf.mxu0
  %v354 = vadd.f32 0.0, %v353
  %355 = vmatmul.bf16.gmra.mxu0 %v238
  %v356 = vpop.f32.mrf.mxu0
  %v357 = vadd.f32 0.0, %v356
  %v358 = vpop.f32.mrf.mxu0
  %v359 = vadd.f32 0.0, %v358
  %360 = vmatmul.bf16.gmra.mxu0 %v241
  %v361 = vpop.f32.mrf.mxu0
  %v362 = vadd.f32 0.0, %v361
  %v363 = vpop.f32.mrf.mxu0
  %v364 = vadd.f32 0.0, %v363
  %365 = vmatmul.bf16.gmra.mxu0 %v244
  %v366 = vpop.f32.mrf.mxu0
  %v367 = vadd.f32 0.0, %v366
  %v368 = vpop.f32.mrf.mxu0
  %v369 = vadd.f32 0.0, %v368
  %370 = vmatmul.bf16.gmra.mxu0 %v247
  %v371 = vpop.f32.mrf.mxu0
  %v372 = vadd.f32 0.0, %v371
  %v373 = vpop.f32.mrf.mxu0
  %v374 = vadd.f32 0.0, %v373
  %375 = vmatmul.bf16.gmra.mxu0 %v250
  %v376 = vpop.f32.mrf.mxu0
  %v377 = vadd.f32 0.0, %v376
  %v378 = vpop.f32.mrf.mxu0
  %v379 = vadd.f32 0.0, %v378
  %380 = vmatmul.bf16.gmra.mxu0 %v253
  %v381 = vpop.f32.mrf.mxu0
  %v382 = vadd.f32 0.0, %v381
  %v383 = vpop.f32.mrf.mxu0
  %v384 = vadd.f32 0.0, %v383
  %385 = vmatmul.bf16.gmra.mxu0 %v256
  %v386 = vpop.f32.mrf.mxu0
  %v387 = vadd.f32 0.0, %v386
  %v388 = vpop.f32.mrf.mxu0
  %v389 = vadd.f32 0.0, %v388
  %390 = vmatmul.bf16.gmra.mxu0 %v259
  %v391 = vpop.f32.mrf.mxu0
  %v392 = vadd.f32 0.0, %v391
  %v393 = vpop.f32.mrf.mxu0
  %v394 = vadd.f32 0.0, %v393
  %395 = vmatmul.bf16.gmra.mxu0 %v262
  %v396 = vpop.f32.mrf.mxu0
  %v397 = vadd.f32 0.0, %v396
  %v398 = vpop.f32.mrf.mxu0
  %v399 = vadd.f32 0.0, %v398
  %400 = vmatmul.bf16.gmra.mxu0 %v265
  %v401 = vpop.f32.mrf.mxu0
  %v402 = vadd.f32 0.0, %v401
  %v403 = vpop.f32.mrf.mxu0
  %v404 = vadd.f32 0.0, %v403
  %405 = vmatmul.bf16.gmra.mxu0 %v268
  %v406 = vpop.f32.mrf.mxu0
  %v407 = vadd.f32 0.0, %v406
  %v408 = vpop.f32.mrf.mxu0
  %409 = vdwg.mxu0
  %s410 = scalar_lea.vmem %s0, 196
  %v411 = vld [vmem:[%s410] sm:$0xf]
  %v412 = vld [vmem:[%s410 + $0x4] sm:$0xf]
  %v413 = vld [vmem:[%s410 + $0x8] sm:$0xf]
  %v414 = vld [vmem:[%s410 + $0xc] sm:$0xf]
  %v415 = vld [vmem:[%s410 + $0x10] sm:$0xf]
  %v416 = vld [vmem:[%s410 + $0x14] sm:$0xf]
  %v417 = vld [vmem:[%s410 + $0x18] sm:$0xf]
  %v418 = vld [vmem:[%s410 + $0x1c] sm:$0xf]
  %v419 = vld [vmem:[%s410 + $0x20] sm:$0xf]
  %v420 = vld [vmem:[%s410 + $0x24] sm:$0xf]
  %v421 = vld [vmem:[%s410 + $0x28] sm:$0xf]
  %v422 = vld [vmem:[%s410 + $0x2c] sm:$0xf]
  %v423 = vld [vmem:[%s410 + $0x30] sm:$0xf]
  %v424 = vld [vmem:[%s410 + $0x34] sm:$0xf]
  %v425 = vld [vmem:[%s410 + $0x38] sm:$0xf]
  %v426 = vld [vmem:[%s410 + $0x3c] sm:$0xf]
  %v427 = vld [vmem:[%s410 + $0x40] sm:$0xf]
  %v428 = vld [vmem:[%s410 + $0x44] sm:$0xf]
  %v429 = vld [vmem:[%s410 + $0x48] sm:$0xf]
  %v430 = vld [vmem:[%s410 + $0x4c] sm:$0xf]
  %v431 = vld [vmem:[%s410 + $0x50] sm:$0xf]
  %v432 = vld [vmem:[%s410 + $0x54] sm:$0xf]
  %v433 = vld [vmem:[%s410 + $0x58] sm:$0xf]
  %v434 = vld [vmem:[%s410 + $0x5c] sm:$0xf]
  %v435 = vld [vmem:[%s410 + $0x60] sm:$0xf]
  %v436 = vld [vmem:[%s410 + $0x64] sm:$0xf]
  %v437 = vld [vmem:[%s410 + $0x68] sm:$0xf]
  %v438 = vld [vmem:[%s410 + $0x6c] sm:$0xf]
  %v439 = vld [vmem:[%s410 + $0x70] sm:$0xf]
  %v440 = vld [vmem:[%s410 + $0x74] sm:$0xf]
  %v441 = vld [vmem:[%s410 + $0x78] sm:$0xf]
  %v442 = vld [vmem:[%s410 + $0x7c] sm:$0xf]
  %v443 = vld [vmem:[%s410 + $0x80] sm:$0xf]
  %v444 = vld [vmem:[%s410 + $0x84] sm:$0xf]
  %v445 = vld [vmem:[%s410 + $0x88] sm:$0xf]
  %v446 = vld [vmem:[%s410 + $0x8c] sm:$0xf]
  %v447 = vld [vmem:[%s410 + $0x90] sm:$0xf]
  %v448 = vld [vmem:[%s410 + $0x94] sm:$0xf]
  %v449 = vld [vmem:[%s410 + $0x98] sm:$0xf]
  %v450 = vld [vmem:[%s410 + $0x9c] sm:$0xf]
  %v451 = vld [vmem:[%s410 + $0xa0] sm:$0xf]
  %v452 = vld [vmem:[%s410 + $0xa4] sm:$0xf]
  %v453 = vld [vmem:[%s410 + $0xa8] sm:$0xf]
  %v454 = vld [vmem:[%s410 + $0xac] sm:$0xf]
  %v455 = vld [vmem:[%s410 + $0xb0] sm:$0xf]
  %v456 = vld [vmem:[%s410 + $0xb4] sm:$0xf]
  %v457 = vld [vmem:[%s410 + $0xb8] sm:$0xf]
  %v458 = vld [vmem:[%s410 + $0xbc] sm:$0xf]
  %v459 = vld [vmem:[%s410 + $0xc0] sm:$0xf]
  %v509 = vunpack.c.l.b16 %v411
  %v510 = vunpack.c.l.b16 %v412
  %v511 = vunpack.c.l.b16 %v413
  %v512 = vunpack.c.l.b16 %v414
  %v513 = vunpack.c.l.b16 %v415
  %v514 = vunpack.c.l.b16 %v416
  %v515 = vunpack.c.l.b16 %v417
  %v516 = vunpack.c.l.b16 %v418
  %v517 = vunpack.c.l.b16 %v419
  %v518 = vunpack.c.l.b16 %v420
  %v519 = vunpack.c.l.b16 %v421
  %v520 = vunpack.c.l.b16 %v422
  %v521 = vunpack.c.l.b16 %v423
  %v522 = vunpack.c.l.b16 %v424
  %v523 = vunpack.c.l.b16 %v425
  %v524 = vunpack.c.l.b16 %v426
  %v525 = vunpack.c.l.b16 %v427
  %v526 = vunpack.c.l.b16 %v428
  %v527 = vunpack.c.l.b16 %v429
  %v528 = vunpack.c.l.b16 %v430
  %v529 = vunpack.c.l.b16 %v431
  %v530 = vunpack.c.l.b16 %v432
  %v531 = vunpack.c.l.b16 %v433
  %v532 = vunpack.c.l.b16 %v434
  %v533 = vunpack.c.l.b16 %v435
  %v534 = vunpack.c.l.b16 %v436
  %v535 = vunpack.c.l.b16 %v437
  %v536 = vunpack.c.l.b16 %v438
  %v537 = vunpack.c.l.b16 %v439
  %v538 = vunpack.c.l.b16 %v440
  %v539 = vunpack.c.l.b16 %v441
  %v540 = vunpack.c.l.b16 %v442
  %v541 = vunpack.c.l.b16 %v443
  %v542 = vunpack.c.l.b16 %v444
  %v543 = vunpack.c.l.b16 %v445
  %v544 = vunpack.c.l.b16 %v446
  %v545 = vunpack.c.l.b16 %v447
  %v546 = vunpack.c.l.b16 %v448
  %v547 = vunpack.c.l.b16 %v449
  %v548 = vunpack.c.l.b16 %v450
  %v549 = vunpack.c.l.b16 %v451
  %v550 = vunpack.c.l.b16 %v452
  %v551 = vunpack.c.l.b16 %v453
  %v552 = vunpack.c.l.b16 %v454
  %v553 = vunpack.c.l.b16 %v455
  %v554 = vunpack.c.l.b16 %v456
  %v555 = vunpack.c.l.b16 %v457
  %v556 = vunpack.c.l.b16 %v458
  %v557 = vunpack.c.l.b16 %v459
  %v558 = vpack.c.b16 %v510, %v509
  %v559 = vpack.c.b16 %v512, %v511
  %v560 = vpack.c.b16 %v514, %v513
  %v561 = vpack.c.b16 %v516, %v515
  %v562 = vpack.c.b16 %v518, %v517
  %v563 = vpack.c.b16 %v520, %v519
  %v564 = vpack.c.b16 %v522, %v521
  %v565 = vpack.c.b16 %v524, %v523
  %v566 = vpack.c.b16 %v526, %v525
  %v567 = vpack.c.b16 %v528, %v527
  %v568 = vpack.c.b16 %v530, %v529
  %v569 = vpack.c.b16 %v532, %v531
  %v570 = vpack.c.b16 %v534, %v533
  %v571 = vpack.c.b16 %v536, %v535
  %v572 = vpack.c.b16 %v538, %v537
  %v573 = vpack.c.b16 %v540, %v539
  %v574 = vpack.c.b16 %v542, %v541
  %v575 = vpack.c.b16 %v544, %v543
  %v576 = vpack.c.b16 %v546, %v545
  %v577 = vpack.c.b16 %v548, %v547
  %v578 = vpack.c.b16 %v550, %v549
  %v579 = vpack.c.b16 %v552, %v551
  %v580 = vpack.c.b16 %v554, %v553
  %v581 = vpack.c.b16 %v556, %v555
  %v582 = vpack.c.b16 %v557, %v557
  %v584 = vsel %vm194, %v558, 0
  %v587 = vsel %vm194, %v559, 0
  %v590 = vsel %vm194, %v560, 0
  %v593 = vsel %vm194, %v561, 0
  %v596 = vsel %vm194, %v562, 0
  %v599 = vsel %vm194, %v563, 0
  %v602 = vsel %vm194, %v564, 0
  %v605 = vsel %vm194, %v565, 0
  %v608 = vsel %vm194, %v566, 0
  %v611 = vsel %vm194, %v567, 0
  %v614 = vsel %vm194, %v568, 0
  %v617 = vsel %vm194, %v569, 0
  %v620 = vsel %vm194, %v570, 0
  %v623 = vsel %vm194, %v571, 0
  %v626 = vsel %vm194, %v572, 0
  %v629 = vsel %vm194, %v573, 0
  %v632 = vsel %vm194, %v574, 0
  %v635 = vsel %vm194, %v575, 0
  %v638 = vsel %vm194, %v576, 0
  %v641 = vsel %vm194, %v577, 0
  %v644 = vsel %vm194, %v578, 0
  %v647 = vsel %vm194, %v579, 0
  %v650 = vsel %vm194, %v580, 0
  %v653 = vsel %vm194, %v581, 0
  %v656 = vsel %vm194, %v582, 0
  %658 = vmatpush.bf16.msra.mxu0 0
  %659 = vmatpush.bf16.msra.mxu0 0
  %660 = vmatpush.bf16.msra.mxu0 0
  %661 = vmatpush.bf16.msra.mxu0 0
  %662 = vmatpush.bf16.msra.mxu0 0
  %663 = vmatpush.bf16.msra.mxu0 0
  %664 = vmatpush.bf16.msra.mxu0 0
  %665 = vmatpush.bf16.msra.mxu0 %v275
  %666 = vmatmul.bf16.gmra.mxu0 %v584
  %v667 = vpop.f32.mrf.mxu0
  %v668 = vadd.f32 0.0, %v667
  %v669 = vpop.f32.mrf.mxu0
  %v670 = vadd.f32 0.0, %v669
  %671 = vmatmul.bf16.gmra.mxu0 %v587
  %v672 = vpop.f32.mrf.mxu0
  %v673 = vadd.f32 0.0, %v672
  %v674 = vpop.f32.mrf.mxu0
  %v675 = vadd.f32 0.0, %v674
  %676 = vmatmul.bf16.gmra.mxu0 %v590
  %v677 = vpop.f32.mrf.mxu0
  %v678 = vadd.f32 0.0, %v677
  %v679 = vpop.f32.mrf.mxu0
  %v680 = vadd.f32 0.0, %v679
  %681 = vmatmul.bf16.gmra.mxu0 %v593
  %v682 = vpop.f32.mrf.mxu0
  %v683 = vadd.f32 0.0, %v682
  %v684 = vpop.f32.mrf.mxu0
  %v685 = vadd.f32 0.0, %v684
  %686 = vmatmul.bf16.gmra.mxu0 %v596
  %v687 = vpop.f32.mrf.mxu0
  %v688 = vadd.f32 0.0, %v687
  %v689 = vpop.f32.mrf.mxu0
  %v690 = vadd.f32 0.0, %v689
  %691 = vmatmul.bf16.gmra.mxu0 %v599
  %v692 = vpop.f32.mrf.mxu0
  %v693 = vadd.f32 0.0, %v692
  %v694 = vpop.f32.mrf.mxu0
  %v695 = vadd.f32 0.0, %v694
  %696 = vmatmul.bf16.gmra.mxu0 %v602
  %v697 = vpop.f32.mrf.mxu0
  %v698 = vadd.f32 0.0, %v697
  %v699 = vpop.f32.mrf.mxu0
  %v700 = vadd.f32 0.0, %v699
  %701 = vmatmul.bf16.gmra.mxu0 %v605
  %v702 = vpop.f32.mrf.mxu0
  %v703 = vadd.f32 0.0, %v702
  %v704 = vpop.f32.mrf.mxu0
  %v705 = vadd.f32 0.0, %v704
  %706 = vmatmul.bf16.gmra.mxu0 %v608
  %v707 = vpop.f32.mrf.mxu0
  %v708 = vadd.f32 0.0, %v707
  %v709 = vpop.f32.mrf.mxu0
  %v710 = vadd.f32 0.0, %v709
  %711 = vmatmul.bf16.gmra.mxu0 %v611
  %v712 = vpop.f32.mrf.mxu0
  %v713 = vadd.f32 0.0, %v712
  %v714 = vpop.f32.mrf.mxu0
  %v715 = vadd.f32 0.0, %v714
  %716 = vmatmul.bf16.gmra.mxu0 %v614
  %v717 = vpop.f32.mrf.mxu0
  %v718 = vadd.f32 0.0, %v717
  %v719 = vpop.f32.mrf.mxu0
  %v720 = vadd.f32 0.0, %v719
  %721 = vmatmul.bf16.gmra.mxu0 %v617
  %v722 = vpop.f32.mrf.mxu0
  %v723 = vadd.f32 0.0, %v722
  %v724 = vpop.f32.mrf.mxu0
  %v725 = vadd.f32 0.0, %v724
  %726 = vmatmul.bf16.gmra.mxu0 %v620
  %v727 = vpop.f32.mrf.mxu0
  %v728 = vadd.f32 0.0, %v727
  %v729 = vpop.f32.mrf.mxu0
  %v730 = vadd.f32 0.0, %v729
  %731 = vmatmul.bf16.gmra.mxu0 %v623
  %v732 = vpop.f32.mrf.mxu0
  %v733 = vadd.f32 0.0, %v732
  %v734 = vpop.f32.mrf.mxu0
  %v735 = vadd.f32 0.0, %v734
  %736 = vmatmul.bf16.gmra.mxu0 %v626
  %v737 = vpop.f32.mrf.mxu0
  %v738 = vadd.f32 0.0, %v737
  %v739 = vpop.f32.mrf.mxu0
  %v740 = vadd.f32 0.0, %v739
  %741 = vmatmul.bf16.gmra.mxu0 %v629
  %v742 = vpop.f32.mrf.mxu0
  %v743 = vadd.f32 0.0, %v742
  %v744 = vpop.f32.mrf.mxu0
  %v745 = vadd.f32 0.0, %v744
  %746 = vmatmul.bf16.gmra.mxu0 %v632
  %v747 = vpop.f32.mrf.mxu0
  %v748 = vadd.f32 0.0, %v747
  %v749 = vpop.f32.mrf.mxu0
  %v750 = vadd.f32 0.0, %v749
  %751 = vmatmul.bf16.gmra.mxu0 %v635
  %v752 = vpop.f32.mrf.mxu0
  %v753 = vadd.f32 0.0, %v752
  %v754 = vpop.f32.mrf.mxu0
  %v755 = vadd.f32 0.0, %v754
  %756 = vmatmul.bf16.gmra.mxu0 %v638
  %v757 = vpop.f32.mrf.mxu0
  %v758 = vadd.f32 0.0, %v757
  %v759 = vpop.f32.mrf.mxu0
  %v760 = vadd.f32 0.0, %v759
  %761 = vmatmul.bf16.gmra.mxu0 %v641
  %v762 = vpop.f32.mrf.mxu0
  %v763 = vadd.f32 0.0, %v762
  %v764 = vpop.f32.mrf.mxu0
  %v765 = vadd.f32 0.0, %v764
  %766 = vmatmul.bf16.gmra.mxu0 %v644
  %v767 = vpop.f32.mrf.mxu0
  %v768 = vadd.f32 0.0, %v767
  %v769 = vpop.f32.mrf.mxu0
  %v770 = vadd.f32 0.0, %v769
  %771 = vmatmul.bf16.gmra.mxu0 %v647
  %v772 = vpop.f32.mrf.mxu0
  %v773 = vadd.f32 0.0, %v772
  %v774 = vpop.f32.mrf.mxu0
  %v775 = vadd.f32 0.0, %v774
  %776 = vmatmul.bf16.gmra.mxu0 %v650
  %v777 = vpop.f32.mrf.mxu0
  %v778 = vadd.f32 0.0, %v777
  %v779 = vpop.f32.mrf.mxu0
  %v780 = vadd.f32 0.0, %v779
  %781 = vmatmul.bf16.gmra.mxu0 %v653
  %v782 = vpop.f32.mrf.mxu0
  %v783 = vadd.f32 0.0, %v782
  %v784 = vpop.f32.mrf.mxu0
  %v785 = vadd.f32 0.0, %v784
  %786 = vmatmul.bf16.gmra.mxu0 %v656
  %v787 = vpop.f32.mrf.mxu0
  %v788 = vadd.f32 0.0, %v787
  %v789 = vpop.f32.mrf.mxu0
  %790 = vdwg.mxu0
  %s791 = scalar_lea.vmem %s0, 392
  %v792 = vld [vmem:[%s791] sm:$0xf]
  %v793 = vld [vmem:[%s791 + $0x4] sm:$0xf]
  %v794 = vld [vmem:[%s791 + $0x8] sm:$0xf]
  %v795 = vld [vmem:[%s791 + $0xc] sm:$0xf]
  %v796 = vld [vmem:[%s791 + $0x10] sm:$0xf]
  %v797 = vld [vmem:[%s791 + $0x14] sm:$0xf]
  %v798 = vld [vmem:[%s791 + $0x18] sm:$0xf]
  %v799 = vld [vmem:[%s791 + $0x1c] sm:$0xf]
  %v800 = vld [vmem:[%s791 + $0x20] sm:$0xf]
  %v801 = vld [vmem:[%s791 + $0x24] sm:$0xf]
  %v802 = vld [vmem:[%s791 + $0x28] sm:$0xf]
  %v803 = vld [vmem:[%s791 + $0x2c] sm:$0xf]
  %v804 = vld [vmem:[%s791 + $0x30] sm:$0xf]
  %v805 = vld [vmem:[%s791 + $0x34] sm:$0xf]
  %v806 = vld [vmem:[%s791 + $0x38] sm:$0xf]
  %v807 = vld [vmem:[%s791 + $0x3c] sm:$0xf]
  %v808 = vld [vmem:[%s791 + $0x40] sm:$0xf]
  %v809 = vld [vmem:[%s791 + $0x44] sm:$0xf]
  %v810 = vld [vmem:[%s791 + $0x48] sm:$0xf]
  %v811 = vld [vmem:[%s791 + $0x4c] sm:$0xf]
  %v812 = vld [vmem:[%s791 + $0x50] sm:$0xf]
  %v813 = vld [vmem:[%s791 + $0x54] sm:$0xf]
  %v814 = vld [vmem:[%s791 + $0x58] sm:$0xf]
  %v815 = vld [vmem:[%s791 + $0x5c] sm:$0xf]
  %v816 = vld [vmem:[%s791 + $0x60] sm:$0xf]
  %v817 = vld [vmem:[%s791 + $0x64] sm:$0xf]
  %v818 = vld [vmem:[%s791 + $0x68] sm:$0xf]
  %v819 = vld [vmem:[%s791 + $0x6c] sm:$0xf]
  %v820 = vld [vmem:[%s791 + $0x70] sm:$0xf]
  %v821 = vld [vmem:[%s791 + $0x74] sm:$0xf]
  %v822 = vld [vmem:[%s791 + $0x78] sm:$0xf]
  %v823 = vld [vmem:[%s791 + $0x7c] sm:$0xf]
  %v824 = vld [vmem:[%s791 + $0x80] sm:$0xf]
  %v825 = vld [vmem:[%s791 + $0x84] sm:$0xf]
  %v826 = vld [vmem:[%s791 + $0x88] sm:$0xf]
  %v827 = vld [vmem:[%s791 + $0x8c] sm:$0xf]
  %v828 = vld [vmem:[%s791 + $0x90] sm:$0xf]
  %v829 = vld [vmem:[%s791 + $0x94] sm:$0xf]
  %v830 = vld [vmem:[%s791 + $0x98] sm:$0xf]
  %v831 = vld [vmem:[%s791 + $0x9c] sm:$0xf]
  %v832 = vld [vmem:[%s791 + $0xa0] sm:$0xf]
  %v833 = vld [vmem:[%s791 + $0xa4] sm:$0xf]
  %v834 = vld [vmem:[%s791 + $0xa8] sm:$0xf]
  %v835 = vld [vmem:[%s791 + $0xac] sm:$0xf]
  %v836 = vld [vmem:[%s791 + $0xb0] sm:$0xf]
  %v837 = vld [vmem:[%s791 + $0xb4] sm:$0xf]
  %v838 = vld [vmem:[%s791 + $0xb8] sm:$0xf]
  %v839 = vld [vmem:[%s791 + $0xbc] sm:$0xf]
  %v840 = vld [vmem:[%s791 + $0xc0] sm:$0xf]
  %v890 = vunpack.c.l.b16 %v792
  %v891 = vunpack.c.l.b16 %v793
  %v892 = vunpack.c.l.b16 %v794
  %v893 = vunpack.c.l.b16 %v795
  %v894 = vunpack.c.l.b16 %v796
  %v895 = vunpack.c.l.b16 %v797
  %v896 = vunpack.c.l.b16 %v798
  %v897 = vunpack.c.l.b16 %v799
  %v898 = vunpack.c.l.b16 %v800
  %v899 = vunpack.c.l.b16 %v801
  %v900 = vunpack.c.l.b16 %v802
  %v901 = vunpack.c.l.b16 %v803
  %v902 = vunpack.c.l.b16 %v804
  %v903 = vunpack.c.l.b16 %v805
  %v904 = vunpack.c.l.b16 %v806
  %v905 = vunpack.c.l.b16 %v807
  %v906 = vunpack.c.l.b16 %v808
  %v907 = vunpack.c.l.b16 %v809
  %v908 = vunpack.c.l.b16 %v810
  %v909 = vunpack.c.l.b16 %v811
  %v910 = vunpack.c.l.b16 %v812
  %v911 = vunpack.c.l.b16 %v813
  %v912 = vunpack.c.l.b16 %v814
  %v913 = vunpack.c.l.b16 %v815
  %v914 = vunpack.c.l.b16 %v816
  %v915 = vunpack.c.l.b16 %v817
  %v916 = vunpack.c.l.b16 %v818
  %v917 = vunpack.c.l.b16 %v819
  %v918 = vunpack.c.l.b16 %v820
  %v919 = vunpack.c.l.b16 %v821
  %v920 = vunpack.c.l.b16 %v822
  %v921 = vunpack.c.l.b16 %v823
  %v922 = vunpack.c.l.b16 %v824
  %v923 = vunpack.c.l.b16 %v825
  %v924 = vunpack.c.l.b16 %v826
  %v925 = vunpack.c.l.b16 %v827
  %v926 = vunpack.c.l.b16 %v828
  %v927 = vunpack.c.l.b16 %v829
  %v928 = vunpack.c.l.b16 %v830
  %v929 = vunpack.c.l.b16 %v831
  %v930 = vunpack.c.l.b16 %v832
  %v931 = vunpack.c.l.b16 %v833
  %v932 = vunpack.c.l.b16 %v834
  %v933 = vunpack.c.l.b16 %v835
  %v934 = vunpack.c.l.b16 %v836
  %v935 = vunpack.c.l.b16 %v837
  %v936 = vunpack.c.l.b16 %v838
  %v937 = vunpack.c.l.b16 %v839
  %v938 = vunpack.c.l.b16 %v840
  %v939 = vpack.c.b16 %v891, %v890
  %v940 = vpack.c.b16 %v893, %v892
  %v941 = vpack.c.b16 %v895, %v894
  %v942 = vpack.c.b16 %v897, %v896
  %v943 = vpack.c.b16 %v899, %v898
  %v944 = vpack.c.b16 %v901, %v900
  %v945 = vpack.c.b16 %v903, %v902
  %v946 = vpack.c.b16 %v905, %v904
  %v947 = vpack.c.b16 %v907, %v906
  %v948 = vpack.c.b16 %v909, %v908
  %v949 = vpack.c.b16 %v911, %v910
  %v950 = vpack.c.b16 %v913, %v912
  %v951 = vpack.c.b16 %v915, %v914
  %v952 = vpack.c.b16 %v917, %v916
  %v953 = vpack.c.b16 %v919, %v918
  %v954 = vpack.c.b16 %v921, %v920
  %v955 = vpack.c.b16 %v923, %v922
  %v956 = vpack.c.b16 %v925, %v924
  %v957 = vpack.c.b16 %v927, %v926
  %v958 = vpack.c.b16 %v929, %v928
  %v959 = vpack.c.b16 %v931, %v930
  %v960 = vpack.c.b16 %v933, %v932
  %v961 = vpack.c.b16 %v935, %v934
  %v962 = vpack.c.b16 %v937, %v936
  %v963 = vpack.c.b16 %v938, %v938
  %v965 = vsel %vm194, %v939, 0
  %v968 = vsel %vm194, %v940, 0
  %v971 = vsel %vm194, %v941, 0
  %v974 = vsel %vm194, %v942, 0
  %v977 = vsel %vm194, %v943, 0
  %v980 = vsel %vm194, %v944, 0
  %v983 = vsel %vm194, %v945, 0
  %v986 = vsel %vm194, %v946, 0
  %v989 = vsel %vm194, %v947, 0
  %v992 = vsel %vm194, %v948, 0
  %v995 = vsel %vm194, %v949, 0
  %v998 = vsel %vm194, %v950, 0
  %v1001 = vsel %vm194, %v951, 0
  %v1004 = vsel %vm194, %v952, 0
  %v1007 = vsel %vm194, %v953, 0
  %v1010 = vsel %vm194, %v954, 0
  %v1013 = vsel %vm194, %v955, 0
  %v1016 = vsel %vm194, %v956, 0
  %v1019 = vsel %vm194, %v957, 0
  %v1022 = vsel %vm194, %v958, 0
  %v1025 = vsel %vm194, %v959, 0
  %v1028 = vsel %vm194, %v960, 0
  %v1031 = vsel %vm194, %v961, 0
  %v1034 = vsel %vm194, %v962, 0
  %v1037 = vsel %vm194, %v963, 0
  %1039 = vmatpush.bf16.msra.mxu0 0
  %1040 = vmatpush.bf16.msra.mxu0 0
  %1041 = vmatpush.bf16.msra.mxu0 0
  %1042 = vmatpush.bf16.msra.mxu0 0
  %1043 = vmatpush.bf16.msra.mxu0 0
  %1044 = vmatpush.bf16.msra.mxu0 0
  %1045 = vmatpush.bf16.msra.mxu0 0
  %1046 = vmatpush.bf16.msra.mxu0 %v275
  %1047 = vmatmul.bf16.gmra.mxu0 %v965
  %v1048 = vpop.f32.mrf.mxu0
  %v1049 = vadd.f32 0.0, %v1048
  %v1050 = vpop.f32.mrf.mxu0
  %v1051 = vadd.f32 0.0, %v1050
  %1052 = vmatmul.bf16.gmra.mxu0 %v968
  %v1053 = vpop.f32.mrf.mxu0
  %v1054 = vadd.f32 0.0, %v1053
  %v1055 = vpop.f32.mrf.mxu0
  %v1056 = vadd.f32 0.0, %v1055
  %1057 = vmatmul.bf16.gmra.mxu0 %v971
  %v1058 = vpop.f32.mrf.mxu0
  %v1059 = vadd.f32 0.0, %v1058
  %v1060 = vpop.f32.mrf.mxu0
  %v1061 = vadd.f32 0.0, %v1060
  %1062 = vmatmul.bf16.gmra.mxu0 %v974
  %v1063 = vpop.f32.mrf.mxu0
  %v1064 = vadd.f32 0.0, %v1063
  %v1065 = vpop.f32.mrf.mxu0
  %v1066 = vadd.f32 0.0, %v1065
  %1067 = vmatmul.bf16.gmra.mxu0 %v977
  %v1068 = vpop.f32.mrf.mxu0
  %v1069 = vadd.f32 0.0, %v1068
  %v1070 = vpop.f32.mrf.mxu0
  %v1071 = vadd.f32 0.0, %v1070
  %1072 = vmatmul.bf16.gmra.mxu0 %v980
  %v1073 = vpop.f32.mrf.mxu0
  %v1074 = vadd.f32 0.0, %v1073
  %v1075 = vpop.f32.mrf.mxu0
  %v1076 = vadd.f32 0.0, %v1075
  %1077 = vmatmul.bf16.gmra.mxu0 %v983
  %v1078 = vpop.f32.mrf.mxu0
  %v1079 = vadd.f32 0.0, %v1078
  %v1080 = vpop.f32.mrf.mxu0
  %v1081 = vadd.f32 0.0, %v1080
  %1082 = vmatmul.bf16.gmra.mxu0 %v986
  %v1083 = vpop.f32.mrf.mxu0
  %v1084 = vadd.f32 0.0, %v1083
  %v1085 = vpop.f32.mrf.mxu0
  %v1086 = vadd.f32 0.0, %v1085
  %1087 = vmatmul.bf16.gmra.mxu0 %v989
  %v1088 = vpop.f32.mrf.mxu0
  %v1089 = vadd.f32 0.0, %v1088
  %v1090 = vpop.f32.mrf.mxu0
  %v1091 = vadd.f32 0.0, %v1090
  %1092 = vmatmul.bf16.gmra.mxu0 %v992
  %v1093 = vpop.f32.mrf.mxu0
  %v1094 = vadd.f32 0.0, %v1093
  %v1095 = vpop.f32.mrf.mxu0
  %v1096 = vadd.f32 0.0, %v1095
  %1097 = vmatmul.bf16.gmra.mxu0 %v995
  %v1098 = vpop.f32.mrf.mxu0
  %v1099 = vadd.f32 0.0, %v1098
  %v1100 = vpop.f32.mrf.mxu0
  %v1101 = vadd.f32 0.0, %v1100
  %1102 = vmatmul.bf16.gmra.mxu0 %v998
  %v1103 = vpop.f32.mrf.mxu0
  %v1104 = vadd.f32 0.0, %v1103
  %v1105 = vpop.f32.mrf.mxu0
  %v1106 = vadd.f32 0.0, %v1105
  %1107 = vmatmul.bf16.gmra.mxu0 %v1001
  %v1108 = vpop.f32.mrf.mxu0
  %v1109 = vadd.f32 0.0, %v1108
  %v1110 = vpop.f32.mrf.mxu0
  %v1111 = vadd.f32 0.0, %v1110
  %1112 = vmatmul.bf16.gmra.mxu0 %v1004
  %v1113 = vpop.f32.mrf.mxu0
  %v1114 = vadd.f32 0.0, %v1113
  %v1115 = vpop.f32.mrf.mxu0
  %v1116 = vadd.f32 0.0, %v1115
  %1117 = vmatmul.bf16.gmra.mxu0 %v1007
  %v1118 = vpop.f32.mrf.mxu0
  %v1119 = vadd.f32 0.0, %v1118
  %v1120 = vpop.f32.mrf.mxu0
  %v1121 = vadd.f32 0.0, %v1120
  %1122 = vmatmul.bf16.gmra.mxu0 %v1010
  %v1123 = vpop.f32.mrf.mxu0
  %v1124 = vadd.f32 0.0, %v1123
  %v1125 = vpop.f32.mrf.mxu0
  %v1126 = vadd.f32 0.0, %v1125
  %1127 = vmatmul.bf16.gmra.mxu0 %v1013
  %v1128 = vpop.f32.mrf.mxu0
  %v1129 = vadd.f32 0.0, %v1128
  %v1130 = vpop.f32.mrf.mxu0
  %v1131 = vadd.f32 0.0, %v1130
  %1132 = vmatmul.bf16.gmra.mxu0 %v1016
  %v1133 = vpop.f32.mrf.mxu0
  %v1134 = vadd.f32 0.0, %v1133
  %v1135 = vpop.f32.mrf.mxu0
  %v1136 = vadd.f32 0.0, %v1135
  %1137 = vmatmul.bf16.gmra.mxu0 %v1019
  %v1138 = vpop.f32.mrf.mxu0
  %v1139 = vadd.f32 0.0, %v1138
  %v1140 = vpop.f32.mrf.mxu0
  %v1141 = vadd.f32 0.0, %v1140
  %1142 = vmatmul.bf16.gmra.mxu0 %v1022
  %v1143 = vpop.f32.mrf.mxu0
  %v1144 = vadd.f32 0.0, %v1143
  %v1145 = vpop.f32.mrf.mxu0
  %v1146 = vadd.f32 0.0, %v1145
  %1147 = vmatmul.bf16.gmra.mxu0 %v1025
  %v1148 = vpop.f32.mrf.mxu0
  %v1149 = vadd.f32 0.0, %v1148
  %v1150 = vpop.f32.mrf.mxu0
  %v1151 = vadd.f32 0.0, %v1150
  %1152 = vmatmul.bf16.gmra.mxu0 %v1028
  %v1153 = vpop.f32.mrf.mxu0
  %v1154 = vadd.f32 0.0, %v1153
  %v1155 = vpop.f32.mrf.mxu0
  %v1156 = vadd.f32 0.0, %v1155
  %1157 = vmatmul.bf16.gmra.mxu0 %v1031
  %v1158 = vpop.f32.mrf.mxu0
  %v1159 = vadd.f32 0.0, %v1158
  %v1160 = vpop.f32.mrf.mxu0
  %v1161 = vadd.f32 0.0, %v1160
  %1162 = vmatmul.bf16.gmra.mxu0 %v1034
  %v1163 = vpop.f32.mrf.mxu0
  %v1164 = vadd.f32 0.0, %v1163
  %v1165 = vpop.f32.mrf.mxu0
  %v1166 = vadd.f32 0.0, %v1165
  %1167 = vmatmul.bf16.gmra.mxu0 %v1037
  %v1168 = vpop.f32.mrf.mxu0
  %v1169 = vadd.f32 0.0, %v1168
  %v1170 = vpop.f32.mrf.mxu0
  %1171 = vdwg.mxu0
  %s1172 = scalar_lea.vmem %s0, 588
  %v1173 = vld [vmem:[%s1172] sm:$0xf]
  %v1174 = vld [vmem:[%s1172 + $0x4] sm:$0xf]
  %v1175 = vld [vmem:[%s1172 + $0x8] sm:$0xf]
  %v1176 = vld [vmem:[%s1172 + $0xc] sm:$0xf]
  %v1177 = vld [vmem:[%s1172 + $0x10] sm:$0xf]
  %v1178 = vld [vmem:[%s1172 + $0x14] sm:$0xf]
  %v1179 = vld [vmem:[%s1172 + $0x18] sm:$0xf]
  %v1180 = vld [vmem:[%s1172 + $0x1c] sm:$0xf]
  %v1181 = vld [vmem:[%s1172 + $0x20] sm:$0xf]
  %v1182 = vld [vmem:[%s1172 + $0x24] sm:$0xf]
  %v1183 = vld [vmem:[%s1172 + $0x28] sm:$0xf]
  %v1184 = vld [vmem:[%s1172 + $0x2c] sm:$0xf]
  %v1185 = vld [vmem:[%s1172 + $0x30] sm:$0xf]
  %v1186 = vld [vmem:[%s1172 + $0x34] sm:$0xf]
  %v1187 = vld [vmem:[%s1172 + $0x38] sm:$0xf]
  %v1188 = vld [vmem:[%s1172 + $0x3c] sm:$0xf]
  %v1189 = vld [vmem:[%s1172 + $0x40] sm:$0xf]
  %v1190 = vld [vmem:[%s1172 + $0x44] sm:$0xf]
  %v1191 = vld [vmem:[%s1172 + $0x48] sm:$0xf]
  %v1192 = vld [vmem:[%s1172 + $0x4c] sm:$0xf]
  %v1193 = vld [vmem:[%s1172 + $0x50] sm:$0xf]
  %v1194 = vld [vmem:[%s1172 + $0x54] sm:$0xf]
  %v1195 = vld [vmem:[%s1172 + $0x58] sm:$0xf]
  %v1196 = vld [vmem:[%s1172 + $0x5c] sm:$0xf]
  %v1197 = vld [vmem:[%s1172 + $0x60] sm:$0xf]
  %v1198 = vld [vmem:[%s1172 + $0x64] sm:$0xf]
  %v1199 = vld [vmem:[%s1172 + $0x68] sm:$0xf]
  %v1200 = vld [vmem:[%s1172 + $0x6c] sm:$0xf]
  %v1201 = vld [vmem:[%s1172 + $0x70] sm:$0xf]
  %v1202 = vld [vmem:[%s1172 + $0x74] sm:$0xf]
  %v1203 = vld [vmem:[%s1172 + $0x78] sm:$0xf]
  %v1204 = vld [vmem:[%s1172 + $0x7c] sm:$0xf]
  %v1205 = vld [vmem:[%s1172 + $0x80] sm:$0xf]
  %v1206 = vld [vmem:[%s1172 + $0x84] sm:$0xf]
  %v1207 = vld [vmem:[%s1172 + $0x88] sm:$0xf]
  %v1208 = vld [vmem:[%s1172 + $0x8c] sm:$0xf]
  %v1209 = vld [vmem:[%s1172 + $0x90] sm:$0xf]
  %v1210 = vld [vmem:[%s1172 + $0x94] sm:$0xf]
  %v1211 = vld [vmem:[%s1172 + $0x98] sm:$0xf]
  %v1212 = vld [vmem:[%s1172 + $0x9c] sm:$0xf]
  %v1213 = vld [vmem:[%s1172 + $0xa0] sm:$0xf]
  %v1214 = vld [vmem:[%s1172 + $0xa4] sm:$0xf]
  %v1215 = vld [vmem:[%s1172 + $0xa8] sm:$0xf]
  %v1216 = vld [vmem:[%s1172 + $0xac] sm:$0xf]
  %v1217 = vld [vmem:[%s1172 + $0xb0] sm:$0xf]
  %v1218 = vld [vmem:[%s1172 + $0xb4] sm:$0xf]
  %v1219 = vld [vmem:[%s1172 + $0xb8] sm:$0xf]
  %v1220 = vld [vmem:[%s1172 + $0xbc] sm:$0xf]
  %v1221 = vld [vmem:[%s1172 + $0xc0] sm:$0xf]
  %v1271 = vunpack.c.l.b16 %v1173
  %v1272 = vunpack.c.l.b16 %v1174
  %v1273 = vunpack.c.l.b16 %v1175
  %v1274 = vunpack.c.l.b16 %v1176
  %v1275 = vunpack.c.l.b16 %v1177
  %v1276 = vunpack.c.l.b16 %v1178
  %v1277 = vunpack.c.l.b16 %v1179
  %v1278 = vunpack.c.l.b16 %v1180
  %v1279 = vunpack.c.l.b16 %v1181
  %v1280 = vunpack.c.l.b16 %v1182
  %v1281 = vunpack.c.l.b16 %v1183
  %v1282 = vunpack.c.l.b16 %v1184
  %v1283 = vunpack.c.l.b16 %v1185
  %v1284 = vunpack.c.l.b16 %v1186
  %v1285 = vunpack.c.l.b16 %v1187
  %v1286 = vunpack.c.l.b16 %v1188
  %v1287 = vunpack.c.l.b16 %v1189
  %v1288 = vunpack.c.l.b16 %v1190
  %v1289 = vunpack.c.l.b16 %v1191
  %v1290 = vunpack.c.l.b16 %v1192
  %v1291 = vunpack.c.l.b16 %v1193
  %v1292 = vunpack.c.l.b16 %v1194
  %v1293 = vunpack.c.l.b16 %v1195
  %v1294 = vunpack.c.l.b16 %v1196
  %v1295 = vunpack.c.l.b16 %v1197
  %v1296 = vunpack.c.l.b16 %v1198
  %v1297 = vunpack.c.l.b16 %v1199
  %v1298 = vunpack.c.l.b16 %v1200
  %v1299 = vunpack.c.l.b16 %v1201
  %v1300 = vunpack.c.l.b16 %v1202
  %v1301 = vunpack.c.l.b16 %v1203
  %v1302 = vunpack.c.l.b16 %v1204
  %v1303 = vunpack.c.l.b16 %v1205
  %v1304 = vunpack.c.l.b16 %v1206
  %v1305 = vunpack.c.l.b16 %v1207
  %v1306 = vunpack.c.l.b16 %v1208
  %v1307 = vunpack.c.l.b16 %v1209
  %v1308 = vunpack.c.l.b16 %v1210
  %v1309 = vunpack.c.l.b16 %v1211
  %v1310 = vunpack.c.l.b16 %v1212
  %v1311 = vunpack.c.l.b16 %v1213
  %v1312 = vunpack.c.l.b16 %v1214
  %v1313 = vunpack.c.l.b16 %v1215
  %v1314 = vunpack.c.l.b16 %v1216
  %v1315 = vunpack.c.l.b16 %v1217
  %v1316 = vunpack.c.l.b16 %v1218
  %v1317 = vunpack.c.l.b16 %v1219
  %v1318 = vunpack.c.l.b16 %v1220
  %v1319 = vunpack.c.l.b16 %v1221
  %v1320 = vpack.c.b16 %v1272, %v1271
  %v1321 = vpack.c.b16 %v1274, %v1273
  %v1322 = vpack.c.b16 %v1276, %v1275
  %v1323 = vpack.c.b16 %v1278, %v1277
  %v1324 = vpack.c.b16 %v1280, %v1279
  %v1325 = vpack.c.b16 %v1282, %v1281
  %v1326 = vpack.c.b16 %v1284, %v1283
  %v1327 = vpack.c.b16 %v1286, %v1285
  %v1328 = vpack.c.b16 %v1288, %v1287
  %v1329 = vpack.c.b16 %v1290, %v1289
  %v1330 = vpack.c.b16 %v1292, %v1291
  %v1331 = vpack.c.b16 %v1294, %v1293
  %v1332 = vpack.c.b16 %v1296, %v1295
  %v1333 = vpack.c.b16 %v1298, %v1297
  %v1334 = vpack.c.b16 %v1300, %v1299
  %v1335 = vpack.c.b16 %v1302, %v1301
  %v1336 = vpack.c.b16 %v1304, %v1303
  %v1337 = vpack.c.b16 %v1306, %v1305
  %v1338 = vpack.c.b16 %v1308, %v1307
  %v1339 = vpack.c.b16 %v1310, %v1309
  %v1340 = vpack.c.b16 %v1312, %v1311
  %v1341 = vpack.c.b16 %v1314, %v1313
  %v1342 = vpack.c.b16 %v1316, %v1315
  %v1343 = vpack.c.b16 %v1318, %v1317
  %v1344 = vpack.c.b16 %v1319, %v1319
  %v1346 = vsel %vm194, %v1320, 0
  %v1349 = vsel %vm194, %v1321, 0
  %v1352 = vsel %vm194, %v1322, 0
  %v1355 = vsel %vm194, %v1323, 0
  %v1358 = vsel %vm194, %v1324, 0
  %v1361 = vsel %vm194, %v1325, 0
  %v1364 = vsel %vm194, %v1326, 0
  %v1367 = vsel %vm194, %v1327, 0
  %v1370 = vsel %vm194, %v1328, 0
  %v1373 = vsel %vm194, %v1329, 0
  %v1376 = vsel %vm194, %v1330, 0
  %v1379 = vsel %vm194, %v1331, 0
  %v1382 = vsel %vm194, %v1332, 0
  %v1385 = vsel %vm194, %v1333, 0
  %v1388 = vsel %vm194, %v1334, 0
  %v1391 = vsel %vm194, %v1335, 0
  %v1394 = vsel %vm194, %v1336, 0
  %v1397 = vsel %vm194, %v1337, 0
  %v1400 = vsel %vm194, %v1338, 0
  %v1403 = vsel %vm194, %v1339, 0
  %v1406 = vsel %vm194, %v1340, 0
  %v1409 = vsel %vm194, %v1341, 0
  %v1412 = vsel %vm194, %v1342, 0
  %v1415 = vsel %vm194, %v1343, 0
  %v1418 = vsel %vm194, %v1344, 0
  %1420 = vmatpush.bf16.msra.mxu0 0
  %1421 = vmatpush.bf16.msra.mxu0 0
  %1422 = vmatpush.bf16.msra.mxu0 0
  %1423 = vmatpush.bf16.msra.mxu0 0
  %1424 = vmatpush.bf16.msra.mxu0 0
  %1425 = vmatpush.bf16.msra.mxu0 0
  %1426 = vmatpush.bf16.msra.mxu0 0
  %1427 = vmatpush.bf16.msra.mxu0 %v275
  %1428 = vmatmul.bf16.gmra.mxu0 %v1346
  %v1429 = vpop.f32.mrf.mxu0
  %v1430 = vadd.f32 0.0, %v1429
  %v1431 = vpop.f32.mrf.mxu0
  %v1432 = vadd.f32 0.0, %v1431
  %1433 = vmatmul.bf16.gmra.mxu0 %v1349
  %v1434 = vpop.f32.mrf.mxu0
  %v1435 = vadd.f32 0.0, %v1434
  %v1436 = vpop.f32.mrf.mxu0
  %v1437 = vadd.f32 0.0, %v1436
  %1438 = vmatmul.bf16.gmra.mxu0 %v1352
  %v1439 = vpop.f32.mrf.mxu0
  %v1440 = vadd.f32 0.0, %v1439
  %v1441 = vpop.f32.mrf.mxu0
  %v1442 = vadd.f32 0.0, %v1441
  %1443 = vmatmul.bf16.gmra.mxu0 %v1355
  %v1444 = vpop.f32.mrf.mxu0
  %v1445 = vadd.f32 0.0, %v1444
  %v1446 = vpop.f32.mrf.mxu0
  %v1447 = vadd.f32 0.0, %v1446
  %1448 = vmatmul.bf16.gmra.mxu0 %v1358
  %v1449 = vpop.f32.mrf.mxu0
  %v1450 = vadd.f32 0.0, %v1449
  %v1451 = vpop.f32.mrf.mxu0
  %v1452 = vadd.f32 0.0, %v1451
  %1453 = vmatmul.bf16.gmra.mxu0 %v1361
  %v1454 = vpop.f32.mrf.mxu0
  %v1455 = vadd.f32 0.0, %v1454
  %v1456 = vpop.f32.mrf.mxu0
  %v1457 = vadd.f32 0.0, %v1456
  %1458 = vmatmul.bf16.gmra.mxu0 %v1364
  %v1459 = vpop.f32.mrf.mxu0
  %v1460 = vadd.f32 0.0, %v1459
  %v1461 = vpop.f32.mrf.mxu0
  %v1462 = vadd.f32 0.0, %v1461
  %1463 = vmatmul.bf16.gmra.mxu0 %v1367
  %v1464 = vpop.f32.mrf.mxu0
  %v1465 = vadd.f32 0.0, %v1464
  %v1466 = vpop.f32.mrf.mxu0
  %v1467 = vadd.f32 0.0, %v1466
  %1468 = vmatmul.bf16.gmra.mxu0 %v1370
  %v1469 = vpop.f32.mrf.mxu0
  %v1470 = vadd.f32 0.0, %v1469
  %v1471 = vpop.f32.mrf.mxu0
  %v1472 = vadd.f32 0.0, %v1471
  %1473 = vmatmul.bf16.gmra.mxu0 %v1373
  %v1474 = vpop.f32.mrf.mxu0
  %v1475 = vadd.f32 0.0, %v1474
  %v1476 = vpop.f32.mrf.mxu0
  %v1477 = vadd.f32 0.0, %v1476
  %1478 = vmatmul.bf16.gmra.mxu0 %v1376
  %v1479 = vpop.f32.mrf.mxu0
  %v1480 = vadd.f32 0.0, %v1479
  %v1481 = vpop.f32.mrf.mxu0
  %v1482 = vadd.f32 0.0, %v1481
  %1483 = vmatmul.bf16.gmra.mxu0 %v1379
  %v1484 = vpop.f32.mrf.mxu0
  %v1485 = vadd.f32 0.0, %v1484
  %v1486 = vpop.f32.mrf.mxu0
  %v1487 = vadd.f32 0.0, %v1486
  %1488 = vmatmul.bf16.gmra.mxu0 %v1382
  %v1489 = vpop.f32.mrf.mxu0
  %v1490 = vadd.f32 0.0, %v1489
  %v1491 = vpop.f32.mrf.mxu0
  %v1492 = vadd.f32 0.0, %v1491
  %1493 = vmatmul.bf16.gmra.mxu0 %v1385
  %v1494 = vpop.f32.mrf.mxu0
  %v1495 = vadd.f32 0.0, %v1494
  %v1496 = vpop.f32.mrf.mxu0
  %v1497 = vadd.f32 0.0, %v1496
  %1498 = vmatmul.bf16.gmra.mxu0 %v1388
  %v1499 = vpop.f32.mrf.mxu0
  %v1500 = vadd.f32 0.0, %v1499
  %v1501 = vpop.f32.mrf.mxu0
  %v1502 = vadd.f32 0.0, %v1501
  %1503 = vmatmul.bf16.gmra.mxu0 %v1391
  %v1504 = vpop.f32.mrf.mxu0
  %v1505 = vadd.f32 0.0, %v1504
  %v1506 = vpop.f32.mrf.mxu0
  %v1507 = vadd.f32 0.0, %v1506
  %1508 = vmatmul.bf16.gmra.mxu0 %v1394
  %v1509 = vpop.f32.mrf.mxu0
  %v1510 = vadd.f32 0.0, %v1509
  %v1511 = vpop.f32.mrf.mxu0
  %v1512 = vadd.f32 0.0, %v1511
  %1513 = vmatmul.bf16.gmra.mxu0 %v1397
  %v1514 = vpop.f32.mrf.mxu0
  %v1515 = vadd.f32 0.0, %v1514
  %v1516 = vpop.f32.mrf.mxu0
  %v1517 = vadd.f32 0.0, %v1516
  %1518 = vmatmul.bf16.gmra.mxu0 %v1400
  %v1519 = vpop.f32.mrf.mxu0
  %v1520 = vadd.f32 0.0, %v1519
  %v1521 = vpop.f32.mrf.mxu0
  %v1522 = vadd.f32 0.0, %v1521
  %1523 = vmatmul.bf16.gmra.mxu0 %v1403
  %v1524 = vpop.f32.mrf.mxu0
  %v1525 = vadd.f32 0.0, %v1524
  %v1526 = vpop.f32.mrf.mxu0
  %v1527 = vadd.f32 0.0, %v1526
  %1528 = vmatmul.bf16.gmra.mxu0 %v1406
  %v1529 = vpop.f32.mrf.mxu0
  %v1530 = vadd.f32 0.0, %v1529
  %v1531 = vpop.f32.mrf.mxu0
  %v1532 = vadd.f32 0.0, %v1531
  %1533 = vmatmul.bf16.gmra.mxu0 %v1409
  %v1534 = vpop.f32.mrf.mxu0
  %v1535 = vadd.f32 0.0, %v1534
  %v1536 = vpop.f32.mrf.mxu0
  %v1537 = vadd.f32 0.0, %v1536
  %1538 = vmatmul.bf16.gmra.mxu0 %v1412
  %v1539 = vpop.f32.mrf.mxu0
  %v1540 = vadd.f32 0.0, %v1539
  %v1541 = vpop.f32.mrf.mxu0
  %v1542 = vadd.f32 0.0, %v1541
  %1543 = vmatmul.bf16.gmra.mxu0 %v1415
  %v1544 = vpop.f32.mrf.mxu0
  %v1545 = vadd.f32 0.0, %v1544
  %v1546 = vpop.f32.mrf.mxu0
  %v1547 = vadd.f32 0.0, %v1546
  %1548 = vmatmul.bf16.gmra.mxu0 %v1418
  %v1549 = vpop.f32.mrf.mxu0
  %v1550 = vadd.f32 0.0, %v1549
  %v1551 = vpop.f32.mrf.mxu0
  %1552 = vdwg.mxu0
  %v1553 = vmax.f32 %v287, %v668
  %v1554 = vmax.f32 %v289, %v670
  %v1555 = vmax.f32 %v292, %v673
  %v1556 = vmax.f32 %v294, %v675
  %v1557 = vmax.f32 %v297, %v678
  %v1558 = vmax.f32 %v299, %v680
  %v1559 = vmax.f32 %v302, %v683
  %v1560 = vmax.f32 %v304, %v685
  %v1561 = vmax.f32 %v307, %v688
  %v1562 = vmax.f32 %v309, %v690
  %v1563 = vmax.f32 %v312, %v693
  %v1564 = vmax.f32 %v314, %v695
  %v1565 = vmax.f32 %v317, %v698
  %v1566 = vmax.f32 %v319, %v700
  %v1567 = vmax.f32 %v322, %v703
  %v1568 = vmax.f32 %v324, %v705
  %v1569 = vmax.f32 %v327, %v708
  %v1570 = vmax.f32 %v329, %v710
  %v1571 = vmax.f32 %v332, %v713
  %v1572 = vmax.f32 %v334, %v715
  %v1573 = vmax.f32 %v337, %v718
  %v1574 = vmax.f32 %v339, %v720
  %v1575 = vmax.f32 %v342, %v723
  %v1576 = vmax.f32 %v344, %v725
  %v1577 = vmax.f32 %v347, %v728
  %v1578 = vmax.f32 %v349, %v730
  %v1579 = vmax.f32 %v352, %v733
  %v1580 = vmax.f32 %v354, %v735
  %v1581 = vmax.f32 %v357, %v738
  %v1582 = vmax.f32 %v359, %v740
  %v1583 = vmax.f32 %v362, %v743
  %v1584 = vmax.f32 %v364, %v745
  %v1585 = vmax.f32 %v367, %v748
  %v1586 = vmax.f32 %v369, %v750
  %v1587 = vmax.f32 %v372, %v753
  %v1588 = vmax.f32 %v374, %v755
  %v1589 = vmax.f32 %v377, %v758
  %v1590 = vmax.f32 %v379, %v760
  %v1591 = vmax.f32 %v382, %v763
  %v1592 = vmax.f32 %v384, %v765
  %v1593 = vmax.f32 %v387, %v768
  %v1594 = vmax.f32 %v389, %v770
  %v1595 = vmax.f32 %v392, %v773
  %v1596 = vmax.f32 %v394, %v775
  %v1597 = vmax.f32 %v397, %v778
  %v1598 = vmax.f32 %v399, %v780
  %v1599 = vmax.f32 %v402, %v783
  %v1600 = vmax.f32 %v404, %v785
  %v1601 = vmax.f32 %v407, %v788
  %v1602 = vmax.f32 %v1049, %v1430
  %v1603 = vmax.f32 %v1051, %v1432
  %v1604 = vmax.f32 %v1054, %v1435
  %v1605 = vmax.f32 %v1056, %v1437
  %v1606 = vmax.f32 %v1059, %v1440
  %v1607 = vmax.f32 %v1061, %v1442
  %v1608 = vmax.f32 %v1064, %v1445
  %v1609 = vmax.f32 %v1066, %v1447
  %v1610 = vmax.f32 %v1069, %v1450
  %v1611 = vmax.f32 %v1071, %v1452
  %v1612 = vmax.f32 %v1074, %v1455
  %v1613 = vmax.f32 %v1076, %v1457
  %v1614 = vmax.f32 %v1079, %v1460
  %v1615 = vmax.f32 %v1081, %v1462
  %v1616 = vmax.f32 %v1084, %v1465
  %v1617 = vmax.f32 %v1086, %v1467
  %v1618 = vmax.f32 %v1089, %v1470
  %v1619 = vmax.f32 %v1091, %v1472
  %v1620 = vmax.f32 %v1094, %v1475
  %v1621 = vmax.f32 %v1096, %v1477
  %v1622 = vmax.f32 %v1099, %v1480
  %v1623 = vmax.f32 %v1101, %v1482
  %v1624 = vmax.f32 %v1104, %v1485
  %v1625 = vmax.f32 %v1106, %v1487
  %v1626 = vmax.f32 %v1109, %v1490
  %v1627 = vmax.f32 %v1111, %v1492
  %v1628 = vmax.f32 %v1114, %v1495
  %v1629 = vmax.f32 %v1116, %v1497
  %v1630 = vmax.f32 %v1119, %v1500
  %v1631 = vmax.f32 %v1121, %v1502
  %v1632 = vmax.f32 %v1124, %v1505
  %v1633 = vmax.f32 %v1126, %v1507
  %v1634 = vmax.f32 %v1129, %v1510
  %v1635 = vmax.f32 %v1131, %v1512
  %v1636 = vmax.f32 %v1134, %v1515
  %v1637 = vmax.f32 %v1136, %v1517
  %v1638 = vmax.f32 %v1139, %v1520
  %v1639 = vmax.f32 %v1141, %v1522
  %v1640 = vmax.f32 %v1144, %v1525
  %v1641 = vmax.f32 %v1146, %v1527
  %v1642 = vmax.f32 %v1149, %v1530
  %v1643 = vmax.f32 %v1151, %v1532
  %v1644 = vmax.f32 %v1154, %v1535
  %v1645 = vmax.f32 %v1156, %v1537
  %v1646 = vmax.f32 %v1159, %v1540
  %v1647 = vmax.f32 %v1161, %v1542
  %v1648 = vmax.f32 %v1164, %v1545
  %v1649 = vmax.f32 %v1166, %v1547
  %v1650 = vmax.f32 %v1169, %v1550
  %v1651 = vmax.f32 %v1553, %v1602
  %v1652 = vmax.f32 %v1554, %v1603
  %v1653 = vmax.f32 %v1555, %v1604
  %v1654 = vmax.f32 %v1556, %v1605
  %v1655 = vmax.f32 %v1557, %v1606
  %v1656 = vmax.f32 %v1558, %v1607
  %v1657 = vmax.f32 %v1559, %v1608
  %v1658 = vmax.f32 %v1560, %v1609
  %v1659 = vmax.f32 %v1561, %v1610
  %v1660 = vmax.f32 %v1562, %v1611
  %v1661 = vmax.f32 %v1563, %v1612
  %v1662 = vmax.f32 %v1564, %v1613
  %v1663 = vmax.f32 %v1565, %v1614
  %v1664 = vmax.f32 %v1566, %v1615
  %v1665 = vmax.f32 %v1567, %v1616
  %v1666 = vmax.f32 %v1568, %v1617
  %v1667 = vmax.f32 %v1569, %v1618
  %v1668 = vmax.f32 %v1570, %v1619
  %v1669 = vmax.f32 %v1571, %v1620
  %v1670 = vmax.f32 %v1572, %v1621
  %v1671 = vmax.f32 %v1573, %v1622
  %v1672 = vmax.f32 %v1574, %v1623
  %v1673 = vmax.f32 %v1575, %v1624
  %v1674 = vmax.f32 %v1576, %v1625
  %v1675 = vmax.f32 %v1577, %v1626
  %v1676 = vmax.f32 %v1578, %v1627
  %v1677 = vmax.f32 %v1579, %v1628
  %v1678 = vmax.f32 %v1580, %v1629
  %v1679 = vmax.f32 %v1581, %v1630
  %v1680 = vmax.f32 %v1582, %v1631
  %v1681 = vmax.f32 %v1583, %v1632
  %v1682 = vmax.f32 %v1584, %v1633
  %v1683 = vmax.f32 %v1585, %v1634
  %v1684 = vmax.f32 %v1586, %v1635
  %v1685 = vmax.f32 %v1587, %v1636
  %v1686 = vmax.f32 %v1588, %v1637
  %v1687 = vmax.f32 %v1589, %v1638
  %v1688 = vmax.f32 %v1590, %v1639
  %v1689 = vmax.f32 %v1591, %v1640
  %v1690 = vmax.f32 %v1592, %v1641
  %v1691 = vmax.f32 %v1593, %v1642
  %v1692 = vmax.f32 %v1594, %v1643
  %v1693 = vmax.f32 %v1595, %v1644
  %v1694 = vmax.f32 %v1596, %v1645
  %v1695 = vmax.f32 %v1597, %v1646
  %v1696 = vmax.f32 %v1598, %v1647
  %v1697 = vmax.f32 %v1599, %v1648
  %v1698 = vmax.f32 %v1600, %v1649
  %v1699 = vmax.f32 %v1601, %v1650
  %v1700 = vld [vmem:[%s2] sm:$0x1]
  %v1702 = vperm.slane %v1700, 0
  %v1704 = vadd.f32 %v1651, %v1702
  %v1705 = vadd.f32 %v1652, %v1702
  %v1706 = vadd.f32 %v1653, %v1702
  %v1707 = vadd.f32 %v1654, %v1702
  %v1708 = vadd.f32 %v1655, %v1702
  %v1709 = vadd.f32 %v1656, %v1702
  %v1710 = vadd.f32 %v1657, %v1702
  %v1711 = vadd.f32 %v1658, %v1702
  %v1712 = vadd.f32 %v1659, %v1702
  %v1713 = vadd.f32 %v1660, %v1702
  %v1714 = vadd.f32 %v1661, %v1702
  %v1715 = vadd.f32 %v1662, %v1702
  %v1716 = vadd.f32 %v1663, %v1702
  %v1717 = vadd.f32 %v1664, %v1702
  %v1718 = vadd.f32 %v1665, %v1702
  %v1719 = vadd.f32 %v1666, %v1702
  %v1720 = vadd.f32 %v1667, %v1702
  %v1721 = vadd.f32 %v1668, %v1702
  %v1722 = vadd.f32 %v1669, %v1702
  %v1723 = vadd.f32 %v1670, %v1702
  %v1724 = vadd.f32 %v1671, %v1702
  %v1725 = vadd.f32 %v1672, %v1702
  %v1726 = vadd.f32 %v1673, %v1702
  %v1727 = vadd.f32 %v1674, %v1702
  %v1728 = vadd.f32 %v1675, %v1702
  %v1729 = vadd.f32 %v1676, %v1702
  %v1730 = vadd.f32 %v1677, %v1702
  %v1731 = vadd.f32 %v1678, %v1702
  %v1732 = vadd.f32 %v1679, %v1702
  %v1733 = vadd.f32 %v1680, %v1702
  %v1734 = vadd.f32 %v1681, %v1702
  %v1735 = vadd.f32 %v1682, %v1702
  %v1736 = vadd.f32 %v1683, %v1702
  %v1737 = vadd.f32 %v1684, %v1702
  %v1738 = vadd.f32 %v1685, %v1702
  %v1739 = vadd.f32 %v1686, %v1702
  %v1740 = vadd.f32 %v1687, %v1702
  %v1741 = vadd.f32 %v1688, %v1702
  %v1742 = vadd.f32 %v1689, %v1702
  %v1743 = vadd.f32 %v1690, %v1702
  %v1744 = vadd.f32 %v1691, %v1702
  %v1745 = vadd.f32 %v1692, %v1702
  %v1746 = vadd.f32 %v1693, %v1702
  %v1747 = vadd.f32 %v1694, %v1702
  %v1748 = vadd.f32 %v1695, %v1702
  %v1749 = vadd.f32 %v1696, %v1702
  %v1750 = vadd.f32 %v1697, %v1702
  %v1751 = vadd.f32 %v1698, %v1702
  %v1752 = vadd.f32 %v1699, %v1702
  %v1753 = vmax.f32 %v1704, 0.0
  %v1754 = vmax.f32 %v1705, 0.0
  %v1755 = vmax.f32 %v1706, 0.0
  %v1756 = vmax.f32 %v1707, 0.0
  %v1757 = vmax.f32 %v1708, 0.0
  %v1758 = vmax.f32 %v1709, 0.0
  %v1759 = vmax.f32 %v1710, 0.0
  %v1760 = vmax.f32 %v1711, 0.0
  %v1761 = vmax.f32 %v1712, 0.0
  %v1762 = vmax.f32 %v1713, 0.0
  %v1763 = vmax.f32 %v1714, 0.0
  %v1764 = vmax.f32 %v1715, 0.0
  %v1765 = vmax.f32 %v1716, 0.0
  %v1766 = vmax.f32 %v1717, 0.0
  %v1767 = vmax.f32 %v1718, 0.0
  %v1768 = vmax.f32 %v1719, 0.0
  %v1769 = vmax.f32 %v1720, 0.0
  %v1770 = vmax.f32 %v1721, 0.0
  %v1771 = vmax.f32 %v1722, 0.0
  %v1772 = vmax.f32 %v1723, 0.0
  %v1773 = vmax.f32 %v1724, 0.0
  %v1774 = vmax.f32 %v1725, 0.0
  %v1775 = vmax.f32 %v1726, 0.0
  %v1776 = vmax.f32 %v1727, 0.0
  %v1777 = vmax.f32 %v1728, 0.0
  %v1778 = vmax.f32 %v1729, 0.0
  %v1779 = vmax.f32 %v1730, 0.0
  %v1780 = vmax.f32 %v1731, 0.0
  %v1781 = vmax.f32 %v1732, 0.0
  %v1782 = vmax.f32 %v1733, 0.0
  %v1783 = vmax.f32 %v1734, 0.0
  %v1784 = vmax.f32 %v1735, 0.0
  %v1785 = vmax.f32 %v1736, 0.0
  %v1786 = vmax.f32 %v1737, 0.0
  %v1787 = vmax.f32 %v1738, 0.0
  %v1788 = vmax.f32 %v1739, 0.0
  %v1789 = vmax.f32 %v1740, 0.0
  %v1790 = vmax.f32 %v1741, 0.0
  %v1791 = vmax.f32 %v1742, 0.0
  %v1792 = vmax.f32 %v1743, 0.0
  %v1793 = vmax.f32 %v1744, 0.0
  %v1794 = vmax.f32 %v1745, 0.0
  %v1795 = vmax.f32 %v1746, 0.0
  %v1796 = vmax.f32 %v1747, 0.0
  %v1797 = vmax.f32 %v1748, 0.0
  %v1798 = vmax.f32 %v1749, 0.0
  %v1799 = vmax.f32 %v1750, 0.0
  %v1800 = vmax.f32 %v1751, 0.0
  %v1801 = vmax.f32 %v1752, 0.0
  %v1802 = vpack.c.bf16 %v1753, %v1753
  %v1803 = vpack.c.bf16 %v1754, %v1754
  %v1804 = vpack.c.bf16 %v1755, %v1755
  %v1805 = vpack.c.bf16 %v1756, %v1756
  %v1806 = vpack.c.bf16 %v1757, %v1757
  %v1807 = vpack.c.bf16 %v1758, %v1758
  %v1808 = vpack.c.bf16 %v1759, %v1759
  %v1809 = vpack.c.bf16 %v1760, %v1760
  %v1810 = vpack.c.bf16 %v1761, %v1761
  %v1811 = vpack.c.bf16 %v1762, %v1762
  %v1812 = vpack.c.bf16 %v1763, %v1763
  %v1813 = vpack.c.bf16 %v1764, %v1764
  %v1814 = vpack.c.bf16 %v1765, %v1765
  %v1815 = vpack.c.bf16 %v1766, %v1766
  %v1816 = vpack.c.bf16 %v1767, %v1767
  %v1817 = vpack.c.bf16 %v1768, %v1768
  %v1818 = vpack.c.bf16 %v1769, %v1769
  %v1819 = vpack.c.bf16 %v1770, %v1770
  %v1820 = vpack.c.bf16 %v1771, %v1771
  %v1821 = vpack.c.bf16 %v1772, %v1772
  %v1822 = vpack.c.bf16 %v1773, %v1773
  %v1823 = vpack.c.bf16 %v1774, %v1774
  %v1824 = vpack.c.bf16 %v1775, %v1775
  %v1825 = vpack.c.bf16 %v1776, %v1776
  %v1826 = vpack.c.bf16 %v1777, %v1777
  %v1827 = vpack.c.bf16 %v1778, %v1778
  %v1828 = vpack.c.bf16 %v1779, %v1779
  %v1829 = vpack.c.bf16 %v1780, %v1780
  %v1830 = vpack.c.bf16 %v1781, %v1781
  %v1831 = vpack.c.bf16 %v1782, %v1782
  %v1832 = vpack.c.bf16 %v1783, %v1783
  %v1833 = vpack.c.bf16 %v1784, %v1784
  %v1834 = vpack.c.bf16 %v1785, %v1785
  %v1835 = vpack.c.bf16 %v1786, %v1786
  %v1836 = vpack.c.bf16 %v1787, %v1787
  %v1837 = vpack.c.bf16 %v1788, %v1788
  %v1838 = vpack.c.bf16 %v1789, %v1789
  %v1839 = vpack.c.bf16 %v1790, %v1790
  %v1840 = vpack.c.bf16 %v1791, %v1791
  %v1841 = vpack.c.bf16 %v1792, %v1792
  %v1842 = vpack.c.bf16 %v1793, %v1793
  %v1843 = vpack.c.bf16 %v1794, %v1794
  %v1844 = vpack.c.bf16 %v1795, %v1795
  %v1845 = vpack.c.bf16 %v1796, %v1796
  %v1846 = vpack.c.bf16 %v1797, %v1797
  %v1847 = vpack.c.bf16 %v1798, %v1798
  %v1848 = vpack.c.bf16 %v1799, %v1799
  %v1849 = vpack.c.bf16 %v1800, %v1800
  %v1850 = vpack.c.bf16 %v1801, %v1801
  %vm1851 = vcmask 257024
  %1852 = vst.msk [vmem:[%s3] sm:$0xf] %vm1851, %v1802
  %1853 = vst.msk [vmem:[%s3 + $0x4] sm:$0xf] %vm1851, %v1803
  %1854 = vst.msk [vmem:[%s3 + $0x8] sm:$0xf] %vm1851, %v1804
  %1855 = vst.msk [vmem:[%s3 + $0xc] sm:$0xf] %vm1851, %v1805
  %1856 = vst.msk [vmem:[%s3 + $0x10] sm:$0xf] %vm1851, %v1806
  %1857 = vst.msk [vmem:[%s3 + $0x14] sm:$0xf] %vm1851, %v1807
  %1858 = vst.msk [vmem:[%s3 + $0x18] sm:$0xf] %vm1851, %v1808
  %1859 = vst.msk [vmem:[%s3 + $0x1c] sm:$0xf] %vm1851, %v1809
  %1860 = vst.msk [vmem:[%s3 + $0x20] sm:$0xf] %vm1851, %v1810
  %1861 = vst.msk [vmem:[%s3 + $0x24] sm:$0xf] %vm1851, %v1811
  %1862 = vst.msk [vmem:[%s3 + $0x28] sm:$0xf] %vm1851, %v1812
  %1863 = vst.msk [vmem:[%s3 + $0x2c] sm:$0xf] %vm1851, %v1813
  %1864 = vst.msk [vmem:[%s3 + $0x30] sm:$0xf] %vm1851, %v1814
  %1865 = vst.msk [vmem:[%s3 + $0x34] sm:$0xf] %vm1851, %v1815
  %1866 = vst.msk [vmem:[%s3 + $0x38] sm:$0xf] %vm1851, %v1816
  %1867 = vst.msk [vmem:[%s3 + $0x3c] sm:$0xf] %vm1851, %v1817
  %1868 = vst.msk [vmem:[%s3 + $0x40] sm:$0xf] %vm1851, %v1818
  %1869 = vst.msk [vmem:[%s3 + $0x44] sm:$0xf] %vm1851, %v1819
  %1870 = vst.msk [vmem:[%s3 + $0x48] sm:$0xf] %vm1851, %v1820
  %1871 = vst.msk [vmem:[%s3 + $0x4c] sm:$0xf] %vm1851, %v1821
  %1872 = vst.msk [vmem:[%s3 + $0x50] sm:$0xf] %vm1851, %v1822
  %1873 = vst.msk [vmem:[%s3 + $0x54] sm:$0xf] %vm1851, %v1823
  %1874 = vst.msk [vmem:[%s3 + $0x58] sm:$0xf] %vm1851, %v1824
  %1875 = vst.msk [vmem:[%s3 + $0x5c] sm:$0xf] %vm1851, %v1825
  %1876 = vst.msk [vmem:[%s3 + $0x60] sm:$0xf] %vm1851, %v1826
  %1877 = vst.msk [vmem:[%s3 + $0x64] sm:$0xf] %vm1851, %v1827
  %1878 = vst.msk [vmem:[%s3 + $0x68] sm:$0xf] %vm1851, %v1828
  %1879 = vst.msk [vmem:[%s3 + $0x6c] sm:$0xf] %vm1851, %v1829
  %1880 = vst.msk [vmem:[%s3 + $0x70] sm:$0xf] %vm1851, %v1830
  %1881 = vst.msk [vmem:[%s3 + $0x74] sm:$0xf] %vm1851, %v1831
  %1882 = vst.msk [vmem:[%s3 + $0x78] sm:$0xf] %vm1851, %v1832
  %1883 = vst.msk [vmem:[%s3 + $0x7c] sm:$0xf] %vm1851, %v1833
  %1884 = vst.msk [vmem:[%s3 + $0x80] sm:$0xf] %vm1851, %v1834
  %1885 = vst.msk [vmem:[%s3 + $0x84] sm:$0xf] %vm1851, %v1835
  %1886 = vst.msk [vmem:[%s3 + $0x88] sm:$0xf] %vm1851, %v1836
  %1887 = vst.msk [vmem:[%s3 + $0x8c] sm:$0xf] %vm1851, %v1837
  %1888 = vst.msk [vmem:[%s3 + $0x90] sm:$0xf] %vm1851, %v1838
  %1889 = vst.msk [vmem:[%s3 + $0x94] sm:$0xf] %vm1851, %v1839
  %1890 = vst.msk [vmem:[%s3 + $0x98] sm:$0xf] %vm1851, %v1840
  %1891 = vst.msk [vmem:[%s3 + $0x9c] sm:$0xf] %vm1851, %v1841
  %1892 = vst.msk [vmem:[%s3 + $0xa0] sm:$0xf] %vm1851, %v1842
  %1893 = vst.msk [vmem:[%s3 + $0xa4] sm:$0xf] %vm1851, %v1843
  %1894 = vst.msk [vmem:[%s3 + $0xa8] sm:$0xf] %vm1851, %v1844
  %1895 = vst.msk [vmem:[%s3 + $0xac] sm:$0xf] %vm1851, %v1845
  %1896 = vst.msk [vmem:[%s3 + $0xb0] sm:$0xf] %vm1851, %v1846
  %1897 = vst.msk [vmem:[%s3 + $0xb4] sm:$0xf] %vm1851, %v1847
  %1898 = vst.msk [vmem:[%s3 + $0xb8] sm:$0xf] %vm1851, %v1848
  %1899 = vst.msk [vmem:[%s3 + $0xbc] sm:$0xf] %vm1851, %v1849
  %1900 = vst.msk [vmem:[%s3 + $0xc0] sm:$0xf] %vm1851, %v1850
  // Predicated region
  $region14: #{fashion_cnn_forward.3} parent=0 // pred_check
    _
  $region15: #{fashion_cnn_forward.3} parent=0 // pred_check_branch
    %1902 = sbr.rel (0) target = $region17
  $region16: #{fashion_cnn_forward.3} parent=0 // pred_region
    _
  $region17: #{fashion_cnn_forward.3} parent=0 // pred_fallthru
    _
  // Predicated region
  $region18: #{fashion_cnn_forward.3} parent=0 // pred_check
    _
  $region19: #{fashion_cnn_forward.3} parent=0 // pred_check_branch
    %1904 = sbr.rel (0) target = $region21
  $region20: #{fashion_cnn_forward.3} parent=0 // pred_region
    _
  $region21: #{fashion_cnn_forward.3} parent=0 // pred_fallthru
    _

// kernel: fashion_cnn_forward.4
$region0: #{fashion_cnn_forward.4}
  #allocation0 [shape = 'u32[]', space=smem, size = 0x4, offset = 0x4, fixed_abs, tag = 'smem constant byte address 0x4 - core index']
  #allocation1 [shape = 'u32[72,128]{1,0:T(1,128)}', space=vmem, size = 0x9000, scoped, tag = 'internal scratch']
  %s0 = inlined_call_operand.vmem [shape: bf16[4,72,288], index: 0, kind: input, shape index: {}]
  %s1 = inlined_call_operand.vmem [shape: bf16[288,64], index: 1, kind: input, shape index: {}]
  %s2 = inlined_call_operand.vmem [shape: f32[1,64], index: 2, kind: input, shape index: {}]
  %s3 = inlined_call_operand.vmem [shape: bf16[72,64], index: 3, kind: output, shape index: {}]
  %s4 = sld [smem:[#allocation0]]
  $region22: #{fashion_cnn_forward.4} parent=0
    _
  %s6 = ssub.s32 1, %s4
  %s7 = scalar_select 0, %s6, %s4
  // Predicated region
  $region2: #{fashion_cnn_forward.4} parent=0 // pred_check
    _
  $region3: #{fashion_cnn_forward.4} parent=0 // pred_check_branch
    %9 = sbr.rel (0) target = $region5
  $region4: #{fashion_cnn_forward.4} parent=0 // pred_region
    _
  $region5: #{fashion_cnn_forward.4} parent=0 // pred_fallthru
    _
  // Predicated region
  $region6: #{fashion_cnn_forward.4} parent=0 // pred_check
    _
  $region7: #{fashion_cnn_forward.4} parent=0 // pred_check_branch
    %11 = sbr.rel (0) target = $region9
  $region8: #{fashion_cnn_forward.4} parent=0 // pred_region
    _
  $region9: #{fashion_cnn_forward.4} parent=0 // pred_fallthru
    _
  // Predicated region
  $region10: #{fashion_cnn_forward.4} parent=0 // pred_check
    _
  $region11: #{fashion_cnn_forward.4} parent=0 // pred_check_branch
    %13 = sbr.rel (0) target = $region13
  $region12: #{fashion_cnn_forward.4} parent=0 // pred_region
    _
  $region13: #{fashion_cnn_forward.4} parent=0 // pred_fallthru
    _
  %v15 = vld [vmem:[%s1] sm:$0xf]
  %v16 = vld [vmem:[%s1 + $0x4] sm:$0xf]
  %v17 = vld [vmem:[%s1 + $0x8] sm:$0xf]
  %v18 = vld [vmem:[%s1 + $0xc] sm:$0xf]
  %v19 = vld [vmem:[%s1 + $0x10] sm:$0xf]
  %v20 = vld [vmem:[%s1 + $0x14] sm:$0xf]
  %v21 = vld [vmem:[%s1 + $0x18] sm:$0xf]
  %v22 = vld [vmem:[%s1 + $0x1c] sm:$0xf]
  %v23 = vld [vmem:[%s1 + $0x20] sm:$0xf]
  %v24 = vld [vmem:[%s1 + $0x24] sm:$0xf]
  %v25 = vld [vmem:[%s1 + $0x28] sm:$0xf]
  %v26 = vld [vmem:[%s1 + $0x2c] sm:$0xf]
  %v27 = vld [vmem:[%s1 + $0x30] sm:$0xf]
  %v28 = vld [vmem:[%s1 + $0x34] sm:$0xf]
  %v29 = vld [vmem:[%s1 + $0x38] sm:$0xf]
  %v30 = vld [vmem:[%s1 + $0x3c] sm:$0xf]
  %v31 = vld [vmem:[%s1 + $0x40] sm:$0xf]
  %v32 = vld [vmem:[%s1 + $0x44] sm:$0xf]
  %v33 = vld [vmem:[%s1 + $0x48] sm:$0xf]
  %v34 = vld [vmem:[%s1 + $0x4c] sm:$0xf]
  %v35 = vld [vmem:[%s1 + $0x50] sm:$0xf]
  %v36 = vld [vmem:[%s1 + $0x54] sm:$0xf]
  %v37 = vld [vmem:[%s1 + $0x58] sm:$0xf]
  %v38 = vld [vmem:[%s1 + $0x5c] sm:$0xf]
  %v39 = vld [vmem:[%s1 + $0x60] sm:$0xf]
  %v40 = vld [vmem:[%s1 + $0x64] sm:$0xf]
  %v41 = vld [vmem:[%s1 + $0x68] sm:$0xf]
  %v42 = vld [vmem:[%s1 + $0x6c] sm:$0xf]
  %v43 = vld [vmem:[%s1 + $0x70] sm:$0xf]
  %v44 = vld [vmem:[%s1 + $0x74] sm:$0xf]
  %v45 = vld [vmem:[%s1 + $0x78] sm:$0xf]
  %v46 = vld [vmem:[%s1 + $0x7c] sm:$0xf]
  %v47 = vld [vmem:[%s1 + $0x80] sm:$0xf]
  %v48 = vld [vmem:[%s1 + $0x84] sm:$0xf]
  %v49 = vld [vmem:[%s1 + $0x88] sm:$0xf]
  %v50 = vld [vmem:[%s1 + $0x8c] sm:$0xf]
  %v51 = vld [vmem:[%s0] sm:$0xff]
  %v52 = vld [vmem:[%s0 + $0x8] sm:$0xf]
  %v53 = vld [vmem:[%s0 + $0xc] sm:$0xff]
  %v54 = vld [vmem:[%s0 + $0x14] sm:$0xf]
  %v55 = vld [vmem:[%s0 + $0x18] sm:$0xff]
  %v56 = vld [vmem:[%s0 + $0x20] sm:$0xf]
  %v57 = vld [vmem:[%s0 + $0x24] sm:$0xff]
  %v58 = vld [vmem:[%s0 + $0x2c] sm:$0xf]
  %v59 = vld [vmem:[%s0 + $0x30] sm:$0xff]
  %v60 = vld [vmem:[%s0 + $0x38] sm:$0xf]
  %v61 = vld [vmem:[%s0 + $0x3c] sm:$0xff]
  %v62 = vld [vmem:[%s0 + $0x44] sm:$0xf]
  %v63 = vld [vmem:[%s0 + $0x48] sm:$0xff]
  %v64 = vld [vmem:[%s0 + $0x50] sm:$0xf]
  %v65 = vld [vmem:[%s0 + $0x54] sm:$0xff]
  %v66 = vld [vmem:[%s0 + $0x5c] sm:$0xf]
  %v67 = vld [vmem:[%s0 + $0x60] sm:$0xff]
  %v68 = vld [vmem:[%s0 + $0x68] sm:$0xf]
  %v87 = vunpack.c.l.b16 %v51
  %v88 = vunpack.c.h.b16 %v51
  %v89 = vunpack.c.l.b16 %v52
  %v90 = vunpack.c.l.b16 %v53
  %v91 = vunpack.c.h.b16 %v53
  %v92 = vunpack.c.l.b16 %v54
  %v93 = vunpack.c.l.b16 %v55
  %v94 = vunpack.c.h.b16 %v55
  %v95 = vunpack.c.l.b16 %v56
  %v96 = vunpack.c.l.b16 %v57
  %v97 = vunpack.c.h.b16 %v57
  %v98 = vunpack.c.l.b16 %v58
  %v99 = vunpack.c.l.b16 %v59
  %v100 = vunpack.c.h.b16 %v59
  %v101 = vunpack.c.l.b16 %v60
  %v102 = vunpack.c.l.b16 %v61
  %v103 = vunpack.c.h.b16 %v61
  %v104 = vunpack.c.l.b16 %v62
  %v105 = vunpack.c.l.b16 %v63
  %v106 = vunpack.c.h.b16 %v63
  %v107 = vunpack.c.l.b16 %v64
  %v108 = vunpack.c.l.b16 %v65
  %v109 = vunpack.c.h.b16 %v65
  %v110 = vunpack.c.l.b16 %v66
  %v111 = vunpack.c.l.b16 %v67
  %v112 = vunpack.c.h.b16 %v67
  %v113 = vunpack.c.l.b16 %v68
  %v114 = vpack.c.b16 %v90, %v87
  %v115 = vpack.c.b16 %v91, %v88
  %v116 = vpack.c.b16 %v92, %v89
  %v117 = vpack.c.b16 %v96, %v93
  %v118 = vpack.c.b16 %v97, %v94
  %v119 = vpack.c.b16 %v98, %v95
  %v120 = vpack.c.b16 %v102, %v99
  %v121 = vpack.c.b16 %v103, %v100
  %v122 = vpack.c.b16 %v104, %v101
  %v123 = vpack.c.b16 %v108, %v105
  %v124 = vpack.c.b16 %v109, %v106
  %v125 = vpack.c.b16 %v110, %v107
  %v126 = vpack.c.b16 %v111, %v111
  %v127 = vpack.c.b16 %v112, %v112
  %v128 = vpack.c.b16 %v113, %v113
  %v175 = vunpack.c.l.b16 %v15
  %v176 = vunpack.c.l.b16 %v16
  %v177 = vunpack.c.l.b16 %v17
  %v178 = vunpack.c.l.b16 %v18
  %v179 = vunpack.c.l.b16 %v19
  %v180 = vunpack.c.l.b16 %v20
  %v181 = vunpack.c.l.b16 %v21
  %v182 = vunpack.c.l.b16 %v22
  %v183 = vunpack.c.l.b16 %v23
  %v184 = vunpack.c.l.b16 %v24
  %v185 = vunpack.c.l.b16 %v25
  %v186 = vunpack.c.l.b16 %v26
  %v187 = vunpack.c.l.b16 %v27
  %v188 = vunpack.c.l.b16 %v28
  %v189 = vunpack.c.l.b16 %v29
  %v190 = vunpack.c.l.b16 %v30
  %v191 = vunpack.c.l.b16 %v31
  %v192 = vunpack.c.l.b16 %v32
  %v193 = vunpack.c.l.b16 %v33
  %v194 = vunpack.c.l.b16 %v34
  %v195 = vunpack.c.l.b16 %v35
  %v196 = vunpack.c.l.b16 %v36
  %v197 = vunpack.c.l.b16 %v37
  %v198 = vunpack.c.l.b16 %v38
  %v199 = vunpack.c.l.b16 %v39
  %v200 = vunpack.c.l.b16 %v40
  %v201 = vunpack.c.l.b16 %v41
  %v202 = vunpack.c.l.b16 %v42
  %v203 = vunpack.c.l.b16 %v43
  %v204 = vunpack.c.l.b16 %v44
  %v205 = vunpack.c.l.b16 %v45
  %v206 = vunpack.c.l.b16 %v46
  %v207 = vunpack.c.l.b16 %v47
  %v208 = vunpack.c.l.b16 %v48
  %v209 = vunpack.c.l.b16 %v49
  %v210 = vunpack.c.l.b16 %v50
  %v211 = vpack.c.b16 %v176, %v175
  %v212 = vpack.c.b16 %v178, %v177
  %v213 = vpack.c.b16 %v180, %v179
  %v214 = vpack.c.b16 %v182, %v181
  %v215 = vpack.c.b16 %v184, %v183
  %v216 = vpack.c.b16 %v186, %v185
  %v217 = vpack.c.b16 %v188, %v187
  %v218 = vpack.c.b16 %v190, %v189
  %v219 = vpack.c.b16 %v192, %v191
  %v220 = vpack.c.b16 %v194, %v193
  %v221 = vpack.c.b16 %v196, %v195
  %v222 = vpack.c.b16 %v198, %v197
  %v223 = vpack.c.b16 %v200, %v199
  %v224 = vpack.c.b16 %v202, %v201
  %v225 = vpack.c.b16 %v204, %v203
  %v226 = vpack.c.b16 %v206, %v205
  %v227 = vpack.c.b16 %v208, %v207
  %v228 = vpack.c.b16 %v210, %v209
  %vm247 = vcmask 261120
  %v249 = vsel %vm247, %v116, 0
  %v252 = vsel %vm247, %v119, 0
  %v255 = vsel %vm247, %v122, 0
  %v258 = vsel %vm247, %v125, 0
  %v261 = vsel %vm247, %v128, 0
  %263 = vmatpush.bf16.msra.mxu0 %v218
  %264 = vmatpush.bf16.msra.mxu0 %v217
  %265 = vmatpush.bf16.msra.mxu0 %v216
  %266 = vmatpush.bf16.msra.mxu0 %v215
  %267 = vmatpush.bf16.msra.mxu0 %v214
  %268 = vmatpush.bf16.msra.mxu0 %v213
  %269 = vmatpush.bf16.msra.mxu0 %v212
  %270 = vmatpush.bf16.msra.mxu0 %v211
  %271 = vmatmul.bf16.gmra.mxu0 %v114
  %v272 = vpop.f32.mrf.mxu0
  %v273 = vadd.f32 0.0, %v272
  %v274 = vpop.f32.mrf.mxu0
  %v275 = vadd.f32 0.0, %v274
  %276 = vmatmul.bf16.gmra.mxu0 %v117
  %v277 = vpop.f32.mrf.mxu0
  %v278 = vadd.f32 0.0, %v277
  %v279 = vpop.f32.mrf.mxu0
  %v280 = vadd.f32 0.0, %v279
  %281 = vmatmul.bf16.gmra.mxu0 %v120
  %v282 = vpop.f32.mrf.mxu0
  %v283 = vadd.f32 0.0, %v282
  %v284 = vpop.f32.mrf.mxu0
  %v285 = vadd.f32 0.0, %v284
  %286 = vmatmul.bf16.gmra.mxu0 %v123
  %v287 = vpop.f32.mrf.mxu0
  %v288 = vadd.f32 0.0, %v287
  %v289 = vpop.f32.mrf.mxu0
  %v290 = vadd.f32 0.0, %v289
  %291 = vmatmul.bf16.gmra.mxu0 %v126
  %v292 = vpop.f32.mrf.mxu0
  %v293 = vadd.f32 0.0, %v292
  %v294 = vpop.f32.mrf.mxu0
  %295 = vdwg.mxu0
  %296 = vmatpush.bf16.msra.mxu0 %v226
  %297 = vmatpush.bf16.msra.mxu0 %v225
  %298 = vmatpush.bf16.msra.mxu0 %v224
  %299 = vmatpush.bf16.msra.mxu0 %v223
  %300 = vmatpush.bf16.msra.mxu0 %v222
  %301 = vmatpush.bf16.msra.mxu0 %v221
  %302 = vmatpush.bf16.msra.mxu0 %v220
  %303 = vmatpush.bf16.msra.mxu0 %v219
  %304 = vmatmul.bf16.gmra.mxu0 %v115
  %v305 = vpop.f32.mrf.mxu0
  %v306 = vadd.f32 %v273, %v305
  %v307 = vpop.f32.mrf.mxu0
  %v308 = vadd.f32 %v275, %v307
  %309 = vmatmul.bf16.gmra.mxu0 %v118
  %v310 = vpop.f32.mrf.mxu0
  %v311 = vadd.f32 %v278, %v310
  %v312 = vpop.f32.mrf.mxu0
  %v313 = vadd.f32 %v280, %v312
  %314 = vmatmul.bf16.gmra.mxu0 %v121
  %v315 = vpop.f32.mrf.mxu0
  %v316 = vadd.f32 %v283, %v315
  %v317 = vpop.f32.mrf.mxu0
  %v318 = vadd.f32 %v285, %v317
  %319 = vmatmul.bf16.gmra.mxu0 %v124
  %v320 = vpop.f32.mrf.mxu0
  %v321 = vadd.f32 %v288, %v320
  %v322 = vpop.f32.mrf.mxu0
  %v323 = vadd.f32 %v290, %v322
  %324 = vmatmul.bf16.gmra.mxu0 %v127
  %v325 = vpop.f32.mrf.mxu0
  %v326 = vadd.f32 %v293, %v325
  %v327 = vpop.f32.mrf.mxu0
  %328 = vdwg.mxu0
  %329 = vmatpush.bf16.msra.mxu0 0
  %330 = vmatpush.bf16.msra.mxu0 0
  %331 = vmatpush.bf16.msra.mxu0 0
  %332 = vmatpush.bf16.msra.mxu0 0
  %333 = vmatpush.bf16.msra.mxu0 0
  %334 = vmatpush.bf16.msra.mxu0 0
  %335 = vmatpush.bf16.msra.mxu0 %v228
  %336 = vmatpush.bf16.msra.mxu0 %v227
  %337 = vmatmul.bf16.gmra.mxu0 %v249
  %v338 = vpop.f32.mrf.mxu0
  %v339 = vadd.f32 %v306, %v338
  %v340 = vpop.f32.mrf.mxu0
  %v341 = vadd.f32 %v308, %v340
  %342 = vmatmul.bf16.gmra.mxu0 %v252
  %v343 = vpop.f32.mrf.mxu0
  %v344 = vadd.f32 %v311, %v343
  %v345 = vpop.f32.mrf.mxu0
  %v346 = vadd.f32 %v313, %v345
  %347 = vmatmul.bf16.gmra.mxu0 %v255
  %v348 = vpop.f32.mrf.mxu0
  %v349 = vadd.f32 %v316, %v348
  %v350 = vpop.f32.mrf.mxu0
  %v351 = vadd.f32 %v318, %v350
  %352 = vmatmul.bf16.gmra.mxu0 %v258
  %v353 = vpop.f32.mrf.mxu0
  %v354 = vadd.f32 %v321, %v353
  %v355 = vpop.f32.mrf.mxu0
  %v356 = vadd.f32 %v323, %v355
  %357 = vmatmul.bf16.gmra.mxu0 %v261
  %v358 = vpop.f32.mrf.mxu0
  %v359 = vadd.f32 %v326, %v358
  %v360 = vpop.f32.mrf.mxu0
  %361 = vdwg.mxu0
  %s362 = scalar_lea.vmem %s0, 108
  %v363 = vld [vmem:[%s362] sm:$0xff]
  %v364 = vld [vmem:[%s362 + $0x8] sm:$0xf]
  %v365 = vld [vmem:[%s362 + $0xc] sm:$0xff]
  %v366 = vld [vmem:[%s362 + $0x14] sm:$0xf]
  %v367 = vld [vmem:[%s362 + $0x18] sm:$0xff]
  %v368 = vld [vmem:[%s362 + $0x20] sm:$0xf]
  %v369 = vld [vmem:[%s362 + $0x24] sm:$0xff]
  %v370 = vld [vmem:[%s362 + $0x2c] sm:$0xf]
  %v371 = vld [vmem:[%s362 + $0x30] sm:$0xff]
  %v372 = vld [vmem:[%s362 + $0x38] sm:$0xf]
  %v373 = vld [vmem:[%s362 + $0x3c] sm:$0xff]
  %v374 = vld [vmem:[%s362 + $0x44] sm:$0xf]
  %v375 = vld [vmem:[%s362 + $0x48] sm:$0xff]
  %v376 = vld [vmem:[%s362 + $0x50] sm:$0xf]
  %v377 = vld [vmem:[%s362 + $0x54] sm:$0xff]
  %v378 = vld [vmem:[%s362 + $0x5c] sm:$0xf]
  %v379 = vld [vmem:[%s362 + $0x60] sm:$0xff]
  %v380 = vld [vmem:[%s362 + $0x68] sm:$0xf]
  %v399 = vunpack.c.l.b16 %v363
  %v400 = vunpack.c.h.b16 %v363
  %v401 = vunpack.c.l.b16 %v364
  %v402 = vunpack.c.l.b16 %v365
  %v403 = vunpack.c.h.b16 %v365
  %v404 = vunpack.c.l.b16 %v366
  %v405 = vunpack.c.l.b16 %v367
  %v406 = vunpack.c.h.b16 %v367
  %v407 = vunpack.c.l.b16 %v368
  %v408 = vunpack.c.l.b16 %v369
  %v409 = vunpack.c.h.b16 %v369
  %v410 = vunpack.c.l.b16 %v370
  %v411 = vunpack.c.l.b16 %v371
  %v412 = vunpack.c.h.b16 %v371
  %v413 = vunpack.c.l.b16 %v372
  %v414 = vunpack.c.l.b16 %v373
  %v415 = vunpack.c.h.b16 %v373
  %v416 = vunpack.c.l.b16 %v374
  %v417 = vunpack.c.l.b16 %v375
  %v418 = vunpack.c.h.b16 %v375
  %v419 = vunpack.c.l.b16 %v376
  %v420 = vunpack.c.l.b16 %v377
  %v421 = vunpack.c.h.b16 %v377
  %v422 = vunpack.c.l.b16 %v378
  %v423 = vunpack.c.l.b16 %v379
  %v424 = vunpack.c.h.b16 %v379
  %v425 = vunpack.c.l.b16 %v380
  %v426 = vpack.c.b16 %v402, %v399
  %v427 = vpack.c.b16 %v403, %v400
  %v428 = vpack.c.b16 %v404, %v401
  %v429 = vpack.c.b16 %v408, %v405
  %v430 = vpack.c.b16 %v409, %v406
  %v431 = vpack.c.b16 %v410, %v407
  %v432 = vpack.c.b16 %v414, %v411
  %v433 = vpack.c.b16 %v415, %v412
  %v434 = vpack.c.b16 %v416, %v413
  %v435 = vpack.c.b16 %v420, %v417
  %v436 = vpack.c.b16 %v421, %v418
  %v437 = vpack.c.b16 %v422, %v419
  %v438 = vpack.c.b16 %v423, %v423
  %v439 = vpack.c.b16 %v424, %v424
  %v440 = vpack.c.b16 %v425, %v425
  %v452 = vsel %vm247, %v428, 0
  %v455 = vsel %vm247, %v431, 0
  %v458 = vsel %vm247, %v434, 0
  %v461 = vsel %vm247, %v437, 0
  %v464 = vsel %vm247, %v440, 0
  %466 = vmatpush.bf16.msra.mxu0 %v218
  %467 = vmatpush.bf16.msra.mxu0 %v217
  %468 = vmatpush.bf16.msra.mxu0 %v216
  %469 = vmatpush.bf16.msra.mxu0 %v215
  %470 = vmatpush.bf16.msra.mxu0 %v214
  %471 = vmatpush.bf16.msra.mxu0 %v213
  %472 = vmatpush.bf16.msra.mxu0 %v212
  %473 = vmatpush.bf16.msra.mxu0 %v211
  %474 = vmatmul.bf16.gmra.mxu0 %v426
  %v475 = vpop.f32.mrf.mxu0
  %v476 = vadd.f32 0.0, %v475
  %v477 = vpop.f32.mrf.mxu0
  %v478 = vadd.f32 0.0, %v477
  %479 = vmatmul.bf16.gmra.mxu0 %v429
  %v480 = vpop.f32.mrf.mxu0
  %v481 = vadd.f32 0.0, %v480
  %v482 = vpop.f32.mrf.mxu0
  %v483 = vadd.f32 0.0, %v482
  %484 = vmatmul.bf16.gmra.mxu0 %v432
  %v485 = vpop.f32.mrf.mxu0
  %v486 = vadd.f32 0.0, %v485
  %v487 = vpop.f32.mrf.mxu0
  %v488 = vadd.f32 0.0, %v487
  %489 = vmatmul.bf16.gmra.mxu0 %v435
  %v490 = vpop.f32.mrf.mxu0
  %v491 = vadd.f32 0.0, %v490
  %v492 = vpop.f32.mrf.mxu0
  %v493 = vadd.f32 0.0, %v492
  %494 = vmatmul.bf16.gmra.mxu0 %v438
  %v495 = vpop.f32.mrf.mxu0
  %v496 = vadd.f32 0.0, %v495
  %v497 = vpop.f32.mrf.mxu0
  %498 = vdwg.mxu0
  %499 = vmatpush.bf16.msra.mxu0 %v226
  %500 = vmatpush.bf16.msra.mxu0 %v225
  %501 = vmatpush.bf16.msra.mxu0 %v224
  %502 = vmatpush.bf16.msra.mxu0 %v223
  %503 = vmatpush.bf16.msra.mxu0 %v222
  %504 = vmatpush.bf16.msra.mxu0 %v221
  %505 = vmatpush.bf16.msra.mxu0 %v220
  %506 = vmatpush.bf16.msra.mxu0 %v219
  %507 = vmatmul.bf16.gmra.mxu0 %v427
  %v508 = vpop.f32.mrf.mxu0
  %v509 = vadd.f32 %v476, %v508
  %v510 = vpop.f32.mrf.mxu0
  %v511 = vadd.f32 %v478, %v510
  %512 = vmatmul.bf16.gmra.mxu0 %v430
  %v513 = vpop.f32.mrf.mxu0
  %v514 = vadd.f32 %v481, %v513
  %v515 = vpop.f32.mrf.mxu0
  %v516 = vadd.f32 %v483, %v515
  %517 = vmatmul.bf16.gmra.mxu0 %v433
  %v518 = vpop.f32.mrf.mxu0
  %v519 = vadd.f32 %v486, %v518
  %v520 = vpop.f32.mrf.mxu0
  %v521 = vadd.f32 %v488, %v520
  %522 = vmatmul.bf16.gmra.mxu0 %v436
  %v523 = vpop.f32.mrf.mxu0
  %v524 = vadd.f32 %v491, %v523
  %v525 = vpop.f32.mrf.mxu0
  %v526 = vadd.f32 %v493, %v525
  %527 = vmatmul.bf16.gmra.mxu0 %v439
  %v528 = vpop.f32.mrf.mxu0
  %v529 = vadd.f32 %v496, %v528
  %v530 = vpop.f32.mrf.mxu0
  %531 = vdwg.mxu0
  %532 = vmatpush.bf16.msra.mxu0 0
  %533 = vmatpush.bf16.msra.mxu0 0
  %534 = vmatpush.bf16.msra.mxu0 0
  %535 = vmatpush.bf16.msra.mxu0 0
  %536 = vmatpush.bf16.msra.mxu0 0
  %537 = vmatpush.bf16.msra.mxu0 0
  %538 = vmatpush.bf16.msra.mxu0 %v228
  %539 = vmatpush.bf16.msra.mxu0 %v227
  %540 = vmatmul.bf16.gmra.mxu0 %v452
  %v541 = vpop.f32.mrf.mxu0
  %v542 = vadd.f32 %v509, %v541
  %v543 = vpop.f32.mrf.mxu0
  %v544 = vadd.f32 %v511, %v543
  %545 = vmatmul.bf16.gmra.mxu0 %v455
  %v546 = vpop.f32.mrf.mxu0
  %v547 = vadd.f32 %v514, %v546
  %v548 = vpop.f32.mrf.mxu0
  %v549 = vadd.f32 %v516, %v548
  %550 = vmatmul.bf16.gmra.mxu0 %v458
  %v551 = vpop.f32.mrf.mxu0
  %v552 = vadd.f32 %v519, %v551
  %v553 = vpop.f32.mrf.mxu0
  %v554 = vadd.f32 %v521, %v553
  %555 = vmatmul.bf16.gmra.mxu0 %v461
  %v556 = vpop.f32.mrf.mxu0
  %v557 = vadd.f32 %v524, %v556
  %v558 = vpop.f32.mrf.mxu0
  %v559 = vadd.f32 %v526, %v558
  %560 = vmatmul.bf16.gmra.mxu0 %v464
  %v561 = vpop.f32.mrf.mxu0
  %v562 = vadd.f32 %v529, %v561
  %v563 = vpop.f32.mrf.mxu0
  %564 = vdwg.mxu0
  %s565 = scalar_lea.vmem %s0, 216
  %v566 = vld [vmem:[%s565] sm:$0xff]
  %v567 = vld [vmem:[%s565 + $0x8] sm:$0xf]
  %v568 = vld [vmem:[%s565 + $0xc] sm:$0xff]
  %v569 = vld [vmem:[%s565 + $0x14] sm:$0xf]
  %v570 = vld [vmem:[%s565 + $0x18] sm:$0xff]
  %v571 = vld [vmem:[%s565 + $0x20] sm:$0xf]
  %v572 = vld [vmem:[%s565 + $0x24] sm:$0xff]
  %v573 = vld [vmem:[%s565 + $0x2c] sm:$0xf]
  %v574 = vld [vmem:[%s565 + $0x30] sm:$0xff]
  %v575 = vld [vmem:[%s565 + $0x38] sm:$0xf]
  %v576 = vld [vmem:[%s565 + $0x3c] sm:$0xff]
  %v577 = vld [vmem:[%s565 + $0x44] sm:$0xf]
  %v578 = vld [vmem:[%s565 + $0x48] sm:$0xff]
  %v579 = vld [vmem:[%s565 + $0x50] sm:$0xf]
  %v580 = vld [vmem:[%s565 + $0x54] sm:$0xff]
  %v581 = vld [vmem:[%s565 + $0x5c] sm:$0xf]
  %v582 = vld [vmem:[%s565 + $0x60] sm:$0xff]
  %v583 = vld [vmem:[%s565 + $0x68] sm:$0xf]
  %v602 = vunpack.c.l.b16 %v566
  %v603 = vunpack.c.h.b16 %v566
  %v604 = vunpack.c.l.b16 %v567
  %v605 = vunpack.c.l.b16 %v568
  %v606 = vunpack.c.h.b16 %v568
  %v607 = vunpack.c.l.b16 %v569
  %v608 = vunpack.c.l.b16 %v570
  %v609 = vunpack.c.h.b16 %v570
  %v610 = vunpack.c.l.b16 %v571
  %v611 = vunpack.c.l.b16 %v572
  %v612 = vunpack.c.h.b16 %v572
  %v613 = vunpack.c.l.b16 %v573
  %v614 = vunpack.c.l.b16 %v574
  %v615 = vunpack.c.h.b16 %v574
  %v616 = vunpack.c.l.b16 %v575
  %v617 = vunpack.c.l.b16 %v576
  %v618 = vunpack.c.h.b16 %v576
  %v619 = vunpack.c.l.b16 %v577
  %v620 = vunpack.c.l.b16 %v578
  %v621 = vunpack.c.h.b16 %v578
  %v622 = vunpack.c.l.b16 %v579
  %v623 = vunpack.c.l.b16 %v580
  %v624 = vunpack.c.h.b16 %v580
  %v625 = vunpack.c.l.b16 %v581
  %v626 = vunpack.c.l.b16 %v582
  %v627 = vunpack.c.h.b16 %v582
  %v628 = vunpack.c.l.b16 %v583
  %v629 = vpack.c.b16 %v605, %v602
  %v630 = vpack.c.b16 %v606, %v603
  %v631 = vpack.c.b16 %v607, %v604
  %v632 = vpack.c.b16 %v611, %v608
  %v633 = vpack.c.b16 %v612, %v609
  %v634 = vpack.c.b16 %v613, %v610
  %v635 = vpack.c.b16 %v617, %v614
  %v636 = vpack.c.b16 %v618, %v615
  %v637 = vpack.c.b16 %v619, %v616
  %v638 = vpack.c.b16 %v623, %v620
  %v639 = vpack.c.b16 %v624, %v621
  %v640 = vpack.c.b16 %v625, %v622
  %v641 = vpack.c.b16 %v626, %v626
  %v642 = vpack.c.b16 %v627, %v627
  %v643 = vpack.c.b16 %v628, %v628
  %v655 = vsel %vm247, %v631, 0
  %v658 = vsel %vm247, %v634, 0
  %v661 = vsel %vm247, %v637, 0
  %v664 = vsel %vm247, %v640, 0
  %v667 = vsel %vm247, %v643, 0
  %669 = vmatpush.bf16.msra.mxu0 %v218
  %670 = vmatpush.bf16.msra.mxu0 %v217
  %671 = vmatpush.bf16.msra.mxu0 %v216
  %672 = vmatpush.bf16.msra.mxu0 %v215
  %673 = vmatpush.bf16.msra.mxu0 %v214
  %674 = vmatpush.bf16.msra.mxu0 %v213
  %675 = vmatpush.bf16.msra.mxu0 %v212
  %676 = vmatpush.bf16.msra.mxu0 %v211
  %677 = vmatmul.bf16.gmra.mxu0 %v629
  %v678 = vpop.f32.mrf.mxu0
  %v679 = vadd.f32 0.0, %v678
  %v680 = vpop.f32.mrf.mxu0
  %v681 = vadd.f32 0.0, %v680
  %682 = vmatmul.bf16.gmra.mxu0 %v632
  %v683 = vpop.f32.mrf.mxu0
  %v684 = vadd.f32 0.0, %v683
  %v685 = vpop.f32.mrf.mxu0
  %v686 = vadd.f32 0.0, %v685
  %687 = vmatmul.bf16.gmra.mxu0 %v635
  %v688 = vpop.f32.mrf.mxu0
  %v689 = vadd.f32 0.0, %v688
  %v690 = vpop.f32.mrf.mxu0
  %v691 = vadd.f32 0.0, %v690
  %692 = vmatmul.bf16.gmra.mxu0 %v638
  %v693 = vpop.f32.mrf.mxu0
  %v694 = vadd.f32 0.0, %v693
  %v695 = vpop.f32.mrf.mxu0
  %v696 = vadd.f32 0.0, %v695
  %697 = vmatmul.bf16.gmra.mxu0 %v641
  %v698 = vpop.f32.mrf.mxu0
  %v699 = vadd.f32 0.0, %v698
  %v700 = vpop.f32.mrf.mxu0
  %701 = vdwg.mxu0
  %702 = vmatpush.bf16.msra.mxu0 %v226
  %703 = vmatpush.bf16.msra.mxu0 %v225
  %704 = vmatpush.bf16.msra.mxu0 %v224
  %705 = vmatpush.bf16.msra.mxu0 %v223
  %706 = vmatpush.bf16.msra.mxu0 %v222
  %707 = vmatpush.bf16.msra.mxu0 %v221
  %708 = vmatpush.bf16.msra.mxu0 %v220
  %709 = vmatpush.bf16.msra.mxu0 %v219
  %710 = vmatmul.bf16.gmra.mxu0 %v630
  %v711 = vpop.f32.mrf.mxu0
  %v712 = vadd.f32 %v679, %v711
  %v713 = vpop.f32.mrf.mxu0
  %v714 = vadd.f32 %v681, %v713
  %715 = vmatmul.bf16.gmra.mxu0 %v633
  %v716 = vpop.f32.mrf.mxu0
  %v717 = vadd.f32 %v684, %v716
  %v718 = vpop.f32.mrf.mxu0
  %v719 = vadd.f32 %v686, %v718
  %720 = vmatmul.bf16.gmra.mxu0 %v636
  %v721 = vpop.f32.mrf.mxu0
  %v722 = vadd.f32 %v689, %v721
  %v723 = vpop.f32.mrf.mxu0
  %v724 = vadd.f32 %v691, %v723
  %725 = vmatmul.bf16.gmra.mxu0 %v639
  %v726 = vpop.f32.mrf.mxu0
  %v727 = vadd.f32 %v694, %v726
  %v728 = vpop.f32.mrf.mxu0
  %v729 = vadd.f32 %v696, %v728
  %730 = vmatmul.bf16.gmra.mxu0 %v642
  %v731 = vpop.f32.mrf.mxu0
  %v732 = vadd.f32 %v699, %v731
  %v733 = vpop.f32.mrf.mxu0
  %734 = vdwg.mxu0
  %735 = vmatpush.bf16.msra.mxu0 0
  %736 = vmatpush.bf16.msra.mxu0 0
  %737 = vmatpush.bf16.msra.mxu0 0
  %738 = vmatpush.bf16.msra.mxu0 0
  %739 = vmatpush.bf16.msra.mxu0 0
  %740 = vmatpush.bf16.msra.mxu0 0
  %741 = vmatpush.bf16.msra.mxu0 %v228
  %742 = vmatpush.bf16.msra.mxu0 %v227
  %743 = vmatmul.bf16.gmra.mxu0 %v655
  %v744 = vpop.f32.mrf.mxu0
  %v745 = vadd.f32 %v712, %v744
  %v746 = vpop.f32.mrf.mxu0
  %v747 = vadd.f32 %v714, %v746
  %748 = vmatmul.bf16.gmra.mxu0 %v658
  %v749 = vpop.f32.mrf.mxu0
  %v750 = vadd.f32 %v717, %v749
  %v751 = vpop.f32.mrf.mxu0
  %v752 = vadd.f32 %v719, %v751
  %753 = vmatmul.bf16.gmra.mxu0 %v661
  %v754 = vpop.f32.mrf.mxu0
  %v755 = vadd.f32 %v722, %v754
  %v756 = vpop.f32.mrf.mxu0
  %v757 = vadd.f32 %v724, %v756
  %758 = vmatmul.bf16.gmra.mxu0 %v664
  %v759 = vpop.f32.mrf.mxu0
  %v760 = vadd.f32 %v727, %v759
  %v761 = vpop.f32.mrf.mxu0
  %v762 = vadd.f32 %v729, %v761
  %763 = vmatmul.bf16.gmra.mxu0 %v667
  %v764 = vpop.f32.mrf.mxu0
  %v765 = vadd.f32 %v732, %v764
  %v766 = vpop.f32.mrf.mxu0
  %767 = vdwg.mxu0
  %s768 = scalar_lea.vmem %s0, 324
  %v769 = vld [vmem:[%s768] sm:$0xff]
  %v770 = vld [vmem:[%s768 + $0x8] sm:$0xf]
  %v771 = vld [vmem:[%s768 + $0xc] sm:$0xff]
  %v772 = vld [vmem:[%s768 + $0x14] sm:$0xf]
  %v773 = vld [vmem:[%s768 + $0x18] sm:$0xff]
  %v774 = vld [vmem:[%s768 + $0x20] sm:$0xf]
  %v775 = vld [vmem:[%s768 + $0x24] sm:$0xff]
  %v776 = vld [vmem:[%s768 + $0x2c] sm:$0xf]
  %v777 = vld [vmem:[%s768 + $0x30] sm:$0xff]
  %v778 = vld [vmem:[%s768 + $0x38] sm:$0xf]
  %v779 = vld [vmem:[%s768 + $0x3c] sm:$0xff]
  %v780 = vld [vmem:[%s768 + $0x44] sm:$0xf]
  %v781 = vld [vmem:[%s768 + $0x48] sm:$0xff]
  %v782 = vld [vmem:[%s768 + $0x50] sm:$0xf]
  %v783 = vld [vmem:[%s768 + $0x54] sm:$0xff]
  %v784 = vld [vmem:[%s768 + $0x5c] sm:$0xf]
  %v785 = vld [vmem:[%s768 + $0x60] sm:$0xff]
  %v786 = vld [vmem:[%s768 + $0x68] sm:$0xf]
  %v805 = vunpack.c.l.b16 %v769
  %v806 = vunpack.c.h.b16 %v769
  %v807 = vunpack.c.l.b16 %v770
  %v808 = vunpack.c.l.b16 %v771
  %v809 = vunpack.c.h.b16 %v771
  %v810 = vunpack.c.l.b16 %v772
  %v811 = vunpack.c.l.b16 %v773
  %v812 = vunpack.c.h.b16 %v773
  %v813 = vunpack.c.l.b16 %v774
  %v814 = vunpack.c.l.b16 %v775
  %v815 = vunpack.c.h.b16 %v775
  %v816 = vunpack.c.l.b16 %v776
  %v817 = vunpack.c.l.b16 %v777
  %v818 = vunpack.c.h.b16 %v777
  %v819 = vunpack.c.l.b16 %v778
  %v820 = vunpack.c.l.b16 %v779
  %v821 = vunpack.c.h.b16 %v779
  %v822 = vunpack.c.l.b16 %v780
  %v823 = vunpack.c.l.b16 %v781
  %v824 = vunpack.c.h.b16 %v781
  %v825 = vunpack.c.l.b16 %v782
  %v826 = vunpack.c.l.b16 %v783
  %v827 = vunpack.c.h.b16 %v783
  %v828 = vunpack.c.l.b16 %v784
  %v829 = vunpack.c.l.b16 %v785
  %v830 = vunpack.c.h.b16 %v785
  %v831 = vunpack.c.l.b16 %v786
  %v832 = vpack.c.b16 %v808, %v805
  %v833 = vpack.c.b16 %v809, %v806
  %v834 = vpack.c.b16 %v810, %v807
  %v835 = vpack.c.b16 %v814, %v811
  %v836 = vpack.c.b16 %v815, %v812
  %v837 = vpack.c.b16 %v816, %v813
  %v838 = vpack.c.b16 %v820, %v817
  %v839 = vpack.c.b16 %v821, %v818
  %v840 = vpack.c.b16 %v822, %v819
  %v841 = vpack.c.b16 %v826, %v823
  %v842 = vpack.c.b16 %v827, %v824
  %v843 = vpack.c.b16 %v828, %v825
  %v844 = vpack.c.b16 %v829, %v829
  %v845 = vpack.c.b16 %v830, %v830
  %v846 = vpack.c.b16 %v831, %v831
  %v858 = vsel %vm247, %v834, 0
  %v861 = vsel %vm247, %v837, 0
  %v864 = vsel %vm247, %v840, 0
  %v867 = vsel %vm247, %v843, 0
  %v870 = vsel %vm247, %v846, 0
  %872 = vmatpush.bf16.msra.mxu0 %v218
  %873 = vmatpush.bf16.msra.mxu0 %v217
  %874 = vmatpush.bf16.msra.mxu0 %v216
  %875 = vmatpush.bf16.msra.mxu0 %v215
  %876 = vmatpush.bf16.msra.mxu0 %v214
  %877 = vmatpush.bf16.msra.mxu0 %v213
  %878 = vmatpush.bf16.msra.mxu0 %v212
  %879 = vmatpush.bf16.msra.mxu0 %v211
  %880 = vmatmul.bf16.gmra.mxu0 %v832
  %v881 = vpop.f32.mrf.mxu0
  %v882 = vadd.f32 0.0, %v881
  %v883 = vpop.f32.mrf.mxu0
  %v884 = vadd.f32 0.0, %v883
  %885 = vmatmul.bf16.gmra.mxu0 %v835
  %v886 = vpop.f32.mrf.mxu0
  %v887 = vadd.f32 0.0, %v886
  %v888 = vpop.f32.mrf.mxu0
  %v889 = vadd.f32 0.0, %v888
  %890 = vmatmul.bf16.gmra.mxu0 %v838
  %v891 = vpop.f32.mrf.mxu0
  %v892 = vadd.f32 0.0, %v891
  %v893 = vpop.f32.mrf.mxu0
  %v894 = vadd.f32 0.0, %v893
  %895 = vmatmul.bf16.gmra.mxu0 %v841
  %v896 = vpop.f32.mrf.mxu0
  %v897 = vadd.f32 0.0, %v896
  %v898 = vpop.f32.mrf.mxu0
  %v899 = vadd.f32 0.0, %v898
  %900 = vmatmul.bf16.gmra.mxu0 %v844
  %v901 = vpop.f32.mrf.mxu0
  %v902 = vadd.f32 0.0, %v901
  %v903 = vpop.f32.mrf.mxu0
  %904 = vdwg.mxu0
  %905 = vmatpush.bf16.msra.mxu0 %v226
  %906 = vmatpush.bf16.msra.mxu0 %v225
  %907 = vmatpush.bf16.msra.mxu0 %v224
  %908 = vmatpush.bf16.msra.mxu0 %v223
  %909 = vmatpush.bf16.msra.mxu0 %v222
  %910 = vmatpush.bf16.msra.mxu0 %v221
  %911 = vmatpush.bf16.msra.mxu0 %v220
  %912 = vmatpush.bf16.msra.mxu0 %v219
  %913 = vmatmul.bf16.gmra.mxu0 %v833
  %v914 = vpop.f32.mrf.mxu0
  %v915 = vadd.f32 %v882, %v914
  %v916 = vpop.f32.mrf.mxu0
  %v917 = vadd.f32 %v884, %v916
  %918 = vmatmul.bf16.gmra.mxu0 %v836
  %v919 = vpop.f32.mrf.mxu0
  %v920 = vadd.f32 %v887, %v919
  %v921 = vpop.f32.mrf.mxu0
  %v922 = vadd.f32 %v889, %v921
  %923 = vmatmul.bf16.gmra.mxu0 %v839
  %v924 = vpop.f32.mrf.mxu0
  %v925 = vadd.f32 %v892, %v924
  %v926 = vpop.f32.mrf.mxu0
  %v927 = vadd.f32 %v894, %v926
  %928 = vmatmul.bf16.gmra.mxu0 %v842
  %v929 = vpop.f32.mrf.mxu0
  %v930 = vadd.f32 %v897, %v929
  %v931 = vpop.f32.mrf.mxu0
  %v932 = vadd.f32 %v899, %v931
  %933 = vmatmul.bf16.gmra.mxu0 %v845
  %v934 = vpop.f32.mrf.mxu0
  %v935 = vadd.f32 %v902, %v934
  %v936 = vpop.f32.mrf.mxu0
  %937 = vdwg.mxu0
  %938 = vmatpush.bf16.msra.mxu0 0
  %939 = vmatpush.bf16.msra.mxu0 0
  %940 = vmatpush.bf16.msra.mxu0 0
  %941 = vmatpush.bf16.msra.mxu0 0
  %942 = vmatpush.bf16.msra.mxu0 0
  %943 = vmatpush.bf16.msra.mxu0 0
  %944 = vmatpush.bf16.msra.mxu0 %v228
  %945 = vmatpush.bf16.msra.mxu0 %v227
  %946 = vmatmul.bf16.gmra.mxu0 %v858
  %v947 = vpop.f32.mrf.mxu0
  %v948 = vadd.f32 %v915, %v947
  %v949 = vpop.f32.mrf.mxu0
  %v950 = vadd.f32 %v917, %v949
  %951 = vmatmul.bf16.gmra.mxu0 %v861
  %v952 = vpop.f32.mrf.mxu0
  %v953 = vadd.f32 %v920, %v952
  %v954 = vpop.f32.mrf.mxu0
  %v955 = vadd.f32 %v922, %v954
  %956 = vmatmul.bf16.gmra.mxu0 %v864
  %v957 = vpop.f32.mrf.mxu0
  %v958 = vadd.f32 %v925, %v957
  %v959 = vpop.f32.mrf.mxu0
  %v960 = vadd.f32 %v927, %v959
  %961 = vmatmul.bf16.gmra.mxu0 %v867
  %v962 = vpop.f32.mrf.mxu0
  %v963 = vadd.f32 %v930, %v962
  %v964 = vpop.f32.mrf.mxu0
  %v965 = vadd.f32 %v932, %v964
  %966 = vmatmul.bf16.gmra.mxu0 %v870
  %v967 = vpop.f32.mrf.mxu0
  %v968 = vadd.f32 %v935, %v967
  %v969 = vpop.f32.mrf.mxu0
  %970 = vdwg.mxu0
  %v971 = vmax.f32 %v339, %v542
  %v972 = vmax.f32 %v341, %v544
  %v973 = vmax.f32 %v344, %v547
  %v974 = vmax.f32 %v346, %v549
  %v975 = vmax.f32 %v349, %v552
  %v976 = vmax.f32 %v351, %v554
  %v977 = vmax.f32 %v354, %v557
  %v978 = vmax.f32 %v356, %v559
  %v979 = vmax.f32 %v359, %v562
  %v980 = vmax.f32 %v745, %v948
  %v981 = vmax.f32 %v747, %v950
  %v982 = vmax.f32 %v750, %v953
  %v983 = vmax.f32 %v752, %v955
  %v984 = vmax.f32 %v755, %v958
  %v985 = vmax.f32 %v757, %v960
  %v986 = vmax.f32 %v760, %v963
  %v987 = vmax.f32 %v762, %v965
  %v988 = vmax.f32 %v765, %v968
  %v989 = vmax.f32 %v971, %v980
  %v990 = vmax.f32 %v972, %v981
  %v991 = vmax.f32 %v973, %v982
  %v992 = vmax.f32 %v974, %v983
  %v993 = vmax.f32 %v975, %v984
  %v994 = vmax.f32 %v976, %v985
  %v995 = vmax.f32 %v977, %v986
  %v996 = vmax.f32 %v978, %v987
  %v997 = vmax.f32 %v979, %v988
  %v998 = vld [vmem:[%s2] sm:$0x1]
  %v1000 = vperm.slane %v998, 0
  %v1002 = vadd.f32 %v989, %v1000
  %v1003 = vadd.f32 %v990, %v1000
  %v1004 = vadd.f32 %v991, %v1000
  %v1005 = vadd.f32 %v992, %v1000
  %v1006 = vadd.f32 %v993, %v1000
  %v1007 = vadd.f32 %v994, %v1000
  %v1008 = vadd.f32 %v995, %v1000
  %v1009 = vadd.f32 %v996, %v1000
  %v1010 = vadd.f32 %v997, %v1000
  %v1011 = vmax.f32 %v1002, 0.0
  %v1012 = vmax.f32 %v1003, 0.0
  %v1013 = vmax.f32 %v1004, 0.0
  %v1014 = vmax.f32 %v1005, 0.0
  %v1015 = vmax.f32 %v1006, 0.0
  %v1016 = vmax.f32 %v1007, 0.0
  %v1017 = vmax.f32 %v1008, 0.0
  %v1018 = vmax.f32 %v1009, 0.0
  %v1019 = vmax.f32 %v1010, 0.0
  %v1020 = vpack.c.bf16 %v1011, %v1011
  %v1021 = vpack.c.bf16 %v1012, %v1012
  %v1022 = vpack.c.bf16 %v1013, %v1013
  %v1023 = vpack.c.bf16 %v1014, %v1014
  %v1024 = vpack.c.bf16 %v1015, %v1015
  %v1025 = vpack.c.bf16 %v1016, %v1016
  %v1026 = vpack.c.bf16 %v1017, %v1017
  %v1027 = vpack.c.bf16 %v1018, %v1018
  %v1028 = vpack.c.bf16 %v1019, %v1019
  %vm1029 = vcmask 519168
  %1030 = vst.msk [vmem:[%s3] sm:$0xf] %vm1029, %v1020
  %1031 = vst.msk [vmem:[%s3 + $0x4] sm:$0xf] %vm1029, %v1021
  %1032 = vst.msk [vmem:[%s3 + $0x8] sm:$0xf] %vm1029, %v1022
  %1033 = vst.msk [vmem:[%s3 + $0xc] sm:$0xf] %vm1029, %v1023
  %1034 = vst.msk [vmem:[%s3 + $0x10] sm:$0xf] %vm1029, %v1024
  %1035 = vst.msk [vmem:[%s3 + $0x14] sm:$0xf] %vm1029, %v1025
  %1036 = vst.msk [vmem:[%s3 + $0x18] sm:$0xf] %vm1029, %v1026
  %1037 = vst.msk [vmem:[%s3 + $0x1c] sm:$0xf] %vm1029, %v1027
  %1038 = vst.msk [vmem:[%s3 + $0x20] sm:$0xf] %vm1029, %v1028
  // Predicated region
  $region14: #{fashion_cnn_forward.4} parent=0 // pred_check
    _
  $region15: #{fashion_cnn_forward.4} parent=0 // pred_check_branch
    %1040 = sbr.rel (0) target = $region17
  $region16: #{fashion_cnn_forward.4} parent=0 // pred_region
    _
  $region17: #{fashion_cnn_forward.4} parent=0 // pred_fallthru
    _
  // Predicated region
  $region18: #{fashion_cnn_forward.4} parent=0 // pred_check
    _
  $region19: #{fashion_cnn_forward.4} parent=0 // pred_check_branch
    %1042 = sbr.rel (0) target = $region21
  $region20: #{fashion_cnn_forward.4} parent=0 // pred_region
    _
  $region21: #{fashion_cnn_forward.4} parent=0 // pred_fallthru
    _

// kernel: fashion_cnn_forward.5
$region0: #{fashion_cnn_forward.5}
  #allocation0 [shape = 'u32[]', space=smem, size = 0x4, offset = 0x4, fixed_abs, tag = 'smem constant byte address 0x4 - core index']
  #allocation1 [shape = 'u32[72,128]{1,0:T(1,128)}', space=vmem, size = 0x9000, scoped, tag = 'internal scratch']
  %s0 = inlined_call_operand.vmem [shape: bf16[8,2304], index: 0, kind: input, shape index: {}]
  %s1 = inlined_call_operand.vmem [shape: bf16[2304,600], index: 1, kind: input, shape index: {}]
  %s2 = inlined_call_operand.vmem [shape: f32[1,600], index: 2, kind: input, shape index: {}]
  %s3 = inlined_call_operand.vmem [shape: bf16[600,120], index: 3, kind: input, shape index: {}]
  %s4 = inlined_call_operand.vmem [shape: f32[1,120], index: 4, kind: input, shape index: {}]
  %s5 = inlined_call_operand.vmem [shape: bf16[120,10], index: 5, kind: input, shape index: {}]
  %s6 = inlined_call_operand.vmem [shape: f32[1,10], index: 6, kind: input, shape index: {}]
  %s7 = inlined_call_operand.vmem [shape: f32[8,10], index: 7, kind: output, shape index: {}]
  %s8 = sld [smem:[#allocation0]]
  $region38: #{fashion_cnn_forward.5} parent=0
    _
  %s10 = ssub.s32 1, %s8
  %s11 = scalar_select 0, %s10, %s8
  // Predicated region
  $region2: #{fashion_cnn_forward.5} parent=0 // pred_check
    _
  $region3: #{fashion_cnn_forward.5} parent=0 // pred_check_branch
    %13 = sbr.rel (0) target = $region5
  $region4: #{fashion_cnn_forward.5} parent=0 // pred_region
    _
  $region5: #{fashion_cnn_forward.5} parent=0 // pred_fallthru
    _
  // Predicated region
  $region6: #{fashion_cnn_forward.5} parent=0 // pred_check
    _
  $region7: #{fashion_cnn_forward.5} parent=0 // pred_check_branch
    %15 = sbr.rel (0) target = $region9
  $region8: #{fashion_cnn_forward.5} parent=0 // pred_region
    _
  $region9: #{fashion_cnn_forward.5} parent=0 // pred_fallthru
    _
  // Predicated region
  $region10: #{fashion_cnn_forward.5} parent=0 // pred_check
    _
  $region11: #{fashion_cnn_forward.5} parent=0 // pred_check_branch
    %17 = sbr.rel (0) target = $region13
  $region12: #{fashion_cnn_forward.5} parent=0 // pred_region
    _
  $region13: #{fashion_cnn_forward.5} parent=0 // pred_fallthru
    _
  // Predicated region
  $region14: #{fashion_cnn_forward.5} parent=0 // pred_check
    _
  $region15: #{fashion_cnn_forward.5} parent=0 // pred_check_branch
    %19 = sbr.rel (0) target = $region17
  $region16: #{fashion_cnn_forward.5} parent=0 // pred_region
    _
  $region17: #{fashion_cnn_forward.5} parent=0 // pred_fallthru
    _
  // Predicated region
  $region18: #{fashion_cnn_forward.5} parent=0 // pred_check
    _
  $region19: #{fashion_cnn_forward.5} parent=0 // pred_check_branch
    %21 = sbr.rel (0) target = $region21
  $region20: #{fashion_cnn_forward.5} parent=0 // pred_region
    _
  $region21: #{fashion_cnn_forward.5} parent=0 // pred_fallthru
    _
  // Predicated region
  $region22: #{fashion_cnn_forward.5} parent=0 // pred_check
    _
  $region23: #{fashion_cnn_forward.5} parent=0 // pred_check_branch
    %23 = sbr.rel (0) target = $region25
  $region24: #{fashion_cnn_forward.5} parent=0 // pred_region
    _
  $region25: #{fashion_cnn_forward.5} parent=0 // pred_fallthru
    _
  // Predicated region
  $region26: #{fashion_cnn_forward.5} parent=0 // pred_check
    _
  $region27: #{fashion_cnn_forward.5} parent=0 // pred_check_branch
    %25 = sbr.rel (0) target = $region29
  $region28: #{fashion_cnn_forward.5} parent=0 // pred_region
    _
  $region29: #{fashion_cnn_forward.5} parent=0 // pred_fallthru
    _
  %v27 = vld [vmem:[%s0] sm:$0xff]
  %v28 = vld [vmem:[%s0 + $0x8] sm:$0xff]
  %v29 = vld [vmem:[%s0 + $0x10] sm:$0xff]
  %v30 = vld [vmem:[%s0 + $0x18] sm:$0xff]
  %v31 = vld [vmem:[%s0 + $0x20] sm:$0xff]
  %v32 = vld [vmem:[%s0 + $0x28] sm:$0xff]
  %v33 = vld [vmem:[%s0 + $0x30] sm:$0xff]
  %v34 = vld [vmem:[%s0 + $0x38] sm:$0xff]
  %v35 = vld [vmem:[%s0 + $0x40] sm:$0xff]
  %v36 = vld [vmem:[%s1] sm:$0xff]
  %v37 = vld [vmem:[%s1 + $0x8] sm:$0xff]
  %v38 = vld [vmem:[%s1 + $0x10] sm:$0xf]
  %v39 = vld [vmem:[%s1 + $0x14] sm:$0xff]
  %v40 = vld [vmem:[%s1 + $0x1c] sm:$0xff]
  %v41 = vld [vmem:[%s1 + $0x24] sm:$0xf]
  %v42 = vld [vmem:[%s1 + $0x28] sm:$0xff]
  %v43 = vld [vmem:[%s1 + $0x30] sm:$0xff]
  %v44 = vld [vmem:[%s1 + $0x38] sm:$0xf]
  %v45 = vld [vmem:[%s1 + $0x3c] sm:$0xff]
  %v46 = vld [vmem:[%s1 + $0x44] sm:$0xff]
  %v47 = vld [vmem:[%s1 + $0x4c] sm:$0xf]
  %v48 = vld [vmem:[%s1 + $0x50] sm:$0xff]
  %v49 = vld [vmem:[%s1 + $0x58] sm:$0xff]
  %v50 = vld [vmem:[%s1 + $0x60] sm:$0xf]
  %v51 = vld [vmem:[%s1 + $0x64] sm:$0xff]
  %v52 = vld [vmem:[%s1 + $0x6c] sm:$0xff]
  %v53 = vld [vmem:[%s1 + $0x74] sm:$0xf]
  %v54 = vld [vmem:[%s1 + $0x78] sm:$0xff]
  %v55 = vld [vmem:[%s1 + $0x80] sm:$0xff]
  %v56 = vld [vmem:[%s1 + $0x88] sm:$0xf]
  %v57 = vld [vmem:[%s1 + $0x8c] sm:$0xff]
  %v58 = vld [vmem:[%s1 + $0x94] sm:$0xff]
  %v59 = vld [vmem:[%s1 + $0x9c] sm:$0xf]
  %v60 = vld [vmem:[%s1 + $0xa0] sm:$0xff]
  %v61 = vld [vmem:[%s1 + $0xa8] sm:$0xff]
  %v62 = vld [vmem:[%s1 + $0xb0] sm:$0xf]
  %v63 = vld [vmem:[%s1 + $0xb4] sm:$0xff]
  %v64 = vld [vmem:[%s1 + $0xbc] sm:$0xff]
  %v65 = vld [vmem:[%s1 + $0xc4] sm:$0xf]
  %v66 = vld [vmem:[%s1 + $0xc8] sm:$0xff]
  %v67 = vld [vmem:[%s1 + $0xd0] sm:$0xff]
  %v68 = vld [vmem:[%s1 + $0xd8] sm:$0xf]
  %v69 = vld [vmem:[%s1 + $0xdc] sm:$0xff]
  %v70 = vld [vmem:[%s1 + $0xe4] sm:$0xff]
  %v71 = vld [vmem:[%s1 + $0xec] sm:$0xf]
  %v72 = vld [vmem:[%s1 + $0xf0] sm:$0xff]
  %v73 = vld [vmem:[%s1 + $0xf8] sm:$0xff]
  %v74 = vld [vmem:[%s1 + $0x100] sm:$0xf]
  %v75 = vld [vmem:[%s1 + $0x104] sm:$0xff]
  %v76 = vld [vmem:[%s1 + $0x10c] sm:$0xff]
  %v77 = vld [vmem:[%s1 + $0x114] sm:$0xf]
  %v78 = vld [vmem:[%s1 + $0x118] sm:$0xff]
  %v79 = vld [vmem:[%s1 + $0x120] sm:$0xff]
  %v80 = vld [vmem:[%s1 + $0x128] sm:$0xf]
  %v81 = vld [vmem:[%s1 + $0x12c] sm:$0xff]
  %v82 = vld [vmem:[%s1 + $0x134] sm:$0xff]
  %v83 = vld [vmem:[%s1 + $0x13c] sm:$0xf]
  %v84 = vld [vmem:[%s1 + $0x140] sm:$0xff]
  %v85 = vld [vmem:[%s1 + $0x148] sm:$0xff]
  %v86 = vld [vmem:[%s1 + $0x150] sm:$0xf]
  %v87 = vld [vmem:[%s1 + $0x154] sm:$0xff]
  %v88 = vld [vmem:[%s1 + $0x15c] sm:$0xff]
  %v89 = vld [vmem:[%s1 + $0x164] sm:$0xf]
  %v90 = vld [vmem:[%s1 + $0x168] sm:$0xff]
  %v91 = vld [vmem:[%s1 + $0x170] sm:$0xff]
  %v92 = vld [vmem:[%s1 + $0x178] sm:$0xf]
  %v93 = vld [vmem:[%s1 + $0x17c] sm:$0xff]
  %v94 = vld [vmem:[%s1 + $0x184] sm:$0xff]
  %v95 = vld [vmem:[%s1 + $0x18c] sm:$0xf]
  %v96 = vld [vmem:[%s1 + $0x190] sm:$0xff]
  %v97 = vld [vmem:[%s1 + $0x198] sm:$0xff]
  %v98 = vld [vmem:[%s1 + $0x1a0] sm:$0xf]
  %v99 = vld [vmem:[%s1 + $0x1a4] sm:$0xff]
  %v100 = vld [vmem:[%s1 + $0x1ac] sm:$0xff]
  %v101 = vld [vmem:[%s1 + $0x1b4] sm:$0xf]
  %v102 = vld [vmem:[%s1 + $0x1b8] sm:$0xff]
  %v103 = vld [vmem:[%s1 + $0x1c0] sm:$0xff]
  %v104 = vld [vmem:[%s1 + $0x1c8] sm:$0xf]
  %v105 = vld [vmem:[%s1 + $0x1cc] sm:$0xff]
  %v106 = vld [vmem:[%s1 + $0x1d4] sm:$0xff]
  %v107 = vld [vmem:[%s1 + $0x1dc] sm:$0xf]
  %v108 = vld [vmem:[%s1 + $0x1e0] sm:$0xff]
  %v109 = vld [vmem:[%s1 + $0x1e8] sm:$0xff]
  %v110 = vld [vmem:[%s1 + $0x1f0] sm:$0xf]
  %v111 = vld [vmem:[%s1 + $0x1f4] sm:$0xff]
  %v112 = vld [vmem:[%s1 + $0x1fc] sm:$0xff]
  %v113 = vld [vmem:[%s1 + $0x204] sm:$0xf]
  %v114 = vld [vmem:[%s1 + $0x208] sm:$0xff]
  %v115 = vld [vmem:[%s1 + $0x210] sm:$0xff]
  %v116 = vld [vmem:[%s1 + $0x218] sm:$0xf]
  %v117 = vld [vmem:[%s1 + $0x21c] sm:$0xff]
  %v118 = vld [vmem:[%s1 + $0x224] sm:$0xff]
  %v119 = vld [vmem:[%s1 + $0x22c] sm:$0xf]
  %v120 = vld [vmem:[%s1 + $0x230] sm:$0xff]
  %v121 = vld [vmem:[%s1 + $0x238] sm:$0xff]
  %v122 = vld [vmem:[%s1 + $0x240] sm:$0xf]
  %v123 = vld [vmem:[%s1 + $0x244] sm:$0xff]
  %v124 = vld [vmem:[%s1 + $0x24c] sm:$0xff]
  %v125 = vld [vmem:[%s1 + $0x254] sm:$0xf]
  %v126 = vld [vmem:[%s1 + $0x258] sm:$0xff]
  %v127 = vld [vmem:[%s1 + $0x260] sm:$0xff]
  %v128 = vld [vmem:[%s1 + $0x268] sm:$0xf]
  %v129 = vld [vmem:[%s1 + $0x26c] sm:$0xff]
  %v130 = vld [vmem:[%s1 + $0x274] sm:$0xff]
  %v131 = vld [vmem:[%s1 + $0x27c] sm:$0xf]
  %v132 = vld [vmem:[%s1 + $0x280] sm:$0xff]
  %v133 = vld [vmem:[%s1 + $0x288] sm:$0xff]
  %v134 = vld [vmem:[%s1 + $0x290] sm:$0xf]
  %v135 = vld [vmem:[%s1 + $0x294] sm:$0xff]
  %v136 = vld [vmem:[%s1 + $0x29c] sm:$0xff]
  %v137 = vld [vmem:[%s1 + $0x2a4] sm:$0xf]
  %v138 = vld [vmem:[%s1 + $0x2a8] sm:$0xff]
  %v139 = vld [vmem:[%s1 + $0x2b0] sm:$0xff]
  %v140 = vld [vmem:[%s1 + $0x2b8] sm:$0xf]
  %v141 = vld [vmem:[%s1 + $0x2bc] sm:$0xff]
  %v142 = vld [vmem:[%s1 + $0x2c4] sm:$0xff]
  %v143 = vld [vmem:[%s1 + $0x2cc] sm:$0xf]
  %v144 = vld [vmem:[%s1 + $0x2d0] sm:$0xff]
  %v145 = vld [vmem:[%s1 + $0x2d8] sm:$0xff]
  %v146 = vld [vmem:[%s1 + $0x2e0] sm:$0xf]
  %v147 = vld [vmem:[%s1 + $0x2e4] sm:$0xff]
  %v148 = vld [vmem:[%s1 + $0x2ec] sm:$0xff]
  %v149 = vld [vmem:[%s1 + $0x2f4] sm:$0xf]
  %v150 = vld [vmem:[%s1 + $0x2f8] sm:$0xff]
  %v151 = vld [vmem:[%s1 + $0x300] sm:$0xff]
  %v152 = vld [vmem:[%s1 + $0x308] sm:$0xf]
  %v153 = vld [vmem:[%s1 + $0x30c] sm:$0xff]
  %v154 = vld [vmem:[%s1 + $0x314] sm:$0xff]
  %v155 = vld [vmem:[%s1 + $0x31c] sm:$0xf]
  %v156 = vld [vmem:[%s1 + $0x320] sm:$0xff]
  %v157 = vld [vmem:[%s1 + $0x328] sm:$0xff]
  %v158 = vld [vmem:[%s1 + $0x330] sm:$0xf]
  %v159 = vld [vmem:[%s1 + $0x334] sm:$0xff]
  %v160 = vld [vmem:[%s1 + $0x33c] sm:$0xff]
  %v161 = vld [vmem:[%s1 + $0x344] sm:$0xf]
  %v162 = vld [vmem:[%s1 + $0x348] sm:$0xff]
  %v163 = vld [vmem:[%s1 + $0x350] sm:$0xff]
  %v164 = vld [vmem:[%s1 + $0x358] sm:$0xf]
  %v165 = vld [vmem:[%s1 + $0x35c] sm:$0xff]
  %v166 = vld [vmem:[%s1 + $0x364] sm:$0xff]
  %v167 = vld [vmem:[%s1 + $0x36c] sm:$0xf]
  %v168 = vld [vmem:[%s1 + $0x370] sm:$0xff]
  %v169 = vld [vmem:[%s1 + $0x378] sm:$0xff]
  %v170 = vld [vmem:[%s1 + $0x380] sm:$0xf]
  %v171 = vld [vmem:[%s1 + $0x384] sm:$0xff]
  %v172 = vld [vmem:[%s1 + $0x38c] sm:$0xff]
  %v173 = vld [vmem:[%s1 + $0x394] sm:$0xf]
  %v174 = vld [vmem:[%s1 + $0x398] sm:$0xff]
  %v175 = vld [vmem:[%s1 + $0x3a0] sm:$0xff]
  %v176 = vld [vmem:[%s1 + $0x3a8] sm:$0xf]
  %v177 = vld [vmem:[%s1 + $0x3ac] sm:$0xff]
  %v178 = vld [vmem:[%s1 + $0x3b4] sm:$0xff]
  %v179 = vld [vmem:[%s1 + $0x3bc] sm:$0xf]
  %v180 = vld [vmem:[%s1 + $0x3c0] sm:$0xff]
  %v181 = vld [vmem:[%s1 + $0x3c8] sm:$0xff]
  %v182 = vld [vmem:[%s1 + $0x3d0] sm:$0xf]
  %v183 = vld [vmem:[%s1 + $0x3d4] sm:$0xff]
  %v184 = vld [vmem:[%s1 + $0x3dc] sm:$0xff]
  %v185 = vld [vmem:[%s1 + $0x3e4] sm:$0xf]
  %v186 = vld [vmem:[%s1 + $0x3e8] sm:$0xff]
  %v187 = vld [vmem:[%s1 + $0x3f0] sm:$0xff]
  %v188 = vld [vmem:[%s1 + $0x3f8] sm:$0xf]
  %v189 = vld [vmem:[%s1 + $0x3fc] sm:$0xff]
  %v190 = vld [vmem:[%s1 + $0x404] sm:$0xff]
  %v191 = vld [vmem:[%s1 + $0x40c] sm:$0xf]
  %v192 = vld [vmem:[%s1 + $0x410] sm:$0xff]
  %v193 = vld [vmem:[%s1 + $0x418] sm:$0xff]
  %v194 = vld [vmem:[%s1 + $0x420] sm:$0xf]
  %v195 = vld [vmem:[%s1 + $0x424] sm:$0xff]
  %v196 = vld [vmem:[%s1 + $0x42c] sm:$0xff]
  %v197 = vld [vmem:[%s1 + $0x434] sm:$0xf]
  %v198 = vld [vmem:[%s1 + $0x438] sm:$0xff]
  %v199 = vld [vmem:[%s1 + $0x440] sm:$0xff]
  %v200 = vld [vmem:[%s1 + $0x448] sm:$0xf]
  %v201 = vld [vmem:[%s1 + $0x44c] sm:$0xff]
  %v202 = vld [vmem:[%s1 + $0x454] sm:$0xff]
  %v203 = vld [vmem:[%s1 + $0x45c] sm:$0xf]
  %v204 = vld [vmem:[%s1 + $0x460] sm:$0xff]
  %v205 = vld [vmem:[%s1 + $0x468] sm:$0xff]
  %v206 = vld [vmem:[%s1 + $0x470] sm:$0xf]
  %v207 = vld [vmem:[%s1 + $0x474] sm:$0xff]
  %v208 = vld [vmem:[%s1 + $0x47c] sm:$0xff]
  %v209 = vld [vmem:[%s1 + $0x484] sm:$0xf]
  %v210 = vld [vmem:[%s1 + $0x488] sm:$0xff]
  %v211 = vld [vmem:[%s1 + $0x490] sm:$0xff]
  %v212 = vld [vmem:[%s1 + $0x498] sm:$0xf]
  %v213 = vld [vmem:[%s1 + $0x49c] sm:$0xff]
  %v214 = vld [vmem:[%s1 + $0x4a4] sm:$0xff]
  %v215 = vld [vmem:[%s1 + $0x4ac] sm:$0xf]
  %v216 = vld [vmem:[%s1 + $0x4b0] sm:$0xff]
  %v217 = vld [vmem:[%s1 + $0x4b8] sm:$0xff]
  %v218 = vld [vmem:[%s1 + $0x4c0] sm:$0xf]
  %v219 = vld [vmem:[%s1 + $0x4c4] sm:$0xff]
  %v220 = vld [vmem:[%s1 + $0x4cc] sm:$0xff]
  %v221 = vld [vmem:[%s1 + $0x4d4] sm:$0xf]
  %v222 = vld [vmem:[%s1 + $0x4d8] sm:$0xff]
  %v223 = vld [vmem:[%s1 + $0x4e0] sm:$0xff]
  %v224 = vld [vmem:[%s1 + $0x4e8] sm:$0xf]
  %v225 = vld [vmem:[%s1 + $0x4ec] sm:$0xff]
  %v226 = vld [vmem:[%s1 + $0x4f4] sm:$0xff]
  %v227 = vld [vmem:[%s1 + $0x4fc] sm:$0xf]
  %v228 = vld [vmem:[%s1 + $0x500] sm:$0xff]
  %v229 = vld [vmem:[%s1 + $0x508] sm:$0xff]
  %v230 = vld [vmem:[%s1 + $0x510] sm:$0xf]
  %v231 = vld [vmem:[%s1 + $0x514] sm:$0xff]
  %v232 = vld [vmem:[%s1 + $0x51c] sm:$0xff]
  %v233 = vld [vmem:[%s1 + $0x524] sm:$0xf]
  %v234 = vld [vmem:[%s1 + $0x528] sm:$0xff]
  %v235 = vld [vmem:[%s1 + $0x530] sm:$0xff]
  %v236 = vld [vmem:[%s1 + $0x538] sm:$0xf]
  %v237 = vld [vmem:[%s1 + $0x53c] sm:$0xff]
  %v238 = vld [vmem:[%s1 + $0x544] sm:$0xff]
  %v239 = vld [vmem:[%s1 + $0x54c] sm:$0xf]
  %v240 = vld [vmem:[%s1 + $0x550] sm:$0xff]
  %v241 = vld [vmem:[%s1 + $0x558] sm:$0xff]
  %v242 = vld [vmem:[%s1 + $0x560] sm:$0xf]
  %v243 = vld [vmem:[%s1 + $0x564] sm:$0xff]
  %v244 = vld [vmem:[%s1 + $0x56c] sm:$0xff]
  %v245 = vld [vmem:[%s1 + $0x574] sm:$0xf]
  %v246 = vld [vmem:[%s1 + $0x578] sm:$0xff]
  %v247 = vld [vmem:[%s1 + $0x580] sm:$0xff]
  %v248 = vld [vmem:[%s1 + $0x588] sm:$0xf]
  %v249 = vld [vmem:[%s1 + $0x58c] sm:$0xff]
  %v250 = vld [vmem:[%s1 + $0x594] sm:$0xff]
  %v251 = vld [vmem:[%s1 + $0x59c] sm:$0xf]
  %v252 = vld [vmem:[%s1 + $0x5a0] sm:$0xff]
  %v253 = vld [vmem:[%s1 + $0x5a8] sm:$0xff]
  %v254 = vld [vmem:[%s1 + $0x5b0] sm:$0xf]
  %v255 = vld [vmem:[%s1 + $0x5b4] sm:$0xff]
  %v256 = vld [vmem:[%s1 + $0x5bc] sm:$0xff]
  %v257 = vld [vmem:[%s1 + $0x5c4] sm:$0xf]
  %v258 = vld [vmem:[%s1 + $0x5c8] sm:$0xff]
  %v259 = vld [vmem:[%s1 + $0x5d0] sm:$0xff]
  %v260 = vld [vmem:[%s1 + $0x5d8] sm:$0xf]
  %v261 = vld [vmem:[%s1 + $0x5dc] sm:$0xff]
  %v262 = vld [vmem:[%s1 + $0x5e4] sm:$0xff]
  %v263 = vld [vmem:[%s1 + $0x5ec] sm:$0xf]
  %v264 = vld [vmem:[%s1 + $0x5f0] sm:$0xff]
  %v265 = vld [vmem:[%s1 + $0x5f8] sm:$0xff]
  %v266 = vld [vmem:[%s1 + $0x600] sm:$0xf]
  %v267 = vld [vmem:[%s1 + $0x604] sm:$0xff]
  %v268 = vld [vmem:[%s1 + $0x60c] sm:$0xff]
  %v269 = vld [vmem:[%s1 + $0x614] sm:$0xf]
  %v270 = vld [vmem:[%s1 + $0x618] sm:$0xff]
  %v271 = vld [vmem:[%s1 + $0x620] sm:$0xff]
  %v272 = vld [vmem:[%s1 + $0x628] sm:$0xf]
  %v273 = vld [vmem:[%s1 + $0x62c] sm:$0xff]
  %v274 = vld [vmem:[%s1 + $0x634] sm:$0xff]
  %v275 = vld [vmem:[%s1 + $0x63c] sm:$0xf]
  %v276 = vld [vmem:[%s1 + $0x640] sm:$0xff]
  %v277 = vld [vmem:[%s1 + $0x648] sm:$0xff]
  %v278 = vld [vmem:[%s1 + $0x650] sm:$0xf]
  %v279 = vld [vmem:[%s1 + $0x654] sm:$0xff]
  %v280 = vld [vmem:[%s1 + $0x65c] sm:$0xff]
  %v281 = vld [vmem:[%s1 + $0x664] sm:$0xf]
  %v282 = vld [vmem:[%s1 + $0x668] sm:$0xff]
  %v283 = vld [vmem:[%s1 + $0x670] sm:$0xff]
  %v284 = vld [vmem:[%s1 + $0x678] sm:$0xf]
  %v285 = vld [vmem:[%s1 + $0x67c] sm:$0xff]
  %v286 = vld [vmem:[%s1 + $0x684] sm:$0xff]
  %v287 = vld [vmem:[%s1 + $0x68c] sm:$0xf]
  %v288 = vld [vmem:[%s1 + $0x690] sm:$0xff]
  %v289 = vld [vmem:[%s1 + $0x698] sm:$0xff]
  %v290 = vld [vmem:[%s1 + $0x6a0] sm:$0xf]
  %v291 = vld [vmem:[%s1 + $0x6a4] sm:$0xff]
  %v292 = vld [vmem:[%s1 + $0x6ac] sm:$0xff]
  %v293 = vld [vmem:[%s1 + $0x6b4] sm:$0xf]
  %v294 = vld [vmem:[%s1 + $0x6b8] sm:$0xff]
  %v295 = vld [vmem:[%s1 + $0x6c0] sm:$0xff]
  %v296 = vld [vmem:[%s1 + $0x6c8] sm:$0xf]
  %v297 = vld [vmem:[%s1 + $0x6cc] sm:$0xff]
  %v298 = vld [vmem:[%s1 + $0x6d4] sm:$0xff]
  %v299 = vld [vmem:[%s1 + $0x6dc] sm:$0xf]
  %v300 = vld [vmem:[%s1 + $0x6e0] sm:$0xff]
  %v301 = vld [vmem:[%s1 + $0x6e8] sm:$0xff]
  %v302 = vld [vmem:[%s1 + $0x6f0] sm:$0xf]
  %v303 = vld [vmem:[%s1 + $0x6f4] sm:$0xff]
  %v304 = vld [vmem:[%s1 + $0x6fc] sm:$0xff]
  %v305 = vld [vmem:[%s1 + $0x704] sm:$0xf]
  %v306 = vld [vmem:[%s1 + $0x708] sm:$0xff]
  %v307 = vld [vmem:[%s1 + $0x710] sm:$0xff]
  %v308 = vld [vmem:[%s1 + $0x718] sm:$0xf]
  %v309 = vld [vmem:[%s1 + $0x71c] sm:$0xff]
  %v310 = vld [vmem:[%s1 + $0x724] sm:$0xff]
  %v311 = vld [vmem:[%s1 + $0x72c] sm:$0xf]
  %v312 = vld [vmem:[%s1 + $0x730] sm:$0xff]
  %v313 = vld [vmem:[%s1 + $0x738] sm:$0xff]
  %v314 = vld [vmem:[%s1 + $0x740] sm:$0xf]
  %v315 = vld [vmem:[%s1 + $0x744] sm:$0xff]
  %v316 = vld [vmem:[%s1 + $0x74c] sm:$0xff]
  %v317 = vld [vmem:[%s1 + $0x754] sm:$0xf]
  %v318 = vld [vmem:[%s1 + $0x758] sm:$0xff]
  %v319 = vld [vmem:[%s1 + $0x760] sm:$0xff]
  %v320 = vld [vmem:[%s1 + $0x768] sm:$0xf]
  %v321 = vld [vmem:[%s1 + $0x76c] sm:$0xff]
  %v322 = vld [vmem:[%s1 + $0x774] sm:$0xff]
  %v323 = vld [vmem:[%s1 + $0x77c] sm:$0xf]
  %v324 = vld [vmem:[%s1 + $0x780] sm:$0xff]
  %v325 = vld [vmem:[%s1 + $0x788] sm:$0xff]
  %v326 = vld [vmem:[%s1 + $0x790] sm:$0xf]
  %v327 = vld [vmem:[%s1 + $0x794] sm:$0xff]
  %v328 = vld [vmem:[%s1 + $0x79c] sm:$0xff]
  %v329 = vld [vmem:[%s1 + $0x7a4] sm:$0xf]
  %v330 = vld [vmem:[%s1 + $0x7a8] sm:$0xff]
  %v331 = vld [vmem:[%s1 + $0x7b0] sm:$0xff]
  %v332 = vld [vmem:[%s1 + $0x7b8] sm:$0xf]
  %v333 = vld [vmem:[%s1 + $0x7bc] sm:$0xff]
  %v334 = vld [vmem:[%s1 + $0x7c4] sm:$0xff]
  %v335 = vld [vmem:[%s1 + $0x7cc] sm:$0xf]
  %v336 = vld [vmem:[%s1 + $0x7d0] sm:$0xff]
  %v337 = vld [vmem:[%s1 + $0x7d8] sm:$0xff]
  %v338 = vld [vmem:[%s1 + $0x7e0] sm:$0xf]
  %v339 = vld [vmem:[%s1 + $0x7e4] sm:$0xff]
  %v340 = vld [vmem:[%s1 + $0x7ec] sm:$0xff]
  %v341 = vld [vmem:[%s1 + $0x7f4] sm:$0xf]
  %v342 = vld [vmem:[%s1 + $0x7f8] sm:$0xff]
  %v343 = vld [vmem:[%s1 + $0x800] sm:$0xff]
  %v344 = vld [vmem:[%s1 + $0x808] sm:$0xf]
  %v345 = vld [vmem:[%s1 + $0x80c] sm:$0xff]
  %v346 = vld [vmem:[%s1 + $0x814] sm:$0xff]
  %v347 = vld [vmem:[%s1 + $0x81c] sm:$0xf]
  %v348 = vld [vmem:[%s1 + $0x820] sm:$0xff]
  %v349 = vld [vmem:[%s1 + $0x828] sm:$0xff]
  %v350 = vld [vmem:[%s1 + $0x830] sm:$0xf]
  %v351 = vld [vmem:[%s1 + $0x834] sm:$0xff]
  %v352 = vld [vmem:[%s1 + $0x83c] sm:$0xff]
  %v353 = vld [vmem:[%s1 + $0x844] sm:$0xf]
  %v354 = vld [vmem:[%s1 + $0x848] sm:$0xff]
  %v355 = vld [vmem:[%s1 + $0x850] sm:$0xff]
  %v356 = vld [vmem:[%s1 + $0x858] sm:$0xf]
  %v357 = vld [vmem:[%s1 + $0x85c] sm:$0xff]
  %v358 = vld [vmem:[%s1 + $0x864] sm:$0xff]
  %v359 = vld [vmem:[%s1 + $0x86c] sm:$0xf]
  %v360 = vld [vmem:[%s1 + $0x870] sm:$0xff]
  %v361 = vld [vmem:[%s1 + $0x878] sm:$0xff]
  %v362 = vld [vmem:[%s1 + $0x880] sm:$0xf]
  %v363 = vld [vmem:[%s1 + $0x884] sm:$0xff]
  %v364 = vld [vmem:[%s1 + $0x88c] sm:$0xff]
  %v365 = vld [vmem:[%s1 + $0x894] sm:$0xf]
  %v366 = vld [vmem:[%s1 + $0x898] sm:$0xff]
  %v367 = vld [vmem:[%s1 + $0x8a0] sm:$0xff]
  %v368 = vld [vmem:[%s1 + $0x8a8] sm:$0xf]
  %v369 = vld [vmem:[%s1 + $0x8ac] sm:$0xff]
  %v370 = vld [vmem:[%s1 + $0x8b4] sm:$0xff]
  %v371 = vld [vmem:[%s1 + $0x8bc] sm:$0xf]
  %v372 = vld [vmem:[%s1 + $0x8c0] sm:$0xff]
  %v373 = vld [vmem:[%s1 + $0x8c8] sm:$0xff]
  %v374 = vld [vmem:[%s1 + $0x8d0] sm:$0xf]
  %v375 = vld [vmem:[%s1 + $0x8d4] sm:$0xff]
  %v376 = vld [vmem:[%s1 + $0x8dc] sm:$0xff]
  %v377 = vld [vmem:[%s1 + $0x8e4] sm:$0xf]
  %v378 = vld [vmem:[%s1 + $0x8e8] sm:$0xff]
  %v379 = vld [vmem:[%s1 + $0x8f0] sm:$0xff]
  %v380 = vld [vmem:[%s1 + $0x8f8] sm:$0xf]
  %v381 = vld [vmem:[%s1 + $0x8fc] sm:$0xff]
  %v382 = vld [vmem:[%s1 + $0x904] sm:$0xff]
  %v383 = vld [vmem:[%s1 + $0x90c] sm:$0xf]
  %v384 = vld [vmem:[%s1 + $0x910] sm:$0xff]
  %v385 = vld [vmem:[%s1 + $0x918] sm:$0xff]
  %v386 = vld [vmem:[%s1 + $0x920] sm:$0xf]
  %v387 = vld [vmem:[%s1 + $0x924] sm:$0xff]
  %v388 = vld [vmem:[%s1 + $0x92c] sm:$0xff]
  %v389 = vld [vmem:[%s1 + $0x934] sm:$0xf]
  %v390 = vld [vmem:[%s1 + $0x938] sm:$0xff]
  %v391 = vld [vmem:[%s1 + $0x940] sm:$0xff]
  %v392 = vld [vmem:[%s1 + $0x948] sm:$0xf]
  %v393 = vld [vmem:[%s1 + $0x94c] sm:$0xff]
  %v394 = vld [vmem:[%s1 + $0x954] sm:$0xff]
  %v395 = vld [vmem:[%s1 + $0x95c] sm:$0xf]
  %v396 = vld [vmem:[%s1 + $0x960] sm:$0xff]
  %v397 = vld [vmem:[%s1 + $0x968] sm:$0xff]
  %v398 = vld [vmem:[%s1 + $0x970] sm:$0xf]
  %v399 = vld [vmem:[%s1 + $0x974] sm:$0xff]
  %v400 = vld [vmem:[%s1 + $0x97c] sm:$0xff]
  %v401 = vld [vmem:[%s1 + $0x984] sm:$0xf]
  %v402 = vld [vmem:[%s1 + $0x988] sm:$0xff]
  %v403 = vld [vmem:[%s1 + $0x990] sm:$0xff]
  %v404 = vld [vmem:[%s1 + $0x998] sm:$0xf]
  %v405 = vld [vmem:[%s1 + $0x99c] sm:$0xff]
  %v406 = vld [vmem:[%s1 + $0x9a4] sm:$0xff]
  %v407 = vld [vmem:[%s1 + $0x9ac] sm:$0xf]
  %v408 = vld [vmem:[%s1 + $0x9b0] sm:$0xff]
  %v409 = vld [vmem:[%s1 + $0x9b8] sm:$0xff]
  %v410 = vld [vmem:[%s1 + $0x9c0] sm:$0xf]
  %v411 = vld [vmem:[%s1 + $0x9c4] sm:$0xff]
  %v412 = vld [vmem:[%s1 + $0x9cc] sm:$0xff]
  %v413 = vld [vmem:[%s1 + $0x9d4] sm:$0xf]
  %v414 = vld [vmem:[%s1 + $0x9d8] sm:$0xff]
  %v415 = vld [vmem:[%s1 + $0x9e0] sm:$0xff]
  %v416 = vld [vmem:[%s1 + $0x9e8] sm:$0xf]
  %v417 = vld [vmem:[%s1 + $0x9ec] sm:$0xff]
  %v418 = vld [vmem:[%s1 + $0x9f4] sm:$0xff]
  %v419 = vld [vmem:[%s1 + $0x9fc] sm:$0xf]
  %v420 = vld [vmem:[%s1 + $0xa00] sm:$0xff]
  %v421 = vld [vmem:[%s1 + $0xa08] sm:$0xff]
  %v422 = vld [vmem:[%s1 + $0xa10] sm:$0xf]
  %v423 = vld [vmem:[%s1 + $0xa14] sm:$0xff]
  %v424 = vld [vmem:[%s1 + $0xa1c] sm:$0xff]
  %v425 = vld [vmem:[%s1 + $0xa24] sm:$0xf]
  %v426 = vld [vmem:[%s1 + $0xa28] sm:$0xff]
  %v427 = vld [vmem:[%s1 + $0xa30] sm:$0xff]
  %v428 = vld [vmem:[%s1 + $0xa38] sm:$0xf]
  %v429 = vld [vmem:[%s1 + $0xa3c] sm:$0xff]
  %v430 = vld [vmem:[%s1 + $0xa44] sm:$0xff]
  %v431 = vld [vmem:[%s1 + $0xa4c] sm:$0xf]
  %v432 = vld [vmem:[%s1 + $0xa50] sm:$0xff]
  %v433 = vld [vmem:[%s1 + $0xa58] sm:$0xff]
  %v434 = vld [vmem:[%s1 + $0xa60] sm:$0xf]
  %v435 = vld [vmem:[%s1 + $0xa64] sm:$0xff]
  %v436 = vld [vmem:[%s1 + $0xa6c] sm:$0xff]
  %v437 = vld [vmem:[%s1 + $0xa74] sm:$0xf]
  %v438 = vld [vmem:[%s1 + $0xa78] sm:$0xff]
  %v439 = vld [vmem:[%s1 + $0xa80] sm:$0xff]
  %v440 = vld [vmem:[%s1 + $0xa88] sm:$0xf]
  %v441 = vld [vmem:[%s1 + $0xa8c] sm:$0xff]
  %v442 = vld [vmem:[%s1 + $0xa94] sm:$0xff]
  %v443 = vld [vmem:[%s1 + $0xa9c] sm:$0xf]
  %v444 = vld [vmem:[%s1 + $0xaa0] sm:$0xff]
  %v445 = vld [vmem:[%s1 + $0xaa8] sm:$0xff]
  %v446 = vld [vmem:[%s1 + $0xab0] sm:$0xf]
  %v447 = vld [vmem:[%s1 + $0xab4] sm:$0xff]
  %v448 = vld [vmem:[%s1 + $0xabc] sm:$0xff]
  %v449 = vld [vmem:[%s1 + $0xac4] sm:$0xf]
  %v450 = vld [vmem:[%s1 + $0xac8] sm:$0xff]
  %v451 = vld [vmem:[%s1 + $0xad0] sm:$0xff]
  %v452 = vld [vmem:[%s1 + $0xad8] sm:$0xf]
  %v453 = vld [vmem:[%s1 + $0xadc] sm:$0xff]
  %v454 = vld [vmem:[%s1 + $0xae4] sm:$0xff]
  %v455 = vld [vmem:[%s1 + $0xaec] sm:$0xf]
  %v456 = vld [vmem:[%s1 + $0xaf0] sm:$0xff]
  %v457 = vld [vmem:[%s1 + $0xaf8] sm:$0xff]
  %v458 = vld [vmem:[%s1 + $0xb00] sm:$0xf]
  %v459 = vld [vmem:[%s1 + $0xb04] sm:$0xff]
  %v460 = vld [vmem:[%s1 + $0xb0c] sm:$0xff]
  %v461 = vld [vmem:[%s1 + $0xb14] sm:$0xf]
  %v462 = vld [vmem:[%s1 + $0xb18] sm:$0xff]
  %v463 = vld [vmem:[%s1 + $0xb20] sm:$0xff]
  %v464 = vld [vmem:[%s1 + $0xb28] sm:$0xf]
  %v465 = vld [vmem:[%s1 + $0xb2c] sm:$0xff]
  %v466 = vld [vmem:[%s1 + $0xb34] sm:$0xff]
  %v467 = vld [vmem:[%s1 + $0xb3c] sm:$0xf]
  %v468 = vld [vmem:[%s1 + $0xb40] sm:$0xff]
  %v469 = vld [vmem:[%s1 + $0xb48] sm:$0xff]
  %v470 = vld [vmem:[%s1 + $0xb50] sm:$0xf]
  %v471 = vld [vmem:[%s1 + $0xb54] sm:$0xff]
  %v472 = vld [vmem:[%s1 + $0xb5c] sm:$0xff]
  %v473 = vld [vmem:[%s1 + $0xb64] sm:$0xf]
  %v474 = vld [vmem:[%s1 + $0xb68] sm:$0xff]
  %v475 = vld [vmem:[%s1 + $0xb70] sm:$0xff]
  %v476 = vld [vmem:[%s1 + $0xb78] sm:$0xf]
  %v477 = vld [vmem:[%s1 + $0xb7c] sm:$0xff]
  %v478 = vld [vmem:[%s1 + $0xb84] sm:$0xff]
  %v479 = vld [vmem:[%s1 + $0xb8c] sm:$0xf]
  %v480 = vld [vmem:[%s1 + $0xb90] sm:$0xff]
  %v481 = vld [vmem:[%s1 + $0xb98] sm:$0xff]
  %v482 = vld [vmem:[%s1 + $0xba0] sm:$0xf]
  %v483 = vld [vmem:[%s1 + $0xba4] sm:$0xff]
  %v484 = vld [vmem:[%s1 + $0xbac] sm:$0xff]
  %v485 = vld [vmem:[%s1 + $0xbb4] sm:$0xf]
  %v486 = vld [vmem:[%s1 + $0xbb8] sm:$0xff]
  %v487 = vld [vmem:[%s1 + $0xbc0] sm:$0xff]
  %v488 = vld [vmem:[%s1 + $0xbc8] sm:$0xf]
  %v489 = vld [vmem:[%s1 + $0xbcc] sm:$0xff]
  %v490 = vld [vmem:[%s1 + $0xbd4] sm:$0xff]
  %v491 = vld [vmem:[%s1 + $0xbdc] sm:$0xf]
  %v492 = vld [vmem:[%s1 + $0xbe0] sm:$0xff]
  %v493 = vld [vmem:[%s1 + $0xbe8] sm:$0xff]
  %v494 = vld [vmem:[%s1 + $0xbf0] sm:$0xf]
  %v495 = vld [vmem:[%s1 + $0xbf4] sm:$0xff]
  %v496 = vld [vmem:[%s1 + $0xbfc] sm:$0xff]
  %v497 = vld [vmem:[%s1 + $0xc04] sm:$0xf]
  %v498 = vld [vmem:[%s1 + $0xc08] sm:$0xff]
  %v499 = vld [vmem:[%s1 + $0xc10] sm:$0xff]
  %v500 = vld [vmem:[%s1 + $0xc18] sm:$0xf]
  %v501 = vld [vmem:[%s1 + $0xc1c] sm:$0xff]
  %v502 = vld [vmem:[%s1 + $0xc24] sm:$0xff]
  %v503 = vld [vmem:[%s1 + $0xc2c] sm:$0xf]
  %v504 = vld [vmem:[%s1 + $0xc30] sm:$0xff]
  %v505 = vld [vmem:[%s1 + $0xc38] sm:$0xff]
  %v506 = vld [vmem:[%s1 + $0xc40] sm:$0xf]
  %v507 = vld [vmem:[%s1 + $0xc44] sm:$0xff]
  %v508 = vld [vmem:[%s1 + $0xc4c] sm:$0xff]
  %v509 = vld [vmem:[%s1 + $0xc54] sm:$0xf]
  %v510 = vld [vmem:[%s1 + $0xc58] sm:$0xff]
  %v511 = vld [vmem:[%s1 + $0xc60] sm:$0xff]
  %v512 = vld [vmem:[%s1 + $0xc68] sm:$0xf]
  %v513 = vld [vmem:[%s1 + $0xc6c] sm:$0xff]
  %v514 = vld [vmem:[%s1 + $0xc74] sm:$0xff]
  %v515 = vld [vmem:[%s1 + $0xc7c] sm:$0xf]
  %v516 = vld [vmem:[%s1 + $0xc80] sm:$0xff]
  %v517 = vld [vmem:[%s1 + $0xc88] sm:$0xff]
  %v518 = vld [vmem:[%s1 + $0xc90] sm:$0xf]
  %v519 = vld [vmem:[%s1 + $0xc94] sm:$0xff]
  %v520 = vld [vmem:[%s1 + $0xc9c] sm:$0xff]
  %v521 = vld [vmem:[%s1 + $0xca4] sm:$0xf]
  %v522 = vld [vmem:[%s1 + $0xca8] sm:$0xff]
  %v523 = vld [vmem:[%s1 + $0xcb0] sm:$0xff]
  %v524 = vld [vmem:[%s1 + $0xcb8] sm:$0xf]
  %v525 = vld [vmem:[%s1 + $0xcbc] sm:$0xff]
  %v526 = vld [vmem:[%s1 + $0xcc4] sm:$0xff]
  %v527 = vld [vmem:[%s1 + $0xccc] sm:$0xf]
  %v528 = vld [vmem:[%s1 + $0xcd0] sm:$0xff]
  %v529 = vld [vmem:[%s1 + $0xcd8] sm:$0xff]
  %v530 = vld [vmem:[%s1 + $0xce0] sm:$0xf]
  %v531 = vld [vmem:[%s1 + $0xce4] sm:$0xff]
  %v532 = vld [vmem:[%s1 + $0xcec] sm:$0xff]
  %v533 = vld [vmem:[%s1 + $0xcf4] sm:$0xf]
  %v534 = vld [vmem:[%s1 + $0xcf8] sm:$0xff]
  %v535 = vld [vmem:[%s1 + $0xd00] sm:$0xff]
  %v536 = vld [vmem:[%s1 + $0xd08] sm:$0xf]
  %v537 = vld [vmem:[%s1 + $0xd0c] sm:$0xff]
  %v538 = vld [vmem:[%s1 + $0xd14] sm:$0xff]
  %v539 = vld [vmem:[%s1 + $0xd1c] sm:$0xf]
  %v540 = vld [vmem:[%s1 + $0xd20] sm:$0xff]
  %v541 = vld [vmem:[%s1 + $0xd28] sm:$0xff]
  %v542 = vld [vmem:[%s1 + $0xd30] sm:$0xf]
  %v543 = vld [vmem:[%s1 + $0xd34] sm:$0xff]
  %v544 = vld [vmem:[%s1 + $0xd3c] sm:$0xff]
  %v545 = vld [vmem:[%s1 + $0xd44] sm:$0xf]
  %v546 = vld [vmem:[%s1 + $0xd48] sm:$0xff]
  %v547 = vld [vmem:[%s1 + $0xd50] sm:$0xff]
  %v548 = vld [vmem:[%s1 + $0xd58] sm:$0xf]
  %v549 = vld [vmem:[%s1 + $0xd5c] sm:$0xff]
  %v550 = vld [vmem:[%s1 + $0xd64] sm:$0xff]
  %v551 = vld [vmem:[%s1 + $0xd6c] sm:$0xf]
  %v552 = vld [vmem:[%s1 + $0xd70] sm:$0xff]
  %v553 = vld [vmem:[%s1 + $0xd78] sm:$0xff]
  %v554 = vld [vmem:[%s1 + $0xd80] sm:$0xf]
  %v555 = vld [vmem:[%s1 + $0xd84] sm:$0xff]
  %v556 = vld [vmem:[%s1 + $0xd8c] sm:$0xff]
  %v557 = vld [vmem:[%s1 + $0xd94] sm:$0xf]
  %v558 = vld [vmem:[%s1 + $0xd98] sm:$0xff]
  %v559 = vld [vmem:[%s1 + $0xda0] sm:$0xff]
  %v560 = vld [vmem:[%s1 + $0xda8] sm:$0xf]
  %v561 = vld [vmem:[%s1 + $0xdac] sm:$0xff]
  %v562 = vld [vmem:[%s1 + $0xdb4] sm:$0xff]
  %v563 = vld [vmem:[%s1 + $0xdbc] sm:$0xf]
  %v564 = vld [vmem:[%s1 + $0xdc0] sm:$0xff]
  %v565 = vld [vmem:[%s1 + $0xdc8] sm:$0xff]
  %v566 = vld [vmem:[%s1 + $0xdd0] sm:$0xf]
  %v567 = vld [vmem:[%s1 + $0xdd4] sm:$0xff]
  %v568 = vld [vmem:[%s1 + $0xddc] sm:$0xff]
  %v569 = vld [vmem:[%s1 + $0xde4] sm:$0xf]
  %v570 = vld [vmem:[%s1 + $0xde8] sm:$0xff]
  %v571 = vld [vmem:[%s1 + $0xdf0] sm:$0xff]
  %v572 = vld [vmem:[%s1 + $0xdf8] sm:$0xf]
  %v573 = vld [vmem:[%s1 + $0xdfc] sm:$0xff]
  %v574 = vld [vmem:[%s1 + $0xe04] sm:$0xff]
  %v575 = vld [vmem:[%s1 + $0xe0c] sm:$0xf]
  %v576 = vld [vmem:[%s1 + $0xe10] sm:$0xff]
  %v577 = vld [vmem:[%s1 + $0xe18] sm:$0xff]
  %v578 = vld [vmem:[%s1 + $0xe20] sm:$0xf]
  %v579 = vld [vmem:[%s1 + $0xe24] sm:$0xff]
  %v580 = vld [vmem:[%s1 + $0xe2c] sm:$0xff]
  %v581 = vld [vmem:[%s1 + $0xe34] sm:$0xf]
  %v582 = vld [vmem:[%s1 + $0xe38] sm:$0xff]
  %v583 = vld [vmem:[%s1 + $0xe40] sm:$0xff]
  %v584 = vld [vmem:[%s1 + $0xe48] sm:$0xf]
  %v585 = vld [vmem:[%s1 + $0xe4c] sm:$0xff]
  %v586 = vld [vmem:[%s1 + $0xe54] sm:$0xff]
  %v587 = vld [vmem:[%s1 + $0xe5c] sm:$0xf]
  %v588 = vld [vmem:[%s1 + $0xe60] sm:$0xff]
  %v589 = vld [vmem:[%s1 + $0xe68] sm:$0xff]
  %v590 = vld [vmem:[%s1 + $0xe70] sm:$0xf]
  %v591 = vld [vmem:[%s1 + $0xe74] sm:$0xff]
  %v592 = vld [vmem:[%s1 + $0xe7c] sm:$0xff]
  %v593 = vld [vmem:[%s1 + $0xe84] sm:$0xf]
  %v594 = vld [vmem:[%s1 + $0xe88] sm:$0xff]
  %v595 = vld [vmem:[%s1 + $0xe90] sm:$0xff]
  %v596 = vld [vmem:[%s1 + $0xe98] sm:$0xf]
  %v597 = vld [vmem:[%s1 + $0xe9c] sm:$0xff]
  %v598 = vld [vmem:[%s1 + $0xea4] sm:$0xff]
  %v599 = vld [vmem:[%s1 + $0xeac] sm:$0xf]
  %v600 = vld [vmem:[%s1 + $0xeb0] sm:$0xff]
  %v601 = vld [vmem:[%s1 + $0xeb8] sm:$0xff]
  %v602 = vld [vmem:[%s1 + $0xec0] sm:$0xf]
  %v603 = vld [vmem:[%s1 + $0xec4] sm:$0xff]
  %v604 = vld [vmem:[%s1 + $0xecc] sm:$0xff]
  %v605 = vld [vmem:[%s1 + $0xed4] sm:$0xf]
  %v606 = vld [vmem:[%s1 + $0xed8] sm:$0xff]
  %v607 = vld [vmem:[%s1 + $0xee0] sm:$0xff]
  %v608 = vld [vmem:[%s1 + $0xee8] sm:$0xf]
  %v609 = vld [vmem:[%s1 + $0xeec] sm:$0xff]
  %v610 = vld [vmem:[%s1 + $0xef4] sm:$0xff]
  %v611 = vld [vmem:[%s1 + $0xefc] sm:$0xf]
  %v612 = vld [vmem:[%s1 + $0xf00] sm:$0xff]
  %v613 = vld [vmem:[%s1 + $0xf08] sm:$0xff]
  %v614 = vld [vmem:[%s1 + $0xf10] sm:$0xf]
  %v615 = vld [vmem:[%s1 + $0xf14] sm:$0xff]
  %v616 = vld [vmem:[%s1 + $0xf1c] sm:$0xff]
  %v617 = vld [vmem:[%s1 + $0xf24] sm:$0xf]
  %v618 = vld [vmem:[%s1 + $0xf28] sm:$0xff]
  %v619 = vld [vmem:[%s1 + $0xf30] sm:$0xff]
  %v620 = vld [vmem:[%s1 + $0xf38] sm:$0xf]
  %v621 = vld [vmem:[%s1 + $0xf3c] sm:$0xff]
  %v622 = vld [vmem:[%s1 + $0xf44] sm:$0xff]
  %v623 = vld [vmem:[%s1 + $0xf4c] sm:$0xf]
  %v624 = vld [vmem:[%s1 + $0xf50] sm:$0xff]
  %v625 = vld [vmem:[%s1 + $0xf58] sm:$0xff]
  %v626 = vld [vmem:[%s1 + $0xf60] sm:$0xf]
  %v627 = vld [vmem:[%s1 + $0xf64] sm:$0xff]
  %v628 = vld [vmem:[%s1 + $0xf6c] sm:$0xff]
  %v629 = vld [vmem:[%s1 + $0xf74] sm:$0xf]
  %v630 = vld [vmem:[%s1 + $0xf78] sm:$0xff]
  %v631 = vld [vmem:[%s1 + $0xf80] sm:$0xff]
  %v632 = vld [vmem:[%s1 + $0xf88] sm:$0xf]
  %v633 = vld [vmem:[%s1 + $0xf8c] sm:$0xff]
  %v634 = vld [vmem:[%s1 + $0xf94] sm:$0xff]
  %v635 = vld [vmem:[%s1 + $0xf9c] sm:$0xf]
  %v636 = vld [vmem:[%s1 + $0xfa0] sm:$0xff]
  %v637 = vld [vmem:[%s1 + $0xfa8] sm:$0xff]
  %v638 = vld [vmem:[%s1 + $0xfb0] sm:$0xf]
  %v639 = vld [vmem:[%s1 + $0xfb4] sm:$0xff]
  %v640 = vld [vmem:[%s1 + $0xfbc] sm:$0xff]
  %v641 = vld [vmem:[%s1 + $0xfc4] sm:$0xf]
  %v642 = vld [vmem:[%s1 + $0xfc8] sm:$0xff]
  %v643 = vld [vmem:[%s1 + $0xfd0] sm:$0xff]
  %v644 = vld [vmem:[%s1 + $0xfd8] sm:$0xf]
  %v645 = vld [vmem:[%s1 + $0xfdc] sm:$0xff]
  %v646 = vld [vmem:[%s1 + $0xfe4] sm:$0xff]
  %v647 = vld [vmem:[%s1 + $0xfec] sm:$0xf]
  %v648 = vld [vmem:[%s1 + $0xff0] sm:$0xff]
  %v649 = vld [vmem:[%s1 + $0xff8] sm:$0xff]
  %v650 = vld [vmem:[%s1 + $0x1000] sm:$0xf]
  %v651 = vld [vmem:[%s1 + $0x1004] sm:$0xff]
  %v652 = vld [vmem:[%s1 + $0x100c] sm:$0xff]
  %v653 = vld [vmem:[%s1 + $0x1014] sm:$0xf]
  %v654 = vld [vmem:[%s1 + $0x1018] sm:$0xff]
  %v655 = vld [vmem:[%s1 + $0x1020] sm:$0xff]
  %v656 = vld [vmem:[%s1 + $0x1028] sm:$0xf]
  %v657 = vld [vmem:[%s1 + $0x102c] sm:$0xff]
  %v658 = vld [vmem:[%s1 + $0x1034] sm:$0xff]
  %v659 = vld [vmem:[%s1 + $0x103c] sm:$0xf]
  %v660 = vld [vmem:[%s1 + $0x1040] sm:$0xff]
  %v661 = vld [vmem:[%s1 + $0x1048] sm:$0xff]
  %v662 = vld [vmem:[%s1 + $0x1050] sm:$0xf]
  %v663 = vld [vmem:[%s1 + $0x1054] sm:$0xff]
  %v664 = vld [vmem:[%s1 + $0x105c] sm:$0xff]
  %v665 = vld [vmem:[%s1 + $0x1064] sm:$0xf]
  %v666 = vld [vmem:[%s1 + $0x1068] sm:$0xff]
  %v667 = vld [vmem:[%s1 + $0x1070] sm:$0xff]
  %v668 = vld [vmem:[%s1 + $0x1078] sm:$0xf]
  %v669 = vld [vmem:[%s1 + $0x107c] sm:$0xff]
  %v670 = vld [vmem:[%s1 + $0x1084] sm:$0xff]
  %v671 = vld [vmem:[%s1 + $0x108c] sm:$0xf]
  %v672 = vld [vmem:[%s1 + $0x1090] sm:$0xff]
  %v673 = vld [vmem:[%s1 + $0x1098] sm:$0xff]
  %v674 = vld [vmem:[%s1 + $0x10a0] sm:$0xf]
  %v675 = vld [vmem:[%s1 + $0x10a4] sm:$0xff]
  %v676 = vld [vmem:[%s1 + $0x10ac] sm:$0xff]
  %v677 = vld [vmem:[%s1 + $0x10b4] sm:$0xf]
  %v678 = vld [vmem:[%s1 + $0x10b8] sm:$0xff]
  %v679 = vld [vmem:[%s1 + $0x10c0] sm:$0xff]
  %v680 = vld [vmem:[%s1 + $0x10c8] sm:$0xf]
  %v681 = vld [vmem:[%s1 + $0x10cc] sm:$0xff]
  %v682 = vld [vmem:[%s1 + $0x10d4] sm:$0xff]
  %v683 = vld [vmem:[%s1 + $0x10dc] sm:$0xf]
  %v684 = vld [vmem:[%s1 + $0x10e0] sm:$0xff]
  %v685 = vld [vmem:[%s1 + $0x10e8] sm:$0xff]
  %v686 = vld [vmem:[%s1 + $0x10f0] sm:$0xf]
  %v687 = vld [vmem:[%s1 + $0x10f4] sm:$0xff]
  %v688 = vld [vmem:[%s1 + $0x10fc] sm:$0xff]
  %v689 = vld [vmem:[%s1 + $0x1104] sm:$0xf]
  %v690 = vld [vmem:[%s1 + $0x1108] sm:$0xff]
  %v691 = vld [vmem:[%s1 + $0x1110] sm:$0xff]
  %v692 = vld [vmem:[%s1 + $0x1118] sm:$0xf]
  %v693 = vld [vmem:[%s1 + $0x111c] sm:$0xff]
  %v694 = vld [vmem:[%s1 + $0x1124] sm:$0xff]
  %v695 = vld [vmem:[%s1 + $0x112c] sm:$0xf]
  %v696 = vld [vmem:[%s1 + $0x1130] sm:$0xff]
  %v697 = vld [vmem:[%s1 + $0x1138] sm:$0xff]
  %v698 = vld [vmem:[%s1 + $0x1140] sm:$0xf]
  %v699 = vld [vmem:[%s1 + $0x1144] sm:$0xff]
  %v700 = vld [vmem:[%s1 + $0x114c] sm:$0xff]
  %v701 = vld [vmem:[%s1 + $0x1154] sm:$0xf]
  %v702 = vld [vmem:[%s1 + $0x1158] sm:$0xff]
  %v703 = vld [vmem:[%s1 + $0x1160] sm:$0xff]
  %v704 = vld [vmem:[%s1 + $0x1168] sm:$0xf]
  %v705 = vld [vmem:[%s1 + $0x116c] sm:$0xff]
  %v706 = vld [vmem:[%s1 + $0x1174] sm:$0xff]
  %v707 = vld [vmem:[%s1 + $0x117c] sm:$0xf]
  %v708 = vld [vmem:[%s1 + $0x1180] sm:$0xff]
  %v709 = vld [vmem:[%s1 + $0x1188] sm:$0xff]
  %v710 = vld [vmem:[%s1 + $0x1190] sm:$0xf]
  %v711 = vld [vmem:[%s1 + $0x1194] sm:$0xff]
  %v712 = vld [vmem:[%s1 + $0x119c] sm:$0xff]
  %v713 = vld [vmem:[%s1 + $0x11a4] sm:$0xf]
  %v714 = vld [vmem:[%s1 + $0x11a8] sm:$0xff]
  %v715 = vld [vmem:[%s1 + $0x11b0] sm:$0xff]
  %v716 = vld [vmem:[%s1 + $0x11b8] sm:$0xf]
  %v717 = vld [vmem:[%s1 + $0x11bc] sm:$0xff]
  %v718 = vld [vmem:[%s1 + $0x11c4] sm:$0xff]
  %v719 = vld [vmem:[%s1 + $0x11cc] sm:$0xf]
  %v720 = vld [vmem:[%s1 + $0x11d0] sm:$0xff]
  %v721 = vld [vmem:[%s1 + $0x11d8] sm:$0xff]
  %v722 = vld [vmem:[%s1 + $0x11e0] sm:$0xf]
  %v723 = vld [vmem:[%s1 + $0x11e4] sm:$0xff]
  %v724 = vld [vmem:[%s1 + $0x11ec] sm:$0xff]
  %v725 = vld [vmem:[%s1 + $0x11f4] sm:$0xf]
  %v726 = vld [vmem:[%s1 + $0x11f8] sm:$0xff]
  %v727 = vld [vmem:[%s1 + $0x1200] sm:$0xff]
  %v728 = vld [vmem:[%s1 + $0x1208] sm:$0xf]
  %v729 = vld [vmem:[%s1 + $0x120c] sm:$0xff]
  %v730 = vld [vmem:[%s1 + $0x1214] sm:$0xff]
  %v731 = vld [vmem:[%s1 + $0x121c] sm:$0xf]
  %v732 = vld [vmem:[%s1 + $0x1220] sm:$0xff]
  %v733 = vld [vmem:[%s1 + $0x1228] sm:$0xff]
  %v734 = vld [vmem:[%s1 + $0x1230] sm:$0xf]
  %v735 = vld [vmem:[%s1 + $0x1234] sm:$0xff]
  %v736 = vld [vmem:[%s1 + $0x123c] sm:$0xff]
  %v737 = vld [vmem:[%s1 + $0x1244] sm:$0xf]
  %v738 = vld [vmem:[%s1 + $0x1248] sm:$0xff]
  %v739 = vld [vmem:[%s1 + $0x1250] sm:$0xff]
  %v740 = vld [vmem:[%s1 + $0x1258] sm:$0xf]
  %v741 = vld [vmem:[%s1 + $0x125c] sm:$0xff]
  %v742 = vld [vmem:[%s1 + $0x1264] sm:$0xff]
  %v743 = vld [vmem:[%s1 + $0x126c] sm:$0xf]
  %v744 = vld [vmem:[%s1 + $0x1270] sm:$0xff]
  %v745 = vld [vmem:[%s1 + $0x1278] sm:$0xff]
  %v746 = vld [vmem:[%s1 + $0x1280] sm:$0xf]
  %v747 = vld [vmem:[%s1 + $0x1284] sm:$0xff]
  %v748 = vld [vmem:[%s1 + $0x128c] sm:$0xff]
  %v749 = vld [vmem:[%s1 + $0x1294] sm:$0xf]
  %v750 = vld [vmem:[%s1 + $0x1298] sm:$0xff]
  %v751 = vld [vmem:[%s1 + $0x12a0] sm:$0xff]
  %v752 = vld [vmem:[%s1 + $0x12a8] sm:$0xf]
  %v753 = vld [vmem:[%s1 + $0x12ac] sm:$0xff]
  %v754 = vld [vmem:[%s1 + $0x12b4] sm:$0xff]
  %v755 = vld [vmem:[%s1 + $0x12bc] sm:$0xf]
  %v756 = vld [vmem:[%s1 + $0x12c0] sm:$0xff]
  %v757 = vld [vmem:[%s1 + $0x12c8] sm:$0xff]
  %v758 = vld [vmem:[%s1 + $0x12d0] sm:$0xf]
  %v759 = vld [vmem:[%s1 + $0x12d4] sm:$0xff]
  %v760 = vld [vmem:[%s1 + $0x12dc] sm:$0xff]
  %v761 = vld [vmem:[%s1 + $0x12e4] sm:$0xf]
  %v762 = vld [vmem:[%s1 + $0x12e8] sm:$0xff]
  %v763 = vld [vmem:[%s1 + $0x12f0] sm:$0xff]
  %v764 = vld [vmem:[%s1 + $0x12f8] sm:$0xf]
  %v765 = vld [vmem:[%s1 + $0x12fc] sm:$0xff]
  %v766 = vld [vmem:[%s1 + $0x1304] sm:$0xff]
  %v767 = vld [vmem:[%s1 + $0x130c] sm:$0xf]
  %v768 = vld [vmem:[%s1 + $0x1310] sm:$0xff]
  %v769 = vld [vmem:[%s1 + $0x1318] sm:$0xff]
  %v770 = vld [vmem:[%s1 + $0x1320] sm:$0xf]
  %v771 = vld [vmem:[%s1 + $0x1324] sm:$0xff]
  %v772 = vld [vmem:[%s1 + $0x132c] sm:$0xff]
  %v773 = vld [vmem:[%s1 + $0x1334] sm:$0xf]
  %v774 = vld [vmem:[%s1 + $0x1338] sm:$0xff]
  %v775 = vld [vmem:[%s1 + $0x1340] sm:$0xff]
  %v776 = vld [vmem:[%s1 + $0x1348] sm:$0xf]
  %v777 = vld [vmem:[%s1 + $0x134c] sm:$0xff]
  %v778 = vld [vmem:[%s1 + $0x1354] sm:$0xff]
  %v779 = vld [vmem:[%s1 + $0x135c] sm:$0xf]
  %v780 = vld [vmem:[%s1 + $0x1360] sm:$0xff]
  %v781 = vld [vmem:[%s1 + $0x1368] sm:$0xff]
  %v782 = vld [vmem:[%s1 + $0x1370] sm:$0xf]
  %v783 = vld [vmem:[%s1 + $0x1374] sm:$0xff]
  %v784 = vld [vmem:[%s1 + $0x137c] sm:$0xff]
  %v785 = vld [vmem:[%s1 + $0x1384] sm:$0xf]
  %v786 = vld [vmem:[%s1 + $0x1388] sm:$0xff]
  %v787 = vld [vmem:[%s1 + $0x1390] sm:$0xff]
  %v788 = vld [vmem:[%s1 + $0x1398] sm:$0xf]
  %v789 = vld [vmem:[%s1 + $0x139c] sm:$0xff]
  %v790 = vld [vmem:[%s1 + $0x13a4] sm:$0xff]
  %v791 = vld [vmem:[%s1 + $0x13ac] sm:$0xf]
  %v792 = vld [vmem:[%s1 + $0x13b0] sm:$0xff]
  %v793 = vld [vmem:[%s1 + $0x13b8] sm:$0xff]
  %v794 = vld [vmem:[%s1 + $0x13c0] sm:$0xf]
  %v795 = vld [vmem:[%s1 + $0x13c4] sm:$0xff]
  %v796 = vld [vmem:[%s1 + $0x13cc] sm:$0xff]
  %v797 = vld [vmem:[%s1 + $0x13d4] sm:$0xf]
  %v798 = vld [vmem:[%s1 + $0x13d8] sm:$0xff]
  %v799 = vld [vmem:[%s1 + $0x13e0] sm:$0xff]
  %v800 = vld [vmem:[%s1 + $0x13e8] sm:$0xf]
  %v801 = vld [vmem:[%s1 + $0x13ec] sm:$0xff]
  %v802 = vld [vmem:[%s1 + $0x13f4] sm:$0xff]
  %v803 = vld [vmem:[%s1 + $0x13fc] sm:$0xf]
  %v804 = vld [vmem:[%s1 + $0x1400] sm:$0xff]
  %v805 = vld [vmem:[%s1 + $0x1408] sm:$0xff]
  %v806 = vld [vmem:[%s1 + $0x1410] sm:$0xf]
  %v807 = vld [vmem:[%s1 + $0x1414] sm:$0xff]
  %v808 = vld [vmem:[%s1 + $0x141c] sm:$0xff]
  %v809 = vld [vmem:[%s1 + $0x1424] sm:$0xf]
  %v810 = vld [vmem:[%s1 + $0x1428] sm:$0xff]
  %v811 = vld [vmem:[%s1 + $0x1430] sm:$0xff]
  %v812 = vld [vmem:[%s1 + $0x1438] sm:$0xf]
  %v813 = vld [vmem:[%s1 + $0x143c] sm:$0xff]
  %v814 = vld [vmem:[%s1 + $0x1444] sm:$0xff]
  %v815 = vld [vmem:[%s1 + $0x144c] sm:$0xf]
  %v816 = vld [vmem:[%s1 + $0x1450] sm:$0xff]
  %v817 = vld [vmem:[%s1 + $0x1458] sm:$0xff]
  %v818 = vld [vmem:[%s1 + $0x1460] sm:$0xf]
  %v819 = vld [vmem:[%s1 + $0x1464] sm:$0xff]
  %v820 = vld [vmem:[%s1 + $0x146c] sm:$0xff]
  %v821 = vld [vmem:[%s1 + $0x1474] sm:$0xf]
  %v822 = vld [vmem:[%s1 + $0x1478] sm:$0xff]
  %v823 = vld [vmem:[%s1 + $0x1480] sm:$0xff]
  %v824 = vld [vmem:[%s1 + $0x1488] sm:$0xf]
  %v825 = vld [vmem:[%s1 + $0x148c] sm:$0xff]
  %v826 = vld [vmem:[%s1 + $0x1494] sm:$0xff]
  %v827 = vld [vmem:[%s1 + $0x149c] sm:$0xf]
  %v828 = vld [vmem:[%s1 + $0x14a0] sm:$0xff]
  %v829 = vld [vmem:[%s1 + $0x14a8] sm:$0xff]
  %v830 = vld [vmem:[%s1 + $0x14b0] sm:$0xf]
  %v831 = vld [vmem:[%s1 + $0x14b4] sm:$0xff]
  %v832 = vld [vmem:[%s1 + $0x14bc] sm:$0xff]
  %v833 = vld [vmem:[%s1 + $0x14c4] sm:$0xf]
  %v834 = vld [vmem:[%s1 + $0x14c8] sm:$0xff]
  %v835 = vld [vmem:[%s1 + $0x14d0] sm:$0xff]
  %v836 = vld [vmem:[%s1 + $0x14d8] sm:$0xf]
  %v837 = vld [vmem:[%s1 + $0x14dc] sm:$0xff]
  %v838 = vld [vmem:[%s1 + $0x14e4] sm:$0xff]
  %v839 = vld [vmem:[%s1 + $0x14ec] sm:$0xf]
  %v840 = vld [vmem:[%s1 + $0x14f0] sm:$0xff]
  %v841 = vld [vmem:[%s1 + $0x14f8] sm:$0xff]
  %v842 = vld [vmem:[%s1 + $0x1500] sm:$0xf]
  %v843 = vld [vmem:[%s1 + $0x1504] sm:$0xff]
  %v844 = vld [vmem:[%s1 + $0x150c] sm:$0xff]
  %v845 = vld [vmem:[%s1 + $0x1514] sm:$0xf]
  %v846 = vld [vmem:[%s1 + $0x1518] sm:$0xff]
  %v847 = vld [vmem:[%s1 + $0x1520] sm:$0xff]
  %v848 = vld [vmem:[%s1 + $0x1528] sm:$0xf]
  %v849 = vld [vmem:[%s1 + $0x152c] sm:$0xff]
  %v850 = vld [vmem:[%s1 + $0x1534] sm:$0xff]
  %v851 = vld [vmem:[%s1 + $0x153c] sm:$0xf]
  %v852 = vld [vmem:[%s1 + $0x1540] sm:$0xff]
  %v853 = vld [vmem:[%s1 + $0x1548] sm:$0xff]
  %v854 = vld [vmem:[%s1 + $0x1550] sm:$0xf]
  %v855 = vld [vmem:[%s1 + $0x1554] sm:$0xff]
  %v856 = vld [vmem:[%s1 + $0x155c] sm:$0xff]
  %v857 = vld [vmem:[%s1 + $0x1564] sm:$0xf]
  %v858 = vld [vmem:[%s1 + $0x1568] sm:$0xff]
  %v859 = vld [vmem:[%s1 + $0x1570] sm:$0xff]
  %v860 = vld [vmem:[%s1 + $0x1578] sm:$0xf]
  %v861 = vld [vmem:[%s1 + $0x157c] sm:$0xff]
  %v862 = vld [vmem:[%s1 + $0x1584] sm:$0xff]
  %v863 = vld [vmem:[%s1 + $0x158c] sm:$0xf]
  %v864 = vld [vmem:[%s1 + $0x1590] sm:$0xff]
  %v865 = vld [vmem:[%s1 + $0x1598] sm:$0xff]
  %v866 = vld [vmem:[%s1 + $0x15a0] sm:$0xf]
  %v867 = vld [vmem:[%s1 + $0x15a4] sm:$0xff]
  %v868 = vld [vmem:[%s1 + $0x15ac] sm:$0xff]
  %v869 = vld [vmem:[%s1 + $0x15b4] sm:$0xf]
  %v870 = vld [vmem:[%s1 + $0x15b8] sm:$0xff]
  %v871 = vld [vmem:[%s1 + $0x15c0] sm:$0xff]
  %v872 = vld [vmem:[%s1 + $0x15c8] sm:$0xf]
  %v873 = vld [vmem:[%s1 + $0x15cc] sm:$0xff]
  %v874 = vld [vmem:[%s1 + $0x15d4] sm:$0xff]
  %v875 = vld [vmem:[%s1 + $0x15dc] sm:$0xf]
  %v876 = vld [vmem:[%s1 + $0x15e0] sm:$0xff]
  %v877 = vld [vmem:[%s1 + $0x15e8] sm:$0xff]
  %v878 = vld [vmem:[%s1 + $0x15f0] sm:$0xf]
  %v879 = vld [vmem:[%s1 + $0x15f4] sm:$0xff]
  %v880 = vld [vmem:[%s1 + $0x15fc] sm:$0xff]
  %v881 = vld [vmem:[%s1 + $0x1604] sm:$0xf]
  %v882 = vld [vmem:[%s1 + $0x1608] sm:$0xff]
  %v883 = vld [vmem:[%s1 + $0x1610] sm:$0xff]
  %v884 = vld [vmem:[%s1 + $0x1618] sm:$0xf]
  %v885 = vld [vmem:[%s1 + $0x161c] sm:$0xff]
  %v886 = vld [vmem:[%s1 + $0x1624] sm:$0xff]
  %v887 = vld [vmem:[%s1 + $0x162c] sm:$0xf]
  %v888 = vld [vmem:[%s1 + $0x1630] sm:$0xff]
  %v889 = vld [vmem:[%s1 + $0x1638] sm:$0xff]
  %v890 = vld [vmem:[%s1 + $0x1640] sm:$0xf]
  %v891 = vld [vmem:[%s1 + $0x1644] sm:$0xff]
  %v892 = vld [vmem:[%s1 + $0x164c] sm:$0xff]
  %v893 = vld [vmem:[%s1 + $0x1654] sm:$0xf]
  %v894 = vld [vmem:[%s1 + $0x1658] sm:$0xff]
  %v895 = vld [vmem:[%s1 + $0x1660] sm:$0xff]
  %v896 = vld [vmem:[%s1 + $0x1668] sm:$0xf]
  %v897 = vld [vmem:[%s1 + $0x166c] sm:$0xff]
  %v898 = vld [vmem:[%s1 + $0x1674] sm:$0xff]
  %v899 = vld [vmem:[%s1 + $0x167c] sm:$0xf]
  %v900 = vld [vmem:[%s2] sm:$0x1f]
  %v902 = vperm.slane %v900, 0
  %v903 = vperm.slane %v900, 1
  %v904 = vperm.slane %v900, 2
  %v905 = vperm.slane %v900, 3
  %v906 = vperm.slane %v900, 4
  %v921 = vunpack.c.l.b16 %v27
  %v922 = vunpack.c.h.b16 %v27
  %v923 = vunpack.c.l.b16 %v28
  %v924 = vunpack.c.h.b16 %v28
  %v925 = vunpack.c.l.b16 %v29
  %v926 = vunpack.c.h.b16 %v29
  %v927 = vunpack.c.l.b16 %v30
  %v928 = vunpack.c.h.b16 %v30
  %v929 = vunpack.c.l.b16 %v31
  %v930 = vunpack.c.h.b16 %v31
  %v931 = vunpack.c.l.b16 %v32
  %v932 = vunpack.c.h.b16 %v32
  %v933 = vunpack.c.l.b16 %v33
  %v934 = vunpack.c.h.b16 %v33
  %v935 = vunpack.c.l.b16 %v34
  %v936 = vunpack.c.h.b16 %v34
  %v937 = vunpack.c.l.b16 %v35
  %v938 = vunpack.c.h.b16 %v35
  %v939 = vpack.c.b16 %v921, %v921
  %v940 = vpack.c.b16 %v922, %v922
  %v941 = vpack.c.b16 %v923, %v923
  %v942 = vpack.c.b16 %v924, %v924
  %v943 = vpack.c.b16 %v925, %v925
  %v944 = vpack.c.b16 %v926, %v926
  %v945 = vpack.c.b16 %v927, %v927
  %v946 = vpack.c.b16 %v928, %v928
  %v947 = vpack.c.b16 %v929, %v929
  %v948 = vpack.c.b16 %v930, %v930
  %v949 = vpack.c.b16 %v931, %v931
  %v950 = vpack.c.b16 %v932, %v932
  %v951 = vpack.c.b16 %v933, %v933
  %v952 = vpack.c.b16 %v934, %v934
  %v953 = vpack.c.b16 %v935, %v935
  %v954 = vpack.c.b16 %v936, %v936
  %v955 = vpack.c.b16 %v937, %v937
  %v956 = vpack.c.b16 %v938, %v938
  %v1839 = vunpack.c.l.b16 %v36
  %v1840 = vunpack.c.h.b16 %v36
  %v1841 = vunpack.c.l.b16 %v37
  %v1842 = vunpack.c.h.b16 %v37
  %v1843 = vunpack.c.l.b16 %v38
  %v1844 = vunpack.c.l.b16 %v39
  %v1845 = vunpack.c.h.b16 %v39
  %v1846 = vunpack.c.l.b16 %v40
  %v1847 = vunpack.c.h.b16 %v40
  %v1848 = vunpack.c.l.b16 %v41
  %v1849 = vunpack.c.l.b16 %v42
  %v1850 = vunpack.c.h.b16 %v42
  %v1851 = vunpack.c.l.b16 %v43
  %v1852 = vunpack.c.h.b16 %v43
  %v1853 = vunpack.c.l.b16 %v44
  %v1854 = vunpack.c.l.b16 %v45
  %v1855 = vunpack.c.h.b16 %v45
  %v1856 = vunpack.c.l.b16 %v46
  %v1857 = vunpack.c.h.b16 %v46
  %v1858 = vunpack.c.l.b16 %v47
  %v1859 = vunpack.c.l.b16 %v48
  %v1860 = vunpack.c.h.b16 %v48
  %v1861 = vunpack.c.l.b16 %v49
  %v1862 = vunpack.c.h.b16 %v49
  %v1863 = vunpack.c.l.b16 %v50
  %v1864 = vunpack.c.l.b16 %v51
  %v1865 = vunpack.c.h.b16 %v51
  %v1866 = vunpack.c.l.b16 %v52
  %v1867 = vunpack.c.h.b16 %v52
  %v1868 = vunpack.c.l.b16 %v53
  %v1869 = vunpack.c.l.b16 %v54
  %v1870 = vunpack.c.h.b16 %v54
  %v1871 = vunpack.c.l.b16 %v55
  %v1872 = vunpack.c.h.b16 %v55
  %v1873 = vunpack.c.l.b16 %v56
  %v1874 = vunpack.c.l.b16 %v57
  %v1875 = vunpack.c.h.b16 %v57
  %v1876 = vunpack.c.l.b16 %v58
  %v1877 = vunpack.c.h.b16 %v58
  %v1878 = vunpack.c.l.b16 %v59
  %v1879 = vunpack.c.l.b16 %v60
  %v1880 = vunpack.c.h.b16 %v60
  %v1881 = vunpack.c.l.b16 %v61
  %v1882 = vunpack.c.h.b16 %v61
  %v1883 = vunpack.c.l.b16 %v62
  %v1884 = vunpack.c.l.b16 %v63
  %v1885 = vunpack.c.h.b16 %v63
  %v1886 = vunpack.c.l.b16 %v64
  %v1887 = vunpack.c.h.b16 %v64
  %v1888 = vunpack.c.l.b16 %v65
  %v1889 = vunpack.c.l.b16 %v66
  %v1890 = vunpack.c.h.b16 %v66
  %v1891 = vunpack.c.l.b16 %v67
  %v1892 = vunpack.c.h.b16 %v67
  %v1893 = vunpack.c.l.b16 %v68
  %v1894 = vunpack.c.l.b16 %v69
  %v1895 = vunpack.c.h.b16 %v69
  %v1896 = vunpack.c.l.b16 %v70
  %v1897 = vunpack.c.h.b16 %v70
  %v1898 = vunpack.c.l.b16 %v71
  %v1899 = vunpack.c.l.b16 %v72
  %v1900 = vunpack.c.h.b16 %v72
  %v1901 = vunpack.c.l.b16 %v73
  %v1902 = vunpack.c.h.b16 %v73
  %v1903 = vunpack.c.l.b16 %v74
  %v1904 = vunpack.c.l.b16 %v75
  %v1905 = vunpack.c.h.b16 %v75
  %v1906 = vunpack.c.l.b16 %v76
  %v1907 = vunpack.c.h.b16 %v76
  %v1908 = vunpack.c.l.b16 %v77
  %v1909 = vunpack.c.l.b16 %v78
  %v1910 = vunpack.c.h.b16 %v78
  %v1911 = vunpack.c.l.b16 %v79
  %v1912 = vunpack.c.h.b16 %v79
  %v1913 = vunpack.c.l.b16 %v80
  %v1914 = vunpack.c.l.b16 %v81
  %v1915 = vunpack.c.h.b16 %v81
  %v1916 = vunpack.c.l.b16 %v82
  %v1917 = vunpack.c.h.b16 %v82
  %v1918 = vunpack.c.l.b16 %v83
  %v1919 = vunpack.c.l.b16 %v84
  %v1920 = vunpack.c.h.b16 %v84
  %v1921 = vunpack.c.l.b16 %v85
  %v1922 = vunpack.c.h.b16 %v85
  %v1923 = vunpack.c.l.b16 %v86
  %v1924 = vunpack.c.l.b16 %v87
  %v1925 = vunpack.c.h.b16 %v87
  %v1926 = vunpack.c.l.b16 %v88
  %v1927 = vunpack.c.h.b16 %v88
  %v1928 = vunpack.c.l.b16 %v89
  %v1929 = vunpack.c.l.b16 %v90
  %v1930 = vunpack.c.h.b16 %v90
  %v1931 = vunpack.c.l.b16 %v91
  %v1932 = vunpack.c.h.b16 %v91
  %v1933 = vunpack.c.l.b16 %v92
  %v1934 = vunpack.c.l.b16 %v93
  %v1935 = vunpack.c.h.b16 %v93
  %v1936 = vunpack.c.l.b16 %v94
  %v1937 = vunpack.c.h.b16 %v94
  %v1938 = vunpack.c.l.b16 %v95
  %v1939 = vunpack.c.l.b16 %v96
  %v1940 = vunpack.c.h.b16 %v96
  %v1941 = vunpack.c.l.b16 %v97
  %v1942 = vunpack.c.h.b16 %v97
  %v1943 = vunpack.c.l.b16 %v98
  %v1944 = vunpack.c.l.b16 %v99
  %v1945 = vunpack.c.h.b16 %v99
  %v1946 = vunpack.c.l.b16 %v100
  %v1947 = vunpack.c.h.b16 %v100
  %v1948 = vunpack.c.l.b16 %v101
  %v1949 = vunpack.c.l.b16 %v102
  %v1950 = vunpack.c.h.b16 %v102
  %v1951 = vunpack.c.l.b16 %v103
  %v1952 = vunpack.c.h.b16 %v103
  %v1953 = vunpack.c.l.b16 %v104
  %v1954 = vunpack.c.l.b16 %v105
  %v1955 = vunpack.c.h.b16 %v105
  %v1956 = vunpack.c.l.b16 %v106
  %v1957 = vunpack.c.h.b16 %v106
  %v1958 = vunpack.c.l.b16 %v107
  %v1959 = vunpack.c.l.b16 %v108
  %v1960 = vunpack.c.h.b16 %v108
  %v1961 = vunpack.c.l.b16 %v109
  %v1962 = vunpack.c.h.b16 %v109
  %v1963 = vunpack.c.l.b16 %v110
  %v1964 = vunpack.c.l.b16 %v111
  %v1965 = vunpack.c.h.b16 %v111
  %v1966 = vunpack.c.l.b16 %v112
  %v1967 = vunpack.c.h.b16 %v112
  %v1968 = vunpack.c.l.b16 %v113
  %v1969 = vunpack.c.l.b16 %v114
  %v1970 = vunpack.c.h.b16 %v114
  %v1971 = vunpack.c.l.b16 %v115
  %v1972 = vunpack.c.h.b16 %v115
  %v1973 = vunpack.c.l.b16 %v116
  %v1974 = vunpack.c.l.b16 %v117
  %v1975 = vunpack.c.h.b16 %v117
  %v1976 = vunpack.c.l.b16 %v118
  %v1977 = vunpack.c.h.b16 %v118
  %v1978 = vunpack.c.l.b16 %v119
  %v1979 = vunpack.c.l.b16 %v120
  %v1980 = vunpack.c.h.b16 %v120
  %v1981 = vunpack.c.l.b16 %v121
  %v1982 = vunpack.c.h.b16 %v121
  %v1983 = vunpack.c.l.b16 %v122
  %v1984 = vunpack.c.l.b16 %v123
  %v1985 = vunpack.c.h.b16 %v123
  %v1986 = vunpack.c.l.b16 %v124
  %v1987 = vunpack.c.h.b16 %v124
  %v1988 = vunpack.c.l.b16 %v125
  %v1989 = vunpack.c.l.b16 %v126
  %v1990 = vunpack.c.h.b16 %v126
  %v1991 = vunpack.c.l.b16 %v127
  %v1992 = vunpack.c.h.b16 %v127
  %v1993 = vunpack.c.l.b16 %v128
  %v1994 = vunpack.c.l.b16 %v129
  %v1995 = vunpack.c.h.b16 %v129
  %v1996 = vunpack.c.l.b16 %v130
  %v1997 = vunpack.c.h.b16 %v130
  %v1998 = vunpack.c.l.b16 %v131
  %v1999 = vunpack.c.l.b16 %v132
  %v2000 = vunpack.c.h.b16 %v132
  %v2001 = vunpack.c.l.b16 %v133
  %v2002 = vunpack.c.h.b16 %v133
  %v2003 = vunpack.c.l.b16 %v134
  %v2004 = vunpack.c.l.b16 %v135
  %v2005 = vunpack.c.h.b16 %v135
  %v2006 = vunpack.c.l.b16 %v136
  %v2007 = vunpack.c.h.b16 %v136
  %v2008 = vunpack.c.l.b16 %v137
  %v2009 = vunpack.c.l.b16 %v138
  %v2010 = vunpack.c.h.b16 %v138
  %v2011 = vunpack.c.l.b16 %v139
  %v2012 = vunpack.c.h.b16 %v139
  %v2013 = vunpack.c.l.b16 %v140
  %v2014 = vunpack.c.l.b16 %v141
  %v2015 = vunpack.c.h.b16 %v141
  %v2016 = vunpack.c.l.b16 %v142
  %v2017 = vunpack.c.h.b16 %v142
  %v2018 = vunpack.c.l.b16 %v143
  %v2019 = vunpack.c.l.b16 %v144
  %v2020 = vunpack.c.h.b16 %v144
  %v2021 = vunpack.c.l.b16 %v145
  %v2022 = vunpack.c.h.b16 %v145
  %v2023 = vunpack.c.l.b16 %v146
  %v2024 = vunpack.c.l.b16 %v147
  %v2025 = vunpack.c.h.b16 %v147
  %v2026 = vunpack.c.l.b16 %v148
  %v2027 = vunpack.c.h.b16 %v148
  %v2028 = vunpack.c.l.b16 %v149
  %v2029 = vunpack.c.l.b16 %v150
  %v2030 = vunpack.c.h.b16 %v150
  %v2031 = vunpack.c.l.b16 %v151
  %v2032 = vunpack.c.h.b16 %v151
  %v2033 = vunpack.c.l.b16 %v152
  %v2034 = vunpack.c.l.b16 %v153
  %v2035 = vunpack.c.h.b16 %v153
  %v2036 = vunpack.c.l.b16 %v154
  %v2037 = vunpack.c.h.b16 %v154
  %v2038 = vunpack.c.l.b16 %v155
  %v2039 = vunpack.c.l.b16 %v156
  %v2040 = vunpack.c.h.b16 %v156
  %v2041 = vunpack.c.l.b16 %v157
  %v2042 = vunpack.c.h.b16 %v157
  %v2043 = vunpack.c.l.b16 %v158
  %v2044 = vunpack.c.l.b16 %v159
  %v2045 = vunpack.c.h.b16 %v159
  %v2046 = vunpack.c.l.b16 %v160
  %v2047 = vunpack.c.h.b16 %v160
  %v2048 = vunpack.c.l.b16 %v161
  %v2049 = vunpack.c.l.b16 %v162
  %v2050 = vunpack.c.h.b16 %v162
  %v2051 = vunpack.c.l.b16 %v163
  %v2052 = vunpack.c.h.b16 %v163
  %v2053 = vunpack.c.l.b16 %v164
  %v2054 = vunpack.c.l.b16 %v165
  %v2055 = vunpack.c.h.b16 %v165
  %v2056 = vunpack.c.l.b16 %v166
  %v2057 = vunpack.c.h.b16 %v166
  %v2058 = vunpack.c.l.b16 %v167
  %v2059 = vunpack.c.l.b16 %v168
  %v2060 = vunpack.c.h.b16 %v168
  %v2061 = vunpack.c.l.b16 %v169
  %v2062 = vunpack.c.h.b16 %v169
  %v2063 = vunpack.c.l.b16 %v170
  %v2064 = vunpack.c.l.b16 %v171
  %v2065 = vunpack.c.h.b16 %v171
  %v2066 = vunpack.c.l.b16 %v172
  %v2067 = vunpack.c.h.b16 %v172
  %v2068 = vunpack.c.l.b16 %v173
  %v2069 = vunpack.c.l.b16 %v174
  %v2070 = vunpack.c.h.b16 %v174
  %v2071 = vunpack.c.l.b16 %v175
  %v2072 = vunpack.c.h.b16 %v175
  %v2073 = vunpack.c.l.b16 %v176
  %v2074 = vunpack.c.l.b16 %v177
  %v2075 = vunpack.c.h.b16 %v177
  %v2076 = vunpack.c.l.b16 %v178
  %v2077 = vunpack.c.h.b16 %v178
  %v2078 = vunpack.c.l.b16 %v179
  %v2079 = vunpack.c.l.b16 %v180
  %v2080 = vunpack.c.h.b16 %v180
  %v2081 = vunpack.c.l.b16 %v181
  %v2082 = vunpack.c.h.b16 %v181
  %v2083 = vunpack.c.l.b16 %v182
  %v2084 = vunpack.c.l.b16 %v183
  %v2085 = vunpack.c.h.b16 %v183
  %v2086 = vunpack.c.l.b16 %v184
  %v2087 = vunpack.c.h.b16 %v184
  %v2088 = vunpack.c.l.b16 %v185
  %v2089 = vunpack.c.l.b16 %v186
  %v2090 = vunpack.c.h.b16 %v186
  %v2091 = vunpack.c.l.b16 %v187
  %v2092 = vunpack.c.h.b16 %v187
  %v2093 = vunpack.c.l.b16 %v188
  %v2094 = vunpack.c.l.b16 %v189
  %v2095 = vunpack.c.h.b16 %v189
  %v2096 = vunpack.c.l.b16 %v190
  %v2097 = vunpack.c.h.b16 %v190
  %v2098 = vunpack.c.l.b16 %v191
  %v2099 = vunpack.c.l.b16 %v192
  %v2100 = vunpack.c.h.b16 %v192
  %v2101 = vunpack.c.l.b16 %v193
  %v2102 = vunpack.c.h.b16 %v193
  %v2103 = vunpack.c.l.b16 %v194
  %v2104 = vunpack.c.l.b16 %v195
  %v2105 = vunpack.c.h.b16 %v195
  %v2106 = vunpack.c.l.b16 %v196
  %v2107 = vunpack.c.h.b16 %v196
  %v2108 = vunpack.c.l.b16 %v197
  %v2109 = vunpack.c.l.b16 %v198
  %v2110 = vunpack.c.h.b16 %v198
  %v2111 = vunpack.c.l.b16 %v199
  %v2112 = vunpack.c.h.b16 %v199
  %v2113 = vunpack.c.l.b16 %v200
  %v2114 = vunpack.c.l.b16 %v201
  %v2115 = vunpack.c.h.b16 %v201
  %v2116 = vunpack.c.l.b16 %v202
  %v2117 = vunpack.c.h.b16 %v202
  %v2118 = vunpack.c.l.b16 %v203
  %v2119 = vunpack.c.l.b16 %v204
  %v2120 = vunpack.c.h.b16 %v204
  %v2121 = vunpack.c.l.b16 %v205
  %v2122 = vunpack.c.h.b16 %v205
  %v2123 = vunpack.c.l.b16 %v206
  %v2124 = vunpack.c.l.b16 %v207
  %v2125 = vunpack.c.h.b16 %v207
  %v2126 = vunpack.c.l.b16 %v208
  %v2127 = vunpack.c.h.b16 %v208
  %v2128 = vunpack.c.l.b16 %v209
  %v2129 = vunpack.c.l.b16 %v210
  %v2130 = vunpack.c.h.b16 %v210
  %v2131 = vunpack.c.l.b16 %v211
  %v2132 = vunpack.c.h.b16 %v211
  %v2133 = vunpack.c.l.b16 %v212
  %v2134 = vunpack.c.l.b16 %v213
  %v2135 = vunpack.c.h.b16 %v213
  %v2136 = vunpack.c.l.b16 %v214
  %v2137 = vunpack.c.h.b16 %v214
  %v2138 = vunpack.c.l.b16 %v215
  %v2139 = vunpack.c.l.b16 %v216
  %v2140 = vunpack.c.h.b16 %v216
  %v2141 = vunpack.c.l.b16 %v217
  %v2142 = vunpack.c.h.b16 %v217
  %v2143 = vunpack.c.l.b16 %v218
  %v2144 = vunpack.c.l.b16 %v219
  %v2145 = vunpack.c.h.b16 %v219
  %v2146 = vunpack.c.l.b16 %v220
  %v2147 = vunpack.c.h.b16 %v220
  %v2148 = vunpack.c.l.b16 %v221
  %v2149 = vunpack.c.l.b16 %v222
  %v2150 = vunpack.c.h.b16 %v222
  %v2151 = vunpack.c.l.b16 %v223
  %v2152 = vunpack.c.h.b16 %v223
  %v2153 = vunpack.c.l.b16 %v224
  %v2154 = vunpack.c.l.b16 %v225
  %v2155 = vunpack.c.h.b16 %v225
  %v2156 = vunpack.c.l.b16 %v226
  %v2157 = vunpack.c.h.b16 %v226
  %v2158 = vunpack.c.l.b16 %v227
  %v2159 = vunpack.c.l.b16 %v228
  %v2160 = vunpack.c.h.b16 %v228
  %v2161 = vunpack.c.l.b16 %v229
  %v2162 = vunpack.c.h.b16 %v229
  %v2163 = vunpack.c.l.b16 %v230
  %v2164 = vunpack.c.l.b16 %v231
  %v2165 = vunpack.c.h.b16 %v231
  %v2166 = vunpack.c.l.b16 %v232
  %v2167 = vunpack.c.h.b16 %v232
  %v2168 = vunpack.c.l.b16 %v233
  %v2169 = vunpack.c.l.b16 %v234
  %v2170 = vunpack.c.h.b16 %v234
  %v2171 = vunpack.c.l.b16 %v235
  %v2172 = vunpack.c.h.b16 %v235
  %v2173 = vunpack.c.l.b16 %v236
  %v2174 = vunpack.c.l.b16 %v237
  %v2175 = vunpack.c.h.b16 %v237
  %v2176 = vunpack.c.l.b16 %v238
  %v2177 = vunpack.c.h.b16 %v238
  %v2178 = vunpack.c.l.b16 %v239
  %v2179 = vunpack.c.l.b16 %v240
  %v2180 = vunpack.c.h.b16 %v240
  %v2181 = vunpack.c.l.b16 %v241
  %v2182 = vunpack.c.h.b16 %v241
  %v2183 = vunpack.c.l.b16 %v242
  %v2184 = vunpack.c.l.b16 %v243
  %v2185 = vunpack.c.h.b16 %v243
  %v2186 = vunpack.c.l.b16 %v244
  %v2187 = vunpack.c.h.b16 %v244
  %v2188 = vunpack.c.l.b16 %v245
  %v2189 = vunpack.c.l.b16 %v246
  %v2190 = vunpack.c.h.b16 %v246
  %v2191 = vunpack.c.l.b16 %v247
  %v2192 = vunpack.c.h.b16 %v247
  %v2193 = vunpack.c.l.b16 %v248
  %v2194 = vunpack.c.l.b16 %v249
  %v2195 = vunpack.c.h.b16 %v249
  %v2196 = vunpack.c.l.b16 %v250
  %v2197 = vunpack.c.h.b16 %v250
  %v2198 = vunpack.c.l.b16 %v251
  %v2199 = vunpack.c.l.b16 %v252
  %v2200 = vunpack.c.h.b16 %v252
  %v2201 = vunpack.c.l.b16 %v253
  %v2202 = vunpack.c.h.b16 %v253
  %v2203 = vunpack.c.l.b16 %v254
  %v2204 = vunpack.c.l.b16 %v255
  %v2205 = vunpack.c.h.b16 %v255
  %v2206 = vunpack.c.l.b16 %v256
  %v2207 = vunpack.c.h.b16 %v256
  %v2208 = vunpack.c.l.b16 %v257
  %v2209 = vunpack.c.l.b16 %v258
  %v2210 = vunpack.c.h.b16 %v258
  %v2211 = vunpack.c.l.b16 %v259
  %v2212 = vunpack.c.h.b16 %v259
  %v2213 = vunpack.c.l.b16 %v260
  %v2214 = vunpack.c.l.b16 %v261
  %v2215 = vunpack.c.h.b16 %v261
  %v2216 = vunpack.c.l.b16 %v262
  %v2217 = vunpack.c.h.b16 %v262
  %v2218 = vunpack.c.l.b16 %v263
  %v2219 = vunpack.c.l.b16 %v264
  %v2220 = vunpack.c.h.b16 %v264
  %v2221 = vunpack.c.l.b16 %v265
  %v2222 = vunpack.c.h.b16 %v265
  %v2223 = vunpack.c.l.b16 %v266
  %v2224 = vunpack.c.l.b16 %v267
  %v2225 = vunpack.c.h.b16 %v267
  %v2226 = vunpack.c.l.b16 %v268
  %v2227 = vunpack.c.h.b16 %v268
  %v2228 = vunpack.c.l.b16 %v269
  %v2229 = vunpack.c.l.b16 %v270
  %v2230 = vunpack.c.h.b16 %v270
  %v2231 = vunpack.c.l.b16 %v271
  %v2232 = vunpack.c.h.b16 %v271
  %v2233 = vunpack.c.l.b16 %v272
  %v2234 = vunpack.c.l.b16 %v273
  %v2235 = vunpack.c.h.b16 %v273
  %v2236 = vunpack.c.l.b16 %v274
  %v2237 = vunpack.c.h.b16 %v274
  %v2238 = vunpack.c.l.b16 %v275
  %v2239 = vunpack.c.l.b16 %v276
  %v2240 = vunpack.c.h.b16 %v276
  %v2241 = vunpack.c.l.b16 %v277
  %v2242 = vunpack.c.h.b16 %v277
  %v2243 = vunpack.c.l.b16 %v278
  %v2244 = vunpack.c.l.b16 %v279
  %v2245 = vunpack.c.h.b16 %v279
  %v2246 = vunpack.c.l.b16 %v280
  %v2247 = vunpack.c.h.b16 %v280
  %v2248 = vunpack.c.l.b16 %v281
  %v2249 = vunpack.c.l.b16 %v282
  %v2250 = vunpack.c.h.b16 %v282
  %v2251 = vunpack.c.l.b16 %v283
  %v2252 = vunpack.c.h.b16 %v283
  %v2253 = vunpack.c.l.b16 %v284
  %v2254 = vunpack.c.l.b16 %v285
  %v2255 = vunpack.c.h.b16 %v285
  %v2256 = vunpack.c.l.b16 %v286
  %v2257 = vunpack.c.h.b16 %v286
  %v2258 = vunpack.c.l.b16 %v287
  %v2259 = vunpack.c.l.b16 %v288
  %v2260 = vunpack.c.h.b16 %v288
  %v2261 = vunpack.c.l.b16 %v289
  %v2262 = vunpack.c.h.b16 %v289
  %v2263 = vunpack.c.l.b16 %v290
  %v2264 = vunpack.c.l.b16 %v291
  %v2265 = vunpack.c.h.b16 %v291
  %v2266 = vunpack.c.l.b16 %v292
  %v2267 = vunpack.c.h.b16 %v292
  %v2268 = vunpack.c.l.b16 %v293
  %v2269 = vunpack.c.l.b16 %v294
  %v2270 = vunpack.c.h.b16 %v294
  %v2271 = vunpack.c.l.b16 %v295
  %v2272 = vunpack.c.h.b16 %v295
  %v2273 = vunpack.c.l.b16 %v296
  %v2274 = vunpack.c.l.b16 %v297
  %v2275 = vunpack.c.h.b16 %v297
  %v2276 = vunpack.c.l.b16 %v298
  %v2277 = vunpack.c.h.b16 %v298
  %v2278 = vunpack.c.l.b16 %v299
  %v2279 = vunpack.c.l.b16 %v300
  %v2280 = vunpack.c.h.b16 %v300
  %v2281 = vunpack.c.l.b16 %v301
  %v2282 = vunpack.c.h.b16 %v301
  %v2283 = vunpack.c.l.b16 %v302
  %v2284 = vunpack.c.l.b16 %v303
  %v2285 = vunpack.c.h.b16 %v303
  %v2286 = vunpack.c.l.b16 %v304
  %v2287 = vunpack.c.h.b16 %v304
  %v2288 = vunpack.c.l.b16 %v305
  %v2289 = vunpack.c.l.b16 %v306
  %v2290 = vunpack.c.h.b16 %v306
  %v2291 = vunpack.c.l.b16 %v307
  %v2292 = vunpack.c.h.b16 %v307
  %v2293 = vunpack.c.l.b16 %v308
  %v2294 = vunpack.c.l.b16 %v309
  %v2295 = vunpack.c.h.b16 %v309
  %v2296 = vunpack.c.l.b16 %v310
  %v2297 = vunpack.c.h.b16 %v310
  %v2298 = vunpack.c.l.b16 %v311
  %v2299 = vunpack.c.l.b16 %v312
  %v2300 = vunpack.c.h.b16 %v312
  %v2301 = vunpack.c.l.b16 %v313
  %v2302 = vunpack.c.h.b16 %v313
  %v2303 = vunpack.c.l.b16 %v314
  %v2304 = vunpack.c.l.b16 %v315
  %v2305 = vunpack.c.h.b16 %v315
  %v2306 = vunpack.c.l.b16 %v316
  %v2307 = vunpack.c.h.b16 %v316
  %v2308 = vunpack.c.l.b16 %v317
  %v2309 = vunpack.c.l.b16 %v318
  %v2310 = vunpack.c.h.b16 %v318
  %v2311 = vunpack.c.l.b16 %v319
  %v2312 = vunpack.c.h.b16 %v319
  %v2313 = vunpack.c.l.b16 %v320
  %v2314 = vunpack.c.l.b16 %v321
  %v2315 = vunpack.c.h.b16 %v321
  %v2316 = vunpack.c.l.b16 %v322
  %v2317 = vunpack.c.h.b16 %v322
  %v2318 = vunpack.c.l.b16 %v323
  %v2319 = vunpack.c.l.b16 %v324
  %v2320 = vunpack.c.h.b16 %v324
  %v2321 = vunpack.c.l.b16 %v325
  %v2322 = vunpack.c.h.b16 %v325
  %v2323 = vunpack.c.l.b16 %v326
  %v2324 = vunpack.c.l.b16 %v327
  %v2325 = vunpack.c.h.b16 %v327
  %v2326 = vunpack.c.l.b16 %v328
  %v2327 = vunpack.c.h.b16 %v328
  %v2328 = vunpack.c.l.b16 %v329
  %v2329 = vunpack.c.l.b16 %v330
  %v2330 = vunpack.c.h.b16 %v330
  %v2331 = vunpack.c.l.b16 %v331
  %v2332 = vunpack.c.h.b16 %v331
  %v2333 = vunpack.c.l.b16 %v332
  %v2334 = vunpack.c.l.b16 %v333
  %v2335 = vunpack.c.h.b16 %v333
  %v2336 = vunpack.c.l.b16 %v334
  %v2337 = vunpack.c.h.b16 %v334
  %v2338 = vunpack.c.l.b16 %v335
  %v2339 = vunpack.c.l.b16 %v336
  %v2340 = vunpack.c.h.b16 %v336
  %v2341 = vunpack.c.l.b16 %v337
  %v2342 = vunpack.c.h.b16 %v337
  %v2343 = vunpack.c.l.b16 %v338
  %v2344 = vunpack.c.l.b16 %v339
  %v2345 = vunpack.c.h.b16 %v339
  %v2346 = vunpack.c.l.b16 %v340
  %v2347 = vunpack.c.h.b16 %v340
  %v2348 = vunpack.c.l.b16 %v341
  %v2349 = vunpack.c.l.b16 %v342
  %v2350 = vunpack.c.h.b16 %v342
  %v2351 = vunpack.c.l.b16 %v343
  %v2352 = vunpack.c.h.b16 %v343
  %v2353 = vunpack.c.l.b16 %v344
  %v2354 = vunpack.c.l.b16 %v345
  %v2355 = vunpack.c.h.b16 %v345
  %v2356 = vunpack.c.l.b16 %v346
  %v2357 = vunpack.c.h.b16 %v346
  %v2358 = vunpack.c.l.b16 %v347
  %v2359 = vunpack.c.l.b16 %v348
  %v2360 = vunpack.c.h.b16 %v348
  %v2361 = vunpack.c.l.b16 %v349
  %v2362 = vunpack.c.h.b16 %v349
  %v2363 = vunpack.c.l.b16 %v350
  %v2364 = vunpack.c.l.b16 %v351
  %v2365 = vunpack.c.h.b16 %v351
  %v2366 = vunpack.c.l.b16 %v352
  %v2367 = vunpack.c.h.b16 %v352
  %v2368 = vunpack.c.l.b16 %v353
  %v2369 = vunpack.c.l.b16 %v354
  %v2370 = vunpack.c.h.b16 %v354
  %v2371 = vunpack.c.l.b16 %v355
  %v2372 = vunpack.c.h.b16 %v355
  %v2373 = vunpack.c.l.b16 %v356
  %v2374 = vunpack.c.l.b16 %v357
  %v2375 = vunpack.c.h.b16 %v357
  %v2376 = vunpack.c.l.b16 %v358
  %v2377 = vunpack.c.h.b16 %v358
  %v2378 = vunpack.c.l.b16 %v359
  %v2379 = vunpack.c.l.b16 %v360
  %v2380 = vunpack.c.h.b16 %v360
  %v2381 = vunpack.c.l.b16 %v361
  %v2382 = vunpack.c.h.b16 %v361
  %v2383 = vunpack.c.l.b16 %v362
  %v2384 = vunpack.c.l.b16 %v363
  %v2385 = vunpack.c.h.b16 %v363
  %v2386 = vunpack.c.l.b16 %v364
  %v2387 = vunpack.c.h.b16 %v364
  %v2388 = vunpack.c.l.b16 %v365
  %v2389 = vunpack.c.l.b16 %v366
  %v2390 = vunpack.c.h.b16 %v366
  %v2391 = vunpack.c.l.b16 %v367
  %v2392 = vunpack.c.h.b16 %v367
  %v2393 = vunpack.c.l.b16 %v368
  %v2394 = vunpack.c.l.b16 %v369
  %v2395 = vunpack.c.h.b16 %v369
  %v2396 = vunpack.c.l.b16 %v370
  %v2397 = vunpack.c.h.b16 %v370
  %v2398 = vunpack.c.l.b16 %v371
  %v2399 = vunpack.c.l.b16 %v372
  %v2400 = vunpack.c.h.b16 %v372
  %v2401 = vunpack.c.l.b16 %v373
  %v2402 = vunpack.c.h.b16 %v373
  %v2403 = vunpack.c.l.b16 %v374
  %v2404 = vunpack.c.l.b16 %v375
  %v2405 = vunpack.c.h.b16 %v375
  %v2406 = vunpack.c.l.b16 %v376
  %v2407 = vunpack.c.h.b16 %v376
  %v2408 = vunpack.c.l.b16 %v377
  %v2409 = vunpack.c.l.b16 %v378
  %v2410 = vunpack.c.h.b16 %v378
  %v2411 = vunpack.c.l.b16 %v379
  %v2412 = vunpack.c.h.b16 %v379
  %v2413 = vunpack.c.l.b16 %v380
  %v2414 = vunpack.c.l.b16 %v381
  %v2415 = vunpack.c.h.b16 %v381
  %v2416 = vunpack.c.l.b16 %v382
  %v2417 = vunpack.c.h.b16 %v382
  %v2418 = vunpack.c.l.b16 %v383
  %v2419 = vunpack.c.l.b16 %v384
  %v2420 = vunpack.c.h.b16 %v384
  %v2421 = vunpack.c.l.b16 %v385
  %v2422 = vunpack.c.h.b16 %v385
  %v2423 = vunpack.c.l.b16 %v386
  %v2424 = vunpack.c.l.b16 %v387
  %v2425 = vunpack.c.h.b16 %v387
  %v2426 = vunpack.c.l.b16 %v388
  %v2427 = vunpack.c.h.b16 %v388
  %v2428 = vunpack.c.l.b16 %v389
  %v2429 = vunpack.c.l.b16 %v390
  %v2430 = vunpack.c.h.b16 %v390
  %v2431 = vunpack.c.l.b16 %v391
  %v2432 = vunpack.c.h.b16 %v391
  %v2433 = vunpack.c.l.b16 %v392
  %v2434 = vunpack.c.l.b16 %v393
  %v2435 = vunpack.c.h.b16 %v393
  %v2436 = vunpack.c.l.b16 %v394
  %v2437 = vunpack.c.h.b16 %v394
  %v2438 = vunpack.c.l.b16 %v395
  %v2439 = vunpack.c.l.b16 %v396
  %v2440 = vunpack.c.h.b16 %v396
  %v2441 = vunpack.c.l.b16 %v397
  %v2442 = vunpack.c.h.b16 %v397
  %v2443 = vunpack.c.l.b16 %v398
  %v2444 = vunpack.c.l.b16 %v399
  %v2445 = vunpack.c.h.b16 %v399
  %v2446 = vunpack.c.l.b16 %v400
  %v2447 = vunpack.c.h.b16 %v400
  %v2448 = vunpack.c.l.b16 %v401
  %v2449 = vunpack.c.l.b16 %v402
  %v2450 = vunpack.c.h.b16 %v402
  %v2451 = vunpack.c.l.b16 %v403
  %v2452 = vunpack.c.h.b16 %v403
  %v2453 = vunpack.c.l.b16 %v404
  %v2454 = vunpack.c.l.b16 %v405
  %v2455 = vunpack.c.h.b16 %v405
  %v2456 = vunpack.c.l.b16 %v406
  %v2457 = vunpack.c.h.b16 %v406
  %v2458 = vunpack.c.l.b16 %v407
  %v2459 = vunpack.c.l.b16 %v408
  %v2460 = vunpack.c.h.b16 %v408
  %v2461 = vunpack.c.l.b16 %v409
  %v2462 = vunpack.c.h.b16 %v409
  %v2463 = vunpack.c.l.b16 %v410
  %v2464 = vunpack.c.l.b16 %v411
  %v2465 = vunpack.c.h.b16 %v411
  %v2466 = vunpack.c.l.b16 %v412
  %v2467 = vunpack.c.h.b16 %v412
  %v2468 = vunpack.c.l.b16 %v413
  %v2469 = vunpack.c.l.b16 %v414
  %v2470 = vunpack.c.h.b16 %v414
  %v2471 = vunpack.c.l.b16 %v415
  %v2472 = vunpack.c.h.b16 %v415
  %v2473 = vunpack.c.l.b16 %v416
  %v2474 = vunpack.c.l.b16 %v417
  %v2475 = vunpack.c.h.b16 %v417
  %v2476 = vunpack.c.l.b16 %v418
  %v2477 = vunpack.c.h.b16 %v418
  %v2478 = vunpack.c.l.b16 %v419
  %v2479 = vunpack.c.l.b16 %v420
  %v2480 = vunpack.c.h.b16 %v420
  %v2481 = vunpack.c.l.b16 %v421
  %v2482 = vunpack.c.h.b16 %v421
  %v2483 = vunpack.c.l.b16 %v422
  %v2484 = vunpack.c.l.b16 %v423
  %v2485 = vunpack.c.h.b16 %v423
  %v2486 = vunpack.c.l.b16 %v424
  %v2487 = vunpack.c.h.b16 %v424
  %v2488 = vunpack.c.l.b16 %v425
  %v2489 = vunpack.c.l.b16 %v426
  %v2490 = vunpack.c.h.b16 %v426
  %v2491 = vunpack.c.l.b16 %v427
  %v2492 = vunpack.c.h.b16 %v427
  %v2493 = vunpack.c.l.b16 %v428
  %v2494 = vunpack.c.l.b16 %v429
  %v2495 = vunpack.c.h.b16 %v429
  %v2496 = vunpack.c.l.b16 %v430
  %v2497 = vunpack.c.h.b16 %v430
  %v2498 = vunpack.c.l.b16 %v431
  %v2499 = vunpack.c.l.b16 %v432
  %v2500 = vunpack.c.h.b16 %v432
  %v2501 = vunpack.c.l.b16 %v433
  %v2502 = vunpack.c.h.b16 %v433
  %v2503 = vunpack.c.l.b16 %v434
  %v2504 = vunpack.c.l.b16 %v435
  %v2505 = vunpack.c.h.b16 %v435
  %v2506 = vunpack.c.l.b16 %v436
  %v2507 = vunpack.c.h.b16 %v436
  %v2508 = vunpack.c.l.b16 %v437
  %v2509 = vunpack.c.l.b16 %v438
  %v2510 = vunpack.c.h.b16 %v438
  %v2511 = vunpack.c.l.b16 %v439
  %v2512 = vunpack.c.h.b16 %v439
  %v2513 = vunpack.c.l.b16 %v440
  %v2514 = vunpack.c.l.b16 %v441
  %v2515 = vunpack.c.h.b16 %v441
  %v2516 = vunpack.c.l.b16 %v442
  %v2517 = vunpack.c.h.b16 %v442
  %v2518 = vunpack.c.l.b16 %v443
  %v2519 = vunpack.c.l.b16 %v444
  %v2520 = vunpack.c.h.b16 %v444
  %v2521 = vunpack.c.l.b16 %v445
  %v2522 = vunpack.c.h.b16 %v445
  %v2523 = vunpack.c.l.b16 %v446
  %v2524 = vunpack.c.l.b16 %v447
  %v2525 = vunpack.c.h.b16 %v447
  %v2526 = vunpack.c.l.b16 %v448
  %v2527 = vunpack.c.h.b16 %v448
  %v2528 = vunpack.c.l.b16 %v449
  %v2529 = vunpack.c.l.b16 %v450
  %v2530 = vunpack.c.h.b16 %v450
  %v2531 = vunpack.c.l.b16 %v451
  %v2532 = vunpack.c.h.b16 %v451
  %v2533 = vunpack.c.l.b16 %v452
  %v2534 = vunpack.c.l.b16 %v453
  %v2535 = vunpack.c.h.b16 %v453
  %v2536 = vunpack.c.l.b16 %v454
  %v2537 = vunpack.c.h.b16 %v454
  %v2538 = vunpack.c.l.b16 %v455
  %v2539 = vunpack.c.l.b16 %v456
  %v2540 = vunpack.c.h.b16 %v456
  %v2541 = vunpack.c.l.b16 %v457
  %v2542 = vunpack.c.h.b16 %v457
  %v2543 = vunpack.c.l.b16 %v458
  %v2544 = vunpack.c.l.b16 %v459
  %v2545 = vunpack.c.h.b16 %v459
  %v2546 = vunpack.c.l.b16 %v460
  %v2547 = vunpack.c.h.b16 %v460
  %v2548 = vunpack.c.l.b16 %v461
  %v2549 = vunpack.c.l.b16 %v462
  %v2550 = vunpack.c.h.b16 %v462
  %v2551 = vunpack.c.l.b16 %v463
  %v2552 = vunpack.c.h.b16 %v463
  %v2553 = vunpack.c.l.b16 %v464
  %v2554 = vunpack.c.l.b16 %v465
  %v2555 = vunpack.c.h.b16 %v465
  %v2556 = vunpack.c.l.b16 %v466
  %v2557 = vunpack.c.h.b16 %v466
  %v2558 = vunpack.c.l.b16 %v467
  %v2559 = vunpack.c.l.b16 %v468
  %v2560 = vunpack.c.h.b16 %v468
  %v2561 = vunpack.c.l.b16 %v469
  %v2562 = vunpack.c.h.b16 %v469
  %v2563 = vunpack.c.l.b16 %v470
  %v2564 = vunpack.c.l.b16 %v471
  %v2565 = vunpack.c.h.b16 %v471
  %v2566 = vunpack.c.l.b16 %v472
  %v2567 = vunpack.c.h.b16 %v472
  %v2568 = vunpack.c.l.b16 %v473
  %v2569 = vunpack.c.l.b16 %v474
  %v2570 = vunpack.c.h.b16 %v474
  %v2571 = vunpack.c.l.b16 %v475
  %v2572 = vunpack.c.h.b16 %v475
  %v2573 = vunpack.c.l.b16 %v476
  %v2574 = vunpack.c.l.b16 %v477
  %v2575 = vunpack.c.h.b16 %v477
  %v2576 = vunpack.c.l.b16 %v478
  %v2577 = vunpack.c.h.b16 %v478
  %v2578 = vunpack.c.l.b16 %v479
  %v2579 = vunpack.c.l.b16 %v480
  %v2580 = vunpack.c.h.b16 %v480
  %v2581 = vunpack.c.l.b16 %v481
  %v2582 = vunpack.c.h.b16 %v481
  %v2583 = vunpack.c.l.b16 %v482
  %v2584 = vunpack.c.l.b16 %v483
  %v2585 = vunpack.c.h.b16 %v483
  %v2586 = vunpack.c.l.b16 %v484
  %v2587 = vunpack.c.h.b16 %v484
  %v2588 = vunpack.c.l.b16 %v485
  %v2589 = vunpack.c.l.b16 %v486
  %v2590 = vunpack.c.h.b16 %v486
  %v2591 = vunpack.c.l.b16 %v487
  %v2592 = vunpack.c.h.b16 %v487
  %v2593 = vunpack.c.l.b16 %v488
  %v2594 = vunpack.c.l.b16 %v489
  %v2595 = vunpack.c.h.b16 %v489
  %v2596 = vunpack.c.l.b16 %v490
  %v2597 = vunpack.c.h.b16 %v490
  %v2598 = vunpack.c.l.b16 %v491
  %v2599 = vunpack.c.l.b16 %v492
  %v2600 = vunpack.c.h.b16 %v492
  %v2601 = vunpack.c.l.b16 %v493
  %v2602 = vunpack.c.h.b16 %v493
  %v2603 = vunpack.c.l.b16 %v494
  %v2604 = vunpack.c.l.b16 %v495
  %v2605 = vunpack.c.h.b16 %v495
  %v2606 = vunpack.c.l.b16 %v496
  %v2607 = vunpack.c.h.b16 %v496
  %v2608 = vunpack.c.l.b16 %v497
  %v2609 = vunpack.c.l.b16 %v498
  %v2610 = vunpack.c.h.b16 %v498
  %v2611 = vunpack.c.l.b16 %v499
  %v2612 = vunpack.c.h.b16 %v499
  %v2613 = vunpack.c.l.b16 %v500
  %v2614 = vunpack.c.l.b16 %v501
  %v2615 = vunpack.c.h.b16 %v501
  %v2616 = vunpack.c.l.b16 %v502
  %v2617 = vunpack.c.h.b16 %v502
  %v2618 = vunpack.c.l.b16 %v503
  %v2619 = vunpack.c.l.b16 %v504
  %v2620 = vunpack.c.h.b16 %v504
  %v2621 = vunpack.c.l.b16 %v505
  %v2622 = vunpack.c.h.b16 %v505
  %v2623 = vunpack.c.l.b16 %v506
  %v2624 = vunpack.c.l.b16 %v507
  %v2625 = vunpack.c.h.b16 %v507
  %v2626 = vunpack.c.l.b16 %v508
  %v2627 = vunpack.c.h.b16 %v508
  %v2628 = vunpack.c.l.b16 %v509
  %v2629 = vunpack.c.l.b16 %v510
  %v2630 = vunpack.c.h.b16 %v510
  %v2631 = vunpack.c.l.b16 %v511
  %v2632 = vunpack.c.h.b16 %v511
  %v2633 = vunpack.c.l.b16 %v512
  %v2634 = vunpack.c.l.b16 %v513
  %v2635 = vunpack.c.h.b16 %v513
  %v2636 = vunpack.c.l.b16 %v514
  %v2637 = vunpack.c.h.b16 %v514
  %v2638 = vunpack.c.l.b16 %v515
  %v2639 = vunpack.c.l.b16 %v516
  %v2640 = vunpack.c.h.b16 %v516
  %v2641 = vunpack.c.l.b16 %v517
  %v2642 = vunpack.c.h.b16 %v517
  %v2643 = vunpack.c.l.b16 %v518
  %v2644 = vunpack.c.l.b16 %v519
  %v2645 = vunpack.c.h.b16 %v519
  %v2646 = vunpack.c.l.b16 %v520
  %v2647 = vunpack.c.h.b16 %v520
  %v2648 = vunpack.c.l.b16 %v521
  %v2649 = vunpack.c.l.b16 %v522
  %v2650 = vunpack.c.h.b16 %v522
  %v2651 = vunpack.c.l.b16 %v523
  %v2652 = vunpack.c.h.b16 %v523
  %v2653 = vunpack.c.l.b16 %v524
  %v2654 = vunpack.c.l.b16 %v525
  %v2655 = vunpack.c.h.b16 %v525
  %v2656 = vunpack.c.l.b16 %v526
  %v2657 = vunpack.c.h.b16 %v526
  %v2658 = vunpack.c.l.b16 %v527
  %v2659 = vunpack.c.l.b16 %v528
  %v2660 = vunpack.c.h.b16 %v528
  %v2661 = vunpack.c.l.b16 %v529
  %v2662 = vunpack.c.h.b16 %v529
  %v2663 = vunpack.c.l.b16 %v530
  %v2664 = vunpack.c.l.b16 %v531
  %v2665 = vunpack.c.h.b16 %v531
  %v2666 = vunpack.c.l.b16 %v532
  %v2667 = vunpack.c.h.b16 %v532
  %v2668 = vunpack.c.l.b16 %v533
  %v2669 = vunpack.c.l.b16 %v534
  %v2670 = vunpack.c.h.b16 %v534
  %v2671 = vunpack.c.l.b16 %v535
  %v2672 = vunpack.c.h.b16 %v535
  %v2673 = vunpack.c.l.b16 %v536
  %v2674 = vunpack.c.l.b16 %v537
  %v2675 = vunpack.c.h.b16 %v537
  %v2676 = vunpack.c.l.b16 %v538
  %v2677 = vunpack.c.h.b16 %v538
  %v2678 = vunpack.c.l.b16 %v539
  %v2679 = vunpack.c.l.b16 %v540
  %v2680 = vunpack.c.h.b16 %v540
  %v2681 = vunpack.c.l.b16 %v541
  %v2682 = vunpack.c.h.b16 %v541
  %v2683 = vunpack.c.l.b16 %v542
  %v2684 = vunpack.c.l.b16 %v543
  %v2685 = vunpack.c.h.b16 %v543
  %v2686 = vunpack.c.l.b16 %v544
  %v2687 = vunpack.c.h.b16 %v544
  %v2688 = vunpack.c.l.b16 %v545
  %v2689 = vunpack.c.l.b16 %v546
  %v2690 = vunpack.c.h.b16 %v546
  %v2691 = vunpack.c.l.b16 %v547
  %v2692 = vunpack.c.h.b16 %v547
  %v2693 = vunpack.c.l.b16 %v548
  %v2694 = vunpack.c.l.b16 %v549
  %v2695 = vunpack.c.h.b16 %v549
  %v2696 = vunpack.c.l.b16 %v550
  %v2697 = vunpack.c.h.b16 %v550
  %v2698 = vunpack.c.l.b16 %v551
  %v2699 = vunpack.c.l.b16 %v552
  %v2700 = vunpack.c.h.b16 %v552
  %v2701 = vunpack.c.l.b16 %v553
  %v2702 = vunpack.c.h.b16 %v553
  %v2703 = vunpack.c.l.b16 %v554
  %v2704 = vunpack.c.l.b16 %v555
  %v2705 = vunpack.c.h.b16 %v555
  %v2706 = vunpack.c.l.b16 %v556
  %v2707 = vunpack.c.h.b16 %v556
  %v2708 = vunpack.c.l.b16 %v557
  %v2709 = vunpack.c.l.b16 %v558
  %v2710 = vunpack.c.h.b16 %v558
  %v2711 = vunpack.c.l.b16 %v559
  %v2712 = vunpack.c.h.b16 %v559
  %v2713 = vunpack.c.l.b16 %v560
  %v2714 = vunpack.c.l.b16 %v561
  %v2715 = vunpack.c.h.b16 %v561
  %v2716 = vunpack.c.l.b16 %v562
  %v2717 = vunpack.c.h.b16 %v562
  %v2718 = vunpack.c.l.b16 %v563
  %v2719 = vunpack.c.l.b16 %v564
  %v2720 = vunpack.c.h.b16 %v564
  %v2721 = vunpack.c.l.b16 %v565
  %v2722 = vunpack.c.h.b16 %v565
  %v2723 = vunpack.c.l.b16 %v566
  %v2724 = vunpack.c.l.b16 %v567
  %v2725 = vunpack.c.h.b16 %v567
  %v2726 = vunpack.c.l.b16 %v568
  %v2727 = vunpack.c.h.b16 %v568
  %v2728 = vunpack.c.l.b16 %v569
  %v2729 = vunpack.c.l.b16 %v570
  %v2730 = vunpack.c.h.b16 %v570
  %v2731 = vunpack.c.l.b16 %v571
  %v2732 = vunpack.c.h.b16 %v571
  %v2733 = vunpack.c.l.b16 %v572
  %v2734 = vunpack.c.l.b16 %v573
  %v2735 = vunpack.c.h.b16 %v573
  %v2736 = vunpack.c.l.b16 %v574
  %v2737 = vunpack.c.h.b16 %v574
  %v2738 = vunpack.c.l.b16 %v575
  %v2739 = vunpack.c.l.b16 %v576
  %v2740 = vunpack.c.h.b16 %v576
  %v2741 = vunpack.c.l.b16 %v577
  %v2742 = vunpack.c.h.b16 %v577
  %v2743 = vunpack.c.l.b16 %v578
  %v2744 = vunpack.c.l.b16 %v579
  %v2745 = vunpack.c.h.b16 %v579
  %v2746 = vunpack.c.l.b16 %v580
  %v2747 = vunpack.c.h.b16 %v580
  %v2748 = vunpack.c.l.b16 %v581
  %v2749 = vunpack.c.l.b16 %v582
  %v2750 = vunpack.c.h.b16 %v582
  %v2751 = vunpack.c.l.b16 %v583
  %v2752 = vunpack.c.h.b16 %v583
  %v2753 = vunpack.c.l.b16 %v584
  %v2754 = vunpack.c.l.b16 %v585
  %v2755 = vunpack.c.h.b16 %v585
  %v2756 = vunpack.c.l.b16 %v586
  %v2757 = vunpack.c.h.b16 %v586
  %v2758 = vunpack.c.l.b16 %v587
  %v2759 = vunpack.c.l.b16 %v588
  %v2760 = vunpack.c.h.b16 %v588
  %v2761 = vunpack.c.l.b16 %v589
  %v2762 = vunpack.c.h.b16 %v589
  %v2763 = vunpack.c.l.b16 %v590
  %v2764 = vunpack.c.l.b16 %v591
  %v2765 = vunpack.c.h.b16 %v591
  %v2766 = vunpack.c.l.b16 %v592
  %v2767 = vunpack.c.h.b16 %v592
  %v2768 = vunpack.c.l.b16 %v593
  %v2769 = vunpack.c.l.b16 %v594
  %v2770 = vunpack.c.h.b16 %v594
  %v2771 = vunpack.c.l.b16 %v595
  %v2772 = vunpack.c.h.b16 %v595
  %v2773 = vunpack.c.l.b16 %v596
  %v2774 = vunpack.c.l.b16 %v597
  %v2775 = vunpack.c.h.b16 %v597
  %v2776 = vunpack.c.l.b16 %v598
  %v2777 = vunpack.c.h.b16 %v598
  %v2778 = vunpack.c.l.b16 %v599
  %v2779 = vunpack.c.l.b16 %v600
  %v2780 = vunpack.c.h.b16 %v600
  %v2781 = vunpack.c.l.b16 %v601
  %v2782 = vunpack.c.h.b16 %v601
  %v2783 = vunpack.c.l.b16 %v602
  %v2784 = vunpack.c.l.b16 %v603
  %v2785 = vunpack.c.h.b16 %v603
  %v2786 = vunpack.c.l.b16 %v604
  %v2787 = vunpack.c.h.b16 %v604
  %v2788 = vunpack.c.l.b16 %v605
  %v2789 = vunpack.c.l.b16 %v606
  %v2790 = vunpack.c.h.b16 %v606
  %v2791 = vunpack.c.l.b16 %v607
  %v2792 = vunpack.c.h.b16 %v607
  %v2793 = vunpack.c.l.b16 %v608
  %v2794 = vunpack.c.l.b16 %v609
  %v2795 = vunpack.c.h.b16 %v609
  %v2796 = vunpack.c.l.b16 %v610
  %v2797 = vunpack.c.h.b16 %v610
  %v2798 = vunpack.c.l.b16 %v611
  %v2799 = vunpack.c.l.b16 %v612
  %v2800 = vunpack.c.h.b16 %v612
  %v2801 = vunpack.c.l.b16 %v613
  %v2802 = vunpack.c.h.b16 %v613
  %v2803 = vunpack.c.l.b16 %v614
  %v2804 = vunpack.c.l.b16 %v615
  %v2805 = vunpack.c.h.b16 %v615
  %v2806 = vunpack.c.l.b16 %v616
  %v2807 = vunpack.c.h.b16 %v616
  %v2808 = vunpack.c.l.b16 %v617
  %v2809 = vunpack.c.l.b16 %v618
  %v2810 = vunpack.c.h.b16 %v618
  %v2811 = vunpack.c.l.b16 %v619
  %v2812 = vunpack.c.h.b16 %v619
  %v2813 = vunpack.c.l.b16 %v620
  %v2814 = vunpack.c.l.b16 %v621
  %v2815 = vunpack.c.h.b16 %v621
  %v2816 = vunpack.c.l.b16 %v622
  %v2817 = vunpack.c.h.b16 %v622
  %v2818 = vunpack.c.l.b16 %v623
  %v2819 = vunpack.c.l.b16 %v624
  %v2820 = vunpack.c.h.b16 %v624
  %v2821 = vunpack.c.l.b16 %v625
  %v2822 = vunpack.c.h.b16 %v625
  %v2823 = vunpack.c.l.b16 %v626
  %v2824 = vunpack.c.l.b16 %v627
  %v2825 = vunpack.c.h.b16 %v627
  %v2826 = vunpack.c.l.b16 %v628
  %v2827 = vunpack.c.h.b16 %v628
  %v2828 = vunpack.c.l.b16 %v629
  %v2829 = vunpack.c.l.b16 %v630
  %v2830 = vunpack.c.h.b16 %v630
  %v2831 = vunpack.c.l.b16 %v631
  %v2832 = vunpack.c.h.b16 %v631
  %v2833 = vunpack.c.l.b16 %v632
  %v2834 = vunpack.c.l.b16 %v633
  %v2835 = vunpack.c.h.b16 %v633
  %v2836 = vunpack.c.l.b16 %v634
  %v2837 = vunpack.c.h.b16 %v634
  %v2838 = vunpack.c.l.b16 %v635
  %v2839 = vunpack.c.l.b16 %v636
  %v2840 = vunpack.c.h.b16 %v636
  %v2841 = vunpack.c.l.b16 %v637
  %v2842 = vunpack.c.h.b16 %v637
  %v2843 = vunpack.c.l.b16 %v638
  %v2844 = vunpack.c.l.b16 %v639
  %v2845 = vunpack.c.h.b16 %v639
  %v2846 = vunpack.c.l.b16 %v640
  %v2847 = vunpack.c.h.b16 %v640
  %v2848 = vunpack.c.l.b16 %v641
  %v2849 = vunpack.c.l.b16 %v642
  %v2850 = vunpack.c.h.b16 %v642
  %v2851 = vunpack.c.l.b16 %v643
  %v2852 = vunpack.c.h.b16 %v643
  %v2853 = vunpack.c.l.b16 %v644
  %v2854 = vunpack.c.l.b16 %v645
  %v2855 = vunpack.c.h.b16 %v645
  %v2856 = vunpack.c.l.b16 %v646
  %v2857 = vunpack.c.h.b16 %v646
  %v2858 = vunpack.c.l.b16 %v647
  %v2859 = vunpack.c.l.b16 %v648
  %v2860 = vunpack.c.h.b16 %v648
  %v2861 = vunpack.c.l.b16 %v649
  %v2862 = vunpack.c.h.b16 %v649
  %v2863 = vunpack.c.l.b16 %v650
  %v2864 = vunpack.c.l.b16 %v651
  %v2865 = vunpack.c.h.b16 %v651
  %v2866 = vunpack.c.l.b16 %v652
  %v2867 = vunpack.c.h.b16 %v652
  %v2868 = vunpack.c.l.b16 %v653
  %v2869 = vunpack.c.l.b16 %v654
  %v2870 = vunpack.c.h.b16 %v654
  %v2871 = vunpack.c.l.b16 %v655
  %v2872 = vunpack.c.h.b16 %v655
  %v2873 = vunpack.c.l.b16 %v656
  %v2874 = vunpack.c.l.b16 %v657
  %v2875 = vunpack.c.h.b16 %v657
  %v2876 = vunpack.c.l.b16 %v658
  %v2877 = vunpack.c.h.b16 %v658
  %v2878 = vunpack.c.l.b16 %v659
  %v2879 = vunpack.c.l.b16 %v660
  %v2880 = vunpack.c.h.b16 %v660
  %v2881 = vunpack.c.l.b16 %v661
  %v2882 = vunpack.c.h.b16 %v661
  %v2883 = vunpack.c.l.b16 %v662
  %v2884 = vunpack.c.l.b16 %v663
  %v2885 = vunpack.c.h.b16 %v663
  %v2886 = vunpack.c.l.b16 %v664
  %v2887 = vunpack.c.h.b16 %v664
  %v2888 = vunpack.c.l.b16 %v665
  %v2889 = vunpack.c.l.b16 %v666
  %v2890 = vunpack.c.h.b16 %v666
  %v2891 = vunpack.c.l.b16 %v667
  %v2892 = vunpack.c.h.b16 %v667
  %v2893 = vunpack.c.l.b16 %v668
  %v2894 = vunpack.c.l.b16 %v669
  %v2895 = vunpack.c.h.b16 %v669
  %v2896 = vunpack.c.l.b16 %v670
  %v2897 = vunpack.c.h.b16 %v670
  %v2898 = vunpack.c.l.b16 %v671
  %v2899 = vunpack.c.l.b16 %v672
  %v2900 = vunpack.c.h.b16 %v672
  %v2901 = vunpack.c.l.b16 %v673
  %v2902 = vunpack.c.h.b16 %v673
  %v2903 = vunpack.c.l.b16 %v674
  %v2904 = vunpack.c.l.b16 %v675
  %v2905 = vunpack.c.h.b16 %v675
  %v2906 = vunpack.c.l.b16 %v676
  %v2907 = vunpack.c.h.b16 %v676
  %v2908 = vunpack.c.l.b16 %v677
  %v2909 = vunpack.c.l.b16 %v678
  %v2910 = vunpack.c.h.b16 %v678
  %v2911 = vunpack.c.l.b16 %v679
  %v2912 = vunpack.c.h.b16 %v679
  %v2913 = vunpack.c.l.b16 %v680
  %v2914 = vunpack.c.l.b16 %v681
  %v2915 = vunpack.c.h.b16 %v681
  %v2916 = vunpack.c.l.b16 %v682
  %v2917 = vunpack.c.h.b16 %v682
  %v2918 = vunpack.c.l.b16 %v683
  %v2919 = vunpack.c.l.b16 %v684
  %v2920 = vunpack.c.h.b16 %v684
  %v2921 = vunpack.c.l.b16 %v685
  %v2922 = vunpack.c.h.b16 %v685
  %v2923 = vunpack.c.l.b16 %v686
  %v2924 = vunpack.c.l.b16 %v687
  %v2925 = vunpack.c.h.b16 %v687
  %v2926 = vunpack.c.l.b16 %v688
  %v2927 = vunpack.c.h.b16 %v688
  %v2928 = vunpack.c.l.b16 %v689
  %v2929 = vunpack.c.l.b16 %v690
  %v2930 = vunpack.c.h.b16 %v690
  %v2931 = vunpack.c.l.b16 %v691
  %v2932 = vunpack.c.h.b16 %v691
  %v2933 = vunpack.c.l.b16 %v692
  %v2934 = vunpack.c.l.b16 %v693
  %v2935 = vunpack.c.h.b16 %v693
  %v2936 = vunpack.c.l.b16 %v694
  %v2937 = vunpack.c.h.b16 %v694
  %v2938 = vunpack.c.l.b16 %v695
  %v2939 = vunpack.c.l.b16 %v696
  %v2940 = vunpack.c.h.b16 %v696
  %v2941 = vunpack.c.l.b16 %v697
  %v2942 = vunpack.c.h.b16 %v697
  %v2943 = vunpack.c.l.b16 %v698
  %v2944 = vunpack.c.l.b16 %v699
  %v2945 = vunpack.c.h.b16 %v699
  %v2946 = vunpack.c.l.b16 %v700
  %v2947 = vunpack.c.h.b16 %v700
  %v2948 = vunpack.c.l.b16 %v701
  %v2949 = vunpack.c.l.b16 %v702
  %v2950 = vunpack.c.h.b16 %v702
  %v2951 = vunpack.c.l.b16 %v703
  %v2952 = vunpack.c.h.b16 %v703
  %v2953 = vunpack.c.l.b16 %v704
  %v2954 = vunpack.c.l.b16 %v705
  %v2955 = vunpack.c.h.b16 %v705
  %v2956 = vunpack.c.l.b16 %v706
  %v2957 = vunpack.c.h.b16 %v706
  %v2958 = vunpack.c.l.b16 %v707
  %v2959 = vunpack.c.l.b16 %v708
  %v2960 = vunpack.c.h.b16 %v708
  %v2961 = vunpack.c.l.b16 %v709
  %v2962 = vunpack.c.h.b16 %v709
  %v2963 = vunpack.c.l.b16 %v710
  %v2964 = vunpack.c.l.b16 %v711
  %v2965 = vunpack.c.h.b16 %v711
  %v2966 = vunpack.c.l.b16 %v712
  %v2967 = vunpack.c.h.b16 %v712
  %v2968 = vunpack.c.l.b16 %v713
  %v2969 = vunpack.c.l.b16 %v714
  %v2970 = vunpack.c.h.b16 %v714
  %v2971 = vunpack.c.l.b16 %v715
  %v2972 = vunpack.c.h.b16 %v715
  %v2973 = vunpack.c.l.b16 %v716
  %v2974 = vunpack.c.l.b16 %v717
  %v2975 = vunpack.c.h.b16 %v717
  %v2976 = vunpack.c.l.b16 %v718
  %v2977 = vunpack.c.h.b16 %v718
  %v2978 = vunpack.c.l.b16 %v719
  %v2979 = vunpack.c.l.b16 %v720
  %v2980 = vunpack.c.h.b16 %v720
  %v2981 = vunpack.c.l.b16 %v721
  %v2982 = vunpack.c.h.b16 %v721
  %v2983 = vunpack.c.l.b16 %v722
  %v2984 = vunpack.c.l.b16 %v723
  %v2985 = vunpack.c.h.b16 %v723
  %v2986 = vunpack.c.l.b16 %v724
  %v2987 = vunpack.c.h.b16 %v724
  %v2988 = vunpack.c.l.b16 %v725
  %v2989 = vunpack.c.l.b16 %v726
  %v2990 = vunpack.c.h.b16 %v726
  %v2991 = vunpack.c.l.b16 %v727
  %v2992 = vunpack.c.h.b16 %v727
  %v2993 = vunpack.c.l.b16 %v728
  %v2994 = vunpack.c.l.b16 %v729
  %v2995 = vunpack.c.h.b16 %v729
  %v2996 = vunpack.c.l.b16 %v730
  %v2997 = vunpack.c.h.b16 %v730
  %v2998 = vunpack.c.l.b16 %v731
  %v2999 = vunpack.c.l.b16 %v732
  %v3000 = vunpack.c.h.b16 %v732
  %v3001 = vunpack.c.l.b16 %v733
  %v3002 = vunpack.c.h.b16 %v733
  %v3003 = vunpack.c.l.b16 %v734
  %v3004 = vunpack.c.l.b16 %v735
  %v3005 = vunpack.c.h.b16 %v735
  %v3006 = vunpack.c.l.b16 %v736
  %v3007 = vunpack.c.h.b16 %v736
  %v3008 = vunpack.c.l.b16 %v737
  %v3009 = vunpack.c.l.b16 %v738
  %v3010 = vunpack.c.h.b16 %v738
  %v3011 = vunpack.c.l.b16 %v739
  %v3012 = vunpack.c.h.b16 %v739
  %v3013 = vunpack.c.l.b16 %v740
  %v3014 = vunpack.c.l.b16 %v741
  %v3015 = vunpack.c.h.b16 %v741
  %v3016 = vunpack.c.l.b16 %v742
  %v3017 = vunpack.c.h.b16 %v742
  %v3018 = vunpack.c.l.b16 %v743
  %v3019 = vunpack.c.l.b16 %v744
  %v3020 = vunpack.c.h.b16 %v744
  %v3021 = vunpack.c.l.b16 %v745
  %v3022 = vunpack.c.h.b16 %v745
  %v3023 = vunpack.c.l.b16 %v746
  %v3024 = vunpack.c.l.b16 %v747
  %v3025 = vunpack.c.h.b16 %v747
  %v3026 = vunpack.c.l.b16 %v748
  %v3027 = vunpack.c.h.b16 %v748
  %v3028 = vunpack.c.l.b16 %v749
  %v3029 = vunpack.c.l.b16 %v750
  %v3030 = vunpack.c.h.b16 %v750
  %v3031 = vunpack.c.l.b16 %v751
  %v3032 = vunpack.c.h.b16 %v751
  %v3033 = vunpack.c.l.b16 %v752
  %v3034 = vunpack.c.l.b16 %v753
  %v3035 = vunpack.c.h.b16 %v753
  %v3036 = vunpack.c.l.b16 %v754
  %v3037 = vunpack.c.h.b16 %v754
  %v3038 = vunpack.c.l.b16 %v755
  %v3039 = vunpack.c.l.b16 %v756
  %v3040 = vunpack.c.h.b16 %v756
  %v3041 = vunpack.c.l.b16 %v757
  %v3042 = vunpack.c.h.b16 %v757
  %v3043 = vunpack.c.l.b16 %v758
  %v3044 = vunpack.c.l.b16 %v759
  %v3045 = vunpack.c.h.b16 %v759
  %v3046 = vunpack.c.l.b16 %v760
  %v3047 = vunpack.c.h.b16 %v760
  %v3048 = vunpack.c.l.b16 %v761
  %v3049 = vunpack.c.l.b16 %v762
  %v3050 = vunpack.c.h.b16 %v762
  %v3051 = vunpack.c.l.b16 %v763
  %v3052 = vunpack.c.h.b16 %v763
  %v3053 = vunpack.c.l.b16 %v764
  %v3054 = vunpack.c.l.b16 %v765
  %v3055 = vunpack.c.h.b16 %v765
  %v3056 = vunpack.c.l.b16 %v766
  %v3057 = vunpack.c.h.b16 %v766
  %v3058 = vunpack.c.l.b16 %v767
  %v3059 = vunpack.c.l.b16 %v768
  %v3060 = vunpack.c.h.b16 %v768
  %v3061 = vunpack.c.l.b16 %v769
  %v3062 = vunpack.c.h.b16 %v769
  %v3063 = vunpack.c.l.b16 %v770
  %v3064 = vunpack.c.l.b16 %v771
  %v3065 = vunpack.c.h.b16 %v771
  %v3066 = vunpack.c.l.b16 %v772
  %v3067 = vunpack.c.h.b16 %v772
  %v3068 = vunpack.c.l.b16 %v773
  %v3069 = vunpack.c.l.b16 %v774
  %v3070 = vunpack.c.h.b16 %v774
  %v3071 = vunpack.c.l.b16 %v775
  %v3072 = vunpack.c.h.b16 %v775
  %v3073 = vunpack.c.l.b16 %v776
  %v3074 = vunpack.c.l.b16 %v777
  %v3075 = vunpack.c.h.b16 %v777
  %v3076 = vunpack.c.l.b16 %v778
  %v3077 = vunpack.c.h.b16 %v778
  %v3078 = vunpack.c.l.b16 %v779
  %v3079 = vunpack.c.l.b16 %v780
  %v3080 = vunpack.c.h.b16 %v780
  %v3081 = vunpack.c.l.b16 %v781
  %v3082 = vunpack.c.h.b16 %v781
  %v3083 = vunpack.c.l.b16 %v782
  %v3084 = vunpack.c.l.b16 %v783
  %v3085 = vunpack.c.h.b16 %v783
  %v3086 = vunpack.c.l.b16 %v784
  %v3087 = vunpack.c.h.b16 %v784
  %v3088 = vunpack.c.l.b16 %v785
  %v3089 = vunpack.c.l.b16 %v786
  %v3090 = vunpack.c.h.b16 %v786
  %v3091 = vunpack.c.l.b16 %v787
  %v3092 = vunpack.c.h.b16 %v787
  %v3093 = vunpack.c.l.b16 %v788
  %v3094 = vunpack.c.l.b16 %v789
  %v3095 = vunpack.c.h.b16 %v789
  %v3096 = vunpack.c.l.b16 %v790
  %v3097 = vunpack.c.h.b16 %v790
  %v3098 = vunpack.c.l.b16 %v791
  %v3099 = vunpack.c.l.b16 %v792
  %v3100 = vunpack.c.h.b16 %v792
  %v3101 = vunpack.c.l.b16 %v793
  %v3102 = vunpack.c.h.b16 %v793
  %v3103 = vunpack.c.l.b16 %v794
  %v3104 = vunpack.c.l.b16 %v795
  %v3105 = vunpack.c.h.b16 %v795
  %v3106 = vunpack.c.l.b16 %v796
  %v3107 = vunpack.c.h.b16 %v796
  %v3108 = vunpack.c.l.b16 %v797
  %v3109 = vunpack.c.l.b16 %v798
  %v3110 = vunpack.c.h.b16 %v798
  %v3111 = vunpack.c.l.b16 %v799
  %v3112 = vunpack.c.h.b16 %v799
  %v3113 = vunpack.c.l.b16 %v800
  %v3114 = vunpack.c.l.b16 %v801
  %v3115 = vunpack.c.h.b16 %v801
  %v3116 = vunpack.c.l.b16 %v802
  %v3117 = vunpack.c.h.b16 %v802
  %v3118 = vunpack.c.l.b16 %v803
  %v3119 = vunpack.c.l.b16 %v804
  %v3120 = vunpack.c.h.b16 %v804
  %v3121 = vunpack.c.l.b16 %v805
  %v3122 = vunpack.c.h.b16 %v805
  %v3123 = vunpack.c.l.b16 %v806
  %v3124 = vunpack.c.l.b16 %v807
  %v3125 = vunpack.c.h.b16 %v807
  %v3126 = vunpack.c.l.b16 %v808
  %v3127 = vunpack.c.h.b16 %v808
  %v3128 = vunpack.c.l.b16 %v809
  %v3129 = vunpack.c.l.b16 %v810
  %v3130 = vunpack.c.h.b16 %v810
  %v3131 = vunpack.c.l.b16 %v811
  %v3132 = vunpack.c.h.b16 %v811
  %v3133 = vunpack.c.l.b16 %v812
  %v3134 = vunpack.c.l.b16 %v813
  %v3135 = vunpack.c.h.b16 %v813
  %v3136 = vunpack.c.l.b16 %v814
  %v3137 = vunpack.c.h.b16 %v814
  %v3138 = vunpack.c.l.b16 %v815
  %v3139 = vunpack.c.l.b16 %v816
  %v3140 = vunpack.c.h.b16 %v816
  %v3141 = vunpack.c.l.b16 %v817
  %v3142 = vunpack.c.h.b16 %v817
  %v3143 = vunpack.c.l.b16 %v818
  %v3144 = vunpack.c.l.b16 %v819
  %v3145 = vunpack.c.h.b16 %v819
  %v3146 = vunpack.c.l.b16 %v820
  %v3147 = vunpack.c.h.b16 %v820
  %v3148 = vunpack.c.l.b16 %v821
  %v3149 = vunpack.c.l.b16 %v822
  %v3150 = vunpack.c.h.b16 %v822
  %v3151 = vunpack.c.l.b16 %v823
  %v3152 = vunpack.c.h.b16 %v823
  %v3153 = vunpack.c.l.b16 %v824
  %v3154 = vunpack.c.l.b16 %v825
  %v3155 = vunpack.c.h.b16 %v825
  %v3156 = vunpack.c.l.b16 %v826
  %v3157 = vunpack.c.h.b16 %v826
  %v3158 = vunpack.c.l.b16 %v827
  %v3159 = vunpack.c.l.b16 %v828
  %v3160 = vunpack.c.h.b16 %v828
  %v3161 = vunpack.c.l.b16 %v829
  %v3162 = vunpack.c.h.b16 %v829
  %v3163 = vunpack.c.l.b16 %v830
  %v3164 = vunpack.c.l.b16 %v831
  %v3165 = vunpack.c.h.b16 %v831
  %v3166 = vunpack.c.l.b16 %v832
  %v3167 = vunpack.c.h.b16 %v832
  %v3168 = vunpack.c.l.b16 %v833
  %v3169 = vunpack.c.l.b16 %v834
  %v3170 = vunpack.c.h.b16 %v834
  %v3171 = vunpack.c.l.b16 %v835
  %v3172 = vunpack.c.h.b16 %v835
  %v3173 = vunpack.c.l.b16 %v836
  %v3174 = vunpack.c.l.b16 %v837
  %v3175 = vunpack.c.h.b16 %v837
  %v3176 = vunpack.c.l.b16 %v838
  %v3177 = vunpack.c.h.b16 %v838
  %v3178 = vunpack.c.l.b16 %v839
  %v3179 = vunpack.c.l.b16 %v840
  %v3180 = vunpack.c.h.b16 %v840
  %v3181 = vunpack.c.l.b16 %v841
  %v3182 = vunpack.c.h.b16 %v841
  %v3183 = vunpack.c.l.b16 %v842
  %v3184 = vunpack.c.l.b16 %v843
  %v3185 = vunpack.c.h.b16 %v843
  %v3186 = vunpack.c.l.b16 %v844
  %v3187 = vunpack.c.h.b16 %v844
  %v3188 = vunpack.c.l.b16 %v845
  %v3189 = vunpack.c.l.b16 %v846
  %v3190 = vunpack.c.h.b16 %v846
  %v3191 = vunpack.c.l.b16 %v847
  %v3192 = vunpack.c.h.b16 %v847
  %v3193 = vunpack.c.l.b16 %v848
  %v3194 = vunpack.c.l.b16 %v849
  %v3195 = vunpack.c.h.b16 %v849
  %v3196 = vunpack.c.l.b16 %v850
  %v3197 = vunpack.c.h.b16 %v850
  %v3198 = vunpack.c.l.b16 %v851
  %v3199 = vunpack.c.l.b16 %v852
  %v3200 = vunpack.c.h.b16 %v852
  %v3201 = vunpack.c.l.b16 %v853
  %v3202 = vunpack.c.h.b16 %v853
  %v3203 = vunpack.c.l.b16 %v854
  %v3204 = vunpack.c.l.b16 %v855
  %v3205 = vunpack.c.h.b16 %v855
  %v3206 = vunpack.c.l.b16 %v856
  %v3207 = vunpack.c.h.b16 %v856
  %v3208 = vunpack.c.l.b16 %v857
  %v3209 = vunpack.c.l.b16 %v858
  %v3210 = vunpack.c.h.b16 %v858
  %v3211 = vunpack.c.l.b16 %v859
  %v3212 = vunpack.c.h.b16 %v859
  %v3213 = vunpack.c.l.b16 %v860
  %v3214 = vunpack.c.l.b16 %v861
  %v3215 = vunpack.c.h.b16 %v861
  %v3216 = vunpack.c.l.b16 %v862
  %v3217 = vunpack.c.h.b16 %v862
  %v3218 = vunpack.c.l.b16 %v863
  %v3219 = vunpack.c.l.b16 %v864
  %v3220 = vunpack.c.h.b16 %v864
  %v3221 = vunpack.c.l.b16 %v865
  %v3222 = vunpack.c.h.b16 %v865
  %v3223 = vunpack.c.l.b16 %v866
  %v3224 = vunpack.c.l.b16 %v867
  %v3225 = vunpack.c.h.b16 %v867
  %v3226 = vunpack.c.l.b16 %v868
  %v3227 = vunpack.c.h.b16 %v868
  %v3228 = vunpack.c.l.b16 %v869
  %v3229 = vunpack.c.l.b16 %v870
  %v3230 = vunpack.c.h.b16 %v870
  %v3231 = vunpack.c.l.b16 %v871
  %v3232 = vunpack.c.h.b16 %v871
  %v3233 = vunpack.c.l.b16 %v872
  %v3234 = vunpack.c.l.b16 %v873
  %v3235 = vunpack.c.h.b16 %v873
  %v3236 = vunpack.c.l.b16 %v874
  %v3237 = vunpack.c.h.b16 %v874
  %v3238 = vunpack.c.l.b16 %v875
  %v3239 = vunpack.c.l.b16 %v876
  %v3240 = vunpack.c.h.b16 %v876
  %v3241 = vunpack.c.l.b16 %v877
  %v3242 = vunpack.c.h.b16 %v877
  %v3243 = vunpack.c.l.b16 %v878
  %v3244 = vunpack.c.l.b16 %v879
  %v3245 = vunpack.c.h.b16 %v879
  %v3246 = vunpack.c.l.b16 %v880
  %v3247 = vunpack.c.h.b16 %v880
  %v3248 = vunpack.c.l.b16 %v881
  %v3249 = vunpack.c.l.b16 %v882
  %v3250 = vunpack.c.h.b16 %v882
  %v3251 = vunpack.c.l.b16 %v883
  %v3252 = vunpack.c.h.b16 %v883
  %v3253 = vunpack.c.l.b16 %v884
  %v3254 = vunpack.c.l.b16 %v885
  %v3255 = vunpack.c.h.b16 %v885
  %v3256 = vunpack.c.l.b16 %v886
  %v3257 = vunpack.c.h.b16 %v886
  %v3258 = vunpack.c.l.b16 %v887
  %v3259 = vunpack.c.l.b16 %v888
  %v3260 = vunpack.c.h.b16 %v888
  %v3261 = vunpack.c.l.b16 %v889
  %v3262 = vunpack.c.h.b16 %v889
  %v3263 = vunpack.c.l.b16 %v890
  %v3264 = vunpack.c.l.b16 %v891
  %v3265 = vunpack.c.h.b16 %v891
  %v3266 = vunpack.c.l.b16 %v892
  %v3267 = vunpack.c.h.b16 %v892
  %v3268 = vunpack.c.l.b16 %v893
  %v3269 = vunpack.c.l.b16 %v894
  %v3270 = vunpack.c.h.b16 %v894
  %v3271 = vunpack.c.l.b16 %v895
  %v3272 = vunpack.c.h.b16 %v895
  %v3273 = vunpack.c.l.b16 %v896
  %v3274 = vunpack.c.l.b16 %v897
  %v3275 = vunpack.c.h.b16 %v897
  %v3276 = vunpack.c.l.b16 %v898
  %v3277 = vunpack.c.h.b16 %v898
  %v3278 = vunpack.c.l.b16 %v899
  %v3279 = vpack.c.b16 %v1844, %v1839
  %v3280 = vpack.c.b16 %v1845, %v1840
  %v3281 = vpack.c.b16 %v1846, %v1841
  %v3282 = vpack.c.b16 %v1847, %v1842
  %v3283 = vpack.c.b16 %v1848, %v1843
  %v3284 = vpack.c.b16 %v1854, %v1849
  %v3285 = vpack.c.b16 %v1855, %v1850
  %v3286 = vpack.c.b16 %v1856, %v1851
  %v3287 = vpack.c.b16 %v1857, %v1852
  %v3288 = vpack.c.b16 %v1858, %v1853
  %v3289 = vpack.c.b16 %v1864, %v1859
  %v3290 = vpack.c.b16 %v1865, %v1860
  %v3291 = vpack.c.b16 %v1866, %v1861
  %v3292 = vpack.c.b16 %v1867, %v1862
  %v3293 = vpack.c.b16 %v1868, %v1863
  %v3294 = vpack.c.b16 %v1874, %v1869
  %v3295 = vpack.c.b16 %v1875, %v1870
  %v3296 = vpack.c.b16 %v1876, %v1871
  %v3297 = vpack.c.b16 %v1877, %v1872
  %v3298 = vpack.c.b16 %v1878, %v1873
  %v3299 = vpack.c.b16 %v1884, %v1879
  %v3300 = vpack.c.b16 %v1885, %v1880
  %v3301 = vpack.c.b16 %v1886, %v1881
  %v3302 = vpack.c.b16 %v1887, %v1882
  %v3303 = vpack.c.b16 %v1888, %v1883
  %v3304 = vpack.c.b16 %v1894, %v1889
  %v3305 = vpack.c.b16 %v1895, %v1890
  %v3306 = vpack.c.b16 %v1896, %v1891
  %v3307 = vpack.c.b16 %v1897, %v1892
  %v3308 = vpack.c.b16 %v1898, %v1893
  %v3309 = vpack.c.b16 %v1904, %v1899
  %v3310 = vpack.c.b16 %v1905, %v1900
  %v3311 = vpack.c.b16 %v1906, %v1901
  %v3312 = vpack.c.b16 %v1907, %v1902
  %v3313 = vpack.c.b16 %v1908, %v1903
  %v3314 = vpack.c.b16 %v1914, %v1909
  %v3315 = vpack.c.b16 %v1915, %v1910
  %v3316 = vpack.c.b16 %v1916, %v1911
  %v3317 = vpack.c.b16 %v1917, %v1912
  %v3318 = vpack.c.b16 %v1918, %v1913
  %v3319 = vpack.c.b16 %v1924, %v1919
  %v3320 = vpack.c.b16 %v1925, %v1920
  %v3321 = vpack.c.b16 %v1926, %v1921
  %v3322 = vpack.c.b16 %v1927, %v1922
  %v3323 = vpack.c.b16 %v1928, %v1923
  %v3324 = vpack.c.b16 %v1934, %v1929
  %v3325 = vpack.c.b16 %v1935, %v1930
  %v3326 = vpack.c.b16 %v1936, %v1931
  %v3327 = vpack.c.b16 %v1937, %v1932
  %v3328 = vpack.c.b16 %v1938, %v1933
  %v3329 = vpack.c.b16 %v1944, %v1939
  %v3330 = vpack.c.b16 %v1945, %v1940
  %v3331 = vpack.c.b16 %v1946, %v1941
  %v3332 = vpack.c.b16 %v1947, %v1942
  %v3333 = vpack.c.b16 %v1948, %v1943
  %v3334 = vpack.c.b16 %v1954, %v1949
  %v3335 = vpack.c.b16 %v1955, %v1950
  %v3336 = vpack.c.b16 %v1956, %v1951
  %v3337 = vpack.c.b16 %v1957, %v1952
  %v3338 = vpack.c.b16 %v1958, %v1953
  %v3339 = vpack.c.b16 %v1964, %v1959
  %v3340 = vpack.c.b16 %v1965, %v1960
  %v3341 = vpack.c.b16 %v1966, %v1961
  %v3342 = vpack.c.b16 %v1967, %v1962
  %v3343 = vpack.c.b16 %v1968, %v1963
  %v3344 = vpack.c.b16 %v1974, %v1969
  %v3345 = vpack.c.b16 %v1975, %v1970
  %v3346 = vpack.c.b16 %v1976, %v1971
  %v3347 = vpack.c.b16 %v1977, %v1972
  %v3348 = vpack.c.b16 %v1978, %v1973
  %v3349 = vpack.c.b16 %v1984, %v1979
  %v3350 = vpack.c.b16 %v1985, %v1980
  %v3351 = vpack.c.b16 %v1986, %v1981
  %v3352 = vpack.c.b16 %v1987, %v1982
  %v3353 = vpack.c.b16 %v1988, %v1983
  %v3354 = vpack.c.b16 %v1994, %v1989
  %v3355 = vpack.c.b16 %v1995, %v1990
  %v3356 = vpack.c.b16 %v1996, %v1991
  %v3357 = vpack.c.b16 %v1997, %v1992
  %v3358 = vpack.c.b16 %v1998, %v1993
  %v3359 = vpack.c.b16 %v2004, %v1999
  %v3360 = vpack.c.b16 %v2005, %v2000
  %v3361 = vpack.c.b16 %v2006, %v2001
  %v3362 = vpack.c.b16 %v2007, %v2002
  %v3363 = vpack.c.b16 %v2008, %v2003
  %v3364 = vpack.c.b16 %v2014, %v2009
  %v3365 = vpack.c.b16 %v2015, %v2010
  %v3366 = vpack.c.b16 %v2016, %v2011
  %v3367 = vpack.c.b16 %v2017, %v2012
  %v3368 = vpack.c.b16 %v2018, %v2013
  %v3369 = vpack.c.b16 %v2024, %v2019
  %v3370 = vpack.c.b16 %v2025, %v2020
  %v3371 = vpack.c.b16 %v2026, %v2021
  %v3372 = vpack.c.b16 %v2027, %v2022
  %v3373 = vpack.c.b16 %v2028, %v2023
  %v3374 = vpack.c.b16 %v2034, %v2029
  %v3375 = vpack.c.b16 %v2035, %v2030
  %v3376 = vpack.c.b16 %v2036, %v2031
  %v3377 = vpack.c.b16 %v2037, %v2032
  %v3378 = vpack.c.b16 %v2038, %v2033
  %v3379 = vpack.c.b16 %v2044, %v2039
  %v3380 = vpack.c.b16 %v2045, %v2040
  %v3381 = vpack.c.b16 %v2046, %v2041
  %v3382 = vpack.c.b16 %v2047, %v2042
  %v3383 = vpack.c.b16 %v2048, %v2043
  %v3384 = vpack.c.b16 %v2054, %v2049
  %v3385 = vpack.c.b16 %v2055, %v2050
  %v3386 = vpack.c.b16 %v2056, %v2051
  %v3387 = vpack.c.b16 %v2057, %v2052
  %v3388 = vpack.c.b16 %v2058, %v2053
  %v3389 = vpack.c.b16 %v2064, %v2059
  %v3390 = vpack.c.b16 %v2065, %v2060
  %v3391 = vpack.c.b16 %v2066, %v2061
  %v3392 = vpack.c.b16 %v2067, %v2062
  %v3393 = vpack.c.b16 %v2068, %v2063
  %v3394 = vpack.c.b16 %v2074, %v2069
  %v3395 = vpack.c.b16 %v2075, %v2070
  %v3396 = vpack.c.b16 %v2076, %v2071
  %v3397 = vpack.c.b16 %v2077, %v2072
  %v3398 = vpack.c.b16 %v2078, %v2073
  %v3399 = vpack.c.b16 %v2084, %v2079
  %v3400 = vpack.c.b16 %v2085, %v2080
  %v3401 = vpack.c.b16 %v2086, %v2081
  %v3402 = vpack.c.b16 %v2087, %v2082
  %v3403 = vpack.c.b16 %v2088, %v2083
  %v3404 = vpack.c.b16 %v2094, %v2089
  %v3405 = vpack.c.b16 %v2095, %v2090
  %v3406 = vpack.c.b16 %v2096, %v2091
  %v3407 = vpack.c.b16 %v2097, %v2092
  %v3408 = vpack.c.b16 %v2098, %v2093
  %v3409 = vpack.c.b16 %v2104, %v2099
  %v3410 = vpack.c.b16 %v2105, %v2100
  %v3411 = vpack.c.b16 %v2106, %v2101
  %v3412 = vpack.c.b16 %v2107, %v2102
  %v3413 = vpack.c.b16 %v2108, %v2103
  %v3414 = vpack.c.b16 %v2114, %v2109
  %v3415 = vpack.c.b16 %v2115, %v2110
  %v3416 = vpack.c.b16 %v2116, %v2111
  %v3417 = vpack.c.b16 %v2117, %v2112
  %v3418 = vpack.c.b16 %v2118, %v2113
  %v3419 = vpack.c.b16 %v2124, %v2119
  %v3420 = vpack.c.b16 %v2125, %v2120
  %v3421 = vpack.c.b16 %v2126, %v2121
  %v3422 = vpack.c.b16 %v2127, %v2122
  %v3423 = vpack.c.b16 %v2128, %v2123
  %v3424 = vpack.c.b16 %v2134, %v2129
  %v3425 = vpack.c.b16 %v2135, %v2130
  %v3426 = vpack.c.b16 %v2136, %v2131
  %v3427 = vpack.c.b16 %v2137, %v2132
  %v3428 = vpack.c.b16 %v2138, %v2133
  %v3429 = vpack.c.b16 %v2144, %v2139
  %v3430 = vpack.c.b16 %v2145, %v2140
  %v3431 = vpack.c.b16 %v2146, %v2141
  %v3432 = vpack.c.b16 %v2147, %v2142
  %v3433 = vpack.c.b16 %v2148, %v2143
  %v3434 = vpack.c.b16 %v2154, %v2149
  %v3435 = vpack.c.b16 %v2155, %v2150
  %v3436 = vpack.c.b16 %v2156, %v2151
  %v3437 = vpack.c.b16 %v2157, %v2152
  %v3438 = vpack.c.b16 %v2158, %v2153
  %v3439 = vpack.c.b16 %v2164, %v2159
  %v3440 = vpack.c.b16 %v2165, %v2160
  %v3441 = vpack.c.b16 %v2166, %v2161
  %v3442 = vpack.c.b16 %v2167, %v2162
  %v3443 = vpack.c.b16 %v2168, %v2163
  %v3444 = vpack.c.b16 %v2174, %v2169
  %v3445 = vpack.c.b16 %v2175, %v2170
  %v3446 = vpack.c.b16 %v2176, %v2171
  %v3447 = vpack.c.b16 %v2177, %v2172
  %v3448 = vpack.c.b16 %v2178, %v2173
  %v3449 = vpack.c.b16 %v2184, %v2179
  %v3450 = vpack.c.b16 %v2185, %v2180
  %v3451 = vpack.c.b16 %v2186, %v2181
  %v3452 = vpack.c.b16 %v2187, %v2182
  %v3453 = vpack.c.b16 %v2188, %v2183
  %v3454 = vpack.c.b16 %v2194, %v2189
  %v3455 = vpack.c.b16 %v2195, %v2190
  %v3456 = vpack.c.b16 %v2196, %v2191
  %v3457 = vpack.c.b16 %v2197, %v2192
  %v3458 = vpack.c.b16 %v2198, %v2193
  %v3459 = vpack.c.b16 %v2204, %v2199
  %v3460 = vpack.c.b16 %v2205, %v2200
  %v3461 = vpack.c.b16 %v2206, %v2201
  %v3462 = vpack.c.b16 %v2207, %v2202
  %v3463 = vpack.c.b16 %v2208, %v2203
  %v3464 = vpack.c.b16 %v2214, %v2209
  %v3465 = vpack.c.b16 %v2215, %v2210
  %v3466 = vpack.c.b16 %v2216, %v2211
  %v3467 = vpack.c.b16 %v2217, %v2212
  %v3468 = vpack.c.b16 %v2218, %v2213
  %v3469 = vpack.c.b16 %v2224, %v2219
  %v3470 = vpack.c.b16 %v2225, %v2220
  %v3471 = vpack.c.b16 %v2226, %v2221
  %v3472 = vpack.c.b16 %v2227, %v2222
  %v3473 = vpack.c.b16 %v2228, %v2223
  %v3474 = vpack.c.b16 %v2234, %v2229
  %v3475 = vpack.c.b16 %v2235, %v2230
  %v3476 = vpack.c.b16 %v2236, %v2231
  %v3477 = vpack.c.b16 %v2237, %v2232
  %v3478 = vpack.c.b16 %v2238, %v2233
  %v3479 = vpack.c.b16 %v2244, %v2239
  %v3480 = vpack.c.b16 %v2245, %v2240
  %v3481 = vpack.c.b16 %v2246, %v2241
  %v3482 = vpack.c.b16 %v2247, %v2242
  %v3483 = vpack.c.b16 %v2248, %v2243
  %v3484 = vpack.c.b16 %v2254, %v2249
  %v3485 = vpack.c.b16 %v2255, %v2250
  %v3486 = vpack.c.b16 %v2256, %v2251
  %v3487 = vpack.c.b16 %v2257, %v2252
  %v3488 = vpack.c.b16 %v2258, %v2253
  %v3489 = vpack.c.b16 %v2264, %v2259
  %v3490 = vpack.c.b16 %v2265, %v2260
  %v3491 = vpack.c.b16 %v2266, %v2261
  %v3492 = vpack.c.b16 %v2267, %v2262
  %v3493 = vpack.c.b16 %v2268, %v2263
  %v3494 = vpack.c.b16 %v2274, %v2269
  %v3495 = vpack.c.b16 %v2275, %v2270
  %v3496 = vpack.c.b16 %v2276, %v2271
  %v3497 = vpack.c.b16 %v2277, %v2272
  %v3498 = vpack.c.b16 %v2278, %v2273
  %v3499 = vpack.c.b16 %v2284, %v2279
  %v3500 = vpack.c.b16 %v2285, %v2280
  %v3501 = vpack.c.b16 %v2286, %v2281
  %v3502 = vpack.c.b16 %v2287, %v2282
  %v3503 = vpack.c.b16 %v2288, %v2283
  %v3504 = vpack.c.b16 %v2294, %v2289
  %v3505 = vpack.c.b16 %v2295, %v2290
  %v3506 = vpack.c.b16 %v2296, %v2291
  %v3507 = vpack.c.b16 %v2297, %v2292
  %v3508 = vpack.c.b16 %v2298, %v2293
  %v3509 = vpack.c.b16 %v2304, %v2299
  %v3510 = vpack.c.b16 %v2305, %v2300
  %v3511 = vpack.c.b16 %v2306, %v2301
  %v3512 = vpack.c.b16 %v2307, %v2302
  %v3513 = vpack.c.b16 %v2308, %v2303
  %v3514 = vpack.c.b16 %v2314, %v2309
  %v3515 = vpack.c.b16 %v2315, %v2310
  %v3516 = vpack.c.b16 %v2316, %v2311
  %v3517 = vpack.c.b16 %v2317, %v2312
  %v3518 = vpack.c.b16 %v2318, %v2313
  %v3519 = vpack.c.b16 %v2324, %v2319
  %v3520 = vpack.c.b16 %v2325, %v2320
  %v3521 = vpack.c.b16 %v2326, %v2321
  %v3522 = vpack.c.b16 %v2327, %v2322
  %v3523 = vpack.c.b16 %v2328, %v2323
  %v3524 = vpack.c.b16 %v2334, %v2329
  %v3525 = vpack.c.b16 %v2335, %v2330
  %v3526 = vpack.c.b16 %v2336, %v2331
  %v3527 = vpack.c.b16 %v2337, %v2332
  %v3528 = vpack.c.b16 %v2338, %v2333
  %v3529 = vpack.c.b16 %v2344, %v2339
  %v3530 = vpack.c.b16 %v2345, %v2340
  %v3531 = vpack.c.b16 %v2346, %v2341
  %v3532 = vpack.c.b16 %v2347, %v2342
  %v3533 = vpack.c.b16 %v2348, %v2343
  %v3534 = vpack.c.b16 %v2354, %v2349
  %v3535 = vpack.c.b16 %v2355, %v2350
  %v3536 = vpack.c.b16 %v2356, %v2351
  %v3537 = vpack.c.b16 %v2357, %v2352
  %v3538 = vpack.c.b16 %v2358, %v2353
  %v3539 = vpack.c.b16 %v2364, %v2359
  %v3540 = vpack.c.b16 %v2365, %v2360
  %v3541 = vpack.c.b16 %v2366, %v2361
  %v3542 = vpack.c.b16 %v2367, %v2362
  %v3543 = vpack.c.b16 %v2368, %v2363
  %v3544 = vpack.c.b16 %v2374, %v2369
  %v3545 = vpack.c.b16 %v2375, %v2370
  %v3546 = vpack.c.b16 %v2376, %v2371
  %v3547 = vpack.c.b16 %v2377, %v2372
  %v3548 = vpack.c.b16 %v2378, %v2373
  %v3549 = vpack.c.b16 %v2384, %v2379
  %v3550 = vpack.c.b16 %v2385, %v2380
  %v3551 = vpack.c.b16 %v2386, %v2381
  %v3552 = vpack.c.b16 %v2387, %v2382
  %v3553 = vpack.c.b16 %v2388, %v2383
  %v3554 = vpack.c.b16 %v2394, %v2389
  %v3555 = vpack.c.b16 %v2395, %v2390
  %v3556 = vpack.c.b16 %v2396, %v2391
  %v3557 = vpack.c.b16 %v2397, %v2392
  %v3558 = vpack.c.b16 %v2398, %v2393
  %v3559 = vpack.c.b16 %v2404, %v2399
  %v3560 = vpack.c.b16 %v2405, %v2400
  %v3561 = vpack.c.b16 %v2406, %v2401
  %v3562 = vpack.c.b16 %v2407, %v2402
  %v3563 = vpack.c.b16 %v2408, %v2403
  %v3564 = vpack.c.b16 %v2414, %v2409
  %v3565 = vpack.c.b16 %v2415, %v2410
  %v3566 = vpack.c.b16 %v2416, %v2411
  %v3567 = vpack.c.b16 %v2417, %v2412
  %v3568 = vpack.c.b16 %v2418, %v2413
  %v3569 = vpack.c.b16 %v2424, %v2419
  %v3570 = vpack.c.b16 %v2425, %v2420
  %v3571 = vpack.c.b16 %v2426, %v2421
  %v3572 = vpack.c.b16 %v2427, %v2422
  %v3573 = vpack.c.b16 %v2428, %v2423
  %v3574 = vpack.c.b16 %v2434, %v2429
  %v3575 = vpack.c.b16 %v2435, %v2430
  %v3576 = vpack.c.b16 %v2436, %v2431
  %v3577 = vpack.c.b16 %v2437, %v2432
  %v3578 = vpack.c.b16 %v2438, %v2433
  %v3579 = vpack.c.b16 %v2444, %v2439
  %v3580 = vpack.c.b16 %v2445, %v2440
  %v3581 = vpack.c.b16 %v2446, %v2441
  %v3582 = vpack.c.b16 %v2447, %v2442
  %v3583 = vpack.c.b16 %v2448, %v2443
  %v3584 = vpack.c.b16 %v2454, %v2449
  %v3585 = vpack.c.b16 %v2455, %v2450
  %v3586 = vpack.c.b16 %v2456, %v2451
  %v3587 = vpack.c.b16 %v2457, %v2452
  %v3588 = vpack.c.b16 %v2458, %v2453
  %v3589 = vpack.c.b16 %v2464, %v2459
  %v3590 = vpack.c.b16 %v2465, %v2460
  %v3591 = vpack.c.b16 %v2466, %v2461
  %v3592 = vpack.c.b16 %v2467, %v2462
  %v3593 = vpack.c.b16 %v2468, %v2463
  %v3594 = vpack.c.b16 %v2474, %v2469
  %v3595 = vpack.c.b16 %v2475, %v2470
  %v3596 = vpack.c.b16 %v2476, %v2471
  %v3597 = vpack.c.b16 %v2477, %v2472
  %v3598 = vpack.c.b16 %v2478, %v2473
  %v3599 = vpack.c.b16 %v2484, %v2479
  %v3600 = vpack.c.b16 %v2485, %v2480
  %v3601 = vpack.c.b16 %v2486, %v2481
  %v3602 = vpack.c.b16 %v2487, %v2482
  %v3603 = vpack.c.b16 %v2488, %v2483
  %v3604 = vpack.c.b16 %v2494, %v2489
  %v3605 = vpack.c.b16 %v2495, %v2490
  %v3606 = vpack.c.b16 %v2496, %v2491
  %v3607 = vpack.c.b16 %v2497, %v2492
  %v3608 = vpack.c.b16 %v2498, %v2493
  %v3609 = vpack.c.b16 %v2504, %v2499
  %v3610 = vpack.c.b16 %v2505, %v2500
  %v3611 = vpack.c.b16 %v2506, %v2501
  %v3612 = vpack.c.b16 %v2507, %v2502
  %v3613 = vpack.c.b16 %v2508, %v2503
  %v3614 = vpack.c.b16 %v2514, %v2509
  %v3615 = vpack.c.b16 %v2515, %v2510
  %v3616 = vpack.c.b16 %v2516, %v2511
  %v3617 = vpack.c.b16 %v2517, %v2512
  %v3618 = vpack.c.b16 %v2518, %v2513
  %v3619 = vpack.c.b16 %v2524, %v2519
  %v3620 = vpack.c.b16 %v2525, %v2520
  %v3621 = vpack.c.b16 %v2526, %v2521
  %v3622 = vpack.c.b16 %v2527, %v2522
  %v3623 = vpack.c.b16 %v2528, %v2523
  %v3624 = vpack.c.b16 %v2534, %v2529
  %v3625 = vpack.c.b16 %v2535, %v2530
  %v3626 = vpack.c.b16 %v2536, %v2531
  %v3627 = vpack.c.b16 %v2537, %v2532
  %v3628 = vpack.c.b16 %v2538, %v2533
  %v3629 = vpack.c.b16 %v2544, %v2539
  %v3630 = vpack.c.b16 %v2545, %v2540
  %v3631 = vpack.c.b16 %v2546, %v2541
  %v3632 = vpack.c.b16 %v2547, %v2542
  %v3633 = vpack.c.b16 %v2548, %v2543
  %v3634 = vpack.c.b16 %v2554, %v2549
  %v3635 = vpack.c.b16 %v2555, %v2550
  %v3636 = vpack.c.b16 %v2556, %v2551
  %v3637 = vpack.c.b16 %v2557, %v2552
  %v3638 = vpack.c.b16 %v2558, %v2553
  %v3639 = vpack.c.b16 %v2564, %v2559
  %v3640 = vpack.c.b16 %v2565, %v2560
  %v3641 = vpack.c.b16 %v2566, %v2561
  %v3642 = vpack.c.b16 %v2567, %v2562
  %v3643 = vpack.c.b16 %v2568, %v2563
  %v3644 = vpack.c.b16 %v2574, %v2569
  %v3645 = vpack.c.b16 %v2575, %v2570
  %v3646 = vpack.c.b16 %v2576, %v2571
  %v3647 = vpack.c.b16 %v2577, %v2572
  %v3648 = vpack.c.b16 %v2578, %v2573
  %v3649 = vpack.c.b16 %v2584, %v2579
  %v3650 = vpack.c.b16 %v2585, %v2580
  %v3651 = vpack.c.b16 %v2586, %v2581
  %v3652 = vpack.c.b16 %v2587, %v2582
  %v3653 = vpack.c.b16 %v2588, %v2583
  %v3654 = vpack.c.b16 %v2594, %v2589
  %v3655 = vpack.c.b16 %v2595, %v2590
  %v3656 = vpack.c.b16 %v2596, %v2591
  %v3657 = vpack.c.b16 %v2597, %v2592
  %v3658 = vpack.c.b16 %v2598, %v2593
  %v3659 = vpack.c.b16 %v2604, %v2599
  %v3660 = vpack.c.b16 %v2605, %v2600
  %v3661 = vpack.c.b16 %v2606, %v2601
  %v3662 = vpack.c.b16 %v2607, %v2602
  %v3663 = vpack.c.b16 %v2608, %v2603
  %v3664 = vpack.c.b16 %v2614, %v2609
  %v3665 = vpack.c.b16 %v2615, %v2610
  %v3666 = vpack.c.b16 %v2616, %v2611
  %v3667 = vpack.c.b16 %v2617, %v2612
  %v3668 = vpack.c.b16 %v2618, %v2613
  %v3669 = vpack.c.b16 %v2624, %v2619
  %v3670 = vpack.c.b16 %v2625, %v2620
  %v3671 = vpack.c.b16 %v2626, %v2621
  %v3672 = vpack.c.b16 %v2627, %v2622
  %v3673 = vpack.c.b16 %v2628, %v2623
  %v3674 = vpack.c.b16 %v2634, %v2629
  %v3675 = vpack.c.b16 %v2635, %v2630
  %v3676 = vpack.c.b16 %v2636, %v2631
  %v3677 = vpack.c.b16 %v2637, %v2632
  %v3678 = vpack.c.b16 %v2638, %v2633
  %v3679 = vpack.c.b16 %v2644, %v2639
  %v3680 = vpack.c.b16 %v2645, %v2640
  %v3681 = vpack.c.b16 %v2646, %v2641
  %v3682 = vpack.c.b16 %v2647, %v2642
  %v3683 = vpack.c.b16 %v2648, %v2643
  %v3684 = vpack.c.b16 %v2654, %v2649
  %v3685 = vpack.c.b16 %v2655, %v2650
  %v3686 = vpack.c.b16 %v2656, %v2651
  %v3687 = vpack.c.b16 %v2657, %v2652
  %v3688 = vpack.c.b16 %v2658, %v2653
  %v3689 = vpack.c.b16 %v2664, %v2659
  %v3690 = vpack.c.b16 %v2665, %v2660
  %v3691 = vpack.c.b16 %v2666, %v2661
  %v3692 = vpack.c.b16 %v2667, %v2662
  %v3693 = vpack.c.b16 %v2668, %v2663
  %v3694 = vpack.c.b16 %v2674, %v2669
  %v3695 = vpack.c.b16 %v2675, %v2670
  %v3696 = vpack.c.b16 %v2676, %v2671
  %v3697 = vpack.c.b16 %v2677, %v2672
  %v3698 = vpack.c.b16 %v2678, %v2673
  %v3699 = vpack.c.b16 %v2684, %v2679
  %v3700 = vpack.c.b16 %v2685, %v2680
  %v3701 = vpack.c.b16 %v2686, %v2681
  %v3702 = vpack.c.b16 %v2687, %v2682
  %v3703 = vpack.c.b16 %v2688, %v2683
  %v3704 = vpack.c.b16 %v2694, %v2689
  %v3705 = vpack.c.b16 %v2695, %v2690
  %v3706 = vpack.c.b16 %v2696, %v2691
  %v3707 = vpack.c.b16 %v2697, %v2692
  %v3708 = vpack.c.b16 %v2698, %v2693
  %v3709 = vpack.c.b16 %v2704, %v2699
  %v3710 = vpack.c.b16 %v2705, %v2700
  %v3711 = vpack.c.b16 %v2706, %v2701
  %v3712 = vpack.c.b16 %v2707, %v2702
  %v3713 = vpack.c.b16 %v2708, %v2703
  %v3714 = vpack.c.b16 %v2714, %v2709
  %v3715 = vpack.c.b16 %v2715, %v2710
  %v3716 = vpack.c.b16 %v2716, %v2711
  %v3717 = vpack.c.b16 %v2717, %v2712
  %v3718 = vpack.c.b16 %v2718, %v2713
  %v3719 = vpack.c.b16 %v2724, %v2719
  %v3720 = vpack.c.b16 %v2725, %v2720
  %v3721 = vpack.c.b16 %v2726, %v2721
  %v3722 = vpack.c.b16 %v2727, %v2722
  %v3723 = vpack.c.b16 %v2728, %v2723
  %v3724 = vpack.c.b16 %v2734, %v2729
  %v3725 = vpack.c.b16 %v2735, %v2730
  %v3726 = vpack.c.b16 %v2736, %v2731
  %v3727 = vpack.c.b16 %v2737, %v2732
  %v3728 = vpack.c.b16 %v2738, %v2733
  %v3729 = vpack.c.b16 %v2744, %v2739
  %v3730 = vpack.c.b16 %v2745, %v2740
  %v3731 = vpack.c.b16 %v2746, %v2741
  %v3732 = vpack.c.b16 %v2747, %v2742
  %v3733 = vpack.c.b16 %v2748, %v2743
  %v3734 = vpack.c.b16 %v2754, %v2749
  %v3735 = vpack.c.b16 %v2755, %v2750
  %v3736 = vpack.c.b16 %v2756, %v2751
  %v3737 = vpack.c.b16 %v2757, %v2752
  %v3738 = vpack.c.b16 %v2758, %v2753
  %v3739 = vpack.c.b16 %v2764, %v2759
  %v3740 = vpack.c.b16 %v2765, %v2760
  %v3741 = vpack.c.b16 %v2766, %v2761
  %v3742 = vpack.c.b16 %v2767, %v2762
  %v3743 = vpack.c.b16 %v2768, %v2763
  %v3744 = vpack.c.b16 %v2774, %v2769
  %v3745 = vpack.c.b16 %v2775, %v2770
  %v3746 = vpack.c.b16 %v2776, %v2771
  %v3747 = vpack.c.b16 %v2777, %v2772
  %v3748 = vpack.c.b16 %v2778, %v2773
  %v3749 = vpack.c.b16 %v2784, %v2779
  %v3750 = vpack.c.b16 %v2785, %v2780
  %v3751 = vpack.c.b16 %v2786, %v2781
  %v3752 = vpack.c.b16 %v2787, %v2782
  %v3753 = vpack.c.b16 %v2788, %v2783
  %v3754 = vpack.c.b16 %v2794, %v2789
  %v3755 = vpack.c.b16 %v2795, %v2790
  %v3756 = vpack.c.b16 %v2796, %v2791
  %v3757 = vpack.c.b16 %v2797, %v2792
  %v3758 = vpack.c.b16 %v2798, %v2793
  %v3759 = vpack.c.b16 %v2804, %v2799
  %v3760 = vpack.c.b16 %v2805, %v2800
  %v3761 = vpack.c.b16 %v2806, %v2801
  %v3762 = vpack.c.b16 %v2807, %v2802
  %v3763 = vpack.c.b16 %v2808, %v2803
  %v3764 = vpack.c.b16 %v2814, %v2809
  %v3765 = vpack.c.b16 %v2815, %v2810
  %v3766 = vpack.c.b16 %v2816, %v2811
  %v3767 = vpack.c.b16 %v2817, %v2812
  %v3768 = vpack.c.b16 %v2818, %v2813
  %v3769 = vpack.c.b16 %v2824, %v2819
  %v3770 = vpack.c.b16 %v2825, %v2820
  %v3771 = vpack.c.b16 %v2826, %v2821
  %v3772 = vpack.c.b16 %v2827, %v2822
  %v3773 = vpack.c.b16 %v2828, %v2823
  %v3774 = vpack.c.b16 %v2834, %v2829
  %v3775 = vpack.c.b16 %v2835, %v2830
  %v3776 = vpack.c.b16 %v2836, %v2831
  %v3777 = vpack.c.b16 %v2837, %v2832
  %v3778 = vpack.c.b16 %v2838, %v2833
  %v3779 = vpack.c.b16 %v2844, %v2839
  %v3780 = vpack.c.b16 %v2845, %v2840
  %v3781 = vpack.c.b16 %v2846, %v2841
  %v3782 = vpack.c.b16 %v2847, %v2842
  %v3783 = vpack.c.b16 %v2848, %v2843
  %v3784 = vpack.c.b16 %v2854, %v2849
  %v3785 = vpack.c.b16 %v2855, %v2850
  %v3786 = vpack.c.b16 %v2856, %v2851
  %v3787 = vpack.c.b16 %v2857, %v2852
  %v3788 = vpack.c.b16 %v2858, %v2853
  %v3789 = vpack.c.b16 %v2864, %v2859
  %v3790 = vpack.c.b16 %v2865, %v2860
  %v3791 = vpack.c.b16 %v2866, %v2861
  %v3792 = vpack.c.b16 %v2867, %v2862
  %v3793 = vpack.c.b16 %v2868, %v2863
  %v3794 = vpack.c.b16 %v2874, %v2869
  %v3795 = vpack.c.b16 %v2875, %v2870
  %v3796 = vpack.c.b16 %v2876, %v2871
  %v3797 = vpack.c.b16 %v2877, %v2872
  %v3798 = vpack.c.b16 %v2878, %v2873
  %v3799 = vpack.c.b16 %v2884, %v2879
  %v3800 = vpack.c.b16 %v2885, %v2880
  %v3801 = vpack.c.b16 %v2886, %v2881
  %v3802 = vpack.c.b16 %v2887, %v2882
  %v3803 = vpack.c.b16 %v2888, %v2883
  %v3804 = vpack.c.b16 %v2894, %v2889
  %v3805 = vpack.c.b16 %v2895, %v2890
  %v3806 = vpack.c.b16 %v2896, %v2891
  %v3807 = vpack.c.b16 %v2897, %v2892
  %v3808 = vpack.c.b16 %v2898, %v2893
  %v3809 = vpack.c.b16 %v2904, %v2899
  %v3810 = vpack.c.b16 %v2905, %v2900
  %v3811 = vpack.c.b16 %v2906, %v2901
  %v3812 = vpack.c.b16 %v2907, %v2902
  %v3813 = vpack.c.b16 %v2908, %v2903
  %v3814 = vpack.c.b16 %v2914, %v2909
  %v3815 = vpack.c.b16 %v2915, %v2910
  %v3816 = vpack.c.b16 %v2916, %v2911
  %v3817 = vpack.c.b16 %v2917, %v2912
  %v3818 = vpack.c.b16 %v2918, %v2913
  %v3819 = vpack.c.b16 %v2924, %v2919
  %v3820 = vpack.c.b16 %v2925, %v2920
  %v3821 = vpack.c.b16 %v2926, %v2921
  %v3822 = vpack.c.b16 %v2927, %v2922
  %v3823 = vpack.c.b16 %v2928, %v2923
  %v3824 = vpack.c.b16 %v2934, %v2929
  %v3825 = vpack.c.b16 %v2935, %v2930
  %v3826 = vpack.c.b16 %v2936, %v2931
  %v3827 = vpack.c.b16 %v2937, %v2932
  %v3828 = vpack.c.b16 %v2938, %v2933
  %v3829 = vpack.c.b16 %v2944, %v2939
  %v3830 = vpack.c.b16 %v2945, %v2940
  %v3831 = vpack.c.b16 %v2946, %v2941
  %v3832 = vpack.c.b16 %v2947, %v2942
  %v3833 = vpack.c.b16 %v2948, %v2943
  %v3834 = vpack.c.b16 %v2954, %v2949
  %v3835 = vpack.c.b16 %v2955, %v2950
  %v3836 = vpack.c.b16 %v2956, %v2951
  %v3837 = vpack.c.b16 %v2957, %v2952
  %v3838 = vpack.c.b16 %v2958, %v2953
  %v3839 = vpack.c.b16 %v2964, %v2959
  %v3840 = vpack.c.b16 %v2965, %v2960
  %v3841 = vpack.c.b16 %v2966, %v2961
  %v3842 = vpack.c.b16 %v2967, %v2962
  %v3843 = vpack.c.b16 %v2968, %v2963
  %v3844 = vpack.c.b16 %v2974, %v2969
  %v3845 = vpack.c.b16 %v2975, %v2970
  %v3846 = vpack.c.b16 %v2976, %v2971
  %v3847 = vpack.c.b16 %v2977, %v2972
  %v3848 = vpack.c.b16 %v2978, %v2973
  %v3849 = vpack.c.b16 %v2984, %v2979
  %v3850 = vpack.c.b16 %v2985, %v2980
  %v3851 = vpack.c.b16 %v2986, %v2981
  %v3852 = vpack.c.b16 %v2987, %v2982
  %v3853 = vpack.c.b16 %v2988, %v2983
  %v3854 = vpack.c.b16 %v2994, %v2989
  %v3855 = vpack.c.b16 %v2995, %v2990
  %v3856 = vpack.c.b16 %v2996, %v2991
  %v3857 = vpack.c.b16 %v2997, %v2992
  %v3858 = vpack.c.b16 %v2998, %v2993
  %v3859 = vpack.c.b16 %v3004, %v2999
  %v3860 = vpack.c.b16 %v3005, %v3000
  %v3861 = vpack.c.b16 %v3006, %v3001
  %v3862 = vpack.c.b16 %v3007, %v3002
  %v3863 = vpack.c.b16 %v3008, %v3003
  %v3864 = vpack.c.b16 %v3014, %v3009
  %v3865 = vpack.c.b16 %v3015, %v3010
  %v3866 = vpack.c.b16 %v3016, %v3011
  %v3867 = vpack.c.b16 %v3017, %v3012
  %v3868 = vpack.c.b16 %v3018, %v3013
  %v3869 = vpack.c.b16 %v3024, %v3019
  %v3870 = vpack.c.b16 %v3025, %v3020
  %v3871 = vpack.c.b16 %v3026, %v3021
  %v3872 = vpack.c.b16 %v3027, %v3022
  %v3873 = vpack.c.b16 %v3028, %v3023
  %v3874 = vpack.c.b16 %v3034, %v3029
  %v3875 = vpack.c.b16 %v3035, %v3030
  %v3876 = vpack.c.b16 %v3036, %v3031
  %v3877 = vpack.c.b16 %v3037, %v3032
  %v3878 = vpack.c.b16 %v3038, %v3033
  %v3879 = vpack.c.b16 %v3044, %v3039
  %v3880 = vpack.c.b16 %v3045, %v3040
  %v3881 = vpack.c.b16 %v3046, %v3041
  %v3882 = vpack.c.b16 %v3047, %v3042
  %v3883 = vpack.c.b16 %v3048, %v3043
  %v3884 = vpack.c.b16 %v3054, %v3049
  %v3885 = vpack.c.b16 %v3055, %v3050
  %v3886 = vpack.c.b16 %v3056, %v3051
  %v3887 = vpack.c.b16 %v3057, %v3052
  %v3888 = vpack.c.b16 %v3058, %v3053
  %v3889 = vpack.c.b16 %v3064, %v3059
  %v3890 = vpack.c.b16 %v3065, %v3060
  %v3891 = vpack.c.b16 %v3066, %v3061
  %v3892 = vpack.c.b16 %v3067, %v3062
  %v3893 = vpack.c.b16 %v3068, %v3063
  %v3894 = vpack.c.b16 %v3074, %v3069
  %v3895 = vpack.c.b16 %v3075, %v3070
  %v3896 = vpack.c.b16 %v3076, %v3071
  %v3897 = vpack.c.b16 %v3077, %v3072
  %v3898 = vpack.c.b16 %v3078, %v3073
  %v3899 = vpack.c.b16 %v3084, %v3079
  %v3900 = vpack.c.b16 %v3085, %v3080
  %v3901 = vpack.c.b16 %v3086, %v3081
  %v3902 = vpack.c.b16 %v3087, %v3082
  %v3903 = vpack.c.b16 %v3088, %v3083
  %v3904 = vpack.c.b16 %v3094, %v3089
  %v3905 = vpack.c.b16 %v3095, %v3090
  %v3906 = vpack.c.b16 %v3096, %v3091
  %v3907 = vpack.c.b16 %v3097, %v3092
  %v3908 = vpack.c.b16 %v3098, %v3093
  %v3909 = vpack.c.b16 %v3104, %v3099
  %v3910 = vpack.c.b16 %v3105, %v3100
  %v3911 = vpack.c.b16 %v3106, %v3101
  %v3912 = vpack.c.b16 %v3107, %v3102
  %v3913 = vpack.c.b16 %v3108, %v3103
  %v3914 = vpack.c.b16 %v3114, %v3109
  %v3915 = vpack.c.b16 %v3115, %v3110
  %v3916 = vpack.c.b16 %v3116, %v3111
  %v3917 = vpack.c.b16 %v3117, %v3112
  %v3918 = vpack.c.b16 %v3118, %v3113
  %v3919 = vpack.c.b16 %v3124, %v3119
  %v3920 = vpack.c.b16 %v3125, %v3120
  %v3921 = vpack.c.b16 %v3126, %v3121
  %v3922 = vpack.c.b16 %v3127, %v3122
  %v3923 = vpack.c.b16 %v3128, %v3123
  %v3924 = vpack.c.b16 %v3134, %v3129
  %v3925 = vpack.c.b16 %v3135, %v3130
  %v3926 = vpack.c.b16 %v3136, %v3131
  %v3927 = vpack.c.b16 %v3137, %v3132
  %v3928 = vpack.c.b16 %v3138, %v3133
  %v3929 = vpack.c.b16 %v3144, %v3139
  %v3930 = vpack.c.b16 %v3145, %v3140
  %v3931 = vpack.c.b16 %v3146, %v3141
  %v3932 = vpack.c.b16 %v3147, %v3142
  %v3933 = vpack.c.b16 %v3148, %v3143
  %v3934 = vpack.c.b16 %v3154, %v3149
  %v3935 = vpack.c.b16 %v3155, %v3150
  %v3936 = vpack.c.b16 %v3156, %v3151
  %v3937 = vpack.c.b16 %v3157, %v3152
  %v3938 = vpack.c.b16 %v3158, %v3153
  %v3939 = vpack.c.b16 %v3164, %v3159
  %v3940 = vpack.c.b16 %v3165, %v3160
  %v3941 = vpack.c.b16 %v3166, %v3161
  %v3942 = vpack.c.b16 %v3167, %v3162
  %v3943 = vpack.c.b16 %v3168, %v3163
  %v3944 = vpack.c.b16 %v3174, %v3169
  %v3945 = vpack.c.b16 %v3175, %v3170
  %v3946 = vpack.c.b16 %v3176, %v3171
  %v3947 = vpack.c.b16 %v3177, %v3172
  %v3948 = vpack.c.b16 %v3178, %v3173
  %v3949 = vpack.c.b16 %v3184, %v3179
  %v3950 = vpack.c.b16 %v3185, %v3180
  %v3951 = vpack.c.b16 %v3186, %v3181
  %v3952 = vpack.c.b16 %v3187, %v3182
  %v3953 = vpack.c.b16 %v3188, %v3183
  %v3954 = vpack.c.b16 %v3194, %v3189
  %v3955 = vpack.c.b16 %v3195, %v3190
  %v3956 = vpack.c.b16 %v3196, %v3191
  %v3957 = vpack.c.b16 %v3197, %v3192
  %v3958 = vpack.c.b16 %v3198, %v3193
  %v3959 = vpack.c.b16 %v3204, %v3199
  %v3960 = vpack.c.b16 %v3205, %v3200
  %v3961 = vpack.c.b16 %v3206, %v3201
  %v3962 = vpack.c.b16 %v3207, %v3202
  %v3963 = vpack.c.b16 %v3208, %v3203
  %v3964 = vpack.c.b16 %v3214, %v3209
  %v3965 = vpack.c.b16 %v3215, %v3210
  %v3966 = vpack.c.b16 %v3216, %v3211
  %v3967 = vpack.c.b16 %v3217, %v3212
  %v3968 = vpack.c.b16 %v3218, %v3213
  %v3969 = vpack.c.b16 %v3224, %v3219
  %v3970 = vpack.c.b16 %v3225, %v3220
  %v3971 = vpack.c.b16 %v3226, %v3221
  %v3972 = vpack.c.b16 %v3227, %v3222
  %v3973 = vpack.c.b16 %v3228, %v3223
  %v3974 = vpack.c.b16 %v3234, %v3229
  %v3975 = vpack.c.b16 %v3235, %v3230
  %v3976 = vpack.c.b16 %v3236, %v3231
  %v3977 = vpack.c.b16 %v3237, %v3232
  %v3978 = vpack.c.b16 %v3238, %v3233
  %v3979 = vpack.c.b16 %v3244, %v3239
  %v3980 = vpack.c.b16 %v3245, %v3240
  %v3981 = vpack.c.b16 %v3246, %v3241
  %v3982 = vpack.c.b16 %v3247, %v3242
  %v3983 = vpack.c.b16 %v3248, %v3243
  %v3984 = vpack.c.b16 %v3254, %v3249
  %v3985 = vpack.c.b16 %v3255, %v3250
  %v3986 = vpack.c.b16 %v3256, %v3251
  %v3987 = vpack.c.b16 %v3257, %v3252
  %v3988 = vpack.c.b16 %v3258, %v3253
  %v3989 = vpack.c.b16 %v3264, %v3259
  %v3990 = vpack.c.b16 %v3265, %v3260
  %v3991 = vpack.c.b16 %v3266, %v3261
  %v3992 = vpack.c.b16 %v3267, %v3262
  %v3993 = vpack.c.b16 %v3268, %v3263
  %v3994 = vpack.c.b16 %v3274, %v3269
  %v3995 = vpack.c.b16 %v3275, %v3270
  %v3996 = vpack.c.b16 %v3276, %v3271
  %v3997 = vpack.c.b16 %v3277, %v3272
  %v3998 = vpack.c.b16 %v3278, %v3273
  %4719 = vmatpush.bf16.msra.mxu0 %v3314
  %4720 = vmatpush.bf16.msra.mxu0 %v3309
  %4721 = vmatpush.bf16.msra.mxu0 %v3304
  %4722 = vmatpush.bf16.msra.mxu0 %v3299
  %4723 = vmatpush.bf16.msra.mxu0 %v3294
  %4724 = vmatpush.bf16.msra.mxu0 %v3289
  %4725 = vmatpush.bf16.msra.mxu0 %v3284
  %4726 = vmatpush.bf16.msra.mxu0 %v3279
  %4727 = vmatmul.bf16.gmra.mxu0 %v939
  %v4728 = vpop.f32.mrf.mxu0
  %v4729 = vadd.f32 %v902, %v4728
  %v4730 = vpop.f32.mrf.mxu0
  %4731 = vdwg.mxu0
  %4732 = vmatpush.bf16.msra.mxu0 %v3354
  %4733 = vmatpush.bf16.msra.mxu0 %v3349
  %4734 = vmatpush.bf16.msra.mxu0 %v3344
  %4735 = vmatpush.bf16.msra.mxu0 %v3339
  %4736 = vmatpush.bf16.msra.mxu0 %v3334
  %4737 = vmatpush.bf16.msra.mxu0 %v3329
  %4738 = vmatpush.bf16.msra.mxu0 %v3324
  %4739 = vmatpush.bf16.msra.mxu0 %v3319
  %4740 = vmatmul.bf16.gmra.mxu0 %v940
  %v4741 = vpop.f32.mrf.mxu0
  %v4742 = vadd.f32 %v4729, %v4741
  %v4743 = vpop.f32.mrf.mxu0
  %4744 = vdwg.mxu0
  %4745 = vmatpush.bf16.msra.mxu0 %v3394
  %4746 = vmatpush.bf16.msra.mxu0 %v3389
  %4747 = vmatpush.bf16.msra.mxu0 %v3384
  %4748 = vmatpush.bf16.msra.mxu0 %v3379
  %4749 = vmatpush.bf16.msra.mxu0 %v3374
  %4750 = vmatpush.bf16.msra.mxu0 %v3369
  %4751 = vmatpush.bf16.msra.mxu0 %v3364
  %4752 = vmatpush.bf16.msra.mxu0 %v3359
  %4753 = vmatmul.bf16.gmra.mxu0 %v941
  %v4754 = vpop.f32.mrf.mxu0
  %v4755 = vadd.f32 %v4742, %v4754
  %v4756 = vpop.f32.mrf.mxu0
  %4757 = vdwg.mxu0
  %4758 = vmatpush.bf16.msra.mxu0 %v3434
  %4759 = vmatpush.bf16.msra.mxu0 %v3429
  %4760 = vmatpush.bf16.msra.mxu0 %v3424
  %4761 = vmatpush.bf16.msra.mxu0 %v3419
  %4762 = vmatpush.bf16.msra.mxu0 %v3414
  %4763 = vmatpush.bf16.msra.mxu0 %v3409
  %4764 = vmatpush.bf16.msra.mxu0 %v3404
  %4765 = vmatpush.bf16.msra.mxu0 %v3399
  %4766 = vmatmul.bf16.gmra.mxu0 %v942
  %v4767 = vpop.f32.mrf.mxu0
  %v4768 = vadd.f32 %v4755, %v4767
  %v4769 = vpop.f32.mrf.mxu0
  %4770 = vdwg.mxu0
  %4771 = vmatpush.bf16.msra.mxu0 %v3474
  %4772 = vmatpush.bf16.msra.mxu0 %v3469
  %4773 = vmatpush.bf16.msra.mxu0 %v3464
  %4774 = vmatpush.bf16.msra.mxu0 %v3459
  %4775 = vmatpush.bf16.msra.mxu0 %v3454
  %4776 = vmatpush.bf16.msra.mxu0 %v3449
  %4777 = vmatpush.bf16.msra.mxu0 %v3444
  %4778 = vmatpush.bf16.msra.mxu0 %v3439
  %4779 = vmatmul.bf16.gmra.mxu0 %v943
  %v4780 = vpop.f32.mrf.mxu0
  %v4781 = vadd.f32 %v4768, %v4780
  %v4782 = vpop.f32.mrf.mxu0
  %4783 = vdwg.mxu0
  %4784 = vmatpush.bf16.msra.mxu0 %v3514
  %4785 = vmatpush.bf16.msra.mxu0 %v3509
  %4786 = vmatpush.bf16.msra.mxu0 %v3504
  %4787 = vmatpush.bf16.msra.mxu0 %v3499
  %4788 = vmatpush.bf16.msra.mxu0 %v3494
  %4789 = vmatpush.bf16.msra.mxu0 %v3489
  %4790 = vmatpush.bf16.msra.mxu0 %v3484
  %4791 = vmatpush.bf16.msra.mxu0 %v3479
  %4792 = vmatmul.bf16.gmra.mxu0 %v944
  %v4793 = vpop.f32.mrf.mxu0
  %v4794 = vadd.f32 %v4781, %v4793
  %v4795 = vpop.f32.mrf.mxu0
  %4796 = vdwg.mxu0
  %4797 = vmatpush.bf16.msra.mxu0 %v3554
  %4798 = vmatpush.bf16.msra.mxu0 %v3549
  %4799 = vmatpush.bf16.msra.mxu0 %v3544
  %4800 = vmatpush.bf16.msra.mxu0 %v3539
  %4801 = vmatpush.bf16.msra.mxu0 %v3534
  %4802 = vmatpush.bf16.msra.mxu0 %v3529
  %4803 = vmatpush.bf16.msra.mxu0 %v3524
  %4804 = vmatpush.bf16.msra.mxu0 %v3519
  %4805 = vmatmul.bf16.gmra.mxu0 %v945
  %v4806 = vpop.f32.mrf.mxu0
  %v4807 = vadd.f32 %v4794, %v4806
  %v4808 = vpop.f32.mrf.mxu0
  %4809 = vdwg.mxu0
  %4810 = vmatpush.bf16.msra.mxu0 %v3594
  %4811 = vmatpush.bf16.msra.mxu0 %v3589
  %4812 = vmatpush.bf16.msra.mxu0 %v3584
  %4813 = vmatpush.bf16.msra.mxu0 %v3579
  %4814 = vmatpush.bf16.msra.mxu0 %v3574
  %4815 = vmatpush.bf16.msra.mxu0 %v3569
  %4816 = vmatpush.bf16.msra.mxu0 %v3564
  %4817 = vmatpush.bf16.msra.mxu0 %v3559
  %4818 = vmatmul.bf16.gmra.mxu0 %v946
  %v4819 = vpop.f32.mrf.mxu0
  %v4820 = vadd.f32 %v4807, %v4819
  %v4821 = vpop.f32.mrf.mxu0
  %4822 = vdwg.mxu0
  %4823 = vmatpush.bf16.msra.mxu0 %v3634
  %4824 = vmatpush.bf16.msra.mxu0 %v3629
  %4825 = vmatpush.bf16.msra.mxu0 %v3624
  %4826 = vmatpush.bf16.msra.mxu0 %v3619
  %4827 = vmatpush.bf16.msra.mxu0 %v3614
  %4828 = vmatpush.bf16.msra.mxu0 %v3609
  %4829 = vmatpush.bf16.msra.mxu0 %v3604
  %4830 = vmatpush.bf16.msra.mxu0 %v3599
  %4831 = vmatmul.bf16.gmra.mxu0 %v947
  %v4832 = vpop.f32.mrf.mxu0
  %v4833 = vadd.f32 %v4820, %v4832
  %v4834 = vpop.f32.mrf.mxu0
  %4835 = vdwg.mxu0
  %4836 = vmatpush.bf16.msra.mxu0 %v3674
  %4837 = vmatpush.bf16.msra.mxu0 %v3669
  %4838 = vmatpush.bf16.msra.mxu0 %v3664
  %4839 = vmatpush.bf16.msra.mxu0 %v3659
  %4840 = vmatpush.bf16.msra.mxu0 %v3654
  %4841 = vmatpush.bf16.msra.mxu0 %v3649
  %4842 = vmatpush.bf16.msra.mxu0 %v3644
  %4843 = vmatpush.bf16.msra.mxu0 %v3639
  %4844 = vmatmul.bf16.gmra.mxu0 %v948
  %v4845 = vpop.f32.mrf.mxu0
  %v4846 = vadd.f32 %v4833, %v4845
  %v4847 = vpop.f32.mrf.mxu0
  %4848 = vdwg.mxu0
  %4849 = vmatpush.bf16.msra.mxu0 %v3714
  %4850 = vmatpush.bf16.msra.mxu0 %v3709
  %4851 = vmatpush.bf16.msra.mxu0 %v3704
  %4852 = vmatpush.bf16.msra.mxu0 %v3699
  %4853 = vmatpush.bf16.msra.mxu0 %v3694
  %4854 = vmatpush.bf16.msra.mxu0 %v3689
  %4855 = vmatpush.bf16.msra.mxu0 %v3684
  %4856 = vmatpush.bf16.msra.mxu0 %v3679
  %4857 = vmatmul.bf16.gmra.mxu0 %v949
  %v4858 = vpop.f32.mrf.mxu0
  %v4859 = vadd.f32 %v4846, %v4858
  %v4860 = vpop.f32.mrf.mxu0
  %4861 = vdwg.mxu0
  %4862 = vmatpush.bf16.msra.mxu0 %v3754
  %4863 = vmatpush.bf16.msra.mxu0 %v3749
  %4864 = vmatpush.bf16.msra.mxu0 %v3744
  %4865 = vmatpush.bf16.msra.mxu0 %v3739
  %4866 = vmatpush.bf16.msra.mxu0 %v3734
  %4867 = vmatpush.bf16.msra.mxu0 %v3729
  %4868 = vmatpush.bf16.msra.mxu0 %v3724
  %4869 = vmatpush.bf16.msra.mxu0 %v3719
  %4870 = vmatmul.bf16.gmra.mxu0 %v950
  %v4871 = vpop.f32.mrf.mxu0
  %v4872 = vadd.f32 %v4859, %v4871
  %v4873 = vpop.f32.mrf.mxu0
  %4874 = vdwg.mxu0
  %4875 = vmatpush.bf16.msra.mxu0 %v3794
  %4876 = vmatpush.bf16.msra.mxu0 %v3789
  %4877 = vmatpush.bf16.msra.mxu0 %v3784
  %4878 = vmatpush.bf16.msra.mxu0 %v3779
  %4879 = vmatpush.bf16.msra.mxu0 %v3774
  %4880 = vmatpush.bf16.msra.mxu0 %v3769
  %4881 = vmatpush.bf16.msra.mxu0 %v3764
  %4882 = vmatpush.bf16.msra.mxu0 %v3759
  %4883 = vmatmul.bf16.gmra.mxu0 %v951
  %v4884 = vpop.f32.mrf.mxu0
  %v4885 = vadd.f32 %v4872, %v4884
  %v4886 = vpop.f32.mrf.mxu0
  %4887 = vdwg.mxu0
  %4888 = vmatpush.bf16.msra.mxu0 %v3834
  %4889 = vmatpush.bf16.msra.mxu0 %v3829
  %4890 = vmatpush.bf16.msra.mxu0 %v3824
  %4891 = vmatpush.bf16.msra.mxu0 %v3819
  %4892 = vmatpush.bf16.msra.mxu0 %v3814
  %4893 = vmatpush.bf16.msra.mxu0 %v3809
  %4894 = vmatpush.bf16.msra.mxu0 %v3804
  %4895 = vmatpush.bf16.msra.mxu0 %v3799
  %4896 = vmatmul.bf16.gmra.mxu0 %v952
  %v4897 = vpop.f32.mrf.mxu0
  %v4898 = vadd.f32 %v4885, %v4897
  %v4899 = vpop.f32.mrf.mxu0
  %4900 = vdwg.mxu0
  %4901 = vmatpush.bf16.msra.mxu0 %v3874
  %4902 = vmatpush.bf16.msra.mxu0 %v3869
  %4903 = vmatpush.bf16.msra.mxu0 %v3864
  %4904 = vmatpush.bf16.msra.mxu0 %v3859
  %4905 = vmatpush.bf16.msra.mxu0 %v3854
  %4906 = vmatpush.bf16.msra.mxu0 %v3849
  %4907 = vmatpush.bf16.msra.mxu0 %v3844
  %4908 = vmatpush.bf16.msra.mxu0 %v3839
  %4909 = vmatmul.bf16.gmra.mxu0 %v953
  %v4910 = vpop.f32.mrf.mxu0
  %v4911 = vadd.f32 %v4898, %v4910
  %v4912 = vpop.f32.mrf.mxu0
  %4913 = vdwg.mxu0
  %4914 = vmatpush.bf16.msra.mxu0 %v3914
  %4915 = vmatpush.bf16.msra.mxu0 %v3909
  %4916 = vmatpush.bf16.msra.mxu0 %v3904
  %4917 = vmatpush.bf16.msra.mxu0 %v3899
  %4918 = vmatpush.bf16.msra.mxu0 %v3894
  %4919 = vmatpush.bf16.msra.mxu0 %v3889
  %4920 = vmatpush.bf16.msra.mxu0 %v3884
  %4921 = vmatpush.bf16.msra.mxu0 %v3879
  %4922 = vmatmul.bf16.gmra.mxu0 %v954
  %v4923 = vpop.f32.mrf.mxu0
  %v4924 = vadd.f32 %v4911, %v4923
  %v4925 = vpop.f32.mrf.mxu0
  %4926 = vdwg.mxu0
  %4927 = vmatpush.bf16.msra.mxu0 %v3954
  %4928 = vmatpush.bf16.msra.mxu0 %v3949
  %4929 = vmatpush.bf16.msra.mxu0 %v3944
  %4930 = vmatpush.bf16.msra.mxu0 %v3939
  %4931 = vmatpush.bf16.msra.mxu0 %v3934
  %4932 = vmatpush.bf16.msra.mxu0 %v3929
  %4933 = vmatpush.bf16.msra.mxu0 %v3924
  %4934 = vmatpush.bf16.msra.mxu0 %v3919
  %4935 = vmatmul.bf16.gmra.mxu0 %v955
  %v4936 = vpop.f32.mrf.mxu0
  %v4937 = vadd.f32 %v4924, %v4936
  %v4938 = vpop.f32.mrf.mxu0
  %4939 = vdwg.mxu0
  %4940 = vmatpush.bf16.msra.mxu0 %v3994
  %4941 = vmatpush.bf16.msra.mxu0 %v3989
  %4942 = vmatpush.bf16.msra.mxu0 %v3984
  %4943 = vmatpush.bf16.msra.mxu0 %v3979
  %4944 = vmatpush.bf16.msra.mxu0 %v3974
  %4945 = vmatpush.bf16.msra.mxu0 %v3969
  %4946 = vmatpush.bf16.msra.mxu0 %v3964
  %4947 = vmatpush.bf16.msra.mxu0 %v3959
  %4948 = vmatmul.bf16.gmra.mxu0 %v956
  %v4949 = vpop.f32.mrf.mxu0
  %v4950 = vadd.f32 %v4937, %v4949
  %v4951 = vpop.f32.mrf.mxu0
  %4952 = vdwg.mxu0
  %4953 = vmatpush.bf16.msra.mxu0 %v3315
  %4954 = vmatpush.bf16.msra.mxu0 %v3310
  %4955 = vmatpush.bf16.msra.mxu0 %v3305
  %4956 = vmatpush.bf16.msra.mxu0 %v3300
  %4957 = vmatpush.bf16.msra.mxu0 %v3295
  %4958 = vmatpush.bf16.msra.mxu0 %v3290
  %4959 = vmatpush.bf16.msra.mxu0 %v3285
  %4960 = vmatpush.bf16.msra.mxu0 %v3280
  %4961 = vmatmul.bf16.gmra.mxu0 %v939
  %v4962 = vpop.f32.mrf.mxu0
  %v4963 = vadd.f32 %v903, %v4962
  %v4964 = vpop.f32.mrf.mxu0
  %4965 = vdwg.mxu0
  %4966 = vmatpush.bf16.msra.mxu0 %v3355
  %4967 = vmatpush.bf16.msra.mxu0 %v3350
  %4968 = vmatpush.bf16.msra.mxu0 %v3345
  %4969 = vmatpush.bf16.msra.mxu0 %v3340
  %4970 = vmatpush.bf16.msra.mxu0 %v3335
  %4971 = vmatpush.bf16.msra.mxu0 %v3330
  %4972 = vmatpush.bf16.msra.mxu0 %v3325
  %4973 = vmatpush.bf16.msra.mxu0 %v3320
  %4974 = vmatmul.bf16.gmra.mxu0 %v940
  %v4975 = vpop.f32.mrf.mxu0
  %v4976 = vadd.f32 %v4963, %v4975
  %v4977 = vpop.f32.mrf.mxu0
  %4978 = vdwg.mxu0
  %4979 = vmatpush.bf16.msra.mxu0 %v3395
  %4980 = vmatpush.bf16.msra.mxu0 %v3390
  %4981 = vmatpush.bf16.msra.mxu0 %v3385
  %4982 = vmatpush.bf16.msra.mxu0 %v3380
  %4983 = vmatpush.bf16.msra.mxu0 %v3375
  %4984 = vmatpush.bf16.msra.mxu0 %v3370
  %4985 = vmatpush.bf16.msra.mxu0 %v3365
  %4986 = vmatpush.bf16.msra.mxu0 %v3360
  %4987 = vmatmul.bf16.gmra.mxu0 %v941
  %v4988 = vpop.f32.mrf.mxu0
  %v4989 = vadd.f32 %v4976, %v4988
  %v4990 = vpop.f32.mrf.mxu0
  %4991 = vdwg.mxu0
  %4992 = vmatpush.bf16.msra.mxu0 %v3435
  %4993 = vmatpush.bf16.msra.mxu0 %v3430
  %4994 = vmatpush.bf16.msra.mxu0 %v3425
  %4995 = vmatpush.bf16.msra.mxu0 %v3420
  %4996 = vmatpush.bf16.msra.mxu0 %v3415
  %4997 = vmatpush.bf16.msra.mxu0 %v3410
  %4998 = vmatpush.bf16.msra.mxu0 %v3405
  %4999 = vmatpush.bf16.msra.mxu0 %v3400
  %5000 = vmatmul.bf16.gmra.mxu0 %v942
  %v5001 = vpop.f32.mrf.mxu0
  %v5002 = vadd.f32 %v4989, %v5001
  %v5003 = vpop.f32.mrf.mxu0
  %5004 = vdwg.mxu0
  %5005 = vmatpush.bf16.msra.mxu0 %v3475
  %5006 = vmatpush.bf16.msra.mxu0 %v3470
  %5007 = vmatpush.bf16.msra.mxu0 %v3465
  %5008 = vmatpush.bf16.msra.mxu0 %v3460
  %5009 = vmatpush.bf16.msra.mxu0 %v3455
  %5010 = vmatpush.bf16.msra.mxu0 %v3450
  %5011 = vmatpush.bf16.msra.mxu0 %v3445
  %5012 = vmatpush.bf16.msra.mxu0 %v3440
  %5013 = vmatmul.bf16.gmra.mxu0 %v943
  %v5014 = vpop.f32.mrf.mxu0
  %v5015 = vadd.f32 %v5002, %v5014
  %v5016 = vpop.f32.mrf.mxu0
  %5017 = vdwg.mxu0
  %5018 = vmatpush.bf16.msra.mxu0 %v3515
  %5019 = vmatpush.bf16.msra.mxu0 %v3510
  %5020 = vmatpush.bf16.msra.mxu0 %v3505
  %5021 = vmatpush.bf16.msra.mxu0 %v3500
  %5022 = vmatpush.bf16.msra.mxu0 %v3495
  %5023 = vmatpush.bf16.msra.mxu0 %v3490
  %5024 = vmatpush.bf16.msra.mxu0 %v3485
  %5025 = vmatpush.bf16.msra.mxu0 %v3480
  %5026 = vmatmul.bf16.gmra.mxu0 %v944
  %v5027 = vpop.f32.mrf.mxu0
  %v5028 = vadd.f32 %v5015, %v5027
  %v5029 = vpop.f32.mrf.mxu0
  %5030 = vdwg.mxu0
  %5031 = vmatpush.bf16.msra.mxu0 %v3555
  %5032 = vmatpush.bf16.msra.mxu0 %v3550
  %5033 = vmatpush.bf16.msra.mxu0 %v3545
  %5034 = vmatpush.bf16.msra.mxu0 %v3540
  %5035 = vmatpush.bf16.msra.mxu0 %v3535
  %5036 = vmatpush.bf16.msra.mxu0 %v3530
  %5037 = vmatpush.bf16.msra.mxu0 %v3525
  %5038 = vmatpush.bf16.msra.mxu0 %v3520
  %5039 = vmatmul.bf16.gmra.mxu0 %v945
  %v5040 = vpop.f32.mrf.mxu0
  %v5041 = vadd.f32 %v5028, %v5040
  %v5042 = vpop.f32.mrf.mxu0
  %5043 = vdwg.mxu0
  %5044 = vmatpush.bf16.msra.mxu0 %v3595
  %5045 = vmatpush.bf16.msra.mxu0 %v3590
  %5046 = vmatpush.bf16.msra.mxu0 %v3585
  %5047 = vmatpush.bf16.msra.mxu0 %v3580
  %5048 = vmatpush.bf16.msra.mxu0 %v3575
  %5049 = vmatpush.bf16.msra.mxu0 %v3570
  %5050 = vmatpush.bf16.msra.mxu0 %v3565
  %5051 = vmatpush.bf16.msra.mxu0 %v3560
  %5052 = vmatmul.bf16.gmra.mxu0 %v946
  %v5053 = vpop.f32.mrf.mxu0
  %v5054 = vadd.f32 %v5041, %v5053
  %v5055 = vpop.f32.mrf.mxu0
  %5056 = vdwg.mxu0
  %5057 = vmatpush.bf16.msra.mxu0 %v3635
  %5058 = vmatpush.bf16.msra.mxu0 %v3630
  %5059 = vmatpush.bf16.msra.mxu0 %v3625
  %5060 = vmatpush.bf16.msra.mxu0 %v3620
  %5061 = vmatpush.bf16.msra.mxu0 %v3615
  %5062 = vmatpush.bf16.msra.mxu0 %v3610
  %5063 = vmatpush.bf16.msra.mxu0 %v3605
  %5064 = vmatpush.bf16.msra.mxu0 %v3600
  %5065 = vmatmul.bf16.gmra.mxu0 %v947
  %v5066 = vpop.f32.mrf.mxu0
  %v5067 = vadd.f32 %v5054, %v5066
  %v5068 = vpop.f32.mrf.mxu0
  %5069 = vdwg.mxu0
  %5070 = vmatpush.bf16.msra.mxu0 %v3675
  %5071 = vmatpush.bf16.msra.mxu0 %v3670
  %5072 = vmatpush.bf16.msra.mxu0 %v3665
  %5073 = vmatpush.bf16.msra.mxu0 %v3660
  %5074 = vmatpush.bf16.msra.mxu0 %v3655
  %5075 = vmatpush.bf16.msra.mxu0 %v3650
  %5076 = vmatpush.bf16.msra.mxu0 %v3645
  %5077 = vmatpush.bf16.msra.mxu0 %v3640
  %5078 = vmatmul.bf16.gmra.mxu0 %v948
  %v5079 = vpop.f32.mrf.mxu0
  %v5080 = vadd.f32 %v5067, %v5079
  %v5081 = vpop.f32.mrf.mxu0
  %5082 = vdwg.mxu0
  %5083 = vmatpush.bf16.msra.mxu0 %v3715
  %5084 = vmatpush.bf16.msra.mxu0 %v3710
  %5085 = vmatpush.bf16.msra.mxu0 %v3705
  %5086 = vmatpush.bf16.msra.mxu0 %v3700
  %5087 = vmatpush.bf16.msra.mxu0 %v3695
  %5088 = vmatpush.bf16.msra.mxu0 %v3690
  %5089 = vmatpush.bf16.msra.mxu0 %v3685
  %5090 = vmatpush.bf16.msra.mxu0 %v3680
  %5091 = vmatmul.bf16.gmra.mxu0 %v949
  %v5092 = vpop.f32.mrf.mxu0
  %v5093 = vadd.f32 %v5080, %v5092
  %v5094 = vpop.f32.mrf.mxu0
  %5095 = vdwg.mxu0
  %5096 = vmatpush.bf16.msra.mxu0 %v3755
  %5097 = vmatpush.bf16.msra.mxu0 %v3750
  %5098 = vmatpush.bf16.msra.mxu0 %v3745
  %5099 = vmatpush.bf16.msra.mxu0 %v3740
  %5100 = vmatpush.bf16.msra.mxu0 %v3735
  %5101 = vmatpush.bf16.msra.mxu0 %v3730
  %5102 = vmatpush.bf16.msra.mxu0 %v3725
  %5103 = vmatpush.bf16.msra.mxu0 %v3720
  %5104 = vmatmul.bf16.gmra.mxu0 %v950
  %v5105 = vpop.f32.mrf.mxu0
  %v5106 = vadd.f32 %v5093, %v5105
  %v5107 = vpop.f32.mrf.mxu0
  %5108 = vdwg.mxu0
  %5109 = vmatpush.bf16.msra.mxu0 %v3795
  %5110 = vmatpush.bf16.msra.mxu0 %v3790
  %5111 = vmatpush.bf16.msra.mxu0 %v3785
  %5112 = vmatpush.bf16.msra.mxu0 %v3780
  %5113 = vmatpush.bf16.msra.mxu0 %v3775
  %5114 = vmatpush.bf16.msra.mxu0 %v3770
  %5115 = vmatpush.bf16.msra.mxu0 %v3765
  %5116 = vmatpush.bf16.msra.mxu0 %v3760
  %5117 = vmatmul.bf16.gmra.mxu0 %v951
  %v5118 = vpop.f32.mrf.mxu0
  %v5119 = vadd.f32 %v5106, %v5118
  %v5120 = vpop.f32.mrf.mxu0
  %5121 = vdwg.mxu0
  %5122 = vmatpush.bf16.msra.mxu0 %v3835
  %5123 = vmatpush.bf16.msra.mxu0 %v3830
  %5124 = vmatpush.bf16.msra.mxu0 %v3825
  %5125 = vmatpush.bf16.msra.mxu0 %v3820
  %5126 = vmatpush.bf16.msra.mxu0 %v3815
  %5127 = vmatpush.bf16.msra.mxu0 %v3810
  %5128 = vmatpush.bf16.msra.mxu0 %v3805
  %5129 = vmatpush.bf16.msra.mxu0 %v3800
  %5130 = vmatmul.bf16.gmra.mxu0 %v952
  %v5131 = vpop.f32.mrf.mxu0
  %v5132 = vadd.f32 %v5119, %v5131
  %v5133 = vpop.f32.mrf.mxu0
  %5134 = vdwg.mxu0
  %5135 = vmatpush.bf16.msra.mxu0 %v3875
  %5136 = vmatpush.bf16.msra.mxu0 %v3870
  %5137 = vmatpush.bf16.msra.mxu0 %v3865
  %5138 = vmatpush.bf16.msra.mxu0 %v3860
  %5139 = vmatpush.bf16.msra.mxu0 %v3855
  %5140 = vmatpush.bf16.msra.mxu0 %v3850
  %5141 = vmatpush.bf16.msra.mxu0 %v3845
  %5142 = vmatpush.bf16.msra.mxu0 %v3840
  %5143 = vmatmul.bf16.gmra.mxu0 %v953
  %v5144 = vpop.f32.mrf.mxu0
  %v5145 = vadd.f32 %v5132, %v5144
  %v5146 = vpop.f32.mrf.mxu0
  %5147 = vdwg.mxu0
  %5148 = vmatpush.bf16.msra.mxu0 %v3915
  %5149 = vmatpush.bf16.msra.mxu0 %v3910
  %5150 = vmatpush.bf16.msra.mxu0 %v3905
  %5151 = vmatpush.bf16.msra.mxu0 %v3900
  %5152 = vmatpush.bf16.msra.mxu0 %v3895
  %5153 = vmatpush.bf16.msra.mxu0 %v3890
  %5154 = vmatpush.bf16.msra.mxu0 %v3885
  %5155 = vmatpush.bf16.msra.mxu0 %v3880
  %5156 = vmatmul.bf16.gmra.mxu0 %v954
  %v5157 = vpop.f32.mrf.mxu0
  %v5158 = vadd.f32 %v5145, %v5157
  %v5159 = vpop.f32.mrf.mxu0
  %5160 = vdwg.mxu0
  %5161 = vmatpush.bf16.msra.mxu0 %v3955
  %5162 = vmatpush.bf16.msra.mxu0 %v3950
  %5163 = vmatpush.bf16.msra.mxu0 %v3945
  %5164 = vmatpush.bf16.msra.mxu0 %v3940
  %5165 = vmatpush.bf16.msra.mxu0 %v3935
  %5166 = vmatpush.bf16.msra.mxu0 %v3930
  %5167 = vmatpush.bf16.msra.mxu0 %v3925
  %5168 = vmatpush.bf16.msra.mxu0 %v3920
  %5169 = vmatmul.bf16.gmra.mxu0 %v955
  %v5170 = vpop.f32.mrf.mxu0
  %v5171 = vadd.f32 %v5158, %v5170
  %v5172 = vpop.f32.mrf.mxu0
  %5173 = vdwg.mxu0
  %5174 = vmatpush.bf16.msra.mxu0 %v3995
  %5175 = vmatpush.bf16.msra.mxu0 %v3990
  %5176 = vmatpush.bf16.msra.mxu0 %v3985
  %5177 = vmatpush.bf16.msra.mxu0 %v3980
  %5178 = vmatpush.bf16.msra.mxu0 %v3975
  %5179 = vmatpush.bf16.msra.mxu0 %v3970
  %5180 = vmatpush.bf16.msra.mxu0 %v3965
  %5181 = vmatpush.bf16.msra.mxu0 %v3960
  %5182 = vmatmul.bf16.gmra.mxu0 %v956
  %v5183 = vpop.f32.mrf.mxu0
  %v5184 = vadd.f32 %v5171, %v5183
  %v5185 = vpop.f32.mrf.mxu0
  %5186 = vdwg.mxu0
  %5187 = vmatpush.bf16.msra.mxu0 %v3316
  %5188 = vmatpush.bf16.msra.mxu0 %v3311
  %5189 = vmatpush.bf16.msra.mxu0 %v3306
  %5190 = vmatpush.bf16.msra.mxu0 %v3301
  %5191 = vmatpush.bf16.msra.mxu0 %v3296
  %5192 = vmatpush.bf16.msra.mxu0 %v3291
  %5193 = vmatpush.bf16.msra.mxu0 %v3286
  %5194 = vmatpush.bf16.msra.mxu0 %v3281
  %5195 = vmatmul.bf16.gmra.mxu0 %v939
  %v5196 = vpop.f32.mrf.mxu0
  %v5197 = vadd.f32 %v904, %v5196
  %v5198 = vpop.f32.mrf.mxu0
  %5199 = vdwg.mxu0
  %5200 = vmatpush.bf16.msra.mxu0 %v3356
  %5201 = vmatpush.bf16.msra.mxu0 %v3351
  %5202 = vmatpush.bf16.msra.mxu0 %v3346
  %5203 = vmatpush.bf16.msra.mxu0 %v3341
  %5204 = vmatpush.bf16.msra.mxu0 %v3336
  %5205 = vmatpush.bf16.msra.mxu0 %v3331
  %5206 = vmatpush.bf16.msra.mxu0 %v3326
  %5207 = vmatpush.bf16.msra.mxu0 %v3321
  %5208 = vmatmul.bf16.gmra.mxu0 %v940
  %v5209 = vpop.f32.mrf.mxu0
  %v5210 = vadd.f32 %v5197, %v5209
  %v5211 = vpop.f32.mrf.mxu0
  %5212 = vdwg.mxu0
  %5213 = vmatpush.bf16.msra.mxu0 %v3396
  %5214 = vmatpush.bf16.msra.mxu0 %v3391
  %5215 = vmatpush.bf16.msra.mxu0 %v3386
  %5216 = vmatpush.bf16.msra.mxu0 %v3381
  %5217 = vmatpush.bf16.msra.mxu0 %v3376
  %5218 = vmatpush.bf16.msra.mxu0 %v3371
  %5219 = vmatpush.bf16.msra.mxu0 %v3366
  %5220 = vmatpush.bf16.msra.mxu0 %v3361
  %5221 = vmatmul.bf16.gmra.mxu0 %v941
  %v5222 = vpop.f32.mrf.mxu0
  %v5223 = vadd.f32 %v5210, %v5222
  %v5224 = vpop.f32.mrf.mxu0
  %5225 = vdwg.mxu0
  %5226 = vmatpush.bf16.msra.mxu0 %v3436
  %5227 = vmatpush.bf16.msra.mxu0 %v3431
  %5228 = vmatpush.bf16.msra.mxu0 %v3426
  %5229 = vmatpush.bf16.msra.mxu0 %v3421
  %5230 = vmatpush.bf16.msra.mxu0 %v3416
  %5231 = vmatpush.bf16.msra.mxu0 %v3411
  %5232 = vmatpush.bf16.msra.mxu0 %v3406
  %5233 = vmatpush.bf16.msra.mxu0 %v3401
  %5234 = vmatmul.bf16.gmra.mxu0 %v942
  %v5235 = vpop.f32.mrf.mxu0
  %v5236 = vadd.f32 %v5223, %v5235
  %v5237 = vpop.f32.mrf.mxu0
  %5238 = vdwg.mxu0
  %5239 = vmatpush.bf16.msra.mxu0 %v3476
  %5240 = vmatpush.bf16.msra.mxu0 %v3471
  %5241 = vmatpush.bf16.msra.mxu0 %v3466
  %5242 = vmatpush.bf16.msra.mxu0 %v3461
  %5243 = vmatpush.bf16.msra.mxu0 %v3456
  %5244 = vmatpush.bf16.msra.mxu0 %v3451
  %5245 = vmatpush.bf16.msra.mxu0 %v3446
  %5246 = vmatpush.bf16.msra.mxu0 %v3441
  %5247 = vmatmul.bf16.gmra.mxu0 %v943
  %v5248 = vpop.f32.mrf.mxu0
  %v5249 = vadd.f32 %v5236, %v5248
  %v5250 = vpop.f32.mrf.mxu0
  %5251 = vdwg.mxu0
  %5252 = vmatpush.bf16.msra.mxu0 %v3516
  %5253 = vmatpush.bf16.msra.mxu0 %v3511
  %5254 = vmatpush.bf16.msra.mxu0 %v3506
  %5255 = vmatpush.bf16.msra.mxu0 %v3501
  %5256 = vmatpush.bf16.msra.mxu0 %v3496
  %5257 = vmatpush.bf16.msra.mxu0 %v3491
  %5258 = vmatpush.bf16.msra.mxu0 %v3486
  %5259 = vmatpush.bf16.msra.mxu0 %v3481
  %5260 = vmatmul.bf16.gmra.mxu0 %v944
  %v5261 = vpop.f32.mrf.mxu0
  %v5262 = vadd.f32 %v5249, %v5261
  %v5263 = vpop.f32.mrf.mxu0
  %5264 = vdwg.mxu0
  %5265 = vmatpush.bf16.msra.mxu0 %v3556
  %5266 = vmatpush.bf16.msra.mxu0 %v3551
  %5267 = vmatpush.bf16.msra.mxu0 %v3546
  %5268 = vmatpush.bf16.msra.mxu0 %v3541
  %5269 = vmatpush.bf16.msra.mxu0 %v3536
  %5270 = vmatpush.bf16.msra.mxu0 %v3531
  %5271 = vmatpush.bf16.msra.mxu0 %v3526
  %5272 = vmatpush.bf16.msra.mxu0 %v3521
  %5273 = vmatmul.bf16.gmra.mxu0 %v945
  %v5274 = vpop.f32.mrf.mxu0
  %v5275 = vadd.f32 %v5262, %v5274
  %v5276 = vpop.f32.mrf.mxu0
  %5277 = vdwg.mxu0
  %5278 = vmatpush.bf16.msra.mxu0 %v3596
  %5279 = vmatpush.bf16.msra.mxu0 %v3591
  %5280 = vmatpush.bf16.msra.mxu0 %v3586
  %5281 = vmatpush.bf16.msra.mxu0 %v3581
  %5282 = vmatpush.bf16.msra.mxu0 %v3576
  %5283 = vmatpush.bf16.msra.mxu0 %v3571
  %5284 = vmatpush.bf16.msra.mxu0 %v3566
  %5285 = vmatpush.bf16.msra.mxu0 %v3561
  %5286 = vmatmul.bf16.gmra.mxu0 %v946
  %v5287 = vpop.f32.mrf.mxu0
  %v5288 = vadd.f32 %v5275, %v5287
  %v5289 = vpop.f32.mrf.mxu0
  %5290 = vdwg.mxu0
  %5291 = vmatpush.bf16.msra.mxu0 %v3636
  %5292 = vmatpush.bf16.msra.mxu0 %v3631
  %5293 = vmatpush.bf16.msra.mxu0 %v3626
  %5294 = vmatpush.bf16.msra.mxu0 %v3621
  %5295 = vmatpush.bf16.msra.mxu0 %v3616
  %5296 = vmatpush.bf16.msra.mxu0 %v3611
  %5297 = vmatpush.bf16.msra.mxu0 %v3606
  %5298 = vmatpush.bf16.msra.mxu0 %v3601
  %5299 = vmatmul.bf16.gmra.mxu0 %v947
  %v5300 = vpop.f32.mrf.mxu0
  %v5301 = vadd.f32 %v5288, %v5300
  %v5302 = vpop.f32.mrf.mxu0
  %5303 = vdwg.mxu0
  %5304 = vmatpush.bf16.msra.mxu0 %v3676
  %5305 = vmatpush.bf16.msra.mxu0 %v3671
  %5306 = vmatpush.bf16.msra.mxu0 %v3666
  %5307 = vmatpush.bf16.msra.mxu0 %v3661
  %5308 = vmatpush.bf16.msra.mxu0 %v3656
  %5309 = vmatpush.bf16.msra.mxu0 %v3651
  %5310 = vmatpush.bf16.msra.mxu0 %v3646
  %5311 = vmatpush.bf16.msra.mxu0 %v3641
  %5312 = vmatmul.bf16.gmra.mxu0 %v948
  %v5313 = vpop.f32.mrf.mxu0
  %v5314 = vadd.f32 %v5301, %v5313
  %v5315 = vpop.f32.mrf.mxu0
  %5316 = vdwg.mxu0
  %5317 = vmatpush.bf16.msra.mxu0 %v3716
  %5318 = vmatpush.bf16.msra.mxu0 %v3711
  %5319 = vmatpush.bf16.msra.mxu0 %v3706
  %5320 = vmatpush.bf16.msra.mxu0 %v3701
  %5321 = vmatpush.bf16.msra.mxu0 %v3696
  %5322 = vmatpush.bf16.msra.mxu0 %v3691
  %5323 = vmatpush.bf16.msra.mxu0 %v3686
  %5324 = vmatpush.bf16.msra.mxu0 %v3681
  %5325 = vmatmul.bf16.gmra.mxu0 %v949
  %v5326 = vpop.f32.mrf.mxu0
  %v5327 = vadd.f32 %v5314, %v5326
  %v5328 = vpop.f32.mrf.mxu0
  %5329 = vdwg.mxu0
  %5330 = vmatpush.bf16.msra.mxu0 %v3756
  %5331 = vmatpush.bf16.msra.mxu0 %v3751
  %5332 = vmatpush.bf16.msra.mxu0 %v3746
  %5333 = vmatpush.bf16.msra.mxu0 %v3741
  %5334 = vmatpush.bf16.msra.mxu0 %v3736
  %5335 = vmatpush.bf16.msra.mxu0 %v3731
  %5336 = vmatpush.bf16.msra.mxu0 %v3726
  %5337 = vmatpush.bf16.msra.mxu0 %v3721
  %5338 = vmatmul.bf16.gmra.mxu0 %v950
  %v5339 = vpop.f32.mrf.mxu0
  %v5340 = vadd.f32 %v5327, %v5339
  %v5341 = vpop.f32.mrf.mxu0
  %5342 = vdwg.mxu0
  %5343 = vmatpush.bf16.msra.mxu0 %v3796
  %5344 = vmatpush.bf16.msra.mxu0 %v3791
  %5345 = vmatpush.bf16.msra.mxu0 %v3786
  %5346 = vmatpush.bf16.msra.mxu0 %v3781
  %5347 = vmatpush.bf16.msra.mxu0 %v3776
  %5348 = vmatpush.bf16.msra.mxu0 %v3771
  %5349 = vmatpush.bf16.msra.mxu0 %v3766
  %5350 = vmatpush.bf16.msra.mxu0 %v3761
  %5351 = vmatmul.bf16.gmra.mxu0 %v951
  %v5352 = vpop.f32.mrf.mxu0
  %v5353 = vadd.f32 %v5340, %v5352
  %v5354 = vpop.f32.mrf.mxu0
  %5355 = vdwg.mxu0
  %5356 = vmatpush.bf16.msra.mxu0 %v3836
  %5357 = vmatpush.bf16.msra.mxu0 %v3831
  %5358 = vmatpush.bf16.msra.mxu0 %v3826
  %5359 = vmatpush.bf16.msra.mxu0 %v3821
  %5360 = vmatpush.bf16.msra.mxu0 %v3816
  %5361 = vmatpush.bf16.msra.mxu0 %v3811
  %5362 = vmatpush.bf16.msra.mxu0 %v3806
  %5363 = vmatpush.bf16.msra.mxu0 %v3801
  %5364 = vmatmul.bf16.gmra.mxu0 %v952
  %v5365 = vpop.f32.mrf.mxu0
  %v5366 = vadd.f32 %v5353, %v5365
  %v5367 = vpop.f32.mrf.mxu0
  %5368 = vdwg.mxu0
  %5369 = vmatpush.bf16.msra.mxu0 %v3876
  %5370 = vmatpush.bf16.msra.mxu0 %v3871
  %5371 = vmatpush.bf16.msra.mxu0 %v3866
  %5372 = vmatpush.bf16.msra.mxu0 %v3861
  %5373 = vmatpush.bf16.msra.mxu0 %v3856
  %5374 = vmatpush.bf16.msra.mxu0 %v3851
  %5375 = vmatpush.bf16.msra.mxu0 %v3846
  %5376 = vmatpush.bf16.msra.mxu0 %v3841
  %5377 = vmatmul.bf16.gmra.mxu0 %v953
  %v5378 = vpop.f32.mrf.mxu0
  %v5379 = vadd.f32 %v5366, %v5378
  %v5380 = vpop.f32.mrf.mxu0
  %5381 = vdwg.mxu0
  %5382 = vmatpush.bf16.msra.mxu0 %v3916
  %5383 = vmatpush.bf16.msra.mxu0 %v3911
  %5384 = vmatpush.bf16.msra.mxu0 %v3906
  %5385 = vmatpush.bf16.msra.mxu0 %v3901
  %5386 = vmatpush.bf16.msra.mxu0 %v3896
  %5387 = vmatpush.bf16.msra.mxu0 %v3891
  %5388 = vmatpush.bf16.msra.mxu0 %v3886
  %5389 = vmatpush.bf16.msra.mxu0 %v3881
  %5390 = vmatmul.bf16.gmra.mxu0 %v954
  %v5391 = vpop.f32.mrf.mxu0
  %v5392 = vadd.f32 %v5379, %v5391
  %v5393 = vpop.f32.mrf.mxu0
  %5394 = vdwg.mxu0
  %5395 = vmatpush.bf16.msra.mxu0 %v3956
  %5396 = vmatpush.bf16.msra.mxu0 %v3951
  %5397 = vmatpush.bf16.msra.mxu0 %v3946
  %5398 = vmatpush.bf16.msra.mxu0 %v3941
  %5399 = vmatpush.bf16.msra.mxu0 %v3936
  %5400 = vmatpush.bf16.msra.mxu0 %v3931
  %5401 = vmatpush.bf16.msra.mxu0 %v3926
  %5402 = vmatpush.bf16.msra.mxu0 %v3921
  %5403 = vmatmul.bf16.gmra.mxu0 %v955
  %v5404 = vpop.f32.mrf.mxu0
  %v5405 = vadd.f32 %v5392, %v5404
  %v5406 = vpop.f32.mrf.mxu0
  %5407 = vdwg.mxu0
  %5408 = vmatpush.bf16.msra.mxu0 %v3996
  %5409 = vmatpush.bf16.msra.mxu0 %v3991
  %5410 = vmatpush.bf16.msra.mxu0 %v3986
  %5411 = vmatpush.bf16.msra.mxu0 %v3981
  %5412 = vmatpush.bf16.msra.mxu0 %v3976
  %5413 = vmatpush.bf16.msra.mxu0 %v3971
  %5414 = vmatpush.bf16.msra.mxu0 %v3966
  %5415 = vmatpush.bf16.msra.mxu0 %v3961
  %5416 = vmatmul.bf16.gmra.mxu0 %v956
  %v5417 = vpop.f32.mrf.mxu0
  %v5418 = vadd.f32 %v5405, %v5417
  %v5419 = vpop.f32.mrf.mxu0
  %5420 = vdwg.mxu0
  %5421 = vmatpush.bf16.msra.mxu0 %v3317
  %5422 = vmatpush.bf16.msra.mxu0 %v3312
  %5423 = vmatpush.bf16.msra.mxu0 %v3307
  %5424 = vmatpush.bf16.msra.mxu0 %v3302
  %5425 = vmatpush.bf16.msra.mxu0 %v3297
  %5426 = vmatpush.bf16.msra.mxu0 %v3292
  %5427 = vmatpush.bf16.msra.mxu0 %v3287
  %5428 = vmatpush.bf16.msra.mxu0 %v3282
  %5429 = vmatmul.bf16.gmra.mxu0 %v939
  %v5430 = vpop.f32.mrf.mxu0
  %v5431 = vadd.f32 %v905, %v5430
  %v5432 = vpop.f32.mrf.mxu0
  %5433 = vdwg.mxu0
  %5434 = vmatpush.bf16.msra.mxu0 %v3357
  %5435 = vmatpush.bf16.msra.mxu0 %v3352
  %5436 = vmatpush.bf16.msra.mxu0 %v3347
  %5437 = vmatpush.bf16.msra.mxu0 %v3342
  %5438 = vmatpush.bf16.msra.mxu0 %v3337
  %5439 = vmatpush.bf16.msra.mxu0 %v3332
  %5440 = vmatpush.bf16.msra.mxu0 %v3327
  %5441 = vmatpush.bf16.msra.mxu0 %v3322
  %5442 = vmatmul.bf16.gmra.mxu0 %v940
  %v5443 = vpop.f32.mrf.mxu0
  %v5444 = vadd.f32 %v5431, %v5443
  %v5445 = vpop.f32.mrf.mxu0
  %5446 = vdwg.mxu0
  %5447 = vmatpush.bf16.msra.mxu0 %v3397
  %5448 = vmatpush.bf16.msra.mxu0 %v3392
  %5449 = vmatpush.bf16.msra.mxu0 %v3387
  %5450 = vmatpush.bf16.msra.mxu0 %v3382
  %5451 = vmatpush.bf16.msra.mxu0 %v3377
  %5452 = vmatpush.bf16.msra.mxu0 %v3372
  %5453 = vmatpush.bf16.msra.mxu0 %v3367
  %5454 = vmatpush.bf16.msra.mxu0 %v3362
  %5455 = vmatmul.bf16.gmra.mxu0 %v941
  %v5456 = vpop.f32.mrf.mxu0
  %v5457 = vadd.f32 %v5444, %v5456
  %v5458 = vpop.f32.mrf.mxu0
  %5459 = vdwg.mxu0
  %5460 = vmatpush.bf16.msra.mxu0 %v3437
  %5461 = vmatpush.bf16.msra.mxu0 %v3432
  %5462 = vmatpush.bf16.msra.mxu0 %v3427
  %5463 = vmatpush.bf16.msra.mxu0 %v3422
  %5464 = vmatpush.bf16.msra.mxu0 %v3417
  %5465 = vmatpush.bf16.msra.mxu0 %v3412
  %5466 = vmatpush.bf16.msra.mxu0 %v3407
  %5467 = vmatpush.bf16.msra.mxu0 %v3402
  %5468 = vmatmul.bf16.gmra.mxu0 %v942
  %v5469 = vpop.f32.mrf.mxu0
  %v5470 = vadd.f32 %v5457, %v5469
  %v5471 = vpop.f32.mrf.mxu0
  %5472 = vdwg.mxu0
  %5473 = vmatpush.bf16.msra.mxu0 %v3477
  %5474 = vmatpush.bf16.msra.mxu0 %v3472
  %5475 = vmatpush.bf16.msra.mxu0 %v3467
  %5476 = vmatpush.bf16.msra.mxu0 %v3462
  %5477 = vmatpush.bf16.msra.mxu0 %v3457
  %5478 = vmatpush.bf16.msra.mxu0 %v3452
  %5479 = vmatpush.bf16.msra.mxu0 %v3447
  %5480 = vmatpush.bf16.msra.mxu0 %v3442
  %5481 = vmatmul.bf16.gmra.mxu0 %v943
  %v5482 = vpop.f32.mrf.mxu0
  %v5483 = vadd.f32 %v5470, %v5482
  %v5484 = vpop.f32.mrf.mxu0
  %5485 = vdwg.mxu0
  %5486 = vmatpush.bf16.msra.mxu0 %v3517
  %5487 = vmatpush.bf16.msra.mxu0 %v3512
  %5488 = vmatpush.bf16.msra.mxu0 %v3507
  %5489 = vmatpush.bf16.msra.mxu0 %v3502
  %5490 = vmatpush.bf16.msra.mxu0 %v3497
  %5491 = vmatpush.bf16.msra.mxu0 %v3492
  %5492 = vmatpush.bf16.msra.mxu0 %v3487
  %5493 = vmatpush.bf16.msra.mxu0 %v3482
  %5494 = vmatmul.bf16.gmra.mxu0 %v944
  %v5495 = vpop.f32.mrf.mxu0
  %v5496 = vadd.f32 %v5483, %v5495
  %v5497 = vpop.f32.mrf.mxu0
  %5498 = vdwg.mxu0
  %5499 = vmatpush.bf16.msra.mxu0 %v3557
  %5500 = vmatpush.bf16.msra.mxu0 %v3552
  %5501 = vmatpush.bf16.msra.mxu0 %v3547
  %5502 = vmatpush.bf16.msra.mxu0 %v3542
  %5503 = vmatpush.bf16.msra.mxu0 %v3537
  %5504 = vmatpush.bf16.msra.mxu0 %v3532
  %5505 = vmatpush.bf16.msra.mxu0 %v3527
  %5506 = vmatpush.bf16.msra.mxu0 %v3522
  %5507 = vmatmul.bf16.gmra.mxu0 %v945
  %v5508 = vpop.f32.mrf.mxu0
  %v5509 = vadd.f32 %v5496, %v5508
  %v5510 = vpop.f32.mrf.mxu0
  %5511 = vdwg.mxu0
  %5512 = vmatpush.bf16.msra.mxu0 %v3597
  %5513 = vmatpush.bf16.msra.mxu0 %v3592
  %5514 = vmatpush.bf16.msra.mxu0 %v3587
  %5515 = vmatpush.bf16.msra.mxu0 %v3582
  %5516 = vmatpush.bf16.msra.mxu0 %v3577
  %5517 = vmatpush.bf16.msra.mxu0 %v3572
  %5518 = vmatpush.bf16.msra.mxu0 %v3567
  %5519 = vmatpush.bf16.msra.mxu0 %v3562
  %5520 = vmatmul.bf16.gmra.mxu0 %v946
  %v5521 = vpop.f32.mrf.mxu0
  %v5522 = vadd.f32 %v5509, %v5521
  %v5523 = vpop.f32.mrf.mxu0
  %5524 = vdwg.mxu0
  %5525 = vmatpush.bf16.msra.mxu0 %v3637
  %5526 = vmatpush.bf16.msra.mxu0 %v3632
  %5527 = vmatpush.bf16.msra.mxu0 %v3627
  %5528 = vmatpush.bf16.msra.mxu0 %v3622
  %5529 = vmatpush.bf16.msra.mxu0 %v3617
  %5530 = vmatpush.bf16.msra.mxu0 %v3612
  %5531 = vmatpush.bf16.msra.mxu0 %v3607
  %5532 = vmatpush.bf16.msra.mxu0 %v3602
  %5533 = vmatmul.bf16.gmra.mxu0 %v947
  %v5534 = vpop.f32.mrf.mxu0
  %v5535 = vadd.f32 %v5522, %v5534
  %v5536 = vpop.f32.mrf.mxu0
  %5537 = vdwg.mxu0
  %5538 = vmatpush.bf16.msra.mxu0 %v3677
  %5539 = vmatpush.bf16.msra.mxu0 %v3672
  %5540 = vmatpush.bf16.msra.mxu0 %v3667
  %5541 = vmatpush.bf16.msra.mxu0 %v3662
  %5542 = vmatpush.bf16.msra.mxu0 %v3657
  %5543 = vmatpush.bf16.msra.mxu0 %v3652
  %5544 = vmatpush.bf16.msra.mxu0 %v3647
  %5545 = vmatpush.bf16.msra.mxu0 %v3642
  %5546 = vmatmul.bf16.gmra.mxu0 %v948
  %v5547 = vpop.f32.mrf.mxu0
  %v5548 = vadd.f32 %v5535, %v5547
  %v5549 = vpop.f32.mrf.mxu0
  %5550 = vdwg.mxu0
  %5551 = vmatpush.bf16.msra.mxu0 %v3717
  %5552 = vmatpush.bf16.msra.mxu0 %v3712
  %5553 = vmatpush.bf16.msra.mxu0 %v3707
  %5554 = vmatpush.bf16.msra.mxu0 %v3702
  %5555 = vmatpush.bf16.msra.mxu0 %v3697
  %5556 = vmatpush.bf16.msra.mxu0 %v3692
  %5557 = vmatpush.bf16.msra.mxu0 %v3687
  %5558 = vmatpush.bf16.msra.mxu0 %v3682
  %5559 = vmatmul.bf16.gmra.mxu0 %v949
  %v5560 = vpop.f32.mrf.mxu0
  %v5561 = vadd.f32 %v5548, %v5560
  %v5562 = vpop.f32.mrf.mxu0
  %5563 = vdwg.mxu0
  %5564 = vmatpush.bf16.msra.mxu0 %v3757
  %5565 = vmatpush.bf16.msra.mxu0 %v3752
  %5566 = vmatpush.bf16.msra.mxu0 %v3747
  %5567 = vmatpush.bf16.msra.mxu0 %v3742
  %5568 = vmatpush.bf16.msra.mxu0 %v3737
  %5569 = vmatpush.bf16.msra.mxu0 %v3732
  %5570 = vmatpush.bf16.msra.mxu0 %v3727
  %5571 = vmatpush.bf16.msra.mxu0 %v3722
  %5572 = vmatmul.bf16.gmra.mxu0 %v950
  %v5573 = vpop.f32.mrf.mxu0
  %v5574 = vadd.f32 %v5561, %v5573
  %v5575 = vpop.f32.mrf.mxu0
  %5576 = vdwg.mxu0
  %5577 = vmatpush.bf16.msra.mxu0 %v3797
  %5578 = vmatpush.bf16.msra.mxu0 %v3792
  %5579 = vmatpush.bf16.msra.mxu0 %v3787
  %5580 = vmatpush.bf16.msra.mxu0 %v3782
  %5581 = vmatpush.bf16.msra.mxu0 %v3777
  %5582 = vmatpush.bf16.msra.mxu0 %v3772
  %5583 = vmatpush.bf16.msra.mxu0 %v3767
  %5584 = vmatpush.bf16.msra.mxu0 %v3762
  %5585 = vmatmul.bf16.gmra.mxu0 %v951
  %v5586 = vpop.f32.mrf.mxu0
  %v5587 = vadd.f32 %v5574, %v5586
  %v5588 = vpop.f32.mrf.mxu0
  %5589 = vdwg.mxu0
  %5590 = vmatpush.bf16.msra.mxu0 %v3837
  %5591 = vmatpush.bf16.msra.mxu0 %v3832
  %5592 = vmatpush.bf16.msra.mxu0 %v3827
  %5593 = vmatpush.bf16.msra.mxu0 %v3822
  %5594 = vmatpush.bf16.msra.mxu0 %v3817
  %5595 = vmatpush.bf16.msra.mxu0 %v3812
  %5596 = vmatpush.bf16.msra.mxu0 %v3807
  %5597 = vmatpush.bf16.msra.mxu0 %v3802
  %5598 = vmatmul.bf16.gmra.mxu0 %v952
  %v5599 = vpop.f32.mrf.mxu0
  %v5600 = vadd.f32 %v5587, %v5599
  %v5601 = vpop.f32.mrf.mxu0
  %5602 = vdwg.mxu0
  %5603 = vmatpush.bf16.msra.mxu0 %v3877
  %5604 = vmatpush.bf16.msra.mxu0 %v3872
  %5605 = vmatpush.bf16.msra.mxu0 %v3867
  %5606 = vmatpush.bf16.msra.mxu0 %v3862
  %5607 = vmatpush.bf16.msra.mxu0 %v3857
  %5608 = vmatpush.bf16.msra.mxu0 %v3852
  %5609 = vmatpush.bf16.msra.mxu0 %v3847
  %5610 = vmatpush.bf16.msra.mxu0 %v3842
  %5611 = vmatmul.bf16.gmra.mxu0 %v953
  %v5612 = vpop.f32.mrf.mxu0
  %v5613 = vadd.f32 %v5600, %v5612
  %v5614 = vpop.f32.mrf.mxu0
  %5615 = vdwg.mxu0
  %5616 = vmatpush.bf16.msra.mxu0 %v3917
  %5617 = vmatpush.bf16.msra.mxu0 %v3912
  %5618 = vmatpush.bf16.msra.mxu0 %v3907
  %5619 = vmatpush.bf16.msra.mxu0 %v3902
  %5620 = vmatpush.bf16.msra.mxu0 %v3897
  %5621 = vmatpush.bf16.msra.mxu0 %v3892
  %5622 = vmatpush.bf16.msra.mxu0 %v3887
  %5623 = vmatpush.bf16.msra.mxu0 %v3882
  %5624 = vmatmul.bf16.gmra.mxu0 %v954
  %v5625 = vpop.f32.mrf.mxu0
  %v5626 = vadd.f32 %v5613, %v5625
  %v5627 = vpop.f32.mrf.mxu0
  %5628 = vdwg.mxu0
  %5629 = vmatpush.bf16.msra.mxu0 %v3957
  %5630 = vmatpush.bf16.msra.mxu0 %v3952
  %5631 = vmatpush.bf16.msra.mxu0 %v3947
  %5632 = vmatpush.bf16.msra.mxu0 %v3942
  %5633 = vmatpush.bf16.msra.mxu0 %v3937
  %5634 = vmatpush.bf16.msra.mxu0 %v3932
  %5635 = vmatpush.bf16.msra.mxu0 %v3927
  %5636 = vmatpush.bf16.msra.mxu0 %v3922
  %5637 = vmatmul.bf16.gmra.mxu0 %v955
  %v5638 = vpop.f32.mrf.mxu0
  %v5639 = vadd.f32 %v5626, %v5638
  %v5640 = vpop.f32.mrf.mxu0
  %5641 = vdwg.mxu0
  %5642 = vmatpush.bf16.msra.mxu0 %v3997
  %5643 = vmatpush.bf16.msra.mxu0 %v3992
  %5644 = vmatpush.bf16.msra.mxu0 %v3987
  %5645 = vmatpush.bf16.msra.mxu0 %v3982
  %5646 = vmatpush.bf16.msra.mxu0 %v3977
  %5647 = vmatpush.bf16.msra.mxu0 %v3972
  %5648 = vmatpush.bf16.msra.mxu0 %v3967
  %5649 = vmatpush.bf16.msra.mxu0 %v3962
  %5650 = vmatmul.bf16.gmra.mxu0 %v956
  %v5651 = vpop.f32.mrf.mxu0
  %v5652 = vadd.f32 %v5639, %v5651
  %v5653 = vpop.f32.mrf.mxu0
  %5654 = vdwg.mxu0
  %5655 = vmatpush.bf16.msra.mxu0 %v3318
  %5656 = vmatpush.bf16.msra.mxu0 %v3313
  %5657 = vmatpush.bf16.msra.mxu0 %v3308
  %5658 = vmatpush.bf16.msra.mxu0 %v3303
  %5659 = vmatpush.bf16.msra.mxu0 %v3298
  %5660 = vmatpush.bf16.msra.mxu0 %v3293
  %5661 = vmatpush.bf16.msra.mxu0 %v3288
  %5662 = vmatpush.bf16.msra.mxu0 %v3283
  %5663 = vmatmul.bf16.gmra.mxu0 %v939
  %v5664 = vpop.f32.mrf.mxu0
  %v5665 = vadd.f32 %v906, %v5664
  %v5666 = vpop.f32.mrf.mxu0
  %5667 = vdwg.mxu0
  %5668 = vmatpush.bf16.msra.mxu0 %v3358
  %5669 = vmatpush.bf16.msra.mxu0 %v3353
  %5670 = vmatpush.bf16.msra.mxu0 %v3348
  %5671 = vmatpush.bf16.msra.mxu0 %v3343
  %5672 = vmatpush.bf16.msra.mxu0 %v3338
  %5673 = vmatpush.bf16.msra.mxu0 %v3333
  %5674 = vmatpush.bf16.msra.mxu0 %v3328
  %5675 = vmatpush.bf16.msra.mxu0 %v3323
  %5676 = vmatmul.bf16.gmra.mxu0 %v940
  %v5677 = vpop.f32.mrf.mxu0
  %v5678 = vadd.f32 %v5665, %v5677
  %v5679 = vpop.f32.mrf.mxu0
  %5680 = vdwg.mxu0
  %5681 = vmatpush.bf16.msra.mxu0 %v3398
  %5682 = vmatpush.bf16.msra.mxu0 %v3393
  %5683 = vmatpush.bf16.msra.mxu0 %v3388
  %5684 = vmatpush.bf16.msra.mxu0 %v3383
  %5685 = vmatpush.bf16.msra.mxu0 %v3378
  %5686 = vmatpush.bf16.msra.mxu0 %v3373
  %5687 = vmatpush.bf16.msra.mxu0 %v3368
  %5688 = vmatpush.bf16.msra.mxu0 %v3363
  %5689 = vmatmul.bf16.gmra.mxu0 %v941
  %v5690 = vpop.f32.mrf.mxu0
  %v5691 = vadd.f32 %v5678, %v5690
  %v5692 = vpop.f32.mrf.mxu0
  %5693 = vdwg.mxu0
  %5694 = vmatpush.bf16.msra.mxu0 %v3438
  %5695 = vmatpush.bf16.msra.mxu0 %v3433
  %5696 = vmatpush.bf16.msra.mxu0 %v3428
  %5697 = vmatpush.bf16.msra.mxu0 %v3423
  %5698 = vmatpush.bf16.msra.mxu0 %v3418
  %5699 = vmatpush.bf16.msra.mxu0 %v3413
  %5700 = vmatpush.bf16.msra.mxu0 %v3408
  %5701 = vmatpush.bf16.msra.mxu0 %v3403
  %5702 = vmatmul.bf16.gmra.mxu0 %v942
  %v5703 = vpop.f32.mrf.mxu0
  %v5704 = vadd.f32 %v5691, %v5703
  %v5705 = vpop.f32.mrf.mxu0
  %5706 = vdwg.mxu0
  %5707 = vmatpush.bf16.msra.mxu0 %v3478
  %5708 = vmatpush.bf16.msra.mxu0 %v3473
  %5709 = vmatpush.bf16.msra.mxu0 %v3468
  %5710 = vmatpush.bf16.msra.mxu0 %v3463
  %5711 = vmatpush.bf16.msra.mxu0 %v3458
  %5712 = vmatpush.bf16.msra.mxu0 %v3453
  %5713 = vmatpush.bf16.msra.mxu0 %v3448
  %5714 = vmatpush.bf16.msra.mxu0 %v3443
  %5715 = vmatmul.bf16.gmra.mxu0 %v943
  %v5716 = vpop.f32.mrf.mxu0
  %v5717 = vadd.f32 %v5704, %v5716
  %v5718 = vpop.f32.mrf.mxu0
  %5719 = vdwg.mxu0
  %5720 = vmatpush.bf16.msra.mxu0 %v3518
  %5721 = vmatpush.bf16.msra.mxu0 %v3513
  %5722 = vmatpush.bf16.msra.mxu0 %v3508
  %5723 = vmatpush.bf16.msra.mxu0 %v3503
  %5724 = vmatpush.bf16.msra.mxu0 %v3498
  %5725 = vmatpush.bf16.msra.mxu0 %v3493
  %5726 = vmatpush.bf16.msra.mxu0 %v3488
  %5727 = vmatpush.bf16.msra.mxu0 %v3483
  %5728 = vmatmul.bf16.gmra.mxu0 %v944
  %v5729 = vpop.f32.mrf.mxu0
  %v5730 = vadd.f32 %v5717, %v5729
  %v5731 = vpop.f32.mrf.mxu0
  %5732 = vdwg.mxu0
  %5733 = vmatpush.bf16.msra.mxu0 %v3558
  %5734 = vmatpush.bf16.msra.mxu0 %v3553
  %5735 = vmatpush.bf16.msra.mxu0 %v3548
  %5736 = vmatpush.bf16.msra.mxu0 %v3543
  %5737 = vmatpush.bf16.msra.mxu0 %v3538
  %5738 = vmatpush.bf16.msra.mxu0 %v3533
  %5739 = vmatpush.bf16.msra.mxu0 %v3528
  %5740 = vmatpush.bf16.msra.mxu0 %v3523
  %5741 = vmatmul.bf16.gmra.mxu0 %v945
  %v5742 = vpop.f32.mrf.mxu0
  %v5743 = vadd.f32 %v5730, %v5742
  %v5744 = vpop.f32.mrf.mxu0
  %5745 = vdwg.mxu0
  %5746 = vmatpush.bf16.msra.mxu0 %v3598
  %5747 = vmatpush.bf16.msra.mxu0 %v3593
  %5748 = vmatpush.bf16.msra.mxu0 %v3588
  %5749 = vmatpush.bf16.msra.mxu0 %v3583
  %5750 = vmatpush.bf16.msra.mxu0 %v3578
  %5751 = vmatpush.bf16.msra.mxu0 %v3573
  %5752 = vmatpush.bf16.msra.mxu0 %v3568
  %5753 = vmatpush.bf16.msra.mxu0 %v3563
  %5754 = vmatmul.bf16.gmra.mxu0 %v946
  %v5755 = vpop.f32.mrf.mxu0
  %v5756 = vadd.f32 %v5743, %v5755
  %v5757 = vpop.f32.mrf.mxu0
  %5758 = vdwg.mxu0
  %5759 = vmatpush.bf16.msra.mxu0 %v3638
  %5760 = vmatpush.bf16.msra.mxu0 %v3633
  %5761 = vmatpush.bf16.msra.mxu0 %v3628
  %5762 = vmatpush.bf16.msra.mxu0 %v3623
  %5763 = vmatpush.bf16.msra.mxu0 %v3618
  %5764 = vmatpush.bf16.msra.mxu0 %v3613
  %5765 = vmatpush.bf16.msra.mxu0 %v3608
  %5766 = vmatpush.bf16.msra.mxu0 %v3603
  %5767 = vmatmul.bf16.gmra.mxu0 %v947
  %v5768 = vpop.f32.mrf.mxu0
  %v5769 = vadd.f32 %v5756, %v5768
  %v5770 = vpop.f32.mrf.mxu0
  %5771 = vdwg.mxu0
  %5772 = vmatpush.bf16.msra.mxu0 %v3678
  %5773 = vmatpush.bf16.msra.mxu0 %v3673
  %5774 = vmatpush.bf16.msra.mxu0 %v3668
  %5775 = vmatpush.bf16.msra.mxu0 %v3663
  %5776 = vmatpush.bf16.msra.mxu0 %v3658
  %5777 = vmatpush.bf16.msra.mxu0 %v3653
  %5778 = vmatpush.bf16.msra.mxu0 %v3648
  %5779 = vmatpush.bf16.msra.mxu0 %v3643
  %5780 = vmatmul.bf16.gmra.mxu0 %v948
  %v5781 = vpop.f32.mrf.mxu0
  %v5782 = vadd.f32 %v5769, %v5781
  %v5783 = vpop.f32.mrf.mxu0
  %5784 = vdwg.mxu0
  %5785 = vmatpush.bf16.msra.mxu0 %v3718
  %5786 = vmatpush.bf16.msra.mxu0 %v3713
  %5787 = vmatpush.bf16.msra.mxu0 %v3708
  %5788 = vmatpush.bf16.msra.mxu0 %v3703
  %5789 = vmatpush.bf16.msra.mxu0 %v3698
  %5790 = vmatpush.bf16.msra.mxu0 %v3693
  %5791 = vmatpush.bf16.msra.mxu0 %v3688
  %5792 = vmatpush.bf16.msra.mxu0 %v3683
  %5793 = vmatmul.bf16.gmra.mxu0 %v949
  %v5794 = vpop.f32.mrf.mxu0
  %v5795 = vadd.f32 %v5782, %v5794
  %v5796 = vpop.f32.mrf.mxu0
  %5797 = vdwg.mxu0
  %5798 = vmatpush.bf16.msra.mxu0 %v3758
  %5799 = vmatpush.bf16.msra.mxu0 %v3753
  %5800 = vmatpush.bf16.msra.mxu0 %v3748
  %5801 = vmatpush.bf16.msra.mxu0 %v3743
  %5802 = vmatpush.bf16.msra.mxu0 %v3738
  %5803 = vmatpush.bf16.msra.mxu0 %v3733
  %5804 = vmatpush.bf16.msra.mxu0 %v3728
  %5805 = vmatpush.bf16.msra.mxu0 %v3723
  %5806 = vmatmul.bf16.gmra.mxu0 %v950
  %v5807 = vpop.f32.mrf.mxu0
  %v5808 = vadd.f32 %v5795, %v5807
  %v5809 = vpop.f32.mrf.mxu0
  %5810 = vdwg.mxu0
  %5811 = vmatpush.bf16.msra.mxu0 %v3798
  %5812 = vmatpush.bf16.msra.mxu0 %v3793
  %5813 = vmatpush.bf16.msra.mxu0 %v3788
  %5814 = vmatpush.bf16.msra.mxu0 %v3783
  %5815 = vmatpush.bf16.msra.mxu0 %v3778
  %5816 = vmatpush.bf16.msra.mxu0 %v3773
  %5817 = vmatpush.bf16.msra.mxu0 %v3768
  %5818 = vmatpush.bf16.msra.mxu0 %v3763
  %5819 = vmatmul.bf16.gmra.mxu0 %v951
  %v5820 = vpop.f32.mrf.mxu0
  %v5821 = vadd.f32 %v5808, %v5820
  %v5822 = vpop.f32.mrf.mxu0
  %5823 = vdwg.mxu0
  %5824 = vmatpush.bf16.msra.mxu0 %v3838
  %5825 = vmatpush.bf16.msra.mxu0 %v3833
  %5826 = vmatpush.bf16.msra.mxu0 %v3828
  %5827 = vmatpush.bf16.msra.mxu0 %v3823
  %5828 = vmatpush.bf16.msra.mxu0 %v3818
  %5829 = vmatpush.bf16.msra.mxu0 %v3813
  %5830 = vmatpush.bf16.msra.mxu0 %v3808
  %5831 = vmatpush.bf16.msra.mxu0 %v3803
  %5832 = vmatmul.bf16.gmra.mxu0 %v952
  %v5833 = vpop.f32.mrf.mxu0
  %v5834 = vadd.f32 %v5821, %v5833
  %v5835 = vpop.f32.mrf.mxu0
  %5836 = vdwg.mxu0
  %5837 = vmatpush.bf16.msra.mxu0 %v3878
  %5838 = vmatpush.bf16.msra.mxu0 %v3873
  %5839 = vmatpush.bf16.msra.mxu0 %v3868
  %5840 = vmatpush.bf16.msra.mxu0 %v3863
  %5841 = vmatpush.bf16.msra.mxu0 %v3858
  %5842 = vmatpush.bf16.msra.mxu0 %v3853
  %5843 = vmatpush.bf16.msra.mxu0 %v3848
  %5844 = vmatpush.bf16.msra.mxu0 %v3843
  %5845 = vmatmul.bf16.gmra.mxu0 %v953
  %v5846 = vpop.f32.mrf.mxu0
  %v5847 = vadd.f32 %v5834, %v5846
  %v5848 = vpop.f32.mrf.mxu0
  %5849 = vdwg.mxu0
  %5850 = vmatpush.bf16.msra.mxu0 %v3918
  %5851 = vmatpush.bf16.msra.mxu0 %v3913
  %5852 = vmatpush.bf16.msra.mxu0 %v3908
  %5853 = vmatpush.bf16.msra.mxu0 %v3903
  %5854 = vmatpush.bf16.msra.mxu0 %v3898
  %5855 = vmatpush.bf16.msra.mxu0 %v3893
  %5856 = vmatpush.bf16.msra.mxu0 %v3888
  %5857 = vmatpush.bf16.msra.mxu0 %v3883
  %5858 = vmatmul.bf16.gmra.mxu0 %v954
  %v5859 = vpop.f32.mrf.mxu0
  %v5860 = vadd.f32 %v5847, %v5859
  %v5861 = vpop.f32.mrf.mxu0
  %5862 = vdwg.mxu0
  %5863 = vmatpush.bf16.msra.mxu0 %v3958
  %5864 = vmatpush.bf16.msra.mxu0 %v3953
  %5865 = vmatpush.bf16.msra.mxu0 %v3948
  %5866 = vmatpush.bf16.msra.mxu0 %v3943
  %5867 = vmatpush.bf16.msra.mxu0 %v3938
  %5868 = vmatpush.bf16.msra.mxu0 %v3933
  %5869 = vmatpush.bf16.msra.mxu0 %v3928
  %5870 = vmatpush.bf16.msra.mxu0 %v3923
  %5871 = vmatmul.bf16.gmra.mxu0 %v955
  %v5872 = vpop.f32.mrf.mxu0
  %v5873 = vadd.f32 %v5860, %v5872
  %v5874 = vpop.f32.mrf.mxu0
  %5875 = vdwg.mxu0
  %5876 = vmatpush.bf16.msra.mxu0 %v3998
  %5877 = vmatpush.bf16.msra.mxu0 %v3993
  %5878 = vmatpush.bf16.msra.mxu0 %v3988
  %5879 = vmatpush.bf16.msra.mxu0 %v3983
  %5880 = vmatpush.bf16.msra.mxu0 %v3978
  %5881 = vmatpush.bf16.msra.mxu0 %v3973
  %5882 = vmatpush.bf16.msra.mxu0 %v3968
  %5883 = vmatpush.bf16.msra.mxu0 %v3963
  %5884 = vmatmul.bf16.gmra.mxu0 %v956
  %v5885 = vpop.f32.mrf.mxu0
  %v5886 = vadd.f32 %v5873, %v5885
  %v5887 = vpop.f32.mrf.mxu0
  %5888 = vdwg.mxu0
  %v5889 = vpack.c.bf16 %v4950, %v4950
  %v5890 = vpack.c.bf16 %v5184, %v5184
  %v5891 = vpack.c.bf16 %v5418, %v5418
  %v5892 = vpack.c.bf16 %v5652, %v5652
  %v5893 = vpack.c.bf16 %v5886, %v5886
  %v5894 = vld [vmem:[%s3] sm:$0xf]
  %v5895 = vld [vmem:[%s3 + $0x4] sm:$0xf]
  %v5896 = vld [vmem:[%s3 + $0x8] sm:$0xf]
  %v5897 = vld [vmem:[%s3 + $0xc] sm:$0xf]
  %v5898 = vld [vmem:[%s3 + $0x10] sm:$0xf]
  %v5899 = vld [vmem:[%s3 + $0x14] sm:$0xf]
  %v5900 = vld [vmem:[%s3 + $0x18] sm:$0xf]
  %v5901 = vld [vmem:[%s3 + $0x1c] sm:$0xf]
  %v5902 = vld [vmem:[%s3 + $0x20] sm:$0xf]
  %v5903 = vld [vmem:[%s3 + $0x24] sm:$0xf]
  %v5904 = vld [vmem:[%s3 + $0x28] sm:$0xf]
  %v5905 = vld [vmem:[%s3 + $0x2c] sm:$0xf]
  %v5906 = vld [vmem:[%s3 + $0x30] sm:$0xf]
  %v5907 = vld [vmem:[%s3 + $0x34] sm:$0xf]
  %v5908 = vld [vmem:[%s3 + $0x38] sm:$0xf]
  %v5909 = vld [vmem:[%s3 + $0x3c] sm:$0xf]
  %v5910 = vld [vmem:[%s3 + $0x40] sm:$0xf]
  %v5911 = vld [vmem:[%s3 + $0x44] sm:$0xf]
  %v5912 = vld [vmem:[%s3 + $0x48] sm:$0xf]
  %v5913 = vld [vmem:[%s3 + $0x4c] sm:$0xf]
  %v5914 = vld [vmem:[%s3 + $0x50] sm:$0xf]
  %v5915 = vld [vmem:[%s3 + $0x54] sm:$0xf]
  %v5916 = vld [vmem:[%s3 + $0x58] sm:$0xf]
  %v5917 = vld [vmem:[%s3 + $0x5c] sm:$0xf]
  %v5918 = vld [vmem:[%s3 + $0x60] sm:$0xf]
  %v5919 = vld [vmem:[%s3 + $0x64] sm:$0xf]
  %v5920 = vld [vmem:[%s3 + $0x68] sm:$0xf]
  %v5921 = vld [vmem:[%s3 + $0x6c] sm:$0xf]
  %v5922 = vld [vmem:[%s3 + $0x70] sm:$0xf]
  %v5923 = vld [vmem:[%s3 + $0x74] sm:$0xf]
  %v5924 = vld [vmem:[%s3 + $0x78] sm:$0xf]
  %v5925 = vld [vmem:[%s3 + $0x7c] sm:$0xf]
  %v5926 = vld [vmem:[%s3 + $0x80] sm:$0xf]
  %v5927 = vld [vmem:[%s3 + $0x84] sm:$0xf]
  %v5928 = vld [vmem:[%s3 + $0x88] sm:$0xf]
  %v5929 = vld [vmem:[%s3 + $0x8c] sm:$0xf]
  %v5930 = vld [vmem:[%s3 + $0x90] sm:$0xf]
  %v5931 = vld [vmem:[%s3 + $0x94] sm:$0xf]
  %v5932 = vld [vmem:[%s3 + $0x98] sm:$0xf]
  %v5933 = vld [vmem:[%s3 + $0x9c] sm:$0xf]
  %v5934 = vld [vmem:[%s3 + $0xa0] sm:$0xf]
  %v5935 = vld [vmem:[%s3 + $0xa4] sm:$0xf]
  %v5936 = vld [vmem:[%s3 + $0xa8] sm:$0xf]
  %v5937 = vld [vmem:[%s3 + $0xac] sm:$0xf]
  %v5938 = vld [vmem:[%s3 + $0xb0] sm:$0xf]
  %v5939 = vld [vmem:[%s3 + $0xb4] sm:$0xf]
  %v5940 = vld [vmem:[%s3 + $0xb8] sm:$0xf]
  %v5941 = vld [vmem:[%s3 + $0xbc] sm:$0xf]
  %v5942 = vld [vmem:[%s3 + $0xc0] sm:$0xf]
  %v5943 = vld [vmem:[%s3 + $0xc4] sm:$0xf]
  %v5944 = vld [vmem:[%s3 + $0xc8] sm:$0xf]
  %v5945 = vld [vmem:[%s3 + $0xcc] sm:$0xf]
  %v5946 = vld [vmem:[%s3 + $0xd0] sm:$0xf]
  %v5947 = vld [vmem:[%s3 + $0xd4] sm:$0xf]
  %v5948 = vld [vmem:[%s3 + $0xd8] sm:$0xf]
  %v5949 = vld [vmem:[%s3 + $0xdc] sm:$0xf]
  %v5950 = vld [vmem:[%s3 + $0xe0] sm:$0xf]
  %v5951 = vld [vmem:[%s3 + $0xe4] sm:$0xf]
  %v5952 = vld [vmem:[%s3 + $0xe8] sm:$0xf]
  %v5953 = vld [vmem:[%s3 + $0xec] sm:$0xf]
  %v5954 = vld [vmem:[%s3 + $0xf0] sm:$0xf]
  %v5955 = vld [vmem:[%s3 + $0xf4] sm:$0xf]
  %v5956 = vld [vmem:[%s3 + $0xf8] sm:$0xf]
  %v5957 = vld [vmem:[%s3 + $0xfc] sm:$0xf]
  %v5958 = vld [vmem:[%s3 + $0x100] sm:$0xf]
  %v5959 = vld [vmem:[%s3 + $0x104] sm:$0xf]
  %v5960 = vld [vmem:[%s3 + $0x108] sm:$0xf]
  %v5961 = vld [vmem:[%s3 + $0x10c] sm:$0xf]
  %v5962 = vld [vmem:[%s3 + $0x110] sm:$0xf]
  %v5963 = vld [vmem:[%s3 + $0x114] sm:$0xf]
  %v5964 = vld [vmem:[%s3 + $0x118] sm:$0xf]
  %v5965 = vld [vmem:[%s3 + $0x11c] sm:$0xf]
  %v5966 = vld [vmem:[%s3 + $0x120] sm:$0xf]
  %v5967 = vld [vmem:[%s3 + $0x124] sm:$0xf]
  %v5968 = vld [vmem:[%s3 + $0x128] sm:$0xf]
  %v5969 = vld [vmem:[%s4] sm:$0x1]
  %v5971 = vperm.slane %v5969, 0
  %v6048 = vunpack.c.l.b16 %v5894
  %v6049 = vunpack.c.l.b16 %v5895
  %v6050 = vunpack.c.l.b16 %v5896
  %v6051 = vunpack.c.l.b16 %v5897
  %v6052 = vunpack.c.l.b16 %v5898
  %v6053 = vunpack.c.l.b16 %v5899
  %v6054 = vunpack.c.l.b16 %v5900
  %v6055 = vunpack.c.l.b16 %v5901
  %v6056 = vunpack.c.l.b16 %v5902
  %v6057 = vunpack.c.l.b16 %v5903
  %v6058 = vunpack.c.l.b16 %v5904
  %v6059 = vunpack.c.l.b16 %v5905
  %v6060 = vunpack.c.l.b16 %v5906
  %v6061 = vunpack.c.l.b16 %v5907
  %v6062 = vunpack.c.l.b16 %v5908
  %v6063 = vunpack.c.l.b16 %v5909
  %v6064 = vunpack.c.l.b16 %v5910
  %v6065 = vunpack.c.l.b16 %v5911
  %v6066 = vunpack.c.l.b16 %v5912
  %v6067 = vunpack.c.l.b16 %v5913
  %v6068 = vunpack.c.l.b16 %v5914
  %v6069 = vunpack.c.l.b16 %v5915
  %v6070 = vunpack.c.l.b16 %v5916
  %v6071 = vunpack.c.l.b16 %v5917
  %v6072 = vunpack.c.l.b16 %v5918
  %v6073 = vunpack.c.l.b16 %v5919
  %v6074 = vunpack.c.l.b16 %v5920
  %v6075 = vunpack.c.l.b16 %v5921
  %v6076 = vunpack.c.l.b16 %v5922
  %v6077 = vunpack.c.l.b16 %v5923
  %v6078 = vunpack.c.l.b16 %v5924
  %v6079 = vunpack.c.l.b16 %v5925
  %v6080 = vunpack.c.l.b16 %v5926
  %v6081 = vunpack.c.l.b16 %v5927
  %v6082 = vunpack.c.l.b16 %v5928
  %v6083 = vunpack.c.l.b16 %v5929
  %v6084 = vunpack.c.l.b16 %v5930
  %v6085 = vunpack.c.l.b16 %v5931
  %v6086 = vunpack.c.l.b16 %v5932
  %v6087 = vunpack.c.l.b16 %v5933
  %v6088 = vunpack.c.l.b16 %v5934
  %v6089 = vunpack.c.l.b16 %v5935
  %v6090 = vunpack.c.l.b16 %v5936
  %v6091 = vunpack.c.l.b16 %v5937
  %v6092 = vunpack.c.l.b16 %v5938
  %v6093 = vunpack.c.l.b16 %v5939
  %v6094 = vunpack.c.l.b16 %v5940
  %v6095 = vunpack.c.l.b16 %v5941
  %v6096 = vunpack.c.l.b16 %v5942
  %v6097 = vunpack.c.l.b16 %v5943
  %v6098 = vunpack.c.l.b16 %v5944
  %v6099 = vunpack.c.l.b16 %v5945
  %v6100 = vunpack.c.l.b16 %v5946
  %v6101 = vunpack.c.l.b16 %v5947
  %v6102 = vunpack.c.l.b16 %v5948
  %v6103 = vunpack.c.l.b16 %v5949
  %v6104 = vunpack.c.l.b16 %v5950
  %v6105 = vunpack.c.l.b16 %v5951
  %v6106 = vunpack.c.l.b16 %v5952
  %v6107 = vunpack.c.l.b16 %v5953
  %v6108 = vunpack.c.l.b16 %v5954
  %v6109 = vunpack.c.l.b16 %v5955
  %v6110 = vunpack.c.l.b16 %v5956
  %v6111 = vunpack.c.l.b16 %v5957
  %v6112 = vunpack.c.l.b16 %v5958
  %v6113 = vunpack.c.l.b16 %v5959
  %v6114 = vunpack.c.l.b16 %v5960
  %v6115 = vunpack.c.l.b16 %v5961
  %v6116 = vunpack.c.l.b16 %v5962
  %v6117 = vunpack.c.l.b16 %v5963
  %v6118 = vunpack.c.l.b16 %v5964
  %v6119 = vunpack.c.l.b16 %v5965
  %v6120 = vunpack.c.l.b16 %v5966
  %v6121 = vunpack.c.l.b16 %v5967
  %v6122 = vunpack.c.l.b16 %v5968
  %v6123 = vpack.c.b16 %v6049, %v6048
  %v6124 = vpack.c.b16 %v6051, %v6050
  %v6125 = vpack.c.b16 %v6053, %v6052
  %v6126 = vpack.c.b16 %v6055, %v6054
  %v6127 = vpack.c.b16 %v6057, %v6056
  %v6128 = vpack.c.b16 %v6059, %v6058
  %v6129 = vpack.c.b16 %v6061, %v6060
  %v6130 = vpack.c.b16 %v6063, %v6062
  %v6131 = vpack.c.b16 %v6065, %v6064
  %v6132 = vpack.c.b16 %v6067, %v6066
  %v6133 = vpack.c.b16 %v6069, %v6068
  %v6134 = vpack.c.b16 %v6071, %v6070
  %v6135 = vpack.c.b16 %v6073, %v6072
  %v6136 = vpack.c.b16 %v6075, %v6074
  %v6137 = vpack.c.b16 %v6077, %v6076
  %v6138 = vpack.c.b16 %v6079, %v6078
  %v6139 = vpack.c.b16 %v6081, %v6080
  %v6140 = vpack.c.b16 %v6083, %v6082
  %v6141 = vpack.c.b16 %v6085, %v6084
  %v6142 = vpack.c.b16 %v6087, %v6086
  %v6143 = vpack.c.b16 %v6089, %v6088
  %v6144 = vpack.c.b16 %v6091, %v6090
  %v6145 = vpack.c.b16 %v6093, %v6092
  %v6146 = vpack.c.b16 %v6095, %v6094
  %v6147 = vpack.c.b16 %v6097, %v6096
  %v6148 = vpack.c.b16 %v6099, %v6098
  %v6149 = vpack.c.b16 %v6101, %v6100
  %v6150 = vpack.c.b16 %v6103, %v6102
  %v6151 = vpack.c.b16 %v6105, %v6104
  %v6152 = vpack.c.b16 %v6107, %v6106
  %v6153 = vpack.c.b16 %v6109, %v6108
  %v6154 = vpack.c.b16 %v6111, %v6110
  %v6155 = vpack.c.b16 %v6113, %v6112
  %v6156 = vpack.c.b16 %v6115, %v6114
  %v6157 = vpack.c.b16 %v6117, %v6116
  %v6158 = vpack.c.b16 %v6119, %v6118
  %v6159 = vpack.c.b16 %v6121, %v6120
  %v6160 = vpack.c.b16 %v6122, %v6122
  %vm6198 = vcmask 719872
  %v6200 = vsel %vm6198, %v5893, 0
  %vm6202 = vcmask 1043456
  %v6204 = vsel %vm6202, %v6160, 0
  %6206 = vmatpush.bf16.msra.mxu0 %v6130
  %6207 = vmatpush.bf16.msra.mxu0 %v6129
  %6208 = vmatpush.bf16.msra.mxu0 %v6128
  %6209 = vmatpush.bf16.msra.mxu0 %v6127
  %6210 = vmatpush.bf16.msra.mxu0 %v6126
  %6211 = vmatpush.bf16.msra.mxu0 %v6125
  %6212 = vmatpush.bf16.msra.mxu0 %v6124
  %6213 = vmatpush.bf16.msra.mxu0 %v6123
  %6214 = vmatmul.bf16.gmra.mxu0 %v5889
  %v6215 = vpop.f32.mrf.mxu0
  %v6216 = vadd.f32 %v5971, %v6215
  %v6217 = vpop.f32.mrf.mxu0
  %6218 = vdwg.mxu0
  %6219 = vmatpush.bf16.msra.mxu0 %v6138
  %6220 = vmatpush.bf16.msra.mxu0 %v6137
  %6221 = vmatpush.bf16.msra.mxu0 %v6136
  %6222 = vmatpush.bf16.msra.mxu0 %v6135
  %6223 = vmatpush.bf16.msra.mxu0 %v6134
  %6224 = vmatpush.bf16.msra.mxu0 %v6133
  %6225 = vmatpush.bf16.msra.mxu0 %v6132
  %6226 = vmatpush.bf16.msra.mxu0 %v6131
  %6227 = vmatmul.bf16.gmra.mxu0 %v5890
  %v6228 = vpop.f32.mrf.mxu0
  %v6229 = vadd.f32 %v6216, %v6228
  %v6230 = vpop.f32.mrf.mxu0
  %6231 = vdwg.mxu0
  %6232 = vmatpush.bf16.msra.mxu0 %v6146
  %6233 = vmatpush.bf16.msra.mxu0 %v6145
  %6234 = vmatpush.bf16.msra.mxu0 %v6144
  %6235 = vmatpush.bf16.msra.mxu0 %v6143
  %6236 = vmatpush.bf16.msra.mxu0 %v6142
  %6237 = vmatpush.bf16.msra.mxu0 %v6141
  %6238 = vmatpush.bf16.msra.mxu0 %v6140
  %6239 = vmatpush.bf16.msra.mxu0 %v6139
  %6240 = vmatmul.bf16.gmra.mxu0 %v5891
  %v6241 = vpop.f32.mrf.mxu0
  %v6242 = vadd.f32 %v6229, %v6241
  %v6243 = vpop.f32.mrf.mxu0
  %6244 = vdwg.mxu0
  %6245 = vmatpush.bf16.msra.mxu0 %v6154
  %6246 = vmatpush.bf16.msra.mxu0 %v6153
  %6247 = vmatpush.bf16.msra.mxu0 %v6152
  %6248 = vmatpush.bf16.msra.mxu0 %v6151
  %6249 = vmatpush.bf16.msra.mxu0 %v6150
  %6250 = vmatpush.bf16.msra.mxu0 %v6149
  %6251 = vmatpush.bf16.msra.mxu0 %v6148
  %6252 = vmatpush.bf16.msra.mxu0 %v6147
  %6253 = vmatmul.bf16.gmra.mxu0 %v5892
  %v6254 = vpop.f32.mrf.mxu0
  %v6255 = vadd.f32 %v6242, %v6254
  %v6256 = vpop.f32.mrf.mxu0
  %6257 = vdwg.mxu0
  %6258 = vmatpush.bf16.msra.mxu0 0
  %6259 = vmatpush.bf16.msra.mxu0 0
  %6260 = vmatpush.bf16.msra.mxu0 %v6204
  %6261 = vmatpush.bf16.msra.mxu0 %v6159
  %6262 = vmatpush.bf16.msra.mxu0 %v6158
  %6263 = vmatpush.bf16.msra.mxu0 %v6157
  %6264 = vmatpush.bf16.msra.mxu0 %v6156
  %6265 = vmatpush.bf16.msra.mxu0 %v6155
  %6266 = vmatmul.bf16.gmra.mxu0 %v6200
  %v6267 = vpop.f32.mrf.mxu0
  %v6268 = vadd.f32 %v6255, %v6267
  %v6269 = vpop.f32.mrf.mxu0
  %6270 = vdwg.mxu0
  %v6271 = vpack.c.bf16 %v6268, %v6268
  %v6272 = vld [vmem:[%s5] sm:$0xf]
  %v6273 = vld [vmem:[%s5 + $0x4] sm:$0xf]
  %v6274 = vld [vmem:[%s5 + $0x8] sm:$0xf]
  %v6275 = vld [vmem:[%s5 + $0xc] sm:$0xf]
  %v6276 = vld [vmem:[%s5 + $0x10] sm:$0xf]
  %v6277 = vld [vmem:[%s5 + $0x14] sm:$0xf]
  %v6278 = vld [vmem:[%s5 + $0x18] sm:$0xf]
  %v6279 = vld [vmem:[%s5 + $0x1c] sm:$0xf]
  %v6280 = vld [vmem:[%s5 + $0x20] sm:$0xf]
  %v6281 = vld [vmem:[%s5 + $0x24] sm:$0xf]
  %v6282 = vld [vmem:[%s5 + $0x28] sm:$0xf]
  %v6283 = vld [vmem:[%s5 + $0x2c] sm:$0xf]
  %v6284 = vld [vmem:[%s5 + $0x30] sm:$0xf]
  %v6285 = vld [vmem:[%s5 + $0x34] sm:$0xf]
  %v6286 = vld [vmem:[%s5 + $0x38] sm:$0xf]
  %v6287 = vld [vmem:[%s6] sm:$0x1]
  %v6289 = vperm.slane %v6287, 0
  %v6306 = vunpack.c.l.b16 %v6272
  %v6307 = vunpack.c.l.b16 %v6273
  %v6308 = vunpack.c.l.b16 %v6274
  %v6309 = vunpack.c.l.b16 %v6275
  %v6310 = vunpack.c.l.b16 %v6276
  %v6311 = vunpack.c.l.b16 %v6277
  %v6312 = vunpack.c.l.b16 %v6278
  %v6313 = vunpack.c.l.b16 %v6279
  %v6314 = vunpack.c.l.b16 %v6280
  %v6315 = vunpack.c.l.b16 %v6281
  %v6316 = vunpack.c.l.b16 %v6282
  %v6317 = vunpack.c.l.b16 %v6283
  %v6318 = vunpack.c.l.b16 %v6284
  %v6319 = vunpack.c.l.b16 %v6285
  %v6320 = vunpack.c.l.b16 %v6286
  %v6321 = vpack.c.b16 %v6307, %v6306
  %v6322 = vpack.c.b16 %v6309, %v6308
  %v6323 = vpack.c.b16 %v6311, %v6310
  %v6324 = vpack.c.b16 %v6313, %v6312
  %v6325 = vpack.c.b16 %v6315, %v6314
  %v6326 = vpack.c.b16 %v6317, %v6316
  %v6327 = vpack.c.b16 %v6319, %v6318
  %v6328 = vpack.c.b16 %v6320, %v6320
  %vm6336 = vcmask 982016
  %v6338 = vsel %vm6336, %v6271, 0
  %v6341 = vsel %vm6202, %v6328, 0
  %6343 = vmatpush.bf16.msra.mxu0 %v6341
  %6344 = vmatpush.bf16.msra.mxu0 %v6327
  %6345 = vmatpush.bf16.msra.mxu0 %v6326
  %6346 = vmatpush.bf16.msra.mxu0 %v6325
  %6347 = vmatpush.bf16.msra.mxu0 %v6324
  %6348 = vmatpush.bf16.msra.mxu0 %v6323
  %6349 = vmatpush.bf16.msra.mxu0 %v6322
  %6350 = vmatpush.bf16.msra.mxu0 %v6321
  %6351 = vmatmul.bf16.gmra.mxu0 %v6338
  %v6352 = vpop.f32.mrf.mxu0
  %v6353 = vadd.f32 %v6289, %v6352
  %v6354 = vpop.f32.mrf.mxu0
  %6355 = vdwg.mxu0
  %vm6356 = vcmask 80896
  %v6357 = vsel %vm6356, %v6353, -inf
  %6358 = vmax.xlane.f32.xlu0 %v6357
  %v6359 = vpop.xlane.xlu0 %6358
  %v6360 = vsub.f32 %v6353, %v6359
  %v6361 = vmul.f32 %v6360, 1.442695
  %v6362 = vpow.pop %v6361
  %v6363 = vsel %vm6356, %v6362, 0.0
  %6364 = vadd.xlane.f32.xlu0 %v6363
  %v6365 = vpop.xlane.xlu0 %6364
  %v6366 = vrcp.pop %v6365
  %v6367 = vmul.f32 %v6365, %v6366
  %v6368 = vsub.f32 1.0, %v6367
  %v6369 = vmul.f32 %v6366, %v6368
  %v6370 = vadd.f32 %v6366, %v6369
  %vm6371 = vweird.f32 %v6365
  %vm6372 = vweird.f32 %v6366
  %vm6373 = vmor %vm6371, %vm6372
  %v6374 = vsel %vm6373, %v6366, %v6370
  %v6375 = vand.u32 2147483647, %v6365
  %vm6376 = vcmp.eq.f32.partialorder %v6375, 8.507059e+37
  %v6377 = vand.u32 %v6365, 2147483648
  %v6378 = vor.u32 1.1754944e-38, %v6377
  %v6379 = vsel %vm6376, %v6378, %v6374
  %v6380 = vmul.f32 %v6362, %v6379
  %6381 = vst.msk [vmem:[%s7] sm:$0xff] %vm6356, %v6380
  // Predicated region
  $region30: #{fashion_cnn_forward.5} parent=0 // pred_check
    _
  $region31: #{fashion_cnn_forward.5} parent=0 // pred_check_branch
    %6383 = sbr.rel (0) target = $region33
  $region32: #{fashion_cnn_forward.5} parent=0 // pred_region
    _
  $region33: #{fashion_cnn_forward.5} parent=0 // pred_fallthru
    _
  // Predicated region
  $region34: #{fashion_cnn_forward.5} parent=0 // pred_check
    _
  $region35: #{fashion_cnn_forward.5} parent=0 // pred_check_branch
    %6385 = sbr.rel (0) target = $region37
  $region36: #{fashion_cnn_forward.5} parent=0 // pred_region
    _
  $region37: #{fashion_cnn_forward.5} parent=0 // pred_fallthru
    _

</llo_original>
